<compile_context>
chip_gen: v5e
topology: v5e:2x2
jax: 0.10.0
libtpu: 0.0.40
codegen_flags: <defaults>
</compile_context>

<pallas_src>
import math

import jax
import jax.numpy as jnp
from jax.experimental import pallas as pl
from jax.experimental.pallas import tpu as pltpu


# ----------------------------------------------------------------------------
# Pallas kernel (single fused kernel: all conv layers + concat/mean)
# ----------------------------------------------------------------------------
def _layer_norm(x, w, b, eps=1e-5):
    mu = jnp.mean(x, axis=-1, keepdims=True)
    var = jnp.mean(jnp.square(x - mu), axis=-1, keepdims=True)
    return (x - mu) * jax.lax.rsqrt(var + eps) * w + b


def _make_fused_kernel(n_cat, n_heads):
    """Build the fused TableEncoder kernel (closes over static config)."""

    def kernel(x_cat_ref, x_num_ref, wqkv_ref, wo_ref, w1_ref, w2_ref,
               misc_ref, o_ref):
        bt, s_pad, d = x_cat_ref.shape
        n_layers = wqkv_ref.shape[0]
        n_num = x_num_ref.shape[1]
        hd = d // n_heads
        bs = bt * s_pad

        # Flatten the batch tile: all projection / FFN matmuls run on [Bt*S, D].
        x = x_cat_ref[...].astype(jnp.float32).reshape(bs, d)

        # Additive softmax bias masking the padded key columns (hoisted).
        key_ids = jax.lax.broadcasted_iota(jnp.int32, (1, 1, s_pad), 2)
        key_bias = jnp.where(key_ids < n_cat, 0.0, -1e30).astype(jnp.float32)

        for l in range(n_layers):
            misc = misc_ref[l]                       # [12, D] packed biases / LN
            bq, bk, bv = misc[0:1], misc[1:2], misc[2:3]
            bo, b1, b2 = misc[3:4], misc[4:5], misc[5:6]
            ln1w, ln1b = misc[6:7], misc[7:8]
            ln2w, ln2b = misc[8:9], misc[9:10]
            lnfw, lnfb = misc[10:11], misc[11:12]

            # Fused QKV projection (1/sqrt(hd) already folded into Wq / bq).
            qkv = jnp.dot(x, wqkv_ref[l], preferred_element_type=jnp.float32)
            q = (qkv[:, :d] + bq).reshape(bt, s_pad, d)
            k = (qkv[:, d:2 * d] + bk).reshape(bt, s_pad, d)
            v = (qkv[:, 2 * d:] + bv).reshape(bt, s_pad, d)

            # Tiny per-head softmax attention, batched over the batch tile.
            heads = []
            for h in range(n_heads):
                sl = slice(h * hd, (h + 1) * hd)
                sc = jnp.einsum("bie,bje->bij", q[..., sl], k[..., sl],
                                preferred_element_type=jnp.float32) + key_bias
                m = jnp.max(sc, axis=-1, keepdims=True)
                e = jnp.exp(sc - m)
                p = e * pl.reciprocal(jnp.sum(e, axis=-1, keepdims=True),
                                      approx=True)
                heads.append(jnp.einsum("bij,bje->bie", p, v[..., sl],
                                        preferred_element_type=jnp.float32))
            attn = jnp.concatenate(heads, axis=-1).reshape(bs, d)
            attn = jnp.dot(attn, wo_ref[l],
                           preferred_element_type=jnp.float32) + bo

            # Post-norm encoder layer + final TransformerEncoder LayerNorm.
            x1 = _layer_norm(x + attn, ln1w, ln1b)
            h1 = jnp.maximum(
                jnp.dot(x1, w1_ref[l], preferred_element_type=jnp.float32) + b1,
                0.0)
            ff = jnp.dot(h1, w2_ref[l], preferred_element_type=jnp.float32) + b2
            x2 = _layer_norm(x1 + ff, ln2w, ln2b)
            x = _layer_norm(x2, lnfw, lnfb)

        # torch.cat(dict.values(), dim=1).mean(dim=1)  ->  masked sum + scale.
        x3 = x.reshape(bt, s_pad, d)
        col_ids = jax.lax.broadcasted_iota(jnp.int32, (1, s_pad, 1), 1)
        col_mask = (col_ids < n_cat).astype(jnp.float32)
        cat_sum = jnp.sum(x3 * col_mask, axis=1)                        # [Bt, D]
        num_sum = jnp.sum(x_num_ref[...].astype(jnp.float32), axis=1)   # [Bt, D]
        inv = 1.0 / float(n_cat + n_num)
        o_ref[...] = ((cat_sum + num_sum) * inv).astype(o_ref.dtype)

    return kernel


# ----------------------------------------------------------------------------
# Wrapper: weight fusion / packing + pallas_call
# ----------------------------------------------------------------------------
def _pack_layer_params(layers, d, n_heads):
    """Fuse per-head projections into whole-model matmuls + pack small params."""
    hd = d // n_heads
    scale = 1.0 / math.sqrt(hd)
    wqkv, wo, w1, w2, misc = [], [], [], [], []
    for lp in layers:
        wq = jnp.transpose(lp["wq"], (1, 0, 2)).reshape(d, d) * scale
        wk = jnp.transpose(lp["wk"], (1, 0, 2)).reshape(d, d)
        wv = jnp.transpose(lp["wv"], (1, 0, 2)).reshape(d, d)
        wqkv.append(jnp.concatenate([wq, wk, wv], axis=1))             # [D, 3D]
        wo.append(lp["wo"].reshape(d, d))                               # [D, D]
        w1.append(lp["w1"])
        w2.append(lp["w2"])
        misc.append(jnp.concatenate([
            lp["bq"].reshape(1, d) * scale, lp["bk"].reshape(1, d),
            lp["bv"].reshape(1, d), lp["bo"], lp["b1"], lp["b2"],
            lp["ln1w"], lp["ln1b"], lp["ln2w"], lp["ln2b"],
            lp["lnfw"], lp["lnfb"]], axis=0))                           # [12, D]
    return (jnp.stack(wqkv), jnp.stack(wo), jnp.stack(w1), jnp.stack(w2),
            jnp.stack(misc))


def table_encoder_forward(params, cat_idx, num_raw, *, block_b=None):
    """cat_idx: int32 [B, n_cat]; num_raw: f32 [B, n_num]  ->  f32 [B, D]."""
    B, n_cat = cat_idx.shape
    n_num = num_raw.shape[1]
    D = params["w_num"].shape[1]
    H = params["layers"][0]["wq"].shape[0]

    # --- pre-encoder (glue, plain JAX): embedding lookup + per-column affine ---
    x_cat = jnp.stack([params["emb"][j][cat_idx[:, j]] for j in range(n_cat)],
                      axis=1).astype(jnp.float32)                   # [B, n_cat, D]
    x_num = (num_raw[:, :, None] * params["w_num"][None]
             + params["b_num"][None]).astype(jnp.float32)           # [B, n_num, D]

    # --- pad categorical columns to a sublane-aligned count (masked in-kernel) ---
    s_pad = max(8, -(-n_cat // 8) * 8)
    if s_pad != n_cat:
        x_cat = jnp.pad(x_cat, ((0, 0), (0, s_pad - n_cat), (0, 0)))

    # --- batch tile: amortize per-step overhead; keep >=2 grid steps when B
    #     allows it (v7x megacore); sublane-aligned rows ---
    if block_b is None:
        block_b = max(8, min(256, ((B + 15) // 16) * 8))
    bp = -(-B // block_b) * block_b
    if bp != B:
        x_cat = jnp.pad(x_cat, ((0, bp - B), (0, 0), (0, 0)))
        x_num = jnp.pad(x_num, ((0, bp - B), (0, 0), (0, 0)))

    wqkv, wo, w1, w2, misc = _pack_layer_params(params["layers"], D, H)

    out = pl.pallas_call(
        _make_fused_kernel(n_cat, H),
        out_shape=jax.ShapeDtypeStruct((bp, D), jnp.float32),
        grid=(bp // block_b,),
        in_specs=[
            pl.BlockSpec((block_b, s_pad, D), lambda b: (b, 0, 0)),
            pl.BlockSpec((block_b, n_num, D), lambda b: (b, 0, 0)),
            pl.BlockSpec(wqkv.shape, lambda b: (0, 0, 0)),
            pl.BlockSpec(wo.shape, lambda b: (0, 0, 0)),
            pl.BlockSpec(w1.shape, lambda b: (0, 0, 0)),
            pl.BlockSpec(w2.shape, lambda b: (0, 0, 0)),
            pl.BlockSpec(misc.shape, lambda b: (0, 0, 0)),
        ],
        out_specs=pl.BlockSpec((block_b, D), lambda b: (b, 0)),
        compiler_params=pltpu.CompilerParams(
            dimension_semantics=("parallel",)),
    )(x_cat, x_num, wqkv, wo, w1, w2, misc)
    return out[:B]


# ----------------------------------------------------------------------------
# Parameter init (deterministic, synthetic)
# ----------------------------------------------------------------------------
def init_table_encoder_params(key, *, out_dim, num_layers, num_heads,
                              cat_cardinalities, n_num):
    D = out_dim
    hd = D // num_heads
    keys = iter(jax.random.split(key, 256))

    def nrm(shape, s=0.05):
        return jax.random.normal(next(keys), shape, jnp.float32) * s

    params = {
        "emb": [nrm((c, D), 0.1) for c in cat_cardinalities],   # pre-encoder
        "w_num": nrm((n_num, D), 0.1),
        "b_num": nrm((n_num, D), 0.02),
        "layers": [],
    }
    for _ in range(num_layers):
        params["layers"].append(dict(
            wq=nrm((num_heads, D, hd)), bq=nrm((num_heads, 1, hd), 0.01),
            wk=nrm((num_heads, D, hd)), bk=nrm((num_heads, 1, hd), 0.01),
            wv=nrm((num_heads, D, hd)), bv=nrm((num_heads, 1, hd), 0.01),
            wo=nrm((num_heads, hd, D)), bo=nrm((1, D), 0.01),
            w1=nrm((D, D)), b1=nrm((1, D), 0.01),
            w2=nrm((D, D)), b2=nrm((1, D), 0.01),
            ln1w=jnp.ones((1, D), jnp.float32), ln1b=jnp.zeros((1, D), jnp.float32),
            ln2w=jnp.ones((1, D), jnp.float32), ln2b=jnp.zeros((1, D), jnp.float32),
            lnfw=jnp.ones((1, D), jnp.float32), lnfb=jnp.zeros((1, D), jnp.float32),
        ))
    return params


# ----------------------------------------------------------------------------
# Pure-JAX reference (for correctness check; uses the UNfused weights)
# ----------------------------------------------------------------------------
def _ref_ln(x, w, b, eps=1e-5):
    mu = x.mean(-1, keepdims=True)
    var = ((x - mu) ** 2).mean(-1, keepdims=True)
    return (x - mu) * jax.lax.rsqrt(var + eps) * w + b


def _ref_layer(x, lp):
    H, _, hd = lp["wq"].shape
    attn = jnp.zeros_like(x)
    for h in range(H):
        q = x @ lp["wq"][h] + lp["bq"][h]
        k = x @ lp["wk"][h] + lp["bk"][h]
        v = x @ lp["wv"][h] + lp["bv"][h]
        s = jnp.einsum("bqe,bke->bqk", q, k) / math.sqrt(hd)
        p = jax.nn.softmax(s, axis=-1)
        attn = attn + jnp.einsum("bqk,bke->bqe", p, v) @ lp["wo"][h]
    attn = attn + lp["bo"]
    x1 = _ref_ln(x + attn, lp["ln1w"], lp["ln1b"])
    ff = jnp.maximum(x1 @ lp["w1"] + lp["b1"], 0.0) @ lp["w2"] + lp["b2"]
    x2 = _ref_ln(x1 + ff, lp["ln2w"], lp["ln2b"])
    return _ref_ln(x2, lp["lnfw"], lp["lnfb"])


def reference_forward(params, cat_idx, num_raw):
    n_cat = cat_idx.shape[1]
    x_cat = jnp.stack([params["emb"][j][cat_idx[:, j]] for j in range(n_cat)], axis=1)
    x_num = num_raw[:, :, None] * params["w_num"][None] + params["b_num"][None]
    for lp in params["layers"]:
        x_cat = _ref_layer(x_cat, lp)
    return jnp.concatenate([x_cat, x_num], axis=1).mean(axis=1)


# ----------------------------------------------------------------------------
if __name__ == "__main__":
    B, n_cat, n_num = 16, 5, 3         # small table: 5 categorical + 3 numerical
    D, H, num_layers = 32, 4, 2        # out_dim=32, 4 heads, 2 conv layers
    cards = [7, 5, 11, 4, 9]

    key = jax.random.PRNGKey(0)
    kp, kc, kn = jax.random.split(key, 3)
    params = init_table_encoder_params(
        kp, out_dim=D, num_layers=num_layers, num_heads=H,
        cat_cardinalities=cards, n_num=n_num)

    cat_idx = jnp.stack(
        [jax.random.randint(jax.random.fold_in(kc, j), (B,), 0, cards[j])
         for j in range(n_cat)], axis=1).astype(jnp.int32)
    num_raw = jax.random.normal(kn, (B, n_num), jnp.float32)

    out = table_encoder_forward(params, cat_idx, num_raw)
    out = jax.block_until_ready(out)

    ref = reference_forward(params, cat_idx, num_raw)
    assert out.shape == (B, D)
    # tolerance accounts for the approx (EUP) reciprocal in the softmax
    assert jnp.allclose(out, ref, rtol=2e-3, atol=2e-3), \
        "Pallas output mismatch vs reference"
    print("KERNEL_OK")
</pallas_src>

<mosaic_0001>
module attributes {stable_mosaic.version = 11 : i64} {
  func.func @kernel(%arg0: i32, %arg1: memref<8x8x32xf32, #tpu.memory_space<vmem>>, %arg2: memref<8x3x32xf32, #tpu.memory_space<vmem>>, %arg3: memref<2x32x96xf32, #tpu.memory_space<vmem>>, %arg4: memref<2x32x32xf32, #tpu.memory_space<vmem>>, %arg5: memref<2x32x32xf32, #tpu.memory_space<vmem>>, %arg6: memref<2x32x32xf32, #tpu.memory_space<vmem>>, %arg7: memref<2x12x32xf32, #tpu.memory_space<vmem>>, %arg8: memref<8x32xf32, #tpu.memory_space<vmem>>) attributes {dimension_semantics = [#tpu.dimension_semantics<parallel>], iteration_bounds = array<i64: 2>, scalar_prefetch = 0 : i64, scratch_operands = 0 : i64, tpu.core_type = #tpu.core_type<tc>, window_params = [{transform_indices = @transform_0, window_bounds = array<i64: 8, 8, 32>}, {transform_indices = @transform_1, window_bounds = array<i64: 8, 3, 32>}, {pipeline_mode = #tpu.pipeline_mode<synchronous>, transform_indices = @transform_2, window_bounds = array<i64: 2, 32, 96>}, {pipeline_mode = #tpu.pipeline_mode<synchronous>, transform_indices = @transform_3, window_bounds = array<i64: 2, 32, 32>}, {pipeline_mode = #tpu.pipeline_mode<synchronous>, transform_indices = @transform_4, window_bounds = array<i64: 2, 32, 32>}, {pipeline_mode = #tpu.pipeline_mode<synchronous>, transform_indices = @transform_5, window_bounds = array<i64: 2, 32, 32>}, {pipeline_mode = #tpu.pipeline_mode<synchronous>, transform_indices = @transform_6, window_bounds = array<i64: 2, 12, 32>}, {transform_indices = @transform_7, window_bounds = array<i64: 8, 32>}]} {
    %c0 = arith.constant 0 : index
    %c0_0 = arith.constant 0 : index
    %c0_1 = arith.constant 0 : index
    %0 = vector.load %arg1[%c0, %c0_0, %c0_1] : memref<8x8x32xf32, #tpu.memory_space<vmem>>, vector<8x8x32xf32>
    %1 = vector.shape_cast %0 : vector<8x8x32xf32> to vector<64x32xf32>
    %2 = tpu.iota {dimensions = array<i32: 2>} : vector<1x1x8xi32>
    %c5_i32 = arith.constant 5 : i32
    %3 = vector.broadcast %c5_i32 : i32 to vector<1x1x8xi32>
    %4 = arith.cmpi slt, %2, %3 : vector<1x1x8xi32>
    %cst = arith.constant 0.000000e+00 : f32
    %cst_2 = arith.constant -1.000000e+30 : f32
    %5 = vector.broadcast %cst : f32 to vector<1x1x8xf32>
    %6 = vector.broadcast %cst_2 : f32 to vector<1x1x8xf32>
    %7 = arith.select %4, %5, %6 : vector<1x1x8xi1>, vector<1x1x8xf32>
    %c0_3 = arith.constant 0 : index
    %c0_4 = arith.constant 0 : index
    %c0_5 = arith.constant 0 : index
    %8 = vector.load %arg7[%c0_3, %c0_4, %c0_5] : memref<2x12x32xf32, #tpu.memory_space<vmem>>, vector<1x12x32xf32>
    %9 = vector.shape_cast %8 : vector<1x12x32xf32> to vector<12x32xf32>
    %10 = vector.extract_strided_slice %9 {offsets = [0, 0], sizes = [1, 32], strides = [1, 1]} : vector<12x32xf32> to vector<1x32xf32>
    %11 = vector.extract_strided_slice %9 {offsets = [1, 0], sizes = [1, 32], strides = [1, 1]} : vector<12x32xf32> to vector<1x32xf32>
    %12 = vector.extract_strided_slice %9 {offsets = [2, 0], sizes = [1, 32], strides = [1, 1]} : vector<12x32xf32> to vector<1x32xf32>
    %13 = vector.extract_strided_slice %9 {offsets = [3, 0], sizes = [1, 32], strides = [1, 1]} : vector<12x32xf32> to vector<1x32xf32>
    %14 = vector.extract_strided_slice %9 {offsets = [4, 0], sizes = [1, 32], strides = [1, 1]} : vector<12x32xf32> to vector<1x32xf32>
    %15 = vector.extract_strided_slice %9 {offsets = [5, 0], sizes = [1, 32], strides = [1, 1]} : vector<12x32xf32> to vector<1x32xf32>
    %16 = vector.extract_strided_slice %9 {offsets = [6, 0], sizes = [1, 32], strides = [1, 1]} : vector<12x32xf32> to vector<1x32xf32>
    %17 = vector.extract_strided_slice %9 {offsets = [7, 0], sizes = [1, 32], strides = [1, 1]} : vector<12x32xf32> to vector<1x32xf32>
    %18 = vector.extract_strided_slice %9 {offsets = [8, 0], sizes = [1, 32], strides = [1, 1]} : vector<12x32xf32> to vector<1x32xf32>
    %19 = vector.extract_strided_slice %9 {offsets = [9, 0], sizes = [1, 32], strides = [1, 1]} : vector<12x32xf32> to vector<1x32xf32>
    %20 = vector.extract_strided_slice %9 {offsets = [10, 0], sizes = [1, 32], strides = [1, 1]} : vector<12x32xf32> to vector<1x32xf32>
    %21 = vector.extract_strided_slice %9 {offsets = [11, 0], sizes = [1, 32], strides = [1, 1]} : vector<12x32xf32> to vector<1x32xf32>
    %c0_6 = arith.constant 0 : index
    %c0_7 = arith.constant 0 : index
    %c0_8 = arith.constant 0 : index
    %22 = vector.load %arg3[%c0_6, %c0_7, %c0_8] : memref<2x32x96xf32, #tpu.memory_space<vmem>>, vector<1x32x96xf32>
    %23 = vector.shape_cast %22 : vector<1x32x96xf32> to vector<32x96xf32>
    %cst_9 = arith.constant dense<0.000000e+00> : vector<64x96xf32>
    %24 = tpu.matmul %1, %23, %cst_9 {dimension_numbers = #tpu.dot_dimension_numbers<[1], [0], [0], [1], [0, 0, 1, 1], [], []>} : vector<64x32xf32>, vector<32x96xf32>, vector<64x96xf32> -> vector<64x96xf32>
    %25 = vector.extract_strided_slice %24 {offsets = [0, 0], sizes = [64, 32], strides = [1, 1]} : vector<64x96xf32> to vector<64x32xf32>
    %26 = vector.broadcast %10 : vector<1x32xf32> to vector<64x32xf32>
    %27 = arith.addf %25, %26 : vector<64x32xf32>
    %28 = vector.shape_cast %27 : vector<64x32xf32> to vector<8x8x32xf32>
    %29 = vector.extract_strided_slice %24 {offsets = [0, 32], sizes = [64, 32], strides = [1, 1]} : vector<64x96xf32> to vector<64x32xf32>
    %30 = vector.broadcast %11 : vector<1x32xf32> to vector<64x32xf32>
    %31 = arith.addf %29, %30 : vector<64x32xf32>
    %32 = vector.shape_cast %31 : vector<64x32xf32> to vector<8x8x32xf32>
    %33 = vector.extract_strided_slice %24 {offsets = [0, 64], sizes = [64, 32], strides = [1, 1]} : vector<64x96xf32> to vector<64x32xf32>
    %34 = vector.broadcast %12 : vector<1x32xf32> to vector<64x32xf32>
    %35 = arith.addf %33, %34 : vector<64x32xf32>
    %36 = vector.shape_cast %35 : vector<64x32xf32> to vector<8x8x32xf32>
    %37 = vector.extract_strided_slice %28 {offsets = [0, 0, 0], sizes = [8, 8, 8], strides = [1, 1, 1]} : vector<8x8x32xf32> to vector<8x8x8xf32>
    %38 = vector.extract_strided_slice %32 {offsets = [0, 0, 0], sizes = [8, 8, 8], strides = [1, 1, 1]} : vector<8x8x32xf32> to vector<8x8x8xf32>
    "tpu.trace_start"() <{level = 10 : i32, message = "bie,bje->bij"}> : () -> ()
    %cst_10 = arith.constant dense<0.000000e+00> : vector<8x8x8xf32>
    %39 = tpu.matmul %37, %38, %cst_10 {dimension_numbers = #tpu.dot_dimension_numbers<[2], [2], [1], [1], [0, 0, 0, 1, 1, 1], [0], [0]>} : vector<8x8x8xf32>, vector<8x8x8xf32>, vector<8x8x8xf32> -> vector<8x8x8xf32>
    "tpu.trace_stop"() : () -> ()
    %40 = vector.broadcast %7 : vector<1x1x8xf32> to vector<8x8x8xf32>
    %41 = arith.addf %39, %40 : vector<8x8x8xf32>
    %cst_11 = arith.constant dense<0xFF800000> : vector<8x8xf32>
    %42 = vector.multi_reduction <maximumf>, %41, %cst_11 [2] : vector<8x8x8xf32> to vector<8x8xf32>
    %43 = vector.shape_cast %42 : vector<8x8xf32> to vector<8x8x1xf32>
    %44 = vector.broadcast %43 : vector<8x8x1xf32> to vector<8x8x8xf32>
    %45 = arith.subf %41, %44 : vector<8x8x8xf32>
    %46 = math.exp %45 : vector<8x8x8xf32>
    %cst_12 = arith.constant dense<0.000000e+00> : vector<8x8xf32>
    %47 = vector.multi_reduction <add>, %46, %cst_12 [2] : vector<8x8x8xf32> to vector<8x8xf32>
    %48 = vector.shape_cast %47 : vector<8x8xf32> to vector<8x8x1xf32>
    %49 = tpu.reciprocal %48 {approx = true} : vector<8x8x1xf32> -> vector<8x8x1xf32>
    %50 = vector.broadcast %49 : vector<8x8x1xf32> to vector<8x8x8xf32>
    %51 = arith.mulf %46, %50 : vector<8x8x8xf32>
    %52 = vector.extract_strided_slice %36 {offsets = [0, 0, 0], sizes = [8, 8, 8], strides = [1, 1, 1]} : vector<8x8x32xf32> to vector<8x8x8xf32>
    "tpu.trace_start"() <{level = 10 : i32, message = "bij,bje->bie"}> : () -> ()
    %cst_13 = arith.constant dense<0.000000e+00> : vector<8x8x8xf32>
    %53 = tpu.matmul %51, %52, %cst_13 {dimension_numbers = #tpu.dot_dimension_numbers<[2], [1], [1], [2], [0, 0, 0, 1, 1, 2], [0], [0]>} : vector<8x8x8xf32>, vector<8x8x8xf32>, vector<8x8x8xf32> -> vector<8x8x8xf32>
    "tpu.trace_stop"() : () -> ()
    %54 = vector.extract_strided_slice %28 {offsets = [0, 0, 8], sizes = [8, 8, 8], strides = [1, 1, 1]} : vector<8x8x32xf32> to vector<8x8x8xf32>
    %55 = vector.extract_strided_slice %32 {offsets = [0, 0, 8], sizes = [8, 8, 8], strides = [1, 1, 1]} : vector<8x8x32xf32> to vector<8x8x8xf32>
    "tpu.trace_start"() <{level = 10 : i32, message = "bie,bje->bij"}> : () -> ()
    %cst_14 = arith.constant dense<0.000000e+00> : vector<8x8x8xf32>
    %56 = tpu.matmul %54, %55, %cst_14 {dimension_numbers = #tpu.dot_dimension_numbers<[2], [2], [1], [1], [0, 0, 0, 1, 1, 1], [0], [0]>} : vector<8x8x8xf32>, vector<8x8x8xf32>, vector<8x8x8xf32> -> vector<8x8x8xf32>
    "tpu.trace_stop"() : () -> ()
    %57 = vector.broadcast %7 : vector<1x1x8xf32> to vector<8x8x8xf32>
    %58 = arith.addf %56, %57 : vector<8x8x8xf32>
    %cst_15 = arith.constant dense<0xFF800000> : vector<8x8xf32>
    %59 = vector.multi_reduction <maximumf>, %58, %cst_15 [2] : vector<8x8x8xf32> to vector<8x8xf32>
    %60 = vector.shape_cast %59 : vector<8x8xf32> to vector<8x8x1xf32>
    %61 = vector.broadcast %60 : vector<8x8x1xf32> to vector<8x8x8xf32>
    %62 = arith.subf %58, %61 : vector<8x8x8xf32>
    %63 = math.exp %62 : vector<8x8x8xf32>
    %cst_16 = arith.constant dense<0.000000e+00> : vector<8x8xf32>
    %64 = vector.multi_reduction <add>, %63, %cst_16 [2] : vector<8x8x8xf32> to vector<8x8xf32>
    %65 = vector.shape_cast %64 : vector<8x8xf32> to vector<8x8x1xf32>
    %66 = tpu.reciprocal %65 {approx = true} : vector<8x8x1xf32> -> vector<8x8x1xf32>
    %67 = vector.broadcast %66 : vector<8x8x1xf32> to vector<8x8x8xf32>
    %68 = arith.mulf %63, %67 : vector<8x8x8xf32>
    %69 = vector.extract_strided_slice %36 {offsets = [0, 0, 8], sizes = [8, 8, 8], strides = [1, 1, 1]} : vector<8x8x32xf32> to vector<8x8x8xf32>
    "tpu.trace_start"() <{level = 10 : i32, message = "bij,bje->bie"}> : () -> ()
    %cst_17 = arith.constant dense<0.000000e+00> : vector<8x8x8xf32>
    %70 = tpu.matmul %68, %69, %cst_17 {dimension_numbers = #tpu.dot_dimension_numbers<[2], [1], [1], [2], [0, 0, 0, 1, 1, 2], [0], [0]>} : vector<8x8x8xf32>, vector<8x8x8xf32>, vector<8x8x8xf32> -> vector<8x8x8xf32>
    "tpu.trace_stop"() : () -> ()
    %71 = vector.extract_strided_slice %28 {offsets = [0, 0, 16], sizes = [8, 8, 8], strides = [1, 1, 1]} : vector<8x8x32xf32> to vector<8x8x8xf32>
    %72 = vector.extract_strided_slice %32 {offsets = [0, 0, 16], sizes = [8, 8, 8], strides = [1, 1, 1]} : vector<8x8x32xf32> to vector<8x8x8xf32>
    "tpu.trace_start"() <{level = 10 : i32, message = "bie,bje->bij"}> : () -> ()
    %cst_18 = arith.constant dense<0.000000e+00> : vector<8x8x8xf32>
    %73 = tpu.matmul %71, %72, %cst_18 {dimension_numbers = #tpu.dot_dimension_numbers<[2], [2], [1], [1], [0, 0, 0, 1, 1, 1], [0], [0]>} : vector<8x8x8xf32>, vector<8x8x8xf32>, vector<8x8x8xf32> -> vector<8x8x8xf32>
    "tpu.trace_stop"() : () -> ()
    %74 = vector.broadcast %7 : vector<1x1x8xf32> to vector<8x8x8xf32>
    %75 = arith.addf %73, %74 : vector<8x8x8xf32>
    %cst_19 = arith.constant dense<0xFF800000> : vector<8x8xf32>
    %76 = vector.multi_reduction <maximumf>, %75, %cst_19 [2] : vector<8x8x8xf32> to vector<8x8xf32>
    %77 = vector.shape_cast %76 : vector<8x8xf32> to vector<8x8x1xf32>
    %78 = vector.broadcast %77 : vector<8x8x1xf32> to vector<8x8x8xf32>
    %79 = arith.subf %75, %78 : vector<8x8x8xf32>
    %80 = math.exp %79 : vector<8x8x8xf32>
    %cst_20 = arith.constant dense<0.000000e+00> : vector<8x8xf32>
    %81 = vector.multi_reduction <add>, %80, %cst_20 [2] : vector<8x8x8xf32> to vector<8x8xf32>
    %82 = vector.shape_cast %81 : vector<8x8xf32> to vector<8x8x1xf32>
    %83 = tpu.reciprocal %82 {approx = true} : vector<8x8x1xf32> -> vector<8x8x1xf32>
    %84 = vector.broadcast %83 : vector<8x8x1xf32> to vector<8x8x8xf32>
    %85 = arith.mulf %80, %84 : vector<8x8x8xf32>
    %86 = vector.extract_strided_slice %36 {offsets = [0, 0, 16], sizes = [8, 8, 8], strides = [1, 1, 1]} : vector<8x8x32xf32> to vector<8x8x8xf32>
    "tpu.trace_start"() <{level = 10 : i32, message = "bij,bje->bie"}> : () -> ()
    %cst_21 = arith.constant dense<0.000000e+00> : vector<8x8x8xf32>
    %87 = tpu.matmul %85, %86, %cst_21 {dimension_numbers = #tpu.dot_dimension_numbers<[2], [1], [1], [2], [0, 0, 0, 1, 1, 2], [0], [0]>} : vector<8x8x8xf32>, vector<8x8x8xf32>, vector<8x8x8xf32> -> vector<8x8x8xf32>
    "tpu.trace_stop"() : () -> ()
    %88 = vector.extract_strided_slice %28 {offsets = [0, 0, 24], sizes = [8, 8, 8], strides = [1, 1, 1]} : vector<8x8x32xf32> to vector<8x8x8xf32>
    %89 = vector.extract_strided_slice %32 {offsets = [0, 0, 24], sizes = [8, 8, 8], strides = [1, 1, 1]} : vector<8x8x32xf32> to vector<8x8x8xf32>
    "tpu.trace_start"() <{level = 10 : i32, message = "bie,bje->bij"}> : () -> ()
    %cst_22 = arith.constant dense<0.000000e+00> : vector<8x8x8xf32>
    %90 = tpu.matmul %88, %89, %cst_22 {dimension_numbers = #tpu.dot_dimension_numbers<[2], [2], [1], [1], [0, 0, 0, 1, 1, 1], [0], [0]>} : vector<8x8x8xf32>, vector<8x8x8xf32>, vector<8x8x8xf32> -> vector<8x8x8xf32>
    "tpu.trace_stop"() : () -> ()
    %91 = vector.broadcast %7 : vector<1x1x8xf32> to vector<8x8x8xf32>
    %92 = arith.addf %90, %91 : vector<8x8x8xf32>
    %cst_23 = arith.constant dense<0xFF800000> : vector<8x8xf32>
    %93 = vector.multi_reduction <maximumf>, %92, %cst_23 [2] : vector<8x8x8xf32> to vector<8x8xf32>
    %94 = vector.shape_cast %93 : vector<8x8xf32> to vector<8x8x1xf32>
    %95 = vector.broadcast %94 : vector<8x8x1xf32> to vector<8x8x8xf32>
    %96 = arith.subf %92, %95 : vector<8x8x8xf32>
    %97 = math.exp %96 : vector<8x8x8xf32>
    %cst_24 = arith.constant dense<0.000000e+00> : vector<8x8xf32>
    %98 = vector.multi_reduction <add>, %97, %cst_24 [2] : vector<8x8x8xf32> to vector<8x8xf32>
    %99 = vector.shape_cast %98 : vector<8x8xf32> to vector<8x8x1xf32>
    %100 = tpu.reciprocal %99 {approx = true} : vector<8x8x1xf32> -> vector<8x8x1xf32>
    %101 = vector.broadcast %100 : vector<8x8x1xf32> to vector<8x8x8xf32>
    %102 = arith.mulf %97, %101 : vector<8x8x8xf32>
    %103 = vector.extract_strided_slice %36 {offsets = [0, 0, 24], sizes = [8, 8, 8], strides = [1, 1, 1]} : vector<8x8x32xf32> to vector<8x8x8xf32>
    "tpu.trace_start"() <{level = 10 : i32, message = "bij,bje->bie"}> : () -> ()
    %cst_25 = arith.constant dense<0.000000e+00> : vector<8x8x8xf32>
    %104 = tpu.matmul %102, %103, %cst_25 {dimension_numbers = #tpu.dot_dimension_numbers<[2], [1], [1], [2], [0, 0, 0, 1, 1, 2], [0], [0]>} : vector<8x8x8xf32>, vector<8x8x8xf32>, vector<8x8x8xf32> -> vector<8x8x8xf32>
    "tpu.trace_stop"() : () -> ()
    %105 = tpu.concatenate %53, %70, %87, %104 in 2 : vector<8x8x8xf32>, vector<8x8x8xf32>, vector<8x8x8xf32>, vector<8x8x8xf32> -> vector<8x8x32xf32>
    %106 = vector.shape_cast %105 : vector<8x8x32xf32> to vector<64x32xf32>
    %c0_26 = arith.constant 0 : index
    %c0_27 = arith.constant 0 : index
    %c0_28 = arith.constant 0 : index
    %107 = vector.load %arg4[%c0_26, %c0_27, %c0_28] : memref<2x32x32xf32, #tpu.memory_space<vmem>>, vector<1x32x32xf32>
    %108 = vector.shape_cast %107 : vector<1x32x32xf32> to vector<32x32xf32>
    %cst_29 = arith.constant dense<0.000000e+00> : vector<64x32xf32>
    %109 = tpu.matmul %106, %108, %cst_29 {dimension_numbers = #tpu.dot_dimension_numbers<[1], [0], [0], [1], [0, 0, 1, 1], [], []>} : vector<64x32xf32>, vector<32x32xf32>, vector<64x32xf32> -> vector<64x32xf32>
    %110 = vector.broadcast %13 : vector<1x32xf32> to vector<64x32xf32>
    %111 = arith.addf %109, %110 : vector<64x32xf32>
    %112 = arith.addf %1, %111 : vector<64x32xf32>
    %cst_30 = arith.constant dense<0.000000e+00> : vector<64xf32>
    %113 = vector.multi_reduction <add>, %112, %cst_30 [1] : vector<64x32xf32> to vector<64xf32>
    %114 = vector.shape_cast %113 : vector<64xf32> to vector<64x1xf32>
    %cst_31 = arith.constant 3.200000e+01 : f32
    %115 = vector.broadcast %cst_31 : f32 to vector<64x1xf32>
    %116 = arith.divf %114, %115 : vector<64x1xf32>
    %117 = vector.broadcast %116 : vector<64x1xf32> to vector<64x32xf32>
    %118 = arith.subf %112, %117 : vector<64x32xf32>
    %119 = arith.mulf %118, %118 : vector<64x32xf32>
    %cst_32 = arith.constant dense<0.000000e+00> : vector<64xf32>
    %120 = vector.multi_reduction <add>, %119, %cst_32 [1] : vector<64x32xf32> to vector<64xf32>
    %121 = vector.shape_cast %120 : vector<64xf32> to vector<64x1xf32>
    %cst_33 = arith.constant 3.200000e+01 : f32
    %122 = vector.broadcast %cst_33 : f32 to vector<64x1xf32>
    %123 = arith.divf %121, %122 : vector<64x1xf32>
    %124 = vector.broadcast %116 : vector<64x1xf32> to vector<64x32xf32>
    %125 = arith.subf %112, %124 : vector<64x32xf32>
    %cst_34 = arith.constant 9.99999974E-6 : f32
    %126 = vector.broadcast %cst_34 : f32 to vector<64x1xf32>
    %127 = arith.addf %123, %126 : vector<64x1xf32>
    %128 = math.rsqrt %127 : vector<64x1xf32>
    %129 = vector.broadcast %128 : vector<64x1xf32> to vector<64x32xf32>
    %130 = arith.mulf %125, %129 : vector<64x32xf32>
    %131 = vector.broadcast %16 : vector<1x32xf32> to vector<64x32xf32>
    %132 = arith.mulf %130, %131 : vector<64x32xf32>
    %133 = vector.broadcast %17 : vector<1x32xf32> to vector<64x32xf32>
    %134 = arith.addf %132, %133 : vector<64x32xf32>
    %c0_35 = arith.constant 0 : index
    %c0_36 = arith.constant 0 : index
    %c0_37 = arith.constant 0 : index
    %135 = vector.load %arg5[%c0_35, %c0_36, %c0_37] : memref<2x32x32xf32, #tpu.memory_space<vmem>>, vector<1x32x32xf32>
    %136 = vector.shape_cast %135 : vector<1x32x32xf32> to vector<32x32xf32>
    %cst_38 = arith.constant dense<0.000000e+00> : vector<64x32xf32>
    %137 = tpu.matmul %134, %136, %cst_38 {dimension_numbers = #tpu.dot_dimension_numbers<[1], [0], [0], [1], [0, 0, 1, 1], [], []>} : vector<64x32xf32>, vector<32x32xf32>, vector<64x32xf32> -> vector<64x32xf32>
    %138 = vector.broadcast %14 : vector<1x32xf32> to vector<64x32xf32>
    %139 = arith.addf %137, %138 : vector<64x32xf32>
    %cst_39 = arith.constant 0.000000e+00 : f32
    %140 = vector.broadcast %cst_39 : f32 to vector<64x32xf32>
    %141 = arith.maximumf %139, %140 : vector<64x32xf32>
    %c0_40 = arith.constant 0 : index
    %c0_41 = arith.constant 0 : index
    %c0_42 = arith.constant 0 : index
    %142 = vector.load %arg6[%c0_40, %c0_41, %c0_42] : memref<2x32x32xf32, #tpu.memory_space<vmem>>, vector<1x32x32xf32>
    %143 = vector.shape_cast %142 : vector<1x32x32xf32> to vector<32x32xf32>
    %cst_43 = arith.constant dense<0.000000e+00> : vector<64x32xf32>
    %144 = tpu.matmul %141, %143, %cst_43 {dimension_numbers = #tpu.dot_dimension_numbers<[1], [0], [0], [1], [0, 0, 1, 1], [], []>} : vector<64x32xf32>, vector<32x32xf32>, vector<64x32xf32> -> vector<64x32xf32>
    %145 = vector.broadcast %15 : vector<1x32xf32> to vector<64x32xf32>
    %146 = arith.addf %144, %145 : vector<64x32xf32>
    %147 = arith.addf %134, %146 : vector<64x32xf32>
    %cst_44 = arith.constant dense<0.000000e+00> : vector<64xf32>
    %148 = vector.multi_reduction <add>, %147, %cst_44 [1] : vector<64x32xf32> to vector<64xf32>
    %149 = vector.shape_cast %148 : vector<64xf32> to vector<64x1xf32>
    %cst_45 = arith.constant 3.200000e+01 : f32
    %150 = vector.broadcast %cst_45 : f32 to vector<64x1xf32>
    %151 = arith.divf %149, %150 : vector<64x1xf32>
    %152 = vector.broadcast %151 : vector<64x1xf32> to vector<64x32xf32>
    %153 = arith.subf %147, %152 : vector<64x32xf32>
    %154 = arith.mulf %153, %153 : vector<64x32xf32>
    %cst_46 = arith.constant dense<0.000000e+00> : vector<64xf32>
    %155 = vector.multi_reduction <add>, %154, %cst_46 [1] : vector<64x32xf32> to vector<64xf32>
    %156 = vector.shape_cast %155 : vector<64xf32> to vector<64x1xf32>
    %cst_47 = arith.constant 3.200000e+01 : f32
    %157 = vector.broadcast %cst_47 : f32 to vector<64x1xf32>
    %158 = arith.divf %156, %157 : vector<64x1xf32>
    %159 = vector.broadcast %151 : vector<64x1xf32> to vector<64x32xf32>
    %160 = arith.subf %147, %159 : vector<64x32xf32>
    %cst_48 = arith.constant 9.99999974E-6 : f32
    %161 = vector.broadcast %cst_48 : f32 to vector<64x1xf32>
    %162 = arith.addf %158, %161 : vector<64x1xf32>
    %163 = math.rsqrt %162 : vector<64x1xf32>
    %164 = vector.broadcast %163 : vector<64x1xf32> to vector<64x32xf32>
    %165 = arith.mulf %160, %164 : vector<64x32xf32>
    %166 = vector.broadcast %18 : vector<1x32xf32> to vector<64x32xf32>
    %167 = arith.mulf %165, %166 : vector<64x32xf32>
    %168 = vector.broadcast %19 : vector<1x32xf32> to vector<64x32xf32>
    %169 = arith.addf %167, %168 : vector<64x32xf32>
    %cst_49 = arith.constant dense<0.000000e+00> : vector<64xf32>
    %170 = vector.multi_reduction <add>, %169, %cst_49 [1] : vector<64x32xf32> to vector<64xf32>
    %171 = vector.shape_cast %170 : vector<64xf32> to vector<64x1xf32>
    %cst_50 = arith.constant 3.200000e+01 : f32
    %172 = vector.broadcast %cst_50 : f32 to vector<64x1xf32>
    %173 = arith.divf %171, %172 : vector<64x1xf32>
    %174 = vector.broadcast %173 : vector<64x1xf32> to vector<64x32xf32>
    %175 = arith.subf %169, %174 : vector<64x32xf32>
    %176 = arith.mulf %175, %175 : vector<64x32xf32>
    %cst_51 = arith.constant dense<0.000000e+00> : vector<64xf32>
    %177 = vector.multi_reduction <add>, %176, %cst_51 [1] : vector<64x32xf32> to vector<64xf32>
    %178 = vector.shape_cast %177 : vector<64xf32> to vector<64x1xf32>
    %cst_52 = arith.constant 3.200000e+01 : f32
    %179 = vector.broadcast %cst_52 : f32 to vector<64x1xf32>
    %180 = arith.divf %178, %179 : vector<64x1xf32>
    %181 = vector.broadcast %173 : vector<64x1xf32> to vector<64x32xf32>
    %182 = arith.subf %169, %181 : vector<64x32xf32>
    %cst_53 = arith.constant 9.99999974E-6 : f32
    %183 = vector.broadcast %cst_53 : f32 to vector<64x1xf32>
    %184 = arith.addf %180, %183 : vector<64x1xf32>
    %185 = math.rsqrt %184 : vector<64x1xf32>
    %186 = vector.broadcast %185 : vector<64x1xf32> to vector<64x32xf32>
    %187 = arith.mulf %182, %186 : vector<64x32xf32>
    %188 = vector.broadcast %20 : vector<1x32xf32> to vector<64x32xf32>
    %189 = arith.mulf %187, %188 : vector<64x32xf32>
    %190 = vector.broadcast %21 : vector<1x32xf32> to vector<64x32xf32>
    %191 = arith.addf %189, %190 : vector<64x32xf32>
    %c1 = arith.constant 1 : index
    %c0_54 = arith.constant 0 : index
    %c0_55 = arith.constant 0 : index
    %192 = vector.load %arg7[%c1, %c0_54, %c0_55] : memref<2x12x32xf32, #tpu.memory_space<vmem>>, vector<1x12x32xf32>
    %193 = vector.shape_cast %192 : vector<1x12x32xf32> to vector<12x32xf32>
    %194 = vector.extract_strided_slice %193 {offsets = [0, 0], sizes = [1, 32], strides = [1, 1]} : vector<12x32xf32> to vector<1x32xf32>
    %195 = vector.extract_strided_slice %193 {offsets = [1, 0], sizes = [1, 32], strides = [1, 1]} : vector<12x32xf32> to vector<1x32xf32>
    %196 = vector.extract_strided_slice %193 {offsets = [2, 0], sizes = [1, 32], strides = [1, 1]} : vector<12x32xf32> to vector<1x32xf32>
    %197 = vector.extract_strided_slice %193 {offsets = [3, 0], sizes = [1, 32], strides = [1, 1]} : vector<12x32xf32> to vector<1x32xf32>
    %198 = vector.extract_strided_slice %193 {offsets = [4, 0], sizes = [1, 32], strides = [1, 1]} : vector<12x32xf32> to vector<1x32xf32>
    %199 = vector.extract_strided_slice %193 {offsets = [5, 0], sizes = [1, 32], strides = [1, 1]} : vector<12x32xf32> to vector<1x32xf32>
    %200 = vector.extract_strided_slice %193 {offsets = [6, 0], sizes = [1, 32], strides = [1, 1]} : vector<12x32xf32> to vector<1x32xf32>
    %201 = vector.extract_strided_slice %193 {offsets = [7, 0], sizes = [1, 32], strides = [1, 1]} : vector<12x32xf32> to vector<1x32xf32>
    %202 = vector.extract_strided_slice %193 {offsets = [8, 0], sizes = [1, 32], strides = [1, 1]} : vector<12x32xf32> to vector<1x32xf32>
    %203 = vector.extract_strided_slice %193 {offsets = [9, 0], sizes = [1, 32], strides = [1, 1]} : vector<12x32xf32> to vector<1x32xf32>
    %204 = vector.extract_strided_slice %193 {offsets = [10, 0], sizes = [1, 32], strides = [1, 1]} : vector<12x32xf32> to vector<1x32xf32>
    %205 = vector.extract_strided_slice %193 {offsets = [11, 0], sizes = [1, 32], strides = [1, 1]} : vector<12x32xf32> to vector<1x32xf32>
    %c1_56 = arith.constant 1 : index
    %c0_57 = arith.constant 0 : index
    %c0_58 = arith.constant 0 : index
    %206 = vector.load %arg3[%c1_56, %c0_57, %c0_58] : memref<2x32x96xf32, #tpu.memory_space<vmem>>, vector<1x32x96xf32>
    %207 = vector.shape_cast %206 : vector<1x32x96xf32> to vector<32x96xf32>
    %cst_59 = arith.constant dense<0.000000e+00> : vector<64x96xf32>
    %208 = tpu.matmul %191, %207, %cst_59 {dimension_numbers = #tpu.dot_dimension_numbers<[1], [0], [0], [1], [0, 0, 1, 1], [], []>} : vector<64x32xf32>, vector<32x96xf32>, vector<64x96xf32> -> vector<64x96xf32>
    %209 = vector.extract_strided_slice %208 {offsets = [0, 0], sizes = [64, 32], strides = [1, 1]} : vector<64x96xf32> to vector<64x32xf32>
    %210 = vector.broadcast %194 : vector<1x32xf32> to vector<64x32xf32>
    %211 = arith.addf %209, %210 : vector<64x32xf32>
    %212 = vector.shape_cast %211 : vector<64x32xf32> to vector<8x8x32xf32>
    %213 = vector.extract_strided_slice %208 {offsets = [0, 32], sizes = [64, 32], strides = [1, 1]} : vector<64x96xf32> to vector<64x32xf32>
    %214 = vector.broadcast %195 : vector<1x32xf32> to vector<64x32xf32>
    %215 = arith.addf %213, %214 : vector<64x32xf32>
    %216 = vector.shape_cast %215 : vector<64x32xf32> to vector<8x8x32xf32>
    %217 = vector.extract_strided_slice %208 {offsets = [0, 64], sizes = [64, 32], strides = [1, 1]} : vector<64x96xf32> to vector<64x32xf32>
    %218 = vector.broadcast %196 : vector<1x32xf32> to vector<64x32xf32>
    %219 = arith.addf %217, %218 : vector<64x32xf32>
    %220 = vector.shape_cast %219 : vector<64x32xf32> to vector<8x8x32xf32>
    %221 = vector.extract_strided_slice %212 {offsets = [0, 0, 0], sizes = [8, 8, 8], strides = [1, 1, 1]} : vector<8x8x32xf32> to vector<8x8x8xf32>
    %222 = vector.extract_strided_slice %216 {offsets = [0, 0, 0], sizes = [8, 8, 8], strides = [1, 1, 1]} : vector<8x8x32xf32> to vector<8x8x8xf32>
    "tpu.trace_start"() <{level = 10 : i32, message = "bie,bje->bij"}> : () -> ()
    %cst_60 = arith.constant dense<0.000000e+00> : vector<8x8x8xf32>
    %223 = tpu.matmul %221, %222, %cst_60 {dimension_numbers = #tpu.dot_dimension_numbers<[2], [2], [1], [1], [0, 0, 0, 1, 1, 1], [0], [0]>} : vector<8x8x8xf32>, vector<8x8x8xf32>, vector<8x8x8xf32> -> vector<8x8x8xf32>
    "tpu.trace_stop"() : () -> ()
    %224 = vector.broadcast %7 : vector<1x1x8xf32> to vector<8x8x8xf32>
    %225 = arith.addf %223, %224 : vector<8x8x8xf32>
    %cst_61 = arith.constant dense<0xFF800000> : vector<8x8xf32>
    %226 = vector.multi_reduction <maximumf>, %225, %cst_61 [2] : vector<8x8x8xf32> to vector<8x8xf32>
    %227 = vector.shape_cast %226 : vector<8x8xf32> to vector<8x8x1xf32>
    %228 = vector.broadcast %227 : vector<8x8x1xf32> to vector<8x8x8xf32>
    %229 = arith.subf %225, %228 : vector<8x8x8xf32>
    %230 = math.exp %229 : vector<8x8x8xf32>
    %cst_62 = arith.constant dense<0.000000e+00> : vector<8x8xf32>
    %231 = vector.multi_reduction <add>, %230, %cst_62 [2] : vector<8x8x8xf32> to vector<8x8xf32>
    %232 = vector.shape_cast %231 : vector<8x8xf32> to vector<8x8x1xf32>
    %233 = tpu.reciprocal %232 {approx = true} : vector<8x8x1xf32> -> vector<8x8x1xf32>
    %234 = vector.broadcast %233 : vector<8x8x1xf32> to vector<8x8x8xf32>
    %235 = arith.mulf %230, %234 : vector<8x8x8xf32>
    %236 = vector.extract_strided_slice %220 {offsets = [0, 0, 0], sizes = [8, 8, 8], strides = [1, 1, 1]} : vector<8x8x32xf32> to vector<8x8x8xf32>
    "tpu.trace_start"() <{level = 10 : i32, message = "bij,bje->bie"}> : () -> ()
    %cst_63 = arith.constant dense<0.000000e+00> : vector<8x8x8xf32>
    %237 = tpu.matmul %235, %236, %cst_63 {dimension_numbers = #tpu.dot_dimension_numbers<[2], [1], [1], [2], [0, 0, 0, 1, 1, 2], [0], [0]>} : vector<8x8x8xf32>, vector<8x8x8xf32>, vector<8x8x8xf32> -> vector<8x8x8xf32>
    "tpu.trace_stop"() : () -> ()
    %238 = vector.extract_strided_slice %212 {offsets = [0, 0, 8], sizes = [8, 8, 8], strides = [1, 1, 1]} : vector<8x8x32xf32> to vector<8x8x8xf32>
    %239 = vector.extract_strided_slice %216 {offsets = [0, 0, 8], sizes = [8, 8, 8], strides = [1, 1, 1]} : vector<8x8x32xf32> to vector<8x8x8xf32>
    "tpu.trace_start"() <{level = 10 : i32, message = "bie,bje->bij"}> : () -> ()
    %cst_64 = arith.constant dense<0.000000e+00> : vector<8x8x8xf32>
    %240 = tpu.matmul %238, %239, %cst_64 {dimension_numbers = #tpu.dot_dimension_numbers<[2], [2], [1], [1], [0, 0, 0, 1, 1, 1], [0], [0]>} : vector<8x8x8xf32>, vector<8x8x8xf32>, vector<8x8x8xf32> -> vector<8x8x8xf32>
    "tpu.trace_stop"() : () -> ()
    %241 = vector.broadcast %7 : vector<1x1x8xf32> to vector<8x8x8xf32>
    %242 = arith.addf %240, %241 : vector<8x8x8xf32>
    %cst_65 = arith.constant dense<0xFF800000> : vector<8x8xf32>
    %243 = vector.multi_reduction <maximumf>, %242, %cst_65 [2] : vector<8x8x8xf32> to vector<8x8xf32>
    %244 = vector.shape_cast %243 : vector<8x8xf32> to vector<8x8x1xf32>
    %245 = vector.broadcast %244 : vector<8x8x1xf32> to vector<8x8x8xf32>
    %246 = arith.subf %242, %245 : vector<8x8x8xf32>
    %247 = math.exp %246 : vector<8x8x8xf32>
    %cst_66 = arith.constant dense<0.000000e+00> : vector<8x8xf32>
    %248 = vector.multi_reduction <add>, %247, %cst_66 [2] : vector<8x8x8xf32> to vector<8x8xf32>
    %249 = vector.shape_cast %248 : vector<8x8xf32> to vector<8x8x1xf32>
    %250 = tpu.reciprocal %249 {approx = true} : vector<8x8x1xf32> -> vector<8x8x1xf32>
    %251 = vector.broadcast %250 : vector<8x8x1xf32> to vector<8x8x8xf32>
    %252 = arith.mulf %247, %251 : vector<8x8x8xf32>
    %253 = vector.extract_strided_slice %220 {offsets = [0, 0, 8], sizes = [8, 8, 8], strides = [1, 1, 1]} : vector<8x8x32xf32> to vector<8x8x8xf32>
    "tpu.trace_start"() <{level = 10 : i32, message = "bij,bje->bie"}> : () -> ()
    %cst_67 = arith.constant dense<0.000000e+00> : vector<8x8x8xf32>
    %254 = tpu.matmul %252, %253, %cst_67 {dimension_numbers = #tpu.dot_dimension_numbers<[2], [1], [1], [2], [0, 0, 0, 1, 1, 2], [0], [0]>} : vector<8x8x8xf32>, vector<8x8x8xf32>, vector<8x8x8xf32> -> vector<8x8x8xf32>
    "tpu.trace_stop"() : () -> ()
    %255 = vector.extract_strided_slice %212 {offsets = [0, 0, 16], sizes = [8, 8, 8], strides = [1, 1, 1]} : vector<8x8x32xf32> to vector<8x8x8xf32>
    %256 = vector.extract_strided_slice %216 {offsets = [0, 0, 16], sizes = [8, 8, 8], strides = [1, 1, 1]} : vector<8x8x32xf32> to vector<8x8x8xf32>
    "tpu.trace_start"() <{level = 10 : i32, message = "bie,bje->bij"}> : () -> ()
    %cst_68 = arith.constant dense<0.000000e+00> : vector<8x8x8xf32>
    %257 = tpu.matmul %255, %256, %cst_68 {dimension_numbers = #tpu.dot_dimension_numbers<[2], [2], [1], [1], [0, 0, 0, 1, 1, 1], [0], [0]>} : vector<8x8x8xf32>, vector<8x8x8xf32>, vector<8x8x8xf32> -> vector<8x8x8xf32>
    "tpu.trace_stop"() : () -> ()
    %258 = vector.broadcast %7 : vector<1x1x8xf32> to vector<8x8x8xf32>
    %259 = arith.addf %257, %258 : vector<8x8x8xf32>
    %cst_69 = arith.constant dense<0xFF800000> : vector<8x8xf32>
    %260 = vector.multi_reduction <maximumf>, %259, %cst_69 [2] : vector<8x8x8xf32> to vector<8x8xf32>
    %261 = vector.shape_cast %260 : vector<8x8xf32> to vector<8x8x1xf32>
    %262 = vector.broadcast %261 : vector<8x8x1xf32> to vector<8x8x8xf32>
    %263 = arith.subf %259, %262 : vector<8x8x8xf32>
    %264 = math.exp %263 : vector<8x8x8xf32>
    %cst_70 = arith.constant dense<0.000000e+00> : vector<8x8xf32>
    %265 = vector.multi_reduction <add>, %264, %cst_70 [2] : vector<8x8x8xf32> to vector<8x8xf32>
    %266 = vector.shape_cast %265 : vector<8x8xf32> to vector<8x8x1xf32>
    %267 = tpu.reciprocal %266 {approx = true} : vector<8x8x1xf32> -> vector<8x8x1xf32>
    %268 = vector.broadcast %267 : vector<8x8x1xf32> to vector<8x8x8xf32>
    %269 = arith.mulf %264, %268 : vector<8x8x8xf32>
    %270 = vector.extract_strided_slice %220 {offsets = [0, 0, 16], sizes = [8, 8, 8], strides = [1, 1, 1]} : vector<8x8x32xf32> to vector<8x8x8xf32>
    "tpu.trace_start"() <{level = 10 : i32, message = "bij,bje->bie"}> : () -> ()
    %cst_71 = arith.constant dense<0.000000e+00> : vector<8x8x8xf32>
    %271 = tpu.matmul %269, %270, %cst_71 {dimension_numbers = #tpu.dot_dimension_numbers<[2], [1], [1], [2], [0, 0, 0, 1, 1, 2], [0], [0]>} : vector<8x8x8xf32>, vector<8x8x8xf32>, vector<8x8x8xf32> -> vector<8x8x8xf32>
    "tpu.trace_stop"() : () -> ()
    %272 = vector.extract_strided_slice %212 {offsets = [0, 0, 24], sizes = [8, 8, 8], strides = [1, 1, 1]} : vector<8x8x32xf32> to vector<8x8x8xf32>
    %273 = vector.extract_strided_slice %216 {offsets = [0, 0, 24], sizes = [8, 8, 8], strides = [1, 1, 1]} : vector<8x8x32xf32> to vector<8x8x8xf32>
    "tpu.trace_start"() <{level = 10 : i32, message = "bie,bje->bij"}> : () -> ()
    %cst_72 = arith.constant dense<0.000000e+00> : vector<8x8x8xf32>
    %274 = tpu.matmul %272, %273, %cst_72 {dimension_numbers = #tpu.dot_dimension_numbers<[2], [2], [1], [1], [0, 0, 0, 1, 1, 1], [0], [0]>} : vector<8x8x8xf32>, vector<8x8x8xf32>, vector<8x8x8xf32> -> vector<8x8x8xf32>
    "tpu.trace_stop"() : () -> ()
    %275 = vector.broadcast %7 : vector<1x1x8xf32> to vector<8x8x8xf32>
    %276 = arith.addf %274, %275 : vector<8x8x8xf32>
    %cst_73 = arith.constant dense<0xFF800000> : vector<8x8xf32>
    %277 = vector.multi_reduction <maximumf>, %276, %cst_73 [2] : vector<8x8x8xf32> to vector<8x8xf32>
    %278 = vector.shape_cast %277 : vector<8x8xf32> to vector<8x8x1xf32>
    %279 = vector.broadcast %278 : vector<8x8x1xf32> to vector<8x8x8xf32>
    %280 = arith.subf %276, %279 : vector<8x8x8xf32>
    %281 = math.exp %280 : vector<8x8x8xf32>
    %cst_74 = arith.constant dense<0.000000e+00> : vector<8x8xf32>
    %282 = vector.multi_reduction <add>, %281, %cst_74 [2] : vector<8x8x8xf32> to vector<8x8xf32>
    %283 = vector.shape_cast %282 : vector<8x8xf32> to vector<8x8x1xf32>
    %284 = tpu.reciprocal %283 {approx = true} : vector<8x8x1xf32> -> vector<8x8x1xf32>
    %285 = vector.broadcast %284 : vector<8x8x1xf32> to vector<8x8x8xf32>
    %286 = arith.mulf %281, %285 : vector<8x8x8xf32>
    %287 = vector.extract_strided_slice %220 {offsets = [0, 0, 24], sizes = [8, 8, 8], strides = [1, 1, 1]} : vector<8x8x32xf32> to vector<8x8x8xf32>
    "tpu.trace_start"() <{level = 10 : i32, message = "bij,bje->bie"}> : () -> ()
    %cst_75 = arith.constant dense<0.000000e+00> : vector<8x8x8xf32>
    %288 = tpu.matmul %286, %287, %cst_75 {dimension_numbers = #tpu.dot_dimension_numbers<[2], [1], [1], [2], [0, 0, 0, 1, 1, 2], [0], [0]>} : vector<8x8x8xf32>, vector<8x8x8xf32>, vector<8x8x8xf32> -> vector<8x8x8xf32>
    "tpu.trace_stop"() : () -> ()
    %289 = tpu.concatenate %237, %254, %271, %288 in 2 : vector<8x8x8xf32>, vector<8x8x8xf32>, vector<8x8x8xf32>, vector<8x8x8xf32> -> vector<8x8x32xf32>
    %290 = vector.shape_cast %289 : vector<8x8x32xf32> to vector<64x32xf32>
    %c1_76 = arith.constant 1 : index
    %c0_77 = arith.constant 0 : index
    %c0_78 = arith.constant 0 : index
    %291 = vector.load %arg4[%c1_76, %c0_77, %c0_78] : memref<2x32x32xf32, #tpu.memory_space<vmem>>, vector<1x32x32xf32>
    %292 = vector.shape_cast %291 : vector<1x32x32xf32> to vector<32x32xf32>
    %cst_79 = arith.constant dense<0.000000e+00> : vector<64x32xf32>
    %293 = tpu.matmul %290, %292, %cst_79 {dimension_numbers = #tpu.dot_dimension_numbers<[1], [0], [0], [1], [0, 0, 1, 1], [], []>} : vector<64x32xf32>, vector<32x32xf32>, vector<64x32xf32> -> vector<64x32xf32>
    %294 = vector.broadcast %197 : vector<1x32xf32> to vector<64x32xf32>
    %295 = arith.addf %293, %294 : vector<64x32xf32>
    %296 = arith.addf %191, %295 : vector<64x32xf32>
    %cst_80 = arith.constant dense<0.000000e+00> : vector<64xf32>
    %297 = vector.multi_reduction <add>, %296, %cst_80 [1] : vector<64x32xf32> to vector<64xf32>
    %298 = vector.shape_cast %297 : vector<64xf32> to vector<64x1xf32>
    %cst_81 = arith.constant 3.200000e+01 : f32
    %299 = vector.broadcast %cst_81 : f32 to vector<64x1xf32>
    %300 = arith.divf %298, %299 : vector<64x1xf32>
    %301 = vector.broadcast %300 : vector<64x1xf32> to vector<64x32xf32>
    %302 = arith.subf %296, %301 : vector<64x32xf32>
    %303 = arith.mulf %302, %302 : vector<64x32xf32>
    %cst_82 = arith.constant dense<0.000000e+00> : vector<64xf32>
    %304 = vector.multi_reduction <add>, %303, %cst_82 [1] : vector<64x32xf32> to vector<64xf32>
    %305 = vector.shape_cast %304 : vector<64xf32> to vector<64x1xf32>
    %cst_83 = arith.constant 3.200000e+01 : f32
    %306 = vector.broadcast %cst_83 : f32 to vector<64x1xf32>
    %307 = arith.divf %305, %306 : vector<64x1xf32>
    %308 = vector.broadcast %300 : vector<64x1xf32> to vector<64x32xf32>
    %309 = arith.subf %296, %308 : vector<64x32xf32>
    %cst_84 = arith.constant 9.99999974E-6 : f32
    %310 = vector.broadcast %cst_84 : f32 to vector<64x1xf32>
    %311 = arith.addf %307, %310 : vector<64x1xf32>
    %312 = math.rsqrt %311 : vector<64x1xf32>
    %313 = vector.broadcast %312 : vector<64x1xf32> to vector<64x32xf32>
    %314 = arith.mulf %309, %313 : vector<64x32xf32>
    %315 = vector.broadcast %200 : vector<1x32xf32> to vector<64x32xf32>
    %316 = arith.mulf %314, %315 : vector<64x32xf32>
    %317 = vector.broadcast %201 : vector<1x32xf32> to vector<64x32xf32>
    %318 = arith.addf %316, %317 : vector<64x32xf32>
    %c1_85 = arith.constant 1 : index
    %c0_86 = arith.constant 0 : index
    %c0_87 = arith.constant 0 : index
    %319 = vector.load %arg5[%c1_85, %c0_86, %c0_87] : memref<2x32x32xf32, #tpu.memory_space<vmem>>, vector<1x32x32xf32>
    %320 = vector.shape_cast %319 : vector<1x32x32xf32> to vector<32x32xf32>
    %cst_88 = arith.constant dense<0.000000e+00> : vector<64x32xf32>
    %321 = tpu.matmul %318, %320, %cst_88 {dimension_numbers = #tpu.dot_dimension_numbers<[1], [0], [0], [1], [0, 0, 1, 1], [], []>} : vector<64x32xf32>, vector<32x32xf32>, vector<64x32xf32> -> vector<64x32xf32>
    %322 = vector.broadcast %198 : vector<1x32xf32> to vector<64x32xf32>
    %323 = arith.addf %321, %322 : vector<64x32xf32>
    %cst_89 = arith.constant 0.000000e+00 : f32
    %324 = vector.broadcast %cst_89 : f32 to vector<64x32xf32>
    %325 = arith.maximumf %323, %324 : vector<64x32xf32>
    %c1_90 = arith.constant 1 : index
    %c0_91 = arith.constant 0 : index
    %c0_92 = arith.constant 0 : index
    %326 = vector.load %arg6[%c1_90, %c0_91, %c0_92] : memref<2x32x32xf32, #tpu.memory_space<vmem>>, vector<1x32x32xf32>
    %327 = vector.shape_cast %326 : vector<1x32x32xf32> to vector<32x32xf32>
    %cst_93 = arith.constant dense<0.000000e+00> : vector<64x32xf32>
    %328 = tpu.matmul %325, %327, %cst_93 {dimension_numbers = #tpu.dot_dimension_numbers<[1], [0], [0], [1], [0, 0, 1, 1], [], []>} : vector<64x32xf32>, vector<32x32xf32>, vector<64x32xf32> -> vector<64x32xf32>
    %329 = vector.broadcast %199 : vector<1x32xf32> to vector<64x32xf32>
    %330 = arith.addf %328, %329 : vector<64x32xf32>
    %331 = arith.addf %318, %330 : vector<64x32xf32>
    %cst_94 = arith.constant dense<0.000000e+00> : vector<64xf32>
    %332 = vector.multi_reduction <add>, %331, %cst_94 [1] : vector<64x32xf32> to vector<64xf32>
    %333 = vector.shape_cast %332 : vector<64xf32> to vector<64x1xf32>
    %cst_95 = arith.constant 3.200000e+01 : f32
    %334 = vector.broadcast %cst_95 : f32 to vector<64x1xf32>
    %335 = arith.divf %333, %334 : vector<64x1xf32>
    %336 = vector.broadcast %335 : vector<64x1xf32> to vector<64x32xf32>
    %337 = arith.subf %331, %336 : vector<64x32xf32>
    %338 = arith.mulf %337, %337 : vector<64x32xf32>
    %cst_96 = arith.constant dense<0.000000e+00> : vector<64xf32>
    %339 = vector.multi_reduction <add>, %338, %cst_96 [1] : vector<64x32xf32> to vector<64xf32>
    %340 = vector.shape_cast %339 : vector<64xf32> to vector<64x1xf32>
    %cst_97 = arith.constant 3.200000e+01 : f32
    %341 = vector.broadcast %cst_97 : f32 to vector<64x1xf32>
    %342 = arith.divf %340, %341 : vector<64x1xf32>
    %343 = vector.broadcast %335 : vector<64x1xf32> to vector<64x32xf32>
    %344 = arith.subf %331, %343 : vector<64x32xf32>
    %cst_98 = arith.constant 9.99999974E-6 : f32
    %345 = vector.broadcast %cst_98 : f32 to vector<64x1xf32>
    %346 = arith.addf %342, %345 : vector<64x1xf32>
    %347 = math.rsqrt %346 : vector<64x1xf32>
    %348 = vector.broadcast %347 : vector<64x1xf32> to vector<64x32xf32>
    %349 = arith.mulf %344, %348 : vector<64x32xf32>
    %350 = vector.broadcast %202 : vector<1x32xf32> to vector<64x32xf32>
    %351 = arith.mulf %349, %350 : vector<64x32xf32>
    %352 = vector.broadcast %203 : vector<1x32xf32> to vector<64x32xf32>
    %353 = arith.addf %351, %352 : vector<64x32xf32>
    %cst_99 = arith.constant dense<0.000000e+00> : vector<64xf32>
    %354 = vector.multi_reduction <add>, %353, %cst_99 [1] : vector<64x32xf32> to vector<64xf32>
    %355 = vector.shape_cast %354 : vector<64xf32> to vector<64x1xf32>
    %cst_100 = arith.constant 3.200000e+01 : f32
    %356 = vector.broadcast %cst_100 : f32 to vector<64x1xf32>
    %357 = arith.divf %355, %356 : vector<64x1xf32>
    %358 = vector.broadcast %357 : vector<64x1xf32> to vector<64x32xf32>
    %359 = arith.subf %353, %358 : vector<64x32xf32>
    %360 = arith.mulf %359, %359 : vector<64x32xf32>
    %cst_101 = arith.constant dense<0.000000e+00> : vector<64xf32>
    %361 = vector.multi_reduction <add>, %360, %cst_101 [1] : vector<64x32xf32> to vector<64xf32>
    %362 = vector.shape_cast %361 : vector<64xf32> to vector<64x1xf32>
    %cst_102 = arith.constant 3.200000e+01 : f32
    %363 = vector.broadcast %cst_102 : f32 to vector<64x1xf32>
    %364 = arith.divf %362, %363 : vector<64x1xf32>
    %365 = vector.broadcast %357 : vector<64x1xf32> to vector<64x32xf32>
    %366 = arith.subf %353, %365 : vector<64x32xf32>
    %cst_103 = arith.constant 9.99999974E-6 : f32
    %367 = vector.broadcast %cst_103 : f32 to vector<64x1xf32>
    %368 = arith.addf %364, %367 : vector<64x1xf32>
    %369 = math.rsqrt %368 : vector<64x1xf32>
    %370 = vector.broadcast %369 : vector<64x1xf32> to vector<64x32xf32>
    %371 = arith.mulf %366, %370 : vector<64x32xf32>
    %372 = vector.broadcast %204 : vector<1x32xf32> to vector<64x32xf32>
    %373 = arith.mulf %371, %372 : vector<64x32xf32>
    %374 = vector.broadcast %205 : vector<1x32xf32> to vector<64x32xf32>
    %375 = arith.addf %373, %374 : vector<64x32xf32>
    %376 = vector.shape_cast %375 : vector<64x32xf32> to vector<8x8x32xf32>
    %377 = tpu.iota {dimensions = array<i32: 1>} : vector<1x8x1xi32>
    %c5_i32_104 = arith.constant 5 : i32
    %378 = vector.broadcast %c5_i32_104 : i32 to vector<1x8x1xi32>
    %379 = arith.cmpi slt, %377, %378 : vector<1x8x1xi32>
    %380 = arith.extui %379 : vector<1x8x1xi1> to vector<1x8x1xi32>
    %381 = arith.sitofp %380 : vector<1x8x1xi32> to vector<1x8x1xf32>
    %382 = vector.broadcast %381 : vector<1x8x1xf32> to vector<8x8x32xf32>
    %383 = arith.mulf %376, %382 : vector<8x8x32xf32>
    %cst_105 = arith.constant dense<0.000000e+00> : vector<8x32xf32>
    %384 = vector.multi_reduction <add>, %383, %cst_105 [1] : vector<8x8x32xf32> to vector<8x32xf32>
    %c0_106 = arith.constant 0 : index
    %c0_107 = arith.constant 0 : index
    %c0_108 = arith.constant 0 : index
    %385 = vector.load %arg2[%c0_106, %c0_107, %c0_108] : memref<8x3x32xf32, #tpu.memory_space<vmem>>, vector<8x3x32xf32>
    %cst_109 = arith.constant dense<0.000000e+00> : vector<8x32xf32>
    %386 = vector.multi_reduction <add>, %385, %cst_109 [1] : vector<8x3x32xf32> to vector<8x32xf32>
    %387 = arith.addf %384, %386 : vector<8x32xf32>
    %cst_110 = arith.constant 1.250000e-01 : f32
    %388 = vector.broadcast %cst_110 : f32 to vector<8x32xf32>
    %389 = arith.mulf %387, %388 : vector<8x32xf32>
    %c0_111 = arith.constant 0 : index
    %c0_112 = arith.constant 0 : index
    %390 = vector.load %arg8[%c0_111, %c0_112] : memref<8x32xf32, #tpu.memory_space<vmem>>, vector<8x32xf32>
    tpu.vector_store %arg8[%c0_111, %c0_112], %389 {strides = array<i32>} : memref<8x32xf32, #tpu.memory_space<vmem>>, vector<8x32xf32>,
    return
  }
  func.func @transform_0(%arg0: i32) -> (i32, i32, i32) {
    %c0_i32 = arith.constant 0 : i32
    %c0_i32_0 = arith.constant 0 : i32
    %c0_i32_1 = arith.constant 0 : i32
    return %arg0, %c0_i32, %c0_i32_0 : i32, i32, i32
  }
  func.func @transform_1(%arg0: i32) -> (i32, i32, i32) {
    %c0_i32 = arith.constant 0 : i32
    %c0_i32_0 = arith.constant 0 : i32
    %c0_i32_1 = arith.constant 0 : i32
    return %arg0, %c0_i32, %c0_i32_0 : i32, i32, i32
  }
  func.func @transform_2(%arg0: i32) -> (i32, i32, i32) {
    %c0_i32 = arith.constant 0 : i32
    %c0_i32_0 = arith.constant 0 : i32
    %c0_i32_1 = arith.constant 0 : i32
    %c0_i32_2 = arith.constant 0 : i32
    return %c0_i32, %c0_i32_0, %c0_i32_1 : i32, i32, i32
  }
  func.func @transform_3(%arg0: i32) -> (i32, i32, i32) {
    %c0_i32 = arith.constant 0 : i32
    %c0_i32_0 = arith.constant 0 : i32
    %c0_i32_1 = arith.constant 0 : i32
    %c0_i32_2 = arith.constant 0 : i32
    return %c0_i32, %c0_i32_0, %c0_i32_1 : i32, i32, i32
  }
  func.func @transform_4(%arg0: i32) -> (i32, i32, i32) {
    %c0_i32 = arith.constant 0 : i32
    %c0_i32_0 = arith.constant 0 : i32
    %c0_i32_1 = arith.constant 0 : i32
    %c0_i32_2 = arith.constant 0 : i32
    return %c0_i32, %c0_i32_0, %c0_i32_1 : i32, i32, i32
  }
  func.func @transform_5(%arg0: i32) -> (i32, i32, i32) {
    %c0_i32 = arith.constant 0 : i32
    %c0_i32_0 = arith.constant 0 : i32
    %c0_i32_1 = arith.constant 0 : i32
    %c0_i32_2 = arith.constant 0 : i32
    return %c0_i32, %c0_i32_0, %c0_i32_1 : i32, i32, i32
  }
  func.func @transform_6(%arg0: i32) -> (i32, i32, i32) {
    %c0_i32 = arith.constant 0 : i32
    %c0_i32_0 = arith.constant 0 : i32
    %c0_i32_1 = arith.constant 0 : i32
    %c0_i32_2 = arith.constant 0 : i32
    return %c0_i32, %c0_i32_0, %c0_i32_1 : i32, i32, i32
  }
  func.func @transform_7(%arg0: i32) -> (i32, i32) {
    %c0_i32 = arith.constant 0 : i32
    %c0_i32_0 = arith.constant 0 : i32
    return %arg0, %c0_i32 : i32, i32
  }
}

</mosaic_0001>

<llo_original>
// kernel: tpu_custom_call.1
$region0: #{tpu_custom_call.1}
  #allocation0 [shape = 'u32[]', space=smem, size = 0x4, offset = 0x4, fixed_abs, tag = 'smem constant byte address 0x4 - core index']
  #allocation1 [shape = 'u32[72,128]{1,0:T(1,128)}', space=vmem, size = 0x9000, scoped, tag = 'internal scratch']
  %s0 = inlined_call_operand.hbm [shape: f32[16,8,32], index: 0, kind: input, shape index: {}]
  %s1 = inlined_call_operand.vmem [shape: f32[16,3,32], index: 1, kind: input, shape index: {}]
  %s2 = inlined_call_operand.vmem [shape: f32[2,32,96], index: 2, kind: input, shape index: {}]
  %s3 = inlined_call_operand.hbm [shape: f32[2,32,32], index: 3, kind: input, shape index: {}]
  %s4 = inlined_call_operand.hbm [shape: f32[2,32,32], index: 4, kind: input, shape index: {}]
  %s5 = inlined_call_operand.hbm [shape: f32[2,32,32], index: 5, kind: input, shape index: {}]
  %s6 = inlined_call_operand.vmem [shape: f32[2,12,32], index: 6, kind: input, shape index: {}]
  %s7 = inlined_call_operand.hbm [shape: f32[16,32], index: 7, kind: output, shape index: {}]
  %s8 = sld [smem:[#allocation0]]
  $region77: #{tpu_custom_call.1} parent=0
    _
  %s10 = ssub.s32 1, %s8
  %s11 = scalar_select 0, %s10, %s8
  $region1: #{tpu_custom_call.1} parent=0
    #allocation2 [shape = 'u8[65536]{0}', space=vmem, size = 0x10000, scoped, tag = 'input window, operand 0']
    #allocation3 [shape = 's32[2]{0}', space=sflag, size = 0x8, scoped, tag = 'scoped memory for tpu_custom_call.1']
    #allocation4 [shape = 's32[2]{0}', space=sflag, size = 0x8, scoped, tag = 'scoped memory for tpu_custom_call.1']
    #allocation5 [shape = 'u8[32768]{0}', space=vmem, size = 0x8000, scoped, tag = 'input window, operand 3, single buffered']
    #allocation6 [shape = 's32[1]{0}', space=sflag, size = 0x4, scoped, tag = 'scoped memory for tpu_custom_call.1']
    #allocation7 [shape = 'u8[32768]{0}', space=vmem, size = 0x8000, scoped, tag = 'input window, operand 4, single buffered']
    #allocation8 [shape = 'u8[32768]{0}', space=vmem, size = 0x8000, scoped, tag = 'input window, operand 5, single buffered']
    #allocation9 [shape = 's32[1]{0}', space=sflag, size = 0x4, scoped, tag = 'scoped memory for tpu_custom_call.1']
    #allocation10 [shape = 'u8[8192]{0}', space=vmem, size = 0x2000, scoped, tag = 'output window, operand 0']
    %12 = vsyncpa [#allocation3], 0
    %s13 = scalar_lea.sflag [#allocation3], 1
    %14 = vsyncpa %s13, 0
    %15 = vsyncpa [#allocation6], 0
    %16 = vsyncpa [#allocation9], 0
    %17 = vsyncpa [#allocation4], 0
    %s18 = scalar_lea.sflag [#allocation4], 1
    %19 = vsyncpa %s18, 0
    loop: start=0, step=1, limit=4
    $region2: #{tpu_custom_call.1} parent=1 // loop_pre_header
      _
    $region3: #{tpu_custom_call.1} parent=1 // loop_header
      %s21 = sphi 0, %s25
      %p22 = scmp.ge.s32.totalorder %s21, 4
      %s31 = sphi 0, %s33
      %s34 = sphi 0, %s31
      %s35 = sphi 0, %s34
      %s51 = sphi 0, %s35
      %s57 = sphi 0, %s59
      %s60 = sphi 0, %s57
      %s61 = sphi 0, %s60
      %s77 = sphi 0, %s61
      %s81 = sphi 0, %s81
      %s83 = sphi 0, %s81
      %s84 = sphi 0, %s83
      %s98 = sphi 0, %s84
      %s102 = sphi 0, %s102
      %s104 = sphi 0, %s102
      %s105 = sphi 0, %s104
      %s119 = sphi 0, %s105
      %s123 = sphi 0, %s123
      %s125 = sphi 0, %s123
      %s126 = sphi 0, %s125
      %s140 = sphi 0, %s126
      %s144 = sphi 0, %s144
      %s146 = sphi 0, %s144
      %s147 = sphi 0, %s146
      %s161 = sphi 0, %s147
      %s165 = sphi 0, %s165
      %s167 = sphi 0, %s165
      %s168 = sphi 0, %s167
      %s182 = sphi 0, %s168
      %s188 = sphi 0, %s190
      %s191 = sphi 0, %s188
      %s192 = sphi 0, %s191
      %s208 = sphi 0, %s192
    $region4: #{tpu_custom_call.1} parent=1 // loop_header_branch
      %24 = sbr.rel (%p22) target = $region8
    $region5: #{tpu_custom_call.1} parent=1 // loop_body
      %s26 = ssub.s32 %s21, 1
      %s27 = ssub.s32 %s21, 2
      %s28 = sadd.s32 %s21, 1
      %s29 = ssub.s32 %s21, %s28
      %p30 = scmp.eq.s32.totalorder %s29, 0
      %s32 = sadd.s32 %s31, 1
      %s33 = scalar_select %p30, %s31, %s32
      %p36 = pneg %p30
      %p37 = scmp.eq.s32.totalorder %s21, 1
      %p38 = por %p36, %p37
      %p39 = scmp.ne.s32.totalorder %s31, %s34
      %p40 = scmp.eq.s32.totalorder %s21, 0
      %p41 = por %p39, %p40
      %p42 = scmp.ne.s32.totalorder %s31, %s34
      %p43 = scmp.eq.s32.totalorder %s26, 1
      %p44 = por %p42, %p43
      %p45 = scmp.ne.s32.totalorder %s34, %s35
      %p46 = scmp.eq.s32.totalorder %s26, 0
      %p47 = por %p45, %p46
      %p48 = scmp.ne.s32.totalorder %s34, %s35
      %p49 = scmp.eq.s32.totalorder %s27, 1
      %p50 = por %p48, %p49
      %p52 = scmp.ne.s32.totalorder %s35, %s51
      %p53 = scmp.eq.s32.totalorder %s27, 0
      %p54 = por %p52, %p53
      %s55 = ssub.s32 %s21, %s28
      %p56 = scmp.eq.s32.totalorder %s55, 0
      %s58 = sadd.s32 %s57, 1
      %s59 = scalar_select %p56, %s57, %s58
      %p62 = pneg %p56
      %p63 = scmp.eq.s32.totalorder %s21, 1
      %p64 = por %p62, %p63
      %p65 = scmp.ne.s32.totalorder %s57, %s60
      %p66 = scmp.eq.s32.totalorder %s21, 0
      %p67 = por %p65, %p66
      %p68 = scmp.ne.s32.totalorder %s57, %s60
      %p69 = scmp.eq.s32.totalorder %s26, 1
      %p70 = por %p68, %p69
      %p71 = scmp.ne.s32.totalorder %s60, %s61
      %p72 = scmp.eq.s32.totalorder %s26, 0
      %p73 = por %p71, %p72
      %p74 = scmp.ne.s32.totalorder %s60, %s61
      %p75 = scmp.eq.s32.totalorder %s27, 1
      %p76 = por %p74, %p75
      %p78 = scmp.ne.s32.totalorder %s61, %s77
      %p79 = scmp.eq.s32.totalorder %s27, 0
      %p80 = por %p78, %p79
      %s82 = sadd.s32 %s81, 1
      %p85 = scmp.eq.s32.totalorder %s21, 1
      %p86 = scmp.ne.s32.totalorder %s81, %s83
      %p87 = scmp.eq.s32.totalorder %s21, 0
      %p88 = por %p86, %p87
      %p89 = scmp.ne.s32.totalorder %s81, %s83
      %p90 = scmp.eq.s32.totalorder %s26, 1
      %p91 = por %p89, %p90
      %p92 = scmp.ne.s32.totalorder %s83, %s84
      %p93 = scmp.eq.s32.totalorder %s26, 0
      %p94 = por %p92, %p93
      %p95 = scmp.ne.s32.totalorder %s83, %s84
      %p96 = scmp.eq.s32.totalorder %s27, 1
      %p97 = por %p95, %p96
      %p99 = scmp.ne.s32.totalorder %s84, %s98
      %p100 = scmp.eq.s32.totalorder %s27, 0
      %p101 = por %p99, %p100
      %s103 = sadd.s32 %s102, 1
      %p106 = scmp.eq.s32.totalorder %s21, 1
      %p107 = scmp.ne.s32.totalorder %s102, %s104
      %p108 = scmp.eq.s32.totalorder %s21, 0
      %p109 = por %p107, %p108
      %p110 = scmp.ne.s32.totalorder %s102, %s104
      %p111 = scmp.eq.s32.totalorder %s26, 1
      %p112 = por %p110, %p111
      %p113 = scmp.ne.s32.totalorder %s104, %s105
      %p114 = scmp.eq.s32.totalorder %s26, 0
      %p115 = por %p113, %p114
      %p116 = scmp.ne.s32.totalorder %s104, %s105
      %p117 = scmp.eq.s32.totalorder %s27, 1
      %p118 = por %p116, %p117
      %p120 = scmp.ne.s32.totalorder %s105, %s119
      %p121 = scmp.eq.s32.totalorder %s27, 0
      %p122 = por %p120, %p121
      %s124 = sadd.s32 %s123, 1
      %p127 = scmp.eq.s32.totalorder %s21, 1
      %p128 = scmp.ne.s32.totalorder %s123, %s125
      %p129 = scmp.eq.s32.totalorder %s21, 0
      %p130 = por %p128, %p129
      %p131 = scmp.ne.s32.totalorder %s123, %s125
      %p132 = scmp.eq.s32.totalorder %s26, 1
      %p133 = por %p131, %p132
      %p134 = scmp.ne.s32.totalorder %s125, %s126
      %p135 = scmp.eq.s32.totalorder %s26, 0
      %p136 = por %p134, %p135
      %p137 = scmp.ne.s32.totalorder %s125, %s126
      %p138 = scmp.eq.s32.totalorder %s27, 1
      %p139 = por %p137, %p138
      %p141 = scmp.ne.s32.totalorder %s126, %s140
      %p142 = scmp.eq.s32.totalorder %s27, 0
      %p143 = por %p141, %p142
      %s145 = sadd.s32 %s144, 1
      %p148 = scmp.eq.s32.totalorder %s21, 1
      %p149 = scmp.ne.s32.totalorder %s144, %s146
      %p150 = scmp.eq.s32.totalorder %s21, 0
      %p151 = por %p149, %p150
      %p152 = scmp.ne.s32.totalorder %s144, %s146
      %p153 = scmp.eq.s32.totalorder %s26, 1
      %p154 = por %p152, %p153
      %p155 = scmp.ne.s32.totalorder %s146, %s147
      %p156 = scmp.eq.s32.totalorder %s26, 0
      %p157 = por %p155, %p156
      %p158 = scmp.ne.s32.totalorder %s146, %s147
      %p159 = scmp.eq.s32.totalorder %s27, 1
      %p160 = por %p158, %p159
      %p162 = scmp.ne.s32.totalorder %s147, %s161
      %p163 = scmp.eq.s32.totalorder %s27, 0
      %p164 = por %p162, %p163
      %s166 = sadd.s32 %s165, 1
      %p169 = scmp.eq.s32.totalorder %s21, 1
      %p170 = scmp.ne.s32.totalorder %s165, %s167
      %p171 = scmp.eq.s32.totalorder %s21, 0
      %p172 = por %p170, %p171
      %p173 = scmp.ne.s32.totalorder %s165, %s167
      %p174 = scmp.eq.s32.totalorder %s26, 1
      %p175 = por %p173, %p174
      %p176 = scmp.ne.s32.totalorder %s167, %s168
      %p177 = scmp.eq.s32.totalorder %s26, 0
      %p178 = por %p176, %p177
      %p179 = scmp.ne.s32.totalorder %s167, %s168
      %p180 = scmp.eq.s32.totalorder %s27, 1
      %p181 = por %p179, %p180
      %p183 = scmp.ne.s32.totalorder %s168, %s182
      %p184 = scmp.eq.s32.totalorder %s27, 0
      %p185 = por %p183, %p184
      %s186 = ssub.s32 %s21, %s28
      %p187 = scmp.eq.s32.totalorder %s186, 0
      %s189 = sadd.s32 %s188, 1
      %s190 = scalar_select %p187, %s188, %s189
      %p193 = pneg %p187
      %p194 = scmp.eq.s32.totalorder %s21, 1
      %p195 = por %p193, %p194
      %p196 = scmp.ne.s32.totalorder %s188, %s191
      %p197 = scmp.eq.s32.totalorder %s21, 0
      %p198 = por %p196, %p197
      %p199 = scmp.ne.s32.totalorder %s188, %s191
      %p200 = scmp.eq.s32.totalorder %s26, 1
      %p201 = por %p199, %p200
      %p202 = scmp.ne.s32.totalorder %s191, %s192
      %p203 = scmp.eq.s32.totalorder %s26, 0
      %p204 = por %p202, %p203
      %p205 = scmp.ne.s32.totalorder %s191, %s192
      %p206 = scmp.eq.s32.totalorder %s27, 1
      %p207 = por %p205, %p206
      %p209 = scmp.ne.s32.totalorder %s192, %s208
      %p210 = scmp.eq.s32.totalorder %s27, 0
      %p211 = por %p209, %p210
      %p212 = scmp.le.s32.totalorder 1, %s21
      %p213 = scmp.lt.s32.totalorder %s21, 3
      %p214 = pnand %p212, %p213
      %p215 = pneg %p214
      // Predicated region
      $region9: #{tpu_custom_call.1} parent=5 // pred_check
        _
      $region10: #{tpu_custom_call.1} parent=5 // pred_check_branch
        %217 = sbr.rel (%p214) target = $region12
      $region11: #{tpu_custom_call.1} parent=5 // pred_region
        %s218 = ssub.s32 %s21, 1
        // Predicated region
        $region13: #{tpu_custom_call.1} parent=11 // pred_check
          %p219 = pneg %p94
        $region14: #{tpu_custom_call.1} parent=11 // pred_check_branch
          %221 = sbr.rel (%p219) target = $region16
        $region15: #{tpu_custom_call.1} parent=11 // pred_region
          _
        $region16: #{tpu_custom_call.1} parent=11 // pred_fallthru
          _
        // Predicated region
        $region17: #{tpu_custom_call.1} parent=11 // pred_check
          %p222 = pneg %p115
        $region18: #{tpu_custom_call.1} parent=11 // pred_check_branch
          %224 = sbr.rel (%p222) target = $region20
        $region19: #{tpu_custom_call.1} parent=11 // pred_region
          %226 = vsyncadd [#allocation6], 0
          %s227 = sshll.u32 %s3, 4
          %s228 = int_to_ptr.hbm [resolvable:$true] %s227
          %s229 = sshll.u32 [#allocation5], 4
          %s230 = int_to_ptr.vmem [resolvable:$true] %s229
          %235 = dma.hbm_to_vmem [thread:$0]  %s228, 1024, %s230, [#allocation6], 128, 128, 8
        $region20: #{tpu_custom_call.1} parent=11 // pred_fallthru
          _
        // Predicated region
        $region21: #{tpu_custom_call.1} parent=11 // pred_check
          %p236 = pneg %p136
        $region22: #{tpu_custom_call.1} parent=11 // pred_check_branch
          %238 = sbr.rel (%p236) target = $region24
        $region23: #{tpu_custom_call.1} parent=11 // pred_region
          %240 = vsyncadd [#allocation6], 0
          %s241 = sshll.u32 %s4, 4
          %s242 = int_to_ptr.hbm [resolvable:$true] %s241
          %s243 = sshll.u32 [#allocation7], 4
          %s244 = int_to_ptr.vmem [resolvable:$true] %s243
          %249 = dma.hbm_to_vmem [thread:$0]  %s242, 1024, %s244, [#allocation6], 128, 128, 8
        $region24: #{tpu_custom_call.1} parent=11 // pred_fallthru
          _
        // Predicated region
        $region25: #{tpu_custom_call.1} parent=11 // pred_check
          %p250 = pneg %p157
        $region26: #{tpu_custom_call.1} parent=11 // pred_check_branch
          %252 = sbr.rel (%p250) target = $region28
        $region27: #{tpu_custom_call.1} parent=11 // pred_region
          %254 = vsyncadd [#allocation9], 0
          %s255 = sshll.u32 %s5, 4
          %s256 = int_to_ptr.hbm [resolvable:$true] %s255
          %s257 = sshll.u32 [#allocation8], 4
          %s258 = int_to_ptr.vmem [resolvable:$true] %s257
          %263 = dma.hbm_to_vmem [thread:$0]  %s256, 1024, %s258, [#allocation9], 128, 128, 8
        $region28: #{tpu_custom_call.1} parent=11 // pred_fallthru
          _
        // Predicated region
        $region29: #{tpu_custom_call.1} parent=11 // pred_check
          %p264 = pneg %p178
        $region30: #{tpu_custom_call.1} parent=11 // pred_check_branch
          %266 = sbr.rel (%p264) target = $region32
        $region31: #{tpu_custom_call.1} parent=11 // pred_region
          _
        $region32: #{tpu_custom_call.1} parent=11 // pred_fallthru
          _
      $region12: #{tpu_custom_call.1} parent=5 // pred_fallthru
        _
      %p267 = scmp.lt.s32.totalorder %s21, 2
      // Predicated region
      $region33: #{tpu_custom_call.1} parent=5 // pred_check
        %p268 = pneg %p267
      $region34: #{tpu_custom_call.1} parent=5 // pred_check_branch
        %270 = sbr.rel (%p268) target = $region36
      $region35: #{tpu_custom_call.1} parent=5 // pred_region
        // Predicated region
        $region37: #{tpu_custom_call.1} parent=35 // pred_check
          %p271 = pneg %p41
        $region38: #{tpu_custom_call.1} parent=35 // pred_check_branch
          %273 = sbr.rel (%p271) target = $region40
        $region39: #{tpu_custom_call.1} parent=35 // pred_region
          %s274 = sand.u32 %s31, 1
          %s275 = scalar_lea.sflag [#allocation3], %s274
          %s276 = sand.u32 %s31, 1
          %s277 = smul.addr %s276, 64
          %s278 = scalar_lea.vmem [#allocation2], %s277
          %s279 = smul.u32 8, %s21
          %281 = vsyncadd %s275, 0
          %s282 = smul.addr %s279, 8
          %s283 = scalar_lea.hbm %s0, %s282
          %s284 = sshll.u32 %s283, 4
          %s285 = int_to_ptr.hbm [resolvable:$true] %s284
          %s286 = sshll.u32 %s278, 4
          %s287 = int_to_ptr.vmem [resolvable:$true] %s286
          %292 = dma.hbm_to_vmem [thread:$0]  %s285, 1024, %s287, %s275, 128, 128, 8
        $region40: #{tpu_custom_call.1} parent=35 // pred_fallthru
          _
        // Predicated region
        $region41: #{tpu_custom_call.1} parent=35 // pred_check
          %p293 = pneg %p67
        $region42: #{tpu_custom_call.1} parent=35 // pred_check_branch
          %295 = sbr.rel (%p293) target = $region44
        $region43: #{tpu_custom_call.1} parent=35 // pred_region
          %s296 = smul.u32 8, %s21
          %p297 = scmp.lt.s32.totalorder %s296, 15
          %s298 = scalar_select %p297, %s296, 15
          %s299 = smul.addr %s298, 4
          %s300 = scalar_lea.vmem %s1, %s299
          %s301 = smul.u32 8, %s21
        $region44: #{tpu_custom_call.1} parent=35 // pred_fallthru
          _
      $region36: #{tpu_custom_call.1} parent=5 // pred_fallthru
        _
      %p302 = scmp.le.s32.totalorder 1, %s21
      %p303 = scmp.lt.s32.totalorder %s21, 3
      %p304 = pnand %p302, %p303
      %p305 = pneg %p304
      // Predicated region
      $region45: #{tpu_custom_call.1} parent=5 // pred_check
        _
      $region46: #{tpu_custom_call.1} parent=5 // pred_check_branch
        %307 = sbr.rel (%p304) target = $region48
      $region47: #{tpu_custom_call.1} parent=5 // pred_region
        %s308 = ssub.s32 %s21, 1
        %s309 = sand.u32 %s34, 1
        %s310 = scalar_lea.sflag [#allocation3], %s309
        %s311 = sand.u32 %s34, 1
        %s312 = smul.addr %s311, 64
        %s313 = scalar_lea.vmem [#allocation2], %s312
        // Predicated region
        $region49: #{tpu_custom_call.1} parent=47 // pred_check
          %p314 = pneg %p47
        $region50: #{tpu_custom_call.1} parent=47 // pred_check_branch
          %316 = sbr.rel (%p314) target = $region52
        $region51: #{tpu_custom_call.1} parent=47 // pred_region
          %318 = dma.done %s310, 1024
        $region52: #{tpu_custom_call.1} parent=47 // pred_fallthru
          _
        // Predicated region
        $region53: #{tpu_custom_call.1} parent=47 // pred_check
          %p319 = pneg %p115
        $region54: #{tpu_custom_call.1} parent=47 // pred_check_branch
          %321 = sbr.rel (%p319) target = $region56
        $region55: #{tpu_custom_call.1} parent=47 // pred_region
          %323 = dma.done [#allocation6], 1024
        $region56: #{tpu_custom_call.1} parent=47 // pred_fallthru
          _
        // Predicated region
        $region57: #{tpu_custom_call.1} parent=47 // pred_check
          %p324 = pneg %p136
        $region58: #{tpu_custom_call.1} parent=47 // pred_check_branch
          %326 = sbr.rel (%p324) target = $region60
        $region59: #{tpu_custom_call.1} parent=47 // pred_region
          %328 = dma.done [#allocation6], 1024
        $region60: #{tpu_custom_call.1} parent=47 // pred_fallthru
          _
        // Predicated region
        $region61: #{tpu_custom_call.1} parent=47 // pred_check
          %p329 = pneg %p157
        $region62: #{tpu_custom_call.1} parent=47 // pred_check_branch
          %331 = sbr.rel (%p329) target = $region64
        $region63: #{tpu_custom_call.1} parent=47 // pred_region
          %333 = dma.done [#allocation9], 1024
        $region64: #{tpu_custom_call.1} parent=47 // pred_fallthru
          _
        %s334 = sand.u32 %s34, 1
        %s335 = scalar_lea.sflag [#allocation3], %s334
        %s336 = sand.u32 %s34, 1
        %s337 = smul.addr %s336, 64
        %s338 = scalar_lea.vmem [#allocation2], %s337
        %p339 = pneg %p47
        %p340 = pneg %p44
        %s341 = smul.u32 8, %s26
        %p342 = scmp.lt.s32.totalorder %s341, 15
        %s343 = scalar_select %p342, %s341, 15
        %s344 = smul.addr %s343, 4
        %s345 = scalar_lea.vmem %s1, %s344
        %p346 = pneg %p73
        %p347 = pneg %p70
        %p348 = pneg %p94
        %p349 = pneg %p91
        %p350 = pneg %p115
        %p351 = pneg %p112
        %p352 = pneg %p136
        %p353 = pneg %p133
        %p354 = pneg %p157
        %p355 = pneg %p154
        %p356 = pneg %p178
        %p357 = pneg %p175
        %p358 = pneg %p204
        %p359 = pneg %p201
        %s360 = sand.u32 %s191, 1
        %s361 = scalar_lea.sflag [#allocation4], %s360
        %s362 = sand.u32 %s191, 1
        %s363 = smul.addr %s362, 8
        %s364 = scalar_lea.vmem [#allocation10], %s363
        %s365 = smul.u32 8, %s26
        %s366 = smul.u32 8, %s26
        %p367 = scmp.lt.s32.totalorder %s366, 15
        %s368 = scalar_select %p367, %s366, 15
        %s369 = smul.addr %s368, 4
        %s370 = scalar_lea.vmem %s1, %s369
        %s371 = smul.u32 8, %s26
        %v372 = vld [vmem:[%s313] sm:$0xff]
        %v373 = vld [vmem:[%s313 + $0x8] sm:$0xff]
        %v374 = vld [vmem:[%s313 + $0x10] sm:$0xff]
        %v375 = vld [vmem:[%s313 + $0x18] sm:$0xff]
        %v376 = vld [vmem:[%s313 + $0x20] sm:$0xff]
        %v377 = vld [vmem:[%s313 + $0x28] sm:$0xff]
        %v378 = vld [vmem:[%s313 + $0x30] sm:$0xff]
        %v379 = vld [vmem:[%s313 + $0x38] sm:$0xff]
        %v380 = vlaneseq
        %v381 = vand.u32 %v380, 127
        %vm382 = vcmp.lt.s32.totalorder %v381, 5
        %v383 = vsel %vm382, 0.0, -1e+30
        %v384 = vld [vmem:[%s6] sm:$0xff]
        %v385 = vld [vmem:[%s6 + $0x8] sm:$0xf]
        %v386 = vld [vmem:[%s2] sm:$0xff]
        %v387 = vld [vmem:[%s2 + $0x8] sm:$0xff]
        %v388 = vld [vmem:[%s2 + $0x10] sm:$0xff]
        %v389 = vld [vmem:[%s2 + $0x18] sm:$0xff]
        %vm390 = vcmask 261120
        %v392 = vsel %vm390, %v372, 0
        %v395 = vsel %vm390, %v373, 0
        %v398 = vsel %vm390, %v374, 0
        %v401 = vsel %vm390, %v375, 0
        %v404 = vsel %vm390, %v376, 0
        %v407 = vsel %vm390, %v377, 0
        %v410 = vsel %vm390, %v378, 0
        %v413 = vsel %vm390, %v379, 0
        %415 = vmatpush.msra.mxu0 0.0
        %416 = vmatpush.msra.mxu0 0.0
        %417 = vmatpush.msra.mxu0 0.0
        %418 = vmatpush.msra.mxu0 0.0
        %419 = vmatpush.msra.mxu0 0.0
        %420 = vmatpush.msra.mxu0 0.0
        %421 = vmatpush.msra.mxu0 0.0
        %422 = vmatpush.msra.mxu0 0.0
        %423 = vmatpush.msra.mxu0 0.0
        %424 = vmatpush.msra.mxu0 0.0
        %425 = vmatpush.msra.mxu0 0.0
        %426 = vmatpush.msra.mxu0 0.0
        %427 = vmatpush.msra.mxu0 %v389
        %428 = vmatpush.msra.mxu0 %v388
        %429 = vmatpush.msra.mxu0 %v387
        %430 = vmatpush.msra.mxu0 %v386
        %431 = vmatmul.f32.gmra.mxu0 %v392
        %v432 = vpop.f32.mrf.mxu0
        %v433 = vadd.f32 0.0, %v432
        %434 = vmatmul.f32.gmra.mxu0 %v395
        %v435 = vpop.f32.mrf.mxu0
        %v436 = vadd.f32 0.0, %v435
        %437 = vmatmul.f32.gmra.mxu0 %v398
        %v438 = vpop.f32.mrf.mxu0
        %v439 = vadd.f32 0.0, %v438
        %440 = vmatmul.f32.gmra.mxu0 %v401
        %v441 = vpop.f32.mrf.mxu0
        %v442 = vadd.f32 0.0, %v441
        %443 = vmatmul.f32.gmra.mxu0 %v404
        %v444 = vpop.f32.mrf.mxu0
        %v445 = vadd.f32 0.0, %v444
        %446 = vmatmul.f32.gmra.mxu0 %v407
        %v447 = vpop.f32.mrf.mxu0
        %v448 = vadd.f32 0.0, %v447
        %449 = vmatmul.f32.gmra.mxu0 %v410
        %v450 = vpop.f32.mrf.mxu0
        %v451 = vadd.f32 0.0, %v450
        %452 = vmatmul.f32.gmra.mxu0 %v413
        %v453 = vpop.f32.mrf.mxu0
        %v454 = vadd.f32 0.0, %v453
        %455 = vdwg.mxu0
        %v456 = vperm.slane %v384, 0
        %v457 = vadd.f32 %v433, %v456
        %v458 = vadd.f32 %v436, %v456
        %v459 = vadd.f32 %v439, %v456
        %v460 = vadd.f32 %v442, %v456
        %v461 = vadd.f32 %v445, %v456
        %v462 = vadd.f32 %v448, %v456
        %v463 = vadd.f32 %v451, %v456
        %v464 = vadd.f32 %v454, %v456
        %v465 = vperm.slane %v384, 1
        %467 = vrot.lane.b32.xlu0 %v465, 32
        %v468 = vpop.permute.xlu0 %467
        %v470 = vadd.f32 %v433, %v468
        %v471 = vadd.f32 %v436, %v468
        %v472 = vadd.f32 %v439, %v468
        %v473 = vadd.f32 %v442, %v468
        %v474 = vadd.f32 %v445, %v468
        %v475 = vadd.f32 %v448, %v468
        %v476 = vadd.f32 %v451, %v468
        %v477 = vadd.f32 %v454, %v468
        %v478 = vperm.slane %v384, 2
        %480 = vrot.lane.b32.xlu0 %v478, 64
        %v481 = vpop.permute.xlu0 %480
        %v483 = vadd.f32 %v433, %v481
        %v484 = vadd.f32 %v436, %v481
        %v485 = vadd.f32 %v439, %v481
        %v486 = vadd.f32 %v442, %v481
        %v487 = vadd.f32 %v445, %v481
        %v488 = vadd.f32 %v448, %v481
        %v489 = vadd.f32 %v451, %v481
        %v490 = vadd.f32 %v454, %v481
        %492 = vrot.lane.b32.xlu0 %v470, 96
        %v493 = vpop.permute.xlu0 %492
        %vm494 = vcmask 64512
        %v496 = vsel %vm494, %v457, 0
        %v498 = vsel %vm494, %v493, 0
        %500 = vmatpush.xpose.msra.mxu0 0.0
        %501 = vmatpush.xpose.msra.mxu0 0.0
        %502 = vmatpush.xpose.msra.mxu0 0.0
        %503 = vmatpush.xpose.msra.mxu0 0.0
        %504 = vmatpush.xpose.msra.mxu0 0.0
        %505 = vmatpush.xpose.msra.mxu0 0.0
        %506 = vmatpush.xpose.msra.mxu0 0.0
        %507 = vmatpush.xpose.msra.mxu0 0.0
        %508 = vmatpush.xpose.msra.mxu0 0.0
        %509 = vmatpush.xpose.msra.mxu0 0.0
        %510 = vmatpush.xpose.msra.mxu0 0.0
        %511 = vmatpush.xpose.msra.mxu0 0.0
        %512 = vmatpush.xpose.msra.mxu0 0.0
        %513 = vmatpush.xpose.msra.mxu0 0.0
        %514 = vmatpush.xpose.msra.mxu0 0.0
        %515 = vmatpush.xpose.msra.mxu0 %v498
        %516 = vmatmul.f32.gmra.mxu0 %v496
        %v517 = vpop.f32.mrf.mxu0
        %v518 = vadd.f32 %v383, %v517
        %519 = vdwg.mxu0
        %521 = vrot.lane.b32.xlu0 %v471, 96
        %v522 = vpop.permute.xlu0 %521
        %v524 = vsel %vm494, %v458, 0
        %v526 = vsel %vm494, %v522, 0
        %528 = vmatpush.xpose.msra.mxu0 0.0
        %529 = vmatpush.xpose.msra.mxu0 0.0
        %530 = vmatpush.xpose.msra.mxu0 0.0
        %531 = vmatpush.xpose.msra.mxu0 0.0
        %532 = vmatpush.xpose.msra.mxu0 0.0
        %533 = vmatpush.xpose.msra.mxu0 0.0
        %534 = vmatpush.xpose.msra.mxu0 0.0
        %535 = vmatpush.xpose.msra.mxu0 0.0
        %536 = vmatpush.xpose.msra.mxu0 0.0
        %537 = vmatpush.xpose.msra.mxu0 0.0
        %538 = vmatpush.xpose.msra.mxu0 0.0
        %539 = vmatpush.xpose.msra.mxu0 0.0
        %540 = vmatpush.xpose.msra.mxu0 0.0
        %541 = vmatpush.xpose.msra.mxu0 0.0
        %542 = vmatpush.xpose.msra.mxu0 0.0
        %543 = vmatpush.xpose.msra.mxu0 %v526
        %544 = vmatmul.f32.gmra.mxu0 %v524
        %v545 = vpop.f32.mrf.mxu0
        %v546 = vadd.f32 %v383, %v545
        %547 = vdwg.mxu0
        %549 = vrot.lane.b32.xlu0 %v472, 96
        %v550 = vpop.permute.xlu0 %549
        %v552 = vsel %vm494, %v459, 0
        %v554 = vsel %vm494, %v550, 0
        %556 = vmatpush.xpose.msra.mxu0 0.0
        %557 = vmatpush.xpose.msra.mxu0 0.0
        %558 = vmatpush.xpose.msra.mxu0 0.0
        %559 = vmatpush.xpose.msra.mxu0 0.0
        %560 = vmatpush.xpose.msra.mxu0 0.0
        %561 = vmatpush.xpose.msra.mxu0 0.0
        %562 = vmatpush.xpose.msra.mxu0 0.0
        %563 = vmatpush.xpose.msra.mxu0 0.0
        %564 = vmatpush.xpose.msra.mxu0 0.0
        %565 = vmatpush.xpose.msra.mxu0 0.0
        %566 = vmatpush.xpose.msra.mxu0 0.0
        %567 = vmatpush.xpose.msra.mxu0 0.0
        %568 = vmatpush.xpose.msra.mxu0 0.0
        %569 = vmatpush.xpose.msra.mxu0 0.0
        %570 = vmatpush.xpose.msra.mxu0 0.0
        %571 = vmatpush.xpose.msra.mxu0 %v554
        %572 = vmatmul.f32.gmra.mxu0 %v552
        %v573 = vpop.f32.mrf.mxu0
        %v574 = vadd.f32 %v383, %v573
        %575 = vdwg.mxu0
        %577 = vrot.lane.b32.xlu0 %v473, 96
        %v578 = vpop.permute.xlu0 %577
        %v580 = vsel %vm494, %v460, 0
        %v582 = vsel %vm494, %v578, 0
        %584 = vmatpush.xpose.msra.mxu0 0.0
        %585 = vmatpush.xpose.msra.mxu0 0.0
        %586 = vmatpush.xpose.msra.mxu0 0.0
        %587 = vmatpush.xpose.msra.mxu0 0.0
        %588 = vmatpush.xpose.msra.mxu0 0.0
        %589 = vmatpush.xpose.msra.mxu0 0.0
        %590 = vmatpush.xpose.msra.mxu0 0.0
        %591 = vmatpush.xpose.msra.mxu0 0.0
        %592 = vmatpush.xpose.msra.mxu0 0.0
        %593 = vmatpush.xpose.msra.mxu0 0.0
        %594 = vmatpush.xpose.msra.mxu0 0.0
        %595 = vmatpush.xpose.msra.mxu0 0.0
        %596 = vmatpush.xpose.msra.mxu0 0.0
        %597 = vmatpush.xpose.msra.mxu0 0.0
        %598 = vmatpush.xpose.msra.mxu0 0.0
        %599 = vmatpush.xpose.msra.mxu0 %v582
        %600 = vmatmul.f32.gmra.mxu0 %v580
        %v601 = vpop.f32.mrf.mxu0
        %v602 = vadd.f32 %v383, %v601
        %603 = vdwg.mxu0
        %605 = vrot.lane.b32.xlu0 %v474, 96
        %v606 = vpop.permute.xlu0 %605
        %v608 = vsel %vm494, %v461, 0
        %v610 = vsel %vm494, %v606, 0
        %612 = vmatpush.xpose.msra.mxu0 0.0
        %613 = vmatpush.xpose.msra.mxu0 0.0
        %614 = vmatpush.xpose.msra.mxu0 0.0
        %615 = vmatpush.xpose.msra.mxu0 0.0
        %616 = vmatpush.xpose.msra.mxu0 0.0
        %617 = vmatpush.xpose.msra.mxu0 0.0
        %618 = vmatpush.xpose.msra.mxu0 0.0
        %619 = vmatpush.xpose.msra.mxu0 0.0
        %620 = vmatpush.xpose.msra.mxu0 0.0
        %621 = vmatpush.xpose.msra.mxu0 0.0
        %622 = vmatpush.xpose.msra.mxu0 0.0
        %623 = vmatpush.xpose.msra.mxu0 0.0
        %624 = vmatpush.xpose.msra.mxu0 0.0
        %625 = vmatpush.xpose.msra.mxu0 0.0
        %626 = vmatpush.xpose.msra.mxu0 0.0
        %627 = vmatpush.xpose.msra.mxu0 %v610
        %628 = vmatmul.f32.gmra.mxu0 %v608
        %v629 = vpop.f32.mrf.mxu0
        %v630 = vadd.f32 %v383, %v629
        %631 = vdwg.mxu0
        %633 = vrot.lane.b32.xlu0 %v475, 96
        %v634 = vpop.permute.xlu0 %633
        %v636 = vsel %vm494, %v462, 0
        %v638 = vsel %vm494, %v634, 0
        %640 = vmatpush.xpose.msra.mxu0 0.0
        %641 = vmatpush.xpose.msra.mxu0 0.0
        %642 = vmatpush.xpose.msra.mxu0 0.0
        %643 = vmatpush.xpose.msra.mxu0 0.0
        %644 = vmatpush.xpose.msra.mxu0 0.0
        %645 = vmatpush.xpose.msra.mxu0 0.0
        %646 = vmatpush.xpose.msra.mxu0 0.0
        %647 = vmatpush.xpose.msra.mxu0 0.0
        %648 = vmatpush.xpose.msra.mxu0 0.0
        %649 = vmatpush.xpose.msra.mxu0 0.0
        %650 = vmatpush.xpose.msra.mxu0 0.0
        %651 = vmatpush.xpose.msra.mxu0 0.0
        %652 = vmatpush.xpose.msra.mxu0 0.0
        %653 = vmatpush.xpose.msra.mxu0 0.0
        %654 = vmatpush.xpose.msra.mxu0 0.0
        %655 = vmatpush.xpose.msra.mxu0 %v638
        %656 = vmatmul.f32.gmra.mxu0 %v636
        %v657 = vpop.f32.mrf.mxu0
        %v658 = vadd.f32 %v383, %v657
        %659 = vdwg.mxu0
        %661 = vrot.lane.b32.xlu0 %v476, 96
        %v662 = vpop.permute.xlu0 %661
        %v664 = vsel %vm494, %v463, 0
        %v666 = vsel %vm494, %v662, 0
        %668 = vmatpush.xpose.msra.mxu0 0.0
        %669 = vmatpush.xpose.msra.mxu0 0.0
        %670 = vmatpush.xpose.msra.mxu0 0.0
        %671 = vmatpush.xpose.msra.mxu0 0.0
        %672 = vmatpush.xpose.msra.mxu0 0.0
        %673 = vmatpush.xpose.msra.mxu0 0.0
        %674 = vmatpush.xpose.msra.mxu0 0.0
        %675 = vmatpush.xpose.msra.mxu0 0.0
        %676 = vmatpush.xpose.msra.mxu0 0.0
        %677 = vmatpush.xpose.msra.mxu0 0.0
        %678 = vmatpush.xpose.msra.mxu0 0.0
        %679 = vmatpush.xpose.msra.mxu0 0.0
        %680 = vmatpush.xpose.msra.mxu0 0.0
        %681 = vmatpush.xpose.msra.mxu0 0.0
        %682 = vmatpush.xpose.msra.mxu0 0.0
        %683 = vmatpush.xpose.msra.mxu0 %v666
        %684 = vmatmul.f32.gmra.mxu0 %v664
        %v685 = vpop.f32.mrf.mxu0
        %v686 = vadd.f32 %v383, %v685
        %687 = vdwg.mxu0
        %689 = vrot.lane.b32.xlu0 %v477, 96
        %v690 = vpop.permute.xlu0 %689
        %v692 = vsel %vm494, %v464, 0
        %v694 = vsel %vm494, %v690, 0
        %696 = vmatpush.xpose.msra.mxu0 0.0
        %697 = vmatpush.xpose.msra.mxu0 0.0
        %698 = vmatpush.xpose.msra.mxu0 0.0
        %699 = vmatpush.xpose.msra.mxu0 0.0
        %700 = vmatpush.xpose.msra.mxu0 0.0
        %701 = vmatpush.xpose.msra.mxu0 0.0
        %702 = vmatpush.xpose.msra.mxu0 0.0
        %703 = vmatpush.xpose.msra.mxu0 0.0
        %704 = vmatpush.xpose.msra.mxu0 0.0
        %705 = vmatpush.xpose.msra.mxu0 0.0
        %706 = vmatpush.xpose.msra.mxu0 0.0
        %707 = vmatpush.xpose.msra.mxu0 0.0
        %708 = vmatpush.xpose.msra.mxu0 0.0
        %709 = vmatpush.xpose.msra.mxu0 0.0
        %710 = vmatpush.xpose.msra.mxu0 0.0
        %711 = vmatpush.xpose.msra.mxu0 %v694
        %712 = vmatmul.f32.gmra.mxu0 %v692
        %v713 = vpop.f32.mrf.mxu0
        %v714 = vadd.f32 %v383, %v713
        %715 = vdwg.mxu0
        %v716 = vsel %vm494, %v518, -inf
        %717 = vmax.xlane.f32.xlu0 %v716
        %v718 = vpop.xlane.xlu0 %717
        %v719 = vsel %vm494, %v546, -inf
        %720 = vmax.xlane.f32.xlu0 %v719
        %v721 = vpop.xlane.xlu0 %720
        %v722 = vsel %vm494, %v574, -inf
        %723 = vmax.xlane.f32.xlu0 %v722
        %v724 = vpop.xlane.xlu0 %723
        %v725 = vsel %vm494, %v602, -inf
        %726 = vmax.xlane.f32.xlu0 %v725
        %v727 = vpop.xlane.xlu0 %726
        %v728 = vsel %vm494, %v630, -inf
        %729 = vmax.xlane.f32.xlu0 %v728
        %v730 = vpop.xlane.xlu0 %729
        %v731 = vsel %vm494, %v658, -inf
        %732 = vmax.xlane.f32.xlu0 %v731
        %v733 = vpop.xlane.xlu0 %732
        %v734 = vsel %vm494, %v686, -inf
        %735 = vmax.xlane.f32.xlu0 %v734
        %v736 = vpop.xlane.xlu0 %735
        %v737 = vsel %vm494, %v714, -inf
        %738 = vmax.xlane.f32.xlu0 %v737
        %v739 = vpop.xlane.xlu0 %738
        %v740 = vsub.f32 %v518, %v718
        %v741 = vsub.f32 %v546, %v721
        %v742 = vsub.f32 %v574, %v724
        %v743 = vsub.f32 %v602, %v727
        %v744 = vsub.f32 %v630, %v730
        %v745 = vsub.f32 %v658, %v733
        %v746 = vsub.f32 %v686, %v736
        %v747 = vsub.f32 %v714, %v739
        %v748 = vmul.f32 %v740, 1.442695
        %v749 = vpow.pop %v748
        %v750 = vmul.f32 %v741, 1.442695
        %v751 = vpow.pop %v750
        %v752 = vmul.f32 %v742, 1.442695
        %v753 = vpow.pop %v752
        %v754 = vmul.f32 %v743, 1.442695
        %v755 = vpow.pop %v754
        %v756 = vmul.f32 %v744, 1.442695
        %v757 = vpow.pop %v756
        %v758 = vmul.f32 %v745, 1.442695
        %v759 = vpow.pop %v758
        %v760 = vmul.f32 %v746, 1.442695
        %v761 = vpow.pop %v760
        %v762 = vmul.f32 %v747, 1.442695
        %v763 = vpow.pop %v762
        %v764 = vsel %vm494, %v749, 0.0
        %765 = vadd.xlane.f32.xlu0 %v764
        %v766 = vpop.xlane.xlu0 %765
        %v767 = vsel %vm494, %v751, 0.0
        %768 = vadd.xlane.f32.xlu0 %v767
        %v769 = vpop.xlane.xlu0 %768
        %v770 = vsel %vm494, %v753, 0.0
        %771 = vadd.xlane.f32.xlu0 %v770
        %v772 = vpop.xlane.xlu0 %771
        %v773 = vsel %vm494, %v755, 0.0
        %774 = vadd.xlane.f32.xlu0 %v773
        %v775 = vpop.xlane.xlu0 %774
        %v776 = vsel %vm494, %v757, 0.0
        %777 = vadd.xlane.f32.xlu0 %v776
        %v778 = vpop.xlane.xlu0 %777
        %v779 = vsel %vm494, %v759, 0.0
        %780 = vadd.xlane.f32.xlu0 %v779
        %v781 = vpop.xlane.xlu0 %780
        %v782 = vsel %vm494, %v761, 0.0
        %783 = vadd.xlane.f32.xlu0 %v782
        %v784 = vpop.xlane.xlu0 %783
        %v785 = vsel %vm494, %v763, 0.0
        %786 = vadd.xlane.f32.xlu0 %v785
        %v787 = vpop.xlane.xlu0 %786
        %v788 = vrcp.pop %v766
        %v789 = vrcp.pop %v769
        %v790 = vrcp.pop %v772
        %v791 = vrcp.pop %v775
        %v792 = vrcp.pop %v778
        %v793 = vrcp.pop %v781
        %v794 = vrcp.pop %v784
        %v795 = vrcp.pop %v787
        %v796 = vmul.f32 %v749, %v788
        %v797 = vmul.f32 %v751, %v789
        %v798 = vmul.f32 %v753, %v790
        %v799 = vmul.f32 %v755, %v791
        %v800 = vmul.f32 %v757, %v792
        %v801 = vmul.f32 %v759, %v793
        %v802 = vmul.f32 %v761, %v794
        %v803 = vmul.f32 %v763, %v795
        %805 = vrot.lane.b32.xlu0 %v483, 64
        %v806 = vpop.permute.xlu0 %805
        %v809 = vsel %vm494, %v796, 0
        %811 = vmatpush.msra.mxu0 0.0
        %812 = vmatpush.msra.mxu0 0.0
        %813 = vmatpush.msra.mxu0 0.0
        %814 = vmatpush.msra.mxu0 0.0
        %815 = vmatpush.msra.mxu0 0.0
        %816 = vmatpush.msra.mxu0 0.0
        %817 = vmatpush.msra.mxu0 0.0
        %818 = vmatpush.msra.mxu0 0.0
        %819 = vmatpush.msra.mxu0 0.0
        %820 = vmatpush.msra.mxu0 0.0
        %821 = vmatpush.msra.mxu0 0.0
        %822 = vmatpush.msra.mxu0 0.0
        %823 = vmatpush.msra.mxu0 0.0
        %824 = vmatpush.msra.mxu0 0.0
        %825 = vmatpush.msra.mxu0 0.0
        %826 = vmatpush.msra.mxu0 %v806
        %827 = vmatmul.f32.gmra.mxu0 %v809
        %v828 = vpop.f32.mrf.mxu0
        %v829 = vadd.f32 0.0, %v828
        %830 = vdwg.mxu0
        %832 = vrot.lane.b32.xlu0 %v484, 64
        %v833 = vpop.permute.xlu0 %832
        %v836 = vsel %vm494, %v797, 0
        %838 = vmatpush.msra.mxu0 0.0
        %839 = vmatpush.msra.mxu0 0.0
        %840 = vmatpush.msra.mxu0 0.0
        %841 = vmatpush.msra.mxu0 0.0
        %842 = vmatpush.msra.mxu0 0.0
        %843 = vmatpush.msra.mxu0 0.0
        %844 = vmatpush.msra.mxu0 0.0
        %845 = vmatpush.msra.mxu0 0.0
        %846 = vmatpush.msra.mxu0 0.0
        %847 = vmatpush.msra.mxu0 0.0
        %848 = vmatpush.msra.mxu0 0.0
        %849 = vmatpush.msra.mxu0 0.0
        %850 = vmatpush.msra.mxu0 0.0
        %851 = vmatpush.msra.mxu0 0.0
        %852 = vmatpush.msra.mxu0 0.0
        %853 = vmatpush.msra.mxu0 %v833
        %854 = vmatmul.f32.gmra.mxu0 %v836
        %v855 = vpop.f32.mrf.mxu0
        %v856 = vadd.f32 0.0, %v855
        %857 = vdwg.mxu0
        %859 = vrot.lane.b32.xlu0 %v485, 64
        %v860 = vpop.permute.xlu0 %859
        %v863 = vsel %vm494, %v798, 0
        %865 = vmatpush.msra.mxu0 0.0
        %866 = vmatpush.msra.mxu0 0.0
        %867 = vmatpush.msra.mxu0 0.0
        %868 = vmatpush.msra.mxu0 0.0
        %869 = vmatpush.msra.mxu0 0.0
        %870 = vmatpush.msra.mxu0 0.0
        %871 = vmatpush.msra.mxu0 0.0
        %872 = vmatpush.msra.mxu0 0.0
        %873 = vmatpush.msra.mxu0 0.0
        %874 = vmatpush.msra.mxu0 0.0
        %875 = vmatpush.msra.mxu0 0.0
        %876 = vmatpush.msra.mxu0 0.0
        %877 = vmatpush.msra.mxu0 0.0
        %878 = vmatpush.msra.mxu0 0.0
        %879 = vmatpush.msra.mxu0 0.0
        %880 = vmatpush.msra.mxu0 %v860
        %881 = vmatmul.f32.gmra.mxu0 %v863
        %v882 = vpop.f32.mrf.mxu0
        %v883 = vadd.f32 0.0, %v882
        %884 = vdwg.mxu0
        %886 = vrot.lane.b32.xlu0 %v486, 64
        %v887 = vpop.permute.xlu0 %886
        %v890 = vsel %vm494, %v799, 0
        %892 = vmatpush.msra.mxu0 0.0
        %893 = vmatpush.msra.mxu0 0.0
        %894 = vmatpush.msra.mxu0 0.0
        %895 = vmatpush.msra.mxu0 0.0
        %896 = vmatpush.msra.mxu0 0.0
        %897 = vmatpush.msra.mxu0 0.0
        %898 = vmatpush.msra.mxu0 0.0
        %899 = vmatpush.msra.mxu0 0.0
        %900 = vmatpush.msra.mxu0 0.0
        %901 = vmatpush.msra.mxu0 0.0
        %902 = vmatpush.msra.mxu0 0.0
        %903 = vmatpush.msra.mxu0 0.0
        %904 = vmatpush.msra.mxu0 0.0
        %905 = vmatpush.msra.mxu0 0.0
        %906 = vmatpush.msra.mxu0 0.0
        %907 = vmatpush.msra.mxu0 %v887
        %908 = vmatmul.f32.gmra.mxu0 %v890
        %v909 = vpop.f32.mrf.mxu0
        %v910 = vadd.f32 0.0, %v909
        %911 = vdwg.mxu0
        %913 = vrot.lane.b32.xlu0 %v487, 64
        %v914 = vpop.permute.xlu0 %913
        %v917 = vsel %vm494, %v800, 0
        %919 = vmatpush.msra.mxu0 0.0
        %920 = vmatpush.msra.mxu0 0.0
        %921 = vmatpush.msra.mxu0 0.0
        %922 = vmatpush.msra.mxu0 0.0
        %923 = vmatpush.msra.mxu0 0.0
        %924 = vmatpush.msra.mxu0 0.0
        %925 = vmatpush.msra.mxu0 0.0
        %926 = vmatpush.msra.mxu0 0.0
        %927 = vmatpush.msra.mxu0 0.0
        %928 = vmatpush.msra.mxu0 0.0
        %929 = vmatpush.msra.mxu0 0.0
        %930 = vmatpush.msra.mxu0 0.0
        %931 = vmatpush.msra.mxu0 0.0
        %932 = vmatpush.msra.mxu0 0.0
        %933 = vmatpush.msra.mxu0 0.0
        %934 = vmatpush.msra.mxu0 %v914
        %935 = vmatmul.f32.gmra.mxu0 %v917
        %v936 = vpop.f32.mrf.mxu0
        %v937 = vadd.f32 0.0, %v936
        %938 = vdwg.mxu0
        %940 = vrot.lane.b32.xlu0 %v488, 64
        %v941 = vpop.permute.xlu0 %940
        %v944 = vsel %vm494, %v801, 0
        %946 = vmatpush.msra.mxu0 0.0
        %947 = vmatpush.msra.mxu0 0.0
        %948 = vmatpush.msra.mxu0 0.0
        %949 = vmatpush.msra.mxu0 0.0
        %950 = vmatpush.msra.mxu0 0.0
        %951 = vmatpush.msra.mxu0 0.0
        %952 = vmatpush.msra.mxu0 0.0
        %953 = vmatpush.msra.mxu0 0.0
        %954 = vmatpush.msra.mxu0 0.0
        %955 = vmatpush.msra.mxu0 0.0
        %956 = vmatpush.msra.mxu0 0.0
        %957 = vmatpush.msra.mxu0 0.0
        %958 = vmatpush.msra.mxu0 0.0
        %959 = vmatpush.msra.mxu0 0.0
        %960 = vmatpush.msra.mxu0 0.0
        %961 = vmatpush.msra.mxu0 %v941
        %962 = vmatmul.f32.gmra.mxu0 %v944
        %v963 = vpop.f32.mrf.mxu0
        %v964 = vadd.f32 0.0, %v963
        %965 = vdwg.mxu0
        %967 = vrot.lane.b32.xlu0 %v489, 64
        %v968 = vpop.permute.xlu0 %967
        %v971 = vsel %vm494, %v802, 0
        %973 = vmatpush.msra.mxu0 0.0
        %974 = vmatpush.msra.mxu0 0.0
        %975 = vmatpush.msra.mxu0 0.0
        %976 = vmatpush.msra.mxu0 0.0
        %977 = vmatpush.msra.mxu0 0.0
        %978 = vmatpush.msra.mxu0 0.0
        %979 = vmatpush.msra.mxu0 0.0
        %980 = vmatpush.msra.mxu0 0.0
        %981 = vmatpush.msra.mxu0 0.0
        %982 = vmatpush.msra.mxu0 0.0
        %983 = vmatpush.msra.mxu0 0.0
        %984 = vmatpush.msra.mxu0 0.0
        %985 = vmatpush.msra.mxu0 0.0
        %986 = vmatpush.msra.mxu0 0.0
        %987 = vmatpush.msra.mxu0 0.0
        %988 = vmatpush.msra.mxu0 %v968
        %989 = vmatmul.f32.gmra.mxu0 %v971
        %v990 = vpop.f32.mrf.mxu0
        %v991 = vadd.f32 0.0, %v990
        %992 = vdwg.mxu0
        %994 = vrot.lane.b32.xlu0 %v490, 64
        %v995 = vpop.permute.xlu0 %994
        %v998 = vsel %vm494, %v803, 0
        %1000 = vmatpush.msra.mxu0 0.0
        %1001 = vmatpush.msra.mxu0 0.0
        %1002 = vmatpush.msra.mxu0 0.0
        %1003 = vmatpush.msra.mxu0 0.0
        %1004 = vmatpush.msra.mxu0 0.0
        %1005 = vmatpush.msra.mxu0 0.0
        %1006 = vmatpush.msra.mxu0 0.0
        %1007 = vmatpush.msra.mxu0 0.0
        %1008 = vmatpush.msra.mxu0 0.0
        %1009 = vmatpush.msra.mxu0 0.0
        %1010 = vmatpush.msra.mxu0 0.0
        %1011 = vmatpush.msra.mxu0 0.0
        %1012 = vmatpush.msra.mxu0 0.0
        %1013 = vmatpush.msra.mxu0 0.0
        %1014 = vmatpush.msra.mxu0 0.0
        %1015 = vmatpush.msra.mxu0 %v995
        %1016 = vmatmul.f32.gmra.mxu0 %v998
        %v1017 = vpop.f32.mrf.mxu0
        %v1018 = vadd.f32 0.0, %v1017
        %1019 = vdwg.mxu0
        %1020 = vrot.lane.b32.xlu0 %v457, 120
        %v1021 = vpop.permute.xlu0 %1020
        %1022 = vrot.lane.b32.xlu0 %v470, 88
        %v1023 = vpop.permute.xlu0 %1022
        %v1024 = vsel %vm494, %v1021, 0
        %v1026 = vsel %vm494, %v1023, 0
        %1028 = vmatpush.xpose.msra.mxu0 0.0
        %1029 = vmatpush.xpose.msra.mxu0 0.0
        %1030 = vmatpush.xpose.msra.mxu0 0.0
        %1031 = vmatpush.xpose.msra.mxu0 0.0
        %1032 = vmatpush.xpose.msra.mxu0 0.0
        %1033 = vmatpush.xpose.msra.mxu0 0.0
        %1034 = vmatpush.xpose.msra.mxu0 0.0
        %1035 = vmatpush.xpose.msra.mxu0 0.0
        %1036 = vmatpush.xpose.msra.mxu0 0.0
        %1037 = vmatpush.xpose.msra.mxu0 0.0
        %1038 = vmatpush.xpose.msra.mxu0 0.0
        %1039 = vmatpush.xpose.msra.mxu0 0.0
        %1040 = vmatpush.xpose.msra.mxu0 0.0
        %1041 = vmatpush.xpose.msra.mxu0 0.0
        %1042 = vmatpush.xpose.msra.mxu0 0.0
        %1043 = vmatpush.xpose.msra.mxu0 %v1026
        %1044 = vmatmul.f32.gmra.mxu0 %v1024
        %v1045 = vpop.f32.mrf.mxu0
        %v1046 = vadd.f32 %v383, %v1045
        %1047 = vdwg.mxu0
        %1048 = vrot.lane.b32.xlu0 %v458, 120
        %v1049 = vpop.permute.xlu0 %1048
        %1050 = vrot.lane.b32.xlu0 %v471, 88
        %v1051 = vpop.permute.xlu0 %1050
        %v1052 = vsel %vm494, %v1049, 0
        %v1054 = vsel %vm494, %v1051, 0
        %1056 = vmatpush.xpose.msra.mxu0 0.0
        %1057 = vmatpush.xpose.msra.mxu0 0.0
        %1058 = vmatpush.xpose.msra.mxu0 0.0
        %1059 = vmatpush.xpose.msra.mxu0 0.0
        %1060 = vmatpush.xpose.msra.mxu0 0.0
        %1061 = vmatpush.xpose.msra.mxu0 0.0
        %1062 = vmatpush.xpose.msra.mxu0 0.0
        %1063 = vmatpush.xpose.msra.mxu0 0.0
        %1064 = vmatpush.xpose.msra.mxu0 0.0
        %1065 = vmatpush.xpose.msra.mxu0 0.0
        %1066 = vmatpush.xpose.msra.mxu0 0.0
        %1067 = vmatpush.xpose.msra.mxu0 0.0
        %1068 = vmatpush.xpose.msra.mxu0 0.0
        %1069 = vmatpush.xpose.msra.mxu0 0.0
        %1070 = vmatpush.xpose.msra.mxu0 0.0
        %1071 = vmatpush.xpose.msra.mxu0 %v1054
        %1072 = vmatmul.f32.gmra.mxu0 %v1052
        %v1073 = vpop.f32.mrf.mxu0
        %v1074 = vadd.f32 %v383, %v1073
        %1075 = vdwg.mxu0
        %1076 = vrot.lane.b32.xlu0 %v459, 120
        %v1077 = vpop.permute.xlu0 %1076
        %1078 = vrot.lane.b32.xlu0 %v472, 88
        %v1079 = vpop.permute.xlu0 %1078
        %v1080 = vsel %vm494, %v1077, 0
        %v1082 = vsel %vm494, %v1079, 0
        %1084 = vmatpush.xpose.msra.mxu0 0.0
        %1085 = vmatpush.xpose.msra.mxu0 0.0
        %1086 = vmatpush.xpose.msra.mxu0 0.0
        %1087 = vmatpush.xpose.msra.mxu0 0.0
        %1088 = vmatpush.xpose.msra.mxu0 0.0
        %1089 = vmatpush.xpose.msra.mxu0 0.0
        %1090 = vmatpush.xpose.msra.mxu0 0.0
        %1091 = vmatpush.xpose.msra.mxu0 0.0
        %1092 = vmatpush.xpose.msra.mxu0 0.0
        %1093 = vmatpush.xpose.msra.mxu0 0.0
        %1094 = vmatpush.xpose.msra.mxu0 0.0
        %1095 = vmatpush.xpose.msra.mxu0 0.0
        %1096 = vmatpush.xpose.msra.mxu0 0.0
        %1097 = vmatpush.xpose.msra.mxu0 0.0
        %1098 = vmatpush.xpose.msra.mxu0 0.0
        %1099 = vmatpush.xpose.msra.mxu0 %v1082
        %1100 = vmatmul.f32.gmra.mxu0 %v1080
        %v1101 = vpop.f32.mrf.mxu0
        %v1102 = vadd.f32 %v383, %v1101
        %1103 = vdwg.mxu0
        %1104 = vrot.lane.b32.xlu0 %v460, 120
        %v1105 = vpop.permute.xlu0 %1104
        %1106 = vrot.lane.b32.xlu0 %v473, 88
        %v1107 = vpop.permute.xlu0 %1106
        %v1108 = vsel %vm494, %v1105, 0
        %v1110 = vsel %vm494, %v1107, 0
        %1112 = vmatpush.xpose.msra.mxu0 0.0
        %1113 = vmatpush.xpose.msra.mxu0 0.0
        %1114 = vmatpush.xpose.msra.mxu0 0.0
        %1115 = vmatpush.xpose.msra.mxu0 0.0
        %1116 = vmatpush.xpose.msra.mxu0 0.0
        %1117 = vmatpush.xpose.msra.mxu0 0.0
        %1118 = vmatpush.xpose.msra.mxu0 0.0
        %1119 = vmatpush.xpose.msra.mxu0 0.0
        %1120 = vmatpush.xpose.msra.mxu0 0.0
        %1121 = vmatpush.xpose.msra.mxu0 0.0
        %1122 = vmatpush.xpose.msra.mxu0 0.0
        %1123 = vmatpush.xpose.msra.mxu0 0.0
        %1124 = vmatpush.xpose.msra.mxu0 0.0
        %1125 = vmatpush.xpose.msra.mxu0 0.0
        %1126 = vmatpush.xpose.msra.mxu0 0.0
        %1127 = vmatpush.xpose.msra.mxu0 %v1110
        %1128 = vmatmul.f32.gmra.mxu0 %v1108
        %v1129 = vpop.f32.mrf.mxu0
        %v1130 = vadd.f32 %v383, %v1129
        %1131 = vdwg.mxu0
        %1132 = vrot.lane.b32.xlu0 %v461, 120
        %v1133 = vpop.permute.xlu0 %1132
        %1134 = vrot.lane.b32.xlu0 %v474, 88
        %v1135 = vpop.permute.xlu0 %1134
        %v1136 = vsel %vm494, %v1133, 0
        %v1138 = vsel %vm494, %v1135, 0
        %1140 = vmatpush.xpose.msra.mxu0 0.0
        %1141 = vmatpush.xpose.msra.mxu0 0.0
        %1142 = vmatpush.xpose.msra.mxu0 0.0
        %1143 = vmatpush.xpose.msra.mxu0 0.0
        %1144 = vmatpush.xpose.msra.mxu0 0.0
        %1145 = vmatpush.xpose.msra.mxu0 0.0
        %1146 = vmatpush.xpose.msra.mxu0 0.0
        %1147 = vmatpush.xpose.msra.mxu0 0.0
        %1148 = vmatpush.xpose.msra.mxu0 0.0
        %1149 = vmatpush.xpose.msra.mxu0 0.0
        %1150 = vmatpush.xpose.msra.mxu0 0.0
        %1151 = vmatpush.xpose.msra.mxu0 0.0
        %1152 = vmatpush.xpose.msra.mxu0 0.0
        %1153 = vmatpush.xpose.msra.mxu0 0.0
        %1154 = vmatpush.xpose.msra.mxu0 0.0
        %1155 = vmatpush.xpose.msra.mxu0 %v1138
        %1156 = vmatmul.f32.gmra.mxu0 %v1136
        %v1157 = vpop.f32.mrf.mxu0
        %v1158 = vadd.f32 %v383, %v1157
        %1159 = vdwg.mxu0
        %1160 = vrot.lane.b32.xlu0 %v462, 120
        %v1161 = vpop.permute.xlu0 %1160
        %1162 = vrot.lane.b32.xlu0 %v475, 88
        %v1163 = vpop.permute.xlu0 %1162
        %v1164 = vsel %vm494, %v1161, 0
        %v1166 = vsel %vm494, %v1163, 0
        %1168 = vmatpush.xpose.msra.mxu0 0.0
        %1169 = vmatpush.xpose.msra.mxu0 0.0
        %1170 = vmatpush.xpose.msra.mxu0 0.0
        %1171 = vmatpush.xpose.msra.mxu0 0.0
        %1172 = vmatpush.xpose.msra.mxu0 0.0
        %1173 = vmatpush.xpose.msra.mxu0 0.0
        %1174 = vmatpush.xpose.msra.mxu0 0.0
        %1175 = vmatpush.xpose.msra.mxu0 0.0
        %1176 = vmatpush.xpose.msra.mxu0 0.0
        %1177 = vmatpush.xpose.msra.mxu0 0.0
        %1178 = vmatpush.xpose.msra.mxu0 0.0
        %1179 = vmatpush.xpose.msra.mxu0 0.0
        %1180 = vmatpush.xpose.msra.mxu0 0.0
        %1181 = vmatpush.xpose.msra.mxu0 0.0
        %1182 = vmatpush.xpose.msra.mxu0 0.0
        %1183 = vmatpush.xpose.msra.mxu0 %v1166
        %1184 = vmatmul.f32.gmra.mxu0 %v1164
        %v1185 = vpop.f32.mrf.mxu0
        %v1186 = vadd.f32 %v383, %v1185
        %1187 = vdwg.mxu0
        %1188 = vrot.lane.b32.xlu0 %v463, 120
        %v1189 = vpop.permute.xlu0 %1188
        %1190 = vrot.lane.b32.xlu0 %v476, 88
        %v1191 = vpop.permute.xlu0 %1190
        %v1192 = vsel %vm494, %v1189, 0
        %v1194 = vsel %vm494, %v1191, 0
        %1196 = vmatpush.xpose.msra.mxu0 0.0
        %1197 = vmatpush.xpose.msra.mxu0 0.0
        %1198 = vmatpush.xpose.msra.mxu0 0.0
        %1199 = vmatpush.xpose.msra.mxu0 0.0
        %1200 = vmatpush.xpose.msra.mxu0 0.0
        %1201 = vmatpush.xpose.msra.mxu0 0.0
        %1202 = vmatpush.xpose.msra.mxu0 0.0
        %1203 = vmatpush.xpose.msra.mxu0 0.0
        %1204 = vmatpush.xpose.msra.mxu0 0.0
        %1205 = vmatpush.xpose.msra.mxu0 0.0
        %1206 = vmatpush.xpose.msra.mxu0 0.0
        %1207 = vmatpush.xpose.msra.mxu0 0.0
        %1208 = vmatpush.xpose.msra.mxu0 0.0
        %1209 = vmatpush.xpose.msra.mxu0 0.0
        %1210 = vmatpush.xpose.msra.mxu0 0.0
        %1211 = vmatpush.xpose.msra.mxu0 %v1194
        %1212 = vmatmul.f32.gmra.mxu0 %v1192
        %v1213 = vpop.f32.mrf.mxu0
        %v1214 = vadd.f32 %v383, %v1213
        %1215 = vdwg.mxu0
        %1216 = vrot.lane.b32.xlu0 %v464, 120
        %v1217 = vpop.permute.xlu0 %1216
        %1218 = vrot.lane.b32.xlu0 %v477, 88
        %v1219 = vpop.permute.xlu0 %1218
        %v1220 = vsel %vm494, %v1217, 0
        %v1222 = vsel %vm494, %v1219, 0
        %1224 = vmatpush.xpose.msra.mxu0 0.0
        %1225 = vmatpush.xpose.msra.mxu0 0.0
        %1226 = vmatpush.xpose.msra.mxu0 0.0
        %1227 = vmatpush.xpose.msra.mxu0 0.0
        %1228 = vmatpush.xpose.msra.mxu0 0.0
        %1229 = vmatpush.xpose.msra.mxu0 0.0
        %1230 = vmatpush.xpose.msra.mxu0 0.0
        %1231 = vmatpush.xpose.msra.mxu0 0.0
        %1232 = vmatpush.xpose.msra.mxu0 0.0
        %1233 = vmatpush.xpose.msra.mxu0 0.0
        %1234 = vmatpush.xpose.msra.mxu0 0.0
        %1235 = vmatpush.xpose.msra.mxu0 0.0
        %1236 = vmatpush.xpose.msra.mxu0 0.0
        %1237 = vmatpush.xpose.msra.mxu0 0.0
        %1238 = vmatpush.xpose.msra.mxu0 0.0
        %1239 = vmatpush.xpose.msra.mxu0 %v1222
        %1240 = vmatmul.f32.gmra.mxu0 %v1220
        %v1241 = vpop.f32.mrf.mxu0
        %v1242 = vadd.f32 %v383, %v1241
        %1243 = vdwg.mxu0
        %v1244 = vsel %vm494, %v1046, -inf
        %1245 = vmax.xlane.f32.xlu0 %v1244
        %v1246 = vpop.xlane.xlu0 %1245
        %v1247 = vsel %vm494, %v1074, -inf
        %1248 = vmax.xlane.f32.xlu0 %v1247
        %v1249 = vpop.xlane.xlu0 %1248
        %v1250 = vsel %vm494, %v1102, -inf
        %1251 = vmax.xlane.f32.xlu0 %v1250
        %v1252 = vpop.xlane.xlu0 %1251
        %v1253 = vsel %vm494, %v1130, -inf
        %1254 = vmax.xlane.f32.xlu0 %v1253
        %v1255 = vpop.xlane.xlu0 %1254
        %v1256 = vsel %vm494, %v1158, -inf
        %1257 = vmax.xlane.f32.xlu0 %v1256
        %v1258 = vpop.xlane.xlu0 %1257
        %v1259 = vsel %vm494, %v1186, -inf
        %1260 = vmax.xlane.f32.xlu0 %v1259
        %v1261 = vpop.xlane.xlu0 %1260
        %v1262 = vsel %vm494, %v1214, -inf
        %1263 = vmax.xlane.f32.xlu0 %v1262
        %v1264 = vpop.xlane.xlu0 %1263
        %v1265 = vsel %vm494, %v1242, -inf
        %1266 = vmax.xlane.f32.xlu0 %v1265
        %v1267 = vpop.xlane.xlu0 %1266
        %v1268 = vsub.f32 %v1046, %v1246
        %v1269 = vsub.f32 %v1074, %v1249
        %v1270 = vsub.f32 %v1102, %v1252
        %v1271 = vsub.f32 %v1130, %v1255
        %v1272 = vsub.f32 %v1158, %v1258
        %v1273 = vsub.f32 %v1186, %v1261
        %v1274 = vsub.f32 %v1214, %v1264
        %v1275 = vsub.f32 %v1242, %v1267
        %v1276 = vmul.f32 %v1268, 1.442695
        %v1277 = vpow.pop %v1276
        %v1278 = vmul.f32 %v1269, 1.442695
        %v1279 = vpow.pop %v1278
        %v1280 = vmul.f32 %v1270, 1.442695
        %v1281 = vpow.pop %v1280
        %v1282 = vmul.f32 %v1271, 1.442695
        %v1283 = vpow.pop %v1282
        %v1284 = vmul.f32 %v1272, 1.442695
        %v1285 = vpow.pop %v1284
        %v1286 = vmul.f32 %v1273, 1.442695
        %v1287 = vpow.pop %v1286
        %v1288 = vmul.f32 %v1274, 1.442695
        %v1289 = vpow.pop %v1288
        %v1290 = vmul.f32 %v1275, 1.442695
        %v1291 = vpow.pop %v1290
        %v1292 = vsel %vm494, %v1277, 0.0
        %1293 = vadd.xlane.f32.xlu0 %v1292
        %v1294 = vpop.xlane.xlu0 %1293
        %v1295 = vsel %vm494, %v1279, 0.0
        %1296 = vadd.xlane.f32.xlu0 %v1295
        %v1297 = vpop.xlane.xlu0 %1296
        %v1298 = vsel %vm494, %v1281, 0.0
        %1299 = vadd.xlane.f32.xlu0 %v1298
        %v1300 = vpop.xlane.xlu0 %1299
        %v1301 = vsel %vm494, %v1283, 0.0
        %1302 = vadd.xlane.f32.xlu0 %v1301
        %v1303 = vpop.xlane.xlu0 %1302
        %v1304 = vsel %vm494, %v1285, 0.0
        %1305 = vadd.xlane.f32.xlu0 %v1304
        %v1306 = vpop.xlane.xlu0 %1305
        %v1307 = vsel %vm494, %v1287, 0.0
        %1308 = vadd.xlane.f32.xlu0 %v1307
        %v1309 = vpop.xlane.xlu0 %1308
        %v1310 = vsel %vm494, %v1289, 0.0
        %1311 = vadd.xlane.f32.xlu0 %v1310
        %v1312 = vpop.xlane.xlu0 %1311
        %v1313 = vsel %vm494, %v1291, 0.0
        %1314 = vadd.xlane.f32.xlu0 %v1313
        %v1315 = vpop.xlane.xlu0 %1314
        %v1316 = vrcp.pop %v1294
        %v1317 = vrcp.pop %v1297
        %v1318 = vrcp.pop %v1300
        %v1319 = vrcp.pop %v1303
        %v1320 = vrcp.pop %v1306
        %v1321 = vrcp.pop %v1309
        %v1322 = vrcp.pop %v1312
        %v1323 = vrcp.pop %v1315
        %v1324 = vmul.f32 %v1277, %v1316
        %v1325 = vmul.f32 %v1279, %v1317
        %v1326 = vmul.f32 %v1281, %v1318
        %v1327 = vmul.f32 %v1283, %v1319
        %v1328 = vmul.f32 %v1285, %v1320
        %v1329 = vmul.f32 %v1287, %v1321
        %v1330 = vmul.f32 %v1289, %v1322
        %v1331 = vmul.f32 %v1291, %v1323
        %1332 = vrot.lane.b32.xlu0 %v483, 56
        %v1333 = vpop.permute.xlu0 %1332
        %v1336 = vsel %vm494, %v1324, 0
        %1338 = vmatpush.msra.mxu0 0.0
        %1339 = vmatpush.msra.mxu0 0.0
        %1340 = vmatpush.msra.mxu0 0.0
        %1341 = vmatpush.msra.mxu0 0.0
        %1342 = vmatpush.msra.mxu0 0.0
        %1343 = vmatpush.msra.mxu0 0.0
        %1344 = vmatpush.msra.mxu0 0.0
        %1345 = vmatpush.msra.mxu0 0.0
        %1346 = vmatpush.msra.mxu0 0.0
        %1347 = vmatpush.msra.mxu0 0.0
        %1348 = vmatpush.msra.mxu0 0.0
        %1349 = vmatpush.msra.mxu0 0.0
        %1350 = vmatpush.msra.mxu0 0.0
        %1351 = vmatpush.msra.mxu0 0.0
        %1352 = vmatpush.msra.mxu0 0.0
        %1353 = vmatpush.msra.mxu0 %v1333
        %1354 = vmatmul.f32.gmra.mxu0 %v1336
        %v1355 = vpop.f32.mrf.mxu0
        %v1356 = vadd.f32 0.0, %v1355
        %1357 = vdwg.mxu0
        %1358 = vrot.lane.b32.xlu0 %v484, 56
        %v1359 = vpop.permute.xlu0 %1358
        %v1362 = vsel %vm494, %v1325, 0
        %1364 = vmatpush.msra.mxu0 0.0
        %1365 = vmatpush.msra.mxu0 0.0
        %1366 = vmatpush.msra.mxu0 0.0
        %1367 = vmatpush.msra.mxu0 0.0
        %1368 = vmatpush.msra.mxu0 0.0
        %1369 = vmatpush.msra.mxu0 0.0
        %1370 = vmatpush.msra.mxu0 0.0
        %1371 = vmatpush.msra.mxu0 0.0
        %1372 = vmatpush.msra.mxu0 0.0
        %1373 = vmatpush.msra.mxu0 0.0
        %1374 = vmatpush.msra.mxu0 0.0
        %1375 = vmatpush.msra.mxu0 0.0
        %1376 = vmatpush.msra.mxu0 0.0
        %1377 = vmatpush.msra.mxu0 0.0
        %1378 = vmatpush.msra.mxu0 0.0
        %1379 = vmatpush.msra.mxu0 %v1359
        %1380 = vmatmul.f32.gmra.mxu0 %v1362
        %v1381 = vpop.f32.mrf.mxu0
        %v1382 = vadd.f32 0.0, %v1381
        %1383 = vdwg.mxu0
        %1384 = vrot.lane.b32.xlu0 %v485, 56
        %v1385 = vpop.permute.xlu0 %1384
        %v1388 = vsel %vm494, %v1326, 0
        %1390 = vmatpush.msra.mxu0 0.0
        %1391 = vmatpush.msra.mxu0 0.0
        %1392 = vmatpush.msra.mxu0 0.0
        %1393 = vmatpush.msra.mxu0 0.0
        %1394 = vmatpush.msra.mxu0 0.0
        %1395 = vmatpush.msra.mxu0 0.0
        %1396 = vmatpush.msra.mxu0 0.0
        %1397 = vmatpush.msra.mxu0 0.0
        %1398 = vmatpush.msra.mxu0 0.0
        %1399 = vmatpush.msra.mxu0 0.0
        %1400 = vmatpush.msra.mxu0 0.0
        %1401 = vmatpush.msra.mxu0 0.0
        %1402 = vmatpush.msra.mxu0 0.0
        %1403 = vmatpush.msra.mxu0 0.0
        %1404 = vmatpush.msra.mxu0 0.0
        %1405 = vmatpush.msra.mxu0 %v1385
        %1406 = vmatmul.f32.gmra.mxu0 %v1388
        %v1407 = vpop.f32.mrf.mxu0
        %v1408 = vadd.f32 0.0, %v1407
        %1409 = vdwg.mxu0
        %1410 = vrot.lane.b32.xlu0 %v486, 56
        %v1411 = vpop.permute.xlu0 %1410
        %v1414 = vsel %vm494, %v1327, 0
        %1416 = vmatpush.msra.mxu0 0.0
        %1417 = vmatpush.msra.mxu0 0.0
        %1418 = vmatpush.msra.mxu0 0.0
        %1419 = vmatpush.msra.mxu0 0.0
        %1420 = vmatpush.msra.mxu0 0.0
        %1421 = vmatpush.msra.mxu0 0.0
        %1422 = vmatpush.msra.mxu0 0.0
        %1423 = vmatpush.msra.mxu0 0.0
        %1424 = vmatpush.msra.mxu0 0.0
        %1425 = vmatpush.msra.mxu0 0.0
        %1426 = vmatpush.msra.mxu0 0.0
        %1427 = vmatpush.msra.mxu0 0.0
        %1428 = vmatpush.msra.mxu0 0.0
        %1429 = vmatpush.msra.mxu0 0.0
        %1430 = vmatpush.msra.mxu0 0.0
        %1431 = vmatpush.msra.mxu0 %v1411
        %1432 = vmatmul.f32.gmra.mxu0 %v1414
        %v1433 = vpop.f32.mrf.mxu0
        %v1434 = vadd.f32 0.0, %v1433
        %1435 = vdwg.mxu0
        %1436 = vrot.lane.b32.xlu0 %v487, 56
        %v1437 = vpop.permute.xlu0 %1436
        %v1440 = vsel %vm494, %v1328, 0
        %1442 = vmatpush.msra.mxu0 0.0
        %1443 = vmatpush.msra.mxu0 0.0
        %1444 = vmatpush.msra.mxu0 0.0
        %1445 = vmatpush.msra.mxu0 0.0
        %1446 = vmatpush.msra.mxu0 0.0
        %1447 = vmatpush.msra.mxu0 0.0
        %1448 = vmatpush.msra.mxu0 0.0
        %1449 = vmatpush.msra.mxu0 0.0
        %1450 = vmatpush.msra.mxu0 0.0
        %1451 = vmatpush.msra.mxu0 0.0
        %1452 = vmatpush.msra.mxu0 0.0
        %1453 = vmatpush.msra.mxu0 0.0
        %1454 = vmatpush.msra.mxu0 0.0
        %1455 = vmatpush.msra.mxu0 0.0
        %1456 = vmatpush.msra.mxu0 0.0
        %1457 = vmatpush.msra.mxu0 %v1437
        %1458 = vmatmul.f32.gmra.mxu0 %v1440
        %v1459 = vpop.f32.mrf.mxu0
        %v1460 = vadd.f32 0.0, %v1459
        %1461 = vdwg.mxu0
        %1462 = vrot.lane.b32.xlu0 %v488, 56
        %v1463 = vpop.permute.xlu0 %1462
        %v1466 = vsel %vm494, %v1329, 0
        %1468 = vmatpush.msra.mxu0 0.0
        %1469 = vmatpush.msra.mxu0 0.0
        %1470 = vmatpush.msra.mxu0 0.0
        %1471 = vmatpush.msra.mxu0 0.0
        %1472 = vmatpush.msra.mxu0 0.0
        %1473 = vmatpush.msra.mxu0 0.0
        %1474 = vmatpush.msra.mxu0 0.0
        %1475 = vmatpush.msra.mxu0 0.0
        %1476 = vmatpush.msra.mxu0 0.0
        %1477 = vmatpush.msra.mxu0 0.0
        %1478 = vmatpush.msra.mxu0 0.0
        %1479 = vmatpush.msra.mxu0 0.0
        %1480 = vmatpush.msra.mxu0 0.0
        %1481 = vmatpush.msra.mxu0 0.0
        %1482 = vmatpush.msra.mxu0 0.0
        %1483 = vmatpush.msra.mxu0 %v1463
        %1484 = vmatmul.f32.gmra.mxu0 %v1466
        %v1485 = vpop.f32.mrf.mxu0
        %v1486 = vadd.f32 0.0, %v1485
        %1487 = vdwg.mxu0
        %1488 = vrot.lane.b32.xlu0 %v489, 56
        %v1489 = vpop.permute.xlu0 %1488
        %v1492 = vsel %vm494, %v1330, 0
        %1494 = vmatpush.msra.mxu0 0.0
        %1495 = vmatpush.msra.mxu0 0.0
        %1496 = vmatpush.msra.mxu0 0.0
        %1497 = vmatpush.msra.mxu0 0.0
        %1498 = vmatpush.msra.mxu0 0.0
        %1499 = vmatpush.msra.mxu0 0.0
        %1500 = vmatpush.msra.mxu0 0.0
        %1501 = vmatpush.msra.mxu0 0.0
        %1502 = vmatpush.msra.mxu0 0.0
        %1503 = vmatpush.msra.mxu0 0.0
        %1504 = vmatpush.msra.mxu0 0.0
        %1505 = vmatpush.msra.mxu0 0.0
        %1506 = vmatpush.msra.mxu0 0.0
        %1507 = vmatpush.msra.mxu0 0.0
        %1508 = vmatpush.msra.mxu0 0.0
        %1509 = vmatpush.msra.mxu0 %v1489
        %1510 = vmatmul.f32.gmra.mxu0 %v1492
        %v1511 = vpop.f32.mrf.mxu0
        %v1512 = vadd.f32 0.0, %v1511
        %1513 = vdwg.mxu0
        %1514 = vrot.lane.b32.xlu0 %v490, 56
        %v1515 = vpop.permute.xlu0 %1514
        %v1518 = vsel %vm494, %v1331, 0
        %1520 = vmatpush.msra.mxu0 0.0
        %1521 = vmatpush.msra.mxu0 0.0
        %1522 = vmatpush.msra.mxu0 0.0
        %1523 = vmatpush.msra.mxu0 0.0
        %1524 = vmatpush.msra.mxu0 0.0
        %1525 = vmatpush.msra.mxu0 0.0
        %1526 = vmatpush.msra.mxu0 0.0
        %1527 = vmatpush.msra.mxu0 0.0
        %1528 = vmatpush.msra.mxu0 0.0
        %1529 = vmatpush.msra.mxu0 0.0
        %1530 = vmatpush.msra.mxu0 0.0
        %1531 = vmatpush.msra.mxu0 0.0
        %1532 = vmatpush.msra.mxu0 0.0
        %1533 = vmatpush.msra.mxu0 0.0
        %1534 = vmatpush.msra.mxu0 0.0
        %1535 = vmatpush.msra.mxu0 %v1515
        %1536 = vmatmul.f32.gmra.mxu0 %v1518
        %v1537 = vpop.f32.mrf.mxu0
        %v1538 = vadd.f32 0.0, %v1537
        %1539 = vdwg.mxu0
        %1540 = vrot.lane.b32.xlu0 %v457, 112
        %v1541 = vpop.permute.xlu0 %1540
        %1542 = vrot.lane.b32.xlu0 %v470, 80
        %v1543 = vpop.permute.xlu0 %1542
        %v1544 = vsel %vm494, %v1541, 0
        %v1546 = vsel %vm494, %v1543, 0
        %1548 = vmatpush.xpose.msra.mxu0 0.0
        %1549 = vmatpush.xpose.msra.mxu0 0.0
        %1550 = vmatpush.xpose.msra.mxu0 0.0
        %1551 = vmatpush.xpose.msra.mxu0 0.0
        %1552 = vmatpush.xpose.msra.mxu0 0.0
        %1553 = vmatpush.xpose.msra.mxu0 0.0
        %1554 = vmatpush.xpose.msra.mxu0 0.0
        %1555 = vmatpush.xpose.msra.mxu0 0.0
        %1556 = vmatpush.xpose.msra.mxu0 0.0
        %1557 = vmatpush.xpose.msra.mxu0 0.0
        %1558 = vmatpush.xpose.msra.mxu0 0.0
        %1559 = vmatpush.xpose.msra.mxu0 0.0
        %1560 = vmatpush.xpose.msra.mxu0 0.0
        %1561 = vmatpush.xpose.msra.mxu0 0.0
        %1562 = vmatpush.xpose.msra.mxu0 0.0
        %1563 = vmatpush.xpose.msra.mxu0 %v1546
        %1564 = vmatmul.f32.gmra.mxu0 %v1544
        %v1565 = vpop.f32.mrf.mxu0
        %v1566 = vadd.f32 %v383, %v1565
        %1567 = vdwg.mxu0
        %1568 = vrot.lane.b32.xlu0 %v458, 112
        %v1569 = vpop.permute.xlu0 %1568
        %1570 = vrot.lane.b32.xlu0 %v471, 80
        %v1571 = vpop.permute.xlu0 %1570
        %v1572 = vsel %vm494, %v1569, 0
        %v1574 = vsel %vm494, %v1571, 0
        %1576 = vmatpush.xpose.msra.mxu0 0.0
        %1577 = vmatpush.xpose.msra.mxu0 0.0
        %1578 = vmatpush.xpose.msra.mxu0 0.0
        %1579 = vmatpush.xpose.msra.mxu0 0.0
        %1580 = vmatpush.xpose.msra.mxu0 0.0
        %1581 = vmatpush.xpose.msra.mxu0 0.0
        %1582 = vmatpush.xpose.msra.mxu0 0.0
        %1583 = vmatpush.xpose.msra.mxu0 0.0
        %1584 = vmatpush.xpose.msra.mxu0 0.0
        %1585 = vmatpush.xpose.msra.mxu0 0.0
        %1586 = vmatpush.xpose.msra.mxu0 0.0
        %1587 = vmatpush.xpose.msra.mxu0 0.0
        %1588 = vmatpush.xpose.msra.mxu0 0.0
        %1589 = vmatpush.xpose.msra.mxu0 0.0
        %1590 = vmatpush.xpose.msra.mxu0 0.0
        %1591 = vmatpush.xpose.msra.mxu0 %v1574
        %1592 = vmatmul.f32.gmra.mxu0 %v1572
        %v1593 = vpop.f32.mrf.mxu0
        %v1594 = vadd.f32 %v383, %v1593
        %1595 = vdwg.mxu0
        %1596 = vrot.lane.b32.xlu0 %v459, 112
        %v1597 = vpop.permute.xlu0 %1596
        %1598 = vrot.lane.b32.xlu0 %v472, 80
        %v1599 = vpop.permute.xlu0 %1598
        %v1600 = vsel %vm494, %v1597, 0
        %v1602 = vsel %vm494, %v1599, 0
        %1604 = vmatpush.xpose.msra.mxu0 0.0
        %1605 = vmatpush.xpose.msra.mxu0 0.0
        %1606 = vmatpush.xpose.msra.mxu0 0.0
        %1607 = vmatpush.xpose.msra.mxu0 0.0
        %1608 = vmatpush.xpose.msra.mxu0 0.0
        %1609 = vmatpush.xpose.msra.mxu0 0.0
        %1610 = vmatpush.xpose.msra.mxu0 0.0
        %1611 = vmatpush.xpose.msra.mxu0 0.0
        %1612 = vmatpush.xpose.msra.mxu0 0.0
        %1613 = vmatpush.xpose.msra.mxu0 0.0
        %1614 = vmatpush.xpose.msra.mxu0 0.0
        %1615 = vmatpush.xpose.msra.mxu0 0.0
        %1616 = vmatpush.xpose.msra.mxu0 0.0
        %1617 = vmatpush.xpose.msra.mxu0 0.0
        %1618 = vmatpush.xpose.msra.mxu0 0.0
        %1619 = vmatpush.xpose.msra.mxu0 %v1602
        %1620 = vmatmul.f32.gmra.mxu0 %v1600
        %v1621 = vpop.f32.mrf.mxu0
        %v1622 = vadd.f32 %v383, %v1621
        %1623 = vdwg.mxu0
        %1624 = vrot.lane.b32.xlu0 %v460, 112
        %v1625 = vpop.permute.xlu0 %1624
        %1626 = vrot.lane.b32.xlu0 %v473, 80
        %v1627 = vpop.permute.xlu0 %1626
        %v1628 = vsel %vm494, %v1625, 0
        %v1630 = vsel %vm494, %v1627, 0
        %1632 = vmatpush.xpose.msra.mxu0 0.0
        %1633 = vmatpush.xpose.msra.mxu0 0.0
        %1634 = vmatpush.xpose.msra.mxu0 0.0
        %1635 = vmatpush.xpose.msra.mxu0 0.0
        %1636 = vmatpush.xpose.msra.mxu0 0.0
        %1637 = vmatpush.xpose.msra.mxu0 0.0
        %1638 = vmatpush.xpose.msra.mxu0 0.0
        %1639 = vmatpush.xpose.msra.mxu0 0.0
        %1640 = vmatpush.xpose.msra.mxu0 0.0
        %1641 = vmatpush.xpose.msra.mxu0 0.0
        %1642 = vmatpush.xpose.msra.mxu0 0.0
        %1643 = vmatpush.xpose.msra.mxu0 0.0
        %1644 = vmatpush.xpose.msra.mxu0 0.0
        %1645 = vmatpush.xpose.msra.mxu0 0.0
        %1646 = vmatpush.xpose.msra.mxu0 0.0
        %1647 = vmatpush.xpose.msra.mxu0 %v1630
        %1648 = vmatmul.f32.gmra.mxu0 %v1628
        %v1649 = vpop.f32.mrf.mxu0
        %v1650 = vadd.f32 %v383, %v1649
        %1651 = vdwg.mxu0
        %1652 = vrot.lane.b32.xlu0 %v461, 112
        %v1653 = vpop.permute.xlu0 %1652
        %1654 = vrot.lane.b32.xlu0 %v474, 80
        %v1655 = vpop.permute.xlu0 %1654
        %v1656 = vsel %vm494, %v1653, 0
        %v1658 = vsel %vm494, %v1655, 0
        %1660 = vmatpush.xpose.msra.mxu0 0.0
        %1661 = vmatpush.xpose.msra.mxu0 0.0
        %1662 = vmatpush.xpose.msra.mxu0 0.0
        %1663 = vmatpush.xpose.msra.mxu0 0.0
        %1664 = vmatpush.xpose.msra.mxu0 0.0
        %1665 = vmatpush.xpose.msra.mxu0 0.0
        %1666 = vmatpush.xpose.msra.mxu0 0.0
        %1667 = vmatpush.xpose.msra.mxu0 0.0
        %1668 = vmatpush.xpose.msra.mxu0 0.0
        %1669 = vmatpush.xpose.msra.mxu0 0.0
        %1670 = vmatpush.xpose.msra.mxu0 0.0
        %1671 = vmatpush.xpose.msra.mxu0 0.0
        %1672 = vmatpush.xpose.msra.mxu0 0.0
        %1673 = vmatpush.xpose.msra.mxu0 0.0
        %1674 = vmatpush.xpose.msra.mxu0 0.0
        %1675 = vmatpush.xpose.msra.mxu0 %v1658
        %1676 = vmatmul.f32.gmra.mxu0 %v1656
        %v1677 = vpop.f32.mrf.mxu0
        %v1678 = vadd.f32 %v383, %v1677
        %1679 = vdwg.mxu0
        %1680 = vrot.lane.b32.xlu0 %v462, 112
        %v1681 = vpop.permute.xlu0 %1680
        %1682 = vrot.lane.b32.xlu0 %v475, 80
        %v1683 = vpop.permute.xlu0 %1682
        %v1684 = vsel %vm494, %v1681, 0
        %v1686 = vsel %vm494, %v1683, 0
        %1688 = vmatpush.xpose.msra.mxu0 0.0
        %1689 = vmatpush.xpose.msra.mxu0 0.0
        %1690 = vmatpush.xpose.msra.mxu0 0.0
        %1691 = vmatpush.xpose.msra.mxu0 0.0
        %1692 = vmatpush.xpose.msra.mxu0 0.0
        %1693 = vmatpush.xpose.msra.mxu0 0.0
        %1694 = vmatpush.xpose.msra.mxu0 0.0
        %1695 = vmatpush.xpose.msra.mxu0 0.0
        %1696 = vmatpush.xpose.msra.mxu0 0.0
        %1697 = vmatpush.xpose.msra.mxu0 0.0
        %1698 = vmatpush.xpose.msra.mxu0 0.0
        %1699 = vmatpush.xpose.msra.mxu0 0.0
        %1700 = vmatpush.xpose.msra.mxu0 0.0
        %1701 = vmatpush.xpose.msra.mxu0 0.0
        %1702 = vmatpush.xpose.msra.mxu0 0.0
        %1703 = vmatpush.xpose.msra.mxu0 %v1686
        %1704 = vmatmul.f32.gmra.mxu0 %v1684
        %v1705 = vpop.f32.mrf.mxu0
        %v1706 = vadd.f32 %v383, %v1705
        %1707 = vdwg.mxu0
        %1708 = vrot.lane.b32.xlu0 %v463, 112
        %v1709 = vpop.permute.xlu0 %1708
        %1710 = vrot.lane.b32.xlu0 %v476, 80
        %v1711 = vpop.permute.xlu0 %1710
        %v1712 = vsel %vm494, %v1709, 0
        %v1714 = vsel %vm494, %v1711, 0
        %1716 = vmatpush.xpose.msra.mxu0 0.0
        %1717 = vmatpush.xpose.msra.mxu0 0.0
        %1718 = vmatpush.xpose.msra.mxu0 0.0
        %1719 = vmatpush.xpose.msra.mxu0 0.0
        %1720 = vmatpush.xpose.msra.mxu0 0.0
        %1721 = vmatpush.xpose.msra.mxu0 0.0
        %1722 = vmatpush.xpose.msra.mxu0 0.0
        %1723 = vmatpush.xpose.msra.mxu0 0.0
        %1724 = vmatpush.xpose.msra.mxu0 0.0
        %1725 = vmatpush.xpose.msra.mxu0 0.0
        %1726 = vmatpush.xpose.msra.mxu0 0.0
        %1727 = vmatpush.xpose.msra.mxu0 0.0
        %1728 = vmatpush.xpose.msra.mxu0 0.0
        %1729 = vmatpush.xpose.msra.mxu0 0.0
        %1730 = vmatpush.xpose.msra.mxu0 0.0
        %1731 = vmatpush.xpose.msra.mxu0 %v1714
        %1732 = vmatmul.f32.gmra.mxu0 %v1712
        %v1733 = vpop.f32.mrf.mxu0
        %v1734 = vadd.f32 %v383, %v1733
        %1735 = vdwg.mxu0
        %1736 = vrot.lane.b32.xlu0 %v464, 112
        %v1737 = vpop.permute.xlu0 %1736
        %1738 = vrot.lane.b32.xlu0 %v477, 80
        %v1739 = vpop.permute.xlu0 %1738
        %v1740 = vsel %vm494, %v1737, 0
        %v1742 = vsel %vm494, %v1739, 0
        %1744 = vmatpush.xpose.msra.mxu0 0.0
        %1745 = vmatpush.xpose.msra.mxu0 0.0
        %1746 = vmatpush.xpose.msra.mxu0 0.0
        %1747 = vmatpush.xpose.msra.mxu0 0.0
        %1748 = vmatpush.xpose.msra.mxu0 0.0
        %1749 = vmatpush.xpose.msra.mxu0 0.0
        %1750 = vmatpush.xpose.msra.mxu0 0.0
        %1751 = vmatpush.xpose.msra.mxu0 0.0
        %1752 = vmatpush.xpose.msra.mxu0 0.0
        %1753 = vmatpush.xpose.msra.mxu0 0.0
        %1754 = vmatpush.xpose.msra.mxu0 0.0
        %1755 = vmatpush.xpose.msra.mxu0 0.0
        %1756 = vmatpush.xpose.msra.mxu0 0.0
        %1757 = vmatpush.xpose.msra.mxu0 0.0
        %1758 = vmatpush.xpose.msra.mxu0 0.0
        %1759 = vmatpush.xpose.msra.mxu0 %v1742
        %1760 = vmatmul.f32.gmra.mxu0 %v1740
        %v1761 = vpop.f32.mrf.mxu0
        %v1762 = vadd.f32 %v383, %v1761
        %1763 = vdwg.mxu0
        %v1764 = vsel %vm494, %v1566, -inf
        %1765 = vmax.xlane.f32.xlu0 %v1764
        %v1766 = vpop.xlane.xlu0 %1765
        %v1767 = vsel %vm494, %v1594, -inf
        %1768 = vmax.xlane.f32.xlu0 %v1767
        %v1769 = vpop.xlane.xlu0 %1768
        %v1770 = vsel %vm494, %v1622, -inf
        %1771 = vmax.xlane.f32.xlu0 %v1770
        %v1772 = vpop.xlane.xlu0 %1771
        %v1773 = vsel %vm494, %v1650, -inf
        %1774 = vmax.xlane.f32.xlu0 %v1773
        %v1775 = vpop.xlane.xlu0 %1774
        %v1776 = vsel %vm494, %v1678, -inf
        %1777 = vmax.xlane.f32.xlu0 %v1776
        %v1778 = vpop.xlane.xlu0 %1777
        %v1779 = vsel %vm494, %v1706, -inf
        %1780 = vmax.xlane.f32.xlu0 %v1779
        %v1781 = vpop.xlane.xlu0 %1780
        %v1782 = vsel %vm494, %v1734, -inf
        %1783 = vmax.xlane.f32.xlu0 %v1782
        %v1784 = vpop.xlane.xlu0 %1783
        %v1785 = vsel %vm494, %v1762, -inf
        %1786 = vmax.xlane.f32.xlu0 %v1785
        %v1787 = vpop.xlane.xlu0 %1786
        %v1788 = vsub.f32 %v1566, %v1766
        %v1789 = vsub.f32 %v1594, %v1769
        %v1790 = vsub.f32 %v1622, %v1772
        %v1791 = vsub.f32 %v1650, %v1775
        %v1792 = vsub.f32 %v1678, %v1778
        %v1793 = vsub.f32 %v1706, %v1781
        %v1794 = vsub.f32 %v1734, %v1784
        %v1795 = vsub.f32 %v1762, %v1787
        %v1796 = vmul.f32 %v1788, 1.442695
        %v1797 = vpow.pop %v1796
        %v1798 = vmul.f32 %v1789, 1.442695
        %v1799 = vpow.pop %v1798
        %v1800 = vmul.f32 %v1790, 1.442695
        %v1801 = vpow.pop %v1800
        %v1802 = vmul.f32 %v1791, 1.442695
        %v1803 = vpow.pop %v1802
        %v1804 = vmul.f32 %v1792, 1.442695
        %v1805 = vpow.pop %v1804
        %v1806 = vmul.f32 %v1793, 1.442695
        %v1807 = vpow.pop %v1806
        %v1808 = vmul.f32 %v1794, 1.442695
        %v1809 = vpow.pop %v1808
        %v1810 = vmul.f32 %v1795, 1.442695
        %v1811 = vpow.pop %v1810
        %v1812 = vsel %vm494, %v1797, 0.0
        %1813 = vadd.xlane.f32.xlu0 %v1812
        %v1814 = vpop.xlane.xlu0 %1813
        %v1815 = vsel %vm494, %v1799, 0.0
        %1816 = vadd.xlane.f32.xlu0 %v1815
        %v1817 = vpop.xlane.xlu0 %1816
        %v1818 = vsel %vm494, %v1801, 0.0
        %1819 = vadd.xlane.f32.xlu0 %v1818
        %v1820 = vpop.xlane.xlu0 %1819
        %v1821 = vsel %vm494, %v1803, 0.0
        %1822 = vadd.xlane.f32.xlu0 %v1821
        %v1823 = vpop.xlane.xlu0 %1822
        %v1824 = vsel %vm494, %v1805, 0.0
        %1825 = vadd.xlane.f32.xlu0 %v1824
        %v1826 = vpop.xlane.xlu0 %1825
        %v1827 = vsel %vm494, %v1807, 0.0
        %1828 = vadd.xlane.f32.xlu0 %v1827
        %v1829 = vpop.xlane.xlu0 %1828
        %v1830 = vsel %vm494, %v1809, 0.0
        %1831 = vadd.xlane.f32.xlu0 %v1830
        %v1832 = vpop.xlane.xlu0 %1831
        %v1833 = vsel %vm494, %v1811, 0.0
        %1834 = vadd.xlane.f32.xlu0 %v1833
        %v1835 = vpop.xlane.xlu0 %1834
        %v1836 = vrcp.pop %v1814
        %v1837 = vrcp.pop %v1817
        %v1838 = vrcp.pop %v1820
        %v1839 = vrcp.pop %v1823
        %v1840 = vrcp.pop %v1826
        %v1841 = vrcp.pop %v1829
        %v1842 = vrcp.pop %v1832
        %v1843 = vrcp.pop %v1835
        %v1844 = vmul.f32 %v1797, %v1836
        %v1845 = vmul.f32 %v1799, %v1837
        %v1846 = vmul.f32 %v1801, %v1838
        %v1847 = vmul.f32 %v1803, %v1839
        %v1848 = vmul.f32 %v1805, %v1840
        %v1849 = vmul.f32 %v1807, %v1841
        %v1850 = vmul.f32 %v1809, %v1842
        %v1851 = vmul.f32 %v1811, %v1843
        %1852 = vrot.lane.b32.xlu0 %v483, 48
        %v1853 = vpop.permute.xlu0 %1852
        %v1856 = vsel %vm494, %v1844, 0
        %1858 = vmatpush.msra.mxu0 0.0
        %1859 = vmatpush.msra.mxu0 0.0
        %1860 = vmatpush.msra.mxu0 0.0
        %1861 = vmatpush.msra.mxu0 0.0
        %1862 = vmatpush.msra.mxu0 0.0
        %1863 = vmatpush.msra.mxu0 0.0
        %1864 = vmatpush.msra.mxu0 0.0
        %1865 = vmatpush.msra.mxu0 0.0
        %1866 = vmatpush.msra.mxu0 0.0
        %1867 = vmatpush.msra.mxu0 0.0
        %1868 = vmatpush.msra.mxu0 0.0
        %1869 = vmatpush.msra.mxu0 0.0
        %1870 = vmatpush.msra.mxu0 0.0
        %1871 = vmatpush.msra.mxu0 0.0
        %1872 = vmatpush.msra.mxu0 0.0
        %1873 = vmatpush.msra.mxu0 %v1853
        %1874 = vmatmul.f32.gmra.mxu0 %v1856
        %v1875 = vpop.f32.mrf.mxu0
        %v1876 = vadd.f32 0.0, %v1875
        %1877 = vdwg.mxu0
        %1878 = vrot.lane.b32.xlu0 %v484, 48
        %v1879 = vpop.permute.xlu0 %1878
        %v1882 = vsel %vm494, %v1845, 0
        %1884 = vmatpush.msra.mxu0 0.0
        %1885 = vmatpush.msra.mxu0 0.0
        %1886 = vmatpush.msra.mxu0 0.0
        %1887 = vmatpush.msra.mxu0 0.0
        %1888 = vmatpush.msra.mxu0 0.0
        %1889 = vmatpush.msra.mxu0 0.0
        %1890 = vmatpush.msra.mxu0 0.0
        %1891 = vmatpush.msra.mxu0 0.0
        %1892 = vmatpush.msra.mxu0 0.0
        %1893 = vmatpush.msra.mxu0 0.0
        %1894 = vmatpush.msra.mxu0 0.0
        %1895 = vmatpush.msra.mxu0 0.0
        %1896 = vmatpush.msra.mxu0 0.0
        %1897 = vmatpush.msra.mxu0 0.0
        %1898 = vmatpush.msra.mxu0 0.0
        %1899 = vmatpush.msra.mxu0 %v1879
        %1900 = vmatmul.f32.gmra.mxu0 %v1882
        %v1901 = vpop.f32.mrf.mxu0
        %v1902 = vadd.f32 0.0, %v1901
        %1903 = vdwg.mxu0
        %1904 = vrot.lane.b32.xlu0 %v485, 48
        %v1905 = vpop.permute.xlu0 %1904
        %v1908 = vsel %vm494, %v1846, 0
        %1910 = vmatpush.msra.mxu0 0.0
        %1911 = vmatpush.msra.mxu0 0.0
        %1912 = vmatpush.msra.mxu0 0.0
        %1913 = vmatpush.msra.mxu0 0.0
        %1914 = vmatpush.msra.mxu0 0.0
        %1915 = vmatpush.msra.mxu0 0.0
        %1916 = vmatpush.msra.mxu0 0.0
        %1917 = vmatpush.msra.mxu0 0.0
        %1918 = vmatpush.msra.mxu0 0.0
        %1919 = vmatpush.msra.mxu0 0.0
        %1920 = vmatpush.msra.mxu0 0.0
        %1921 = vmatpush.msra.mxu0 0.0
        %1922 = vmatpush.msra.mxu0 0.0
        %1923 = vmatpush.msra.mxu0 0.0
        %1924 = vmatpush.msra.mxu0 0.0
        %1925 = vmatpush.msra.mxu0 %v1905
        %1926 = vmatmul.f32.gmra.mxu0 %v1908
        %v1927 = vpop.f32.mrf.mxu0
        %v1928 = vadd.f32 0.0, %v1927
        %1929 = vdwg.mxu0
        %1930 = vrot.lane.b32.xlu0 %v486, 48
        %v1931 = vpop.permute.xlu0 %1930
        %v1934 = vsel %vm494, %v1847, 0
        %1936 = vmatpush.msra.mxu0 0.0
        %1937 = vmatpush.msra.mxu0 0.0
        %1938 = vmatpush.msra.mxu0 0.0
        %1939 = vmatpush.msra.mxu0 0.0
        %1940 = vmatpush.msra.mxu0 0.0
        %1941 = vmatpush.msra.mxu0 0.0
        %1942 = vmatpush.msra.mxu0 0.0
        %1943 = vmatpush.msra.mxu0 0.0
        %1944 = vmatpush.msra.mxu0 0.0
        %1945 = vmatpush.msra.mxu0 0.0
        %1946 = vmatpush.msra.mxu0 0.0
        %1947 = vmatpush.msra.mxu0 0.0
        %1948 = vmatpush.msra.mxu0 0.0
        %1949 = vmatpush.msra.mxu0 0.0
        %1950 = vmatpush.msra.mxu0 0.0
        %1951 = vmatpush.msra.mxu0 %v1931
        %1952 = vmatmul.f32.gmra.mxu0 %v1934
        %v1953 = vpop.f32.mrf.mxu0
        %v1954 = vadd.f32 0.0, %v1953
        %1955 = vdwg.mxu0
        %1956 = vrot.lane.b32.xlu0 %v487, 48
        %v1957 = vpop.permute.xlu0 %1956
        %v1960 = vsel %vm494, %v1848, 0
        %1962 = vmatpush.msra.mxu0 0.0
        %1963 = vmatpush.msra.mxu0 0.0
        %1964 = vmatpush.msra.mxu0 0.0
        %1965 = vmatpush.msra.mxu0 0.0
        %1966 = vmatpush.msra.mxu0 0.0
        %1967 = vmatpush.msra.mxu0 0.0
        %1968 = vmatpush.msra.mxu0 0.0
        %1969 = vmatpush.msra.mxu0 0.0
        %1970 = vmatpush.msra.mxu0 0.0
        %1971 = vmatpush.msra.mxu0 0.0
        %1972 = vmatpush.msra.mxu0 0.0
        %1973 = vmatpush.msra.mxu0 0.0
        %1974 = vmatpush.msra.mxu0 0.0
        %1975 = vmatpush.msra.mxu0 0.0
        %1976 = vmatpush.msra.mxu0 0.0
        %1977 = vmatpush.msra.mxu0 %v1957
        %1978 = vmatmul.f32.gmra.mxu0 %v1960
        %v1979 = vpop.f32.mrf.mxu0
        %v1980 = vadd.f32 0.0, %v1979
        %1981 = vdwg.mxu0
        %1982 = vrot.lane.b32.xlu0 %v488, 48
        %v1983 = vpop.permute.xlu0 %1982
        %v1986 = vsel %vm494, %v1849, 0
        %1988 = vmatpush.msra.mxu0 0.0
        %1989 = vmatpush.msra.mxu0 0.0
        %1990 = vmatpush.msra.mxu0 0.0
        %1991 = vmatpush.msra.mxu0 0.0
        %1992 = vmatpush.msra.mxu0 0.0
        %1993 = vmatpush.msra.mxu0 0.0
        %1994 = vmatpush.msra.mxu0 0.0
        %1995 = vmatpush.msra.mxu0 0.0
        %1996 = vmatpush.msra.mxu0 0.0
        %1997 = vmatpush.msra.mxu0 0.0
        %1998 = vmatpush.msra.mxu0 0.0
        %1999 = vmatpush.msra.mxu0 0.0
        %2000 = vmatpush.msra.mxu0 0.0
        %2001 = vmatpush.msra.mxu0 0.0
        %2002 = vmatpush.msra.mxu0 0.0
        %2003 = vmatpush.msra.mxu0 %v1983
        %2004 = vmatmul.f32.gmra.mxu0 %v1986
        %v2005 = vpop.f32.mrf.mxu0
        %v2006 = vadd.f32 0.0, %v2005
        %2007 = vdwg.mxu0
        %2008 = vrot.lane.b32.xlu0 %v489, 48
        %v2009 = vpop.permute.xlu0 %2008
        %v2012 = vsel %vm494, %v1850, 0
        %2014 = vmatpush.msra.mxu0 0.0
        %2015 = vmatpush.msra.mxu0 0.0
        %2016 = vmatpush.msra.mxu0 0.0
        %2017 = vmatpush.msra.mxu0 0.0
        %2018 = vmatpush.msra.mxu0 0.0
        %2019 = vmatpush.msra.mxu0 0.0
        %2020 = vmatpush.msra.mxu0 0.0
        %2021 = vmatpush.msra.mxu0 0.0
        %2022 = vmatpush.msra.mxu0 0.0
        %2023 = vmatpush.msra.mxu0 0.0
        %2024 = vmatpush.msra.mxu0 0.0
        %2025 = vmatpush.msra.mxu0 0.0
        %2026 = vmatpush.msra.mxu0 0.0
        %2027 = vmatpush.msra.mxu0 0.0
        %2028 = vmatpush.msra.mxu0 0.0
        %2029 = vmatpush.msra.mxu0 %v2009
        %2030 = vmatmul.f32.gmra.mxu0 %v2012
        %v2031 = vpop.f32.mrf.mxu0
        %v2032 = vadd.f32 0.0, %v2031
        %2033 = vdwg.mxu0
        %2034 = vrot.lane.b32.xlu0 %v490, 48
        %v2035 = vpop.permute.xlu0 %2034
        %v2038 = vsel %vm494, %v1851, 0
        %2040 = vmatpush.msra.mxu0 0.0
        %2041 = vmatpush.msra.mxu0 0.0
        %2042 = vmatpush.msra.mxu0 0.0
        %2043 = vmatpush.msra.mxu0 0.0
        %2044 = vmatpush.msra.mxu0 0.0
        %2045 = vmatpush.msra.mxu0 0.0
        %2046 = vmatpush.msra.mxu0 0.0
        %2047 = vmatpush.msra.mxu0 0.0
        %2048 = vmatpush.msra.mxu0 0.0
        %2049 = vmatpush.msra.mxu0 0.0
        %2050 = vmatpush.msra.mxu0 0.0
        %2051 = vmatpush.msra.mxu0 0.0
        %2052 = vmatpush.msra.mxu0 0.0
        %2053 = vmatpush.msra.mxu0 0.0
        %2054 = vmatpush.msra.mxu0 0.0
        %2055 = vmatpush.msra.mxu0 %v2035
        %2056 = vmatmul.f32.gmra.mxu0 %v2038
        %v2057 = vpop.f32.mrf.mxu0
        %v2058 = vadd.f32 0.0, %v2057
        %2059 = vdwg.mxu0
        %2060 = vrot.lane.b32.xlu0 %v457, 104
        %v2061 = vpop.permute.xlu0 %2060
        %2062 = vrot.lane.b32.xlu0 %v470, 72
        %v2063 = vpop.permute.xlu0 %2062
        %v2064 = vsel %vm494, %v2061, 0
        %v2066 = vsel %vm494, %v2063, 0
        %2068 = vmatpush.xpose.msra.mxu0 0.0
        %2069 = vmatpush.xpose.msra.mxu0 0.0
        %2070 = vmatpush.xpose.msra.mxu0 0.0
        %2071 = vmatpush.xpose.msra.mxu0 0.0
        %2072 = vmatpush.xpose.msra.mxu0 0.0
        %2073 = vmatpush.xpose.msra.mxu0 0.0
        %2074 = vmatpush.xpose.msra.mxu0 0.0
        %2075 = vmatpush.xpose.msra.mxu0 0.0
        %2076 = vmatpush.xpose.msra.mxu0 0.0
        %2077 = vmatpush.xpose.msra.mxu0 0.0
        %2078 = vmatpush.xpose.msra.mxu0 0.0
        %2079 = vmatpush.xpose.msra.mxu0 0.0
        %2080 = vmatpush.xpose.msra.mxu0 0.0
        %2081 = vmatpush.xpose.msra.mxu0 0.0
        %2082 = vmatpush.xpose.msra.mxu0 0.0
        %2083 = vmatpush.xpose.msra.mxu0 %v2066
        %2084 = vmatmul.f32.gmra.mxu0 %v2064
        %v2085 = vpop.f32.mrf.mxu0
        %v2086 = vadd.f32 %v383, %v2085
        %2087 = vdwg.mxu0
        %2088 = vrot.lane.b32.xlu0 %v458, 104
        %v2089 = vpop.permute.xlu0 %2088
        %2090 = vrot.lane.b32.xlu0 %v471, 72
        %v2091 = vpop.permute.xlu0 %2090
        %v2092 = vsel %vm494, %v2089, 0
        %v2094 = vsel %vm494, %v2091, 0
        %2096 = vmatpush.xpose.msra.mxu0 0.0
        %2097 = vmatpush.xpose.msra.mxu0 0.0
        %2098 = vmatpush.xpose.msra.mxu0 0.0
        %2099 = vmatpush.xpose.msra.mxu0 0.0
        %2100 = vmatpush.xpose.msra.mxu0 0.0
        %2101 = vmatpush.xpose.msra.mxu0 0.0
        %2102 = vmatpush.xpose.msra.mxu0 0.0
        %2103 = vmatpush.xpose.msra.mxu0 0.0
        %2104 = vmatpush.xpose.msra.mxu0 0.0
        %2105 = vmatpush.xpose.msra.mxu0 0.0
        %2106 = vmatpush.xpose.msra.mxu0 0.0
        %2107 = vmatpush.xpose.msra.mxu0 0.0
        %2108 = vmatpush.xpose.msra.mxu0 0.0
        %2109 = vmatpush.xpose.msra.mxu0 0.0
        %2110 = vmatpush.xpose.msra.mxu0 0.0
        %2111 = vmatpush.xpose.msra.mxu0 %v2094
        %2112 = vmatmul.f32.gmra.mxu0 %v2092
        %v2113 = vpop.f32.mrf.mxu0
        %v2114 = vadd.f32 %v383, %v2113
        %2115 = vdwg.mxu0
        %2116 = vrot.lane.b32.xlu0 %v459, 104
        %v2117 = vpop.permute.xlu0 %2116
        %2118 = vrot.lane.b32.xlu0 %v472, 72
        %v2119 = vpop.permute.xlu0 %2118
        %v2120 = vsel %vm494, %v2117, 0
        %v2122 = vsel %vm494, %v2119, 0
        %2124 = vmatpush.xpose.msra.mxu0 0.0
        %2125 = vmatpush.xpose.msra.mxu0 0.0
        %2126 = vmatpush.xpose.msra.mxu0 0.0
        %2127 = vmatpush.xpose.msra.mxu0 0.0
        %2128 = vmatpush.xpose.msra.mxu0 0.0
        %2129 = vmatpush.xpose.msra.mxu0 0.0
        %2130 = vmatpush.xpose.msra.mxu0 0.0
        %2131 = vmatpush.xpose.msra.mxu0 0.0
        %2132 = vmatpush.xpose.msra.mxu0 0.0
        %2133 = vmatpush.xpose.msra.mxu0 0.0
        %2134 = vmatpush.xpose.msra.mxu0 0.0
        %2135 = vmatpush.xpose.msra.mxu0 0.0
        %2136 = vmatpush.xpose.msra.mxu0 0.0
        %2137 = vmatpush.xpose.msra.mxu0 0.0
        %2138 = vmatpush.xpose.msra.mxu0 0.0
        %2139 = vmatpush.xpose.msra.mxu0 %v2122
        %2140 = vmatmul.f32.gmra.mxu0 %v2120
        %v2141 = vpop.f32.mrf.mxu0
        %v2142 = vadd.f32 %v383, %v2141
        %2143 = vdwg.mxu0
        %2144 = vrot.lane.b32.xlu0 %v460, 104
        %v2145 = vpop.permute.xlu0 %2144
        %2146 = vrot.lane.b32.xlu0 %v473, 72
        %v2147 = vpop.permute.xlu0 %2146
        %v2148 = vsel %vm494, %v2145, 0
        %v2150 = vsel %vm494, %v2147, 0
        %2152 = vmatpush.xpose.msra.mxu0 0.0
        %2153 = vmatpush.xpose.msra.mxu0 0.0
        %2154 = vmatpush.xpose.msra.mxu0 0.0
        %2155 = vmatpush.xpose.msra.mxu0 0.0
        %2156 = vmatpush.xpose.msra.mxu0 0.0
        %2157 = vmatpush.xpose.msra.mxu0 0.0
        %2158 = vmatpush.xpose.msra.mxu0 0.0
        %2159 = vmatpush.xpose.msra.mxu0 0.0
        %2160 = vmatpush.xpose.msra.mxu0 0.0
        %2161 = vmatpush.xpose.msra.mxu0 0.0
        %2162 = vmatpush.xpose.msra.mxu0 0.0
        %2163 = vmatpush.xpose.msra.mxu0 0.0
        %2164 = vmatpush.xpose.msra.mxu0 0.0
        %2165 = vmatpush.xpose.msra.mxu0 0.0
        %2166 = vmatpush.xpose.msra.mxu0 0.0
        %2167 = vmatpush.xpose.msra.mxu0 %v2150
        %2168 = vmatmul.f32.gmra.mxu0 %v2148
        %v2169 = vpop.f32.mrf.mxu0
        %v2170 = vadd.f32 %v383, %v2169
        %2171 = vdwg.mxu0
        %2172 = vrot.lane.b32.xlu0 %v461, 104
        %v2173 = vpop.permute.xlu0 %2172
        %2174 = vrot.lane.b32.xlu0 %v474, 72
        %v2175 = vpop.permute.xlu0 %2174
        %v2176 = vsel %vm494, %v2173, 0
        %v2178 = vsel %vm494, %v2175, 0
        %2180 = vmatpush.xpose.msra.mxu0 0.0
        %2181 = vmatpush.xpose.msra.mxu0 0.0
        %2182 = vmatpush.xpose.msra.mxu0 0.0
        %2183 = vmatpush.xpose.msra.mxu0 0.0
        %2184 = vmatpush.xpose.msra.mxu0 0.0
        %2185 = vmatpush.xpose.msra.mxu0 0.0
        %2186 = vmatpush.xpose.msra.mxu0 0.0
        %2187 = vmatpush.xpose.msra.mxu0 0.0
        %2188 = vmatpush.xpose.msra.mxu0 0.0
        %2189 = vmatpush.xpose.msra.mxu0 0.0
        %2190 = vmatpush.xpose.msra.mxu0 0.0
        %2191 = vmatpush.xpose.msra.mxu0 0.0
        %2192 = vmatpush.xpose.msra.mxu0 0.0
        %2193 = vmatpush.xpose.msra.mxu0 0.0
        %2194 = vmatpush.xpose.msra.mxu0 0.0
        %2195 = vmatpush.xpose.msra.mxu0 %v2178
        %2196 = vmatmul.f32.gmra.mxu0 %v2176
        %v2197 = vpop.f32.mrf.mxu0
        %v2198 = vadd.f32 %v383, %v2197
        %2199 = vdwg.mxu0
        %2200 = vrot.lane.b32.xlu0 %v462, 104
        %v2201 = vpop.permute.xlu0 %2200
        %2202 = vrot.lane.b32.xlu0 %v475, 72
        %v2203 = vpop.permute.xlu0 %2202
        %v2204 = vsel %vm494, %v2201, 0
        %v2206 = vsel %vm494, %v2203, 0
        %2208 = vmatpush.xpose.msra.mxu0 0.0
        %2209 = vmatpush.xpose.msra.mxu0 0.0
        %2210 = vmatpush.xpose.msra.mxu0 0.0
        %2211 = vmatpush.xpose.msra.mxu0 0.0
        %2212 = vmatpush.xpose.msra.mxu0 0.0
        %2213 = vmatpush.xpose.msra.mxu0 0.0
        %2214 = vmatpush.xpose.msra.mxu0 0.0
        %2215 = vmatpush.xpose.msra.mxu0 0.0
        %2216 = vmatpush.xpose.msra.mxu0 0.0
        %2217 = vmatpush.xpose.msra.mxu0 0.0
        %2218 = vmatpush.xpose.msra.mxu0 0.0
        %2219 = vmatpush.xpose.msra.mxu0 0.0
        %2220 = vmatpush.xpose.msra.mxu0 0.0
        %2221 = vmatpush.xpose.msra.mxu0 0.0
        %2222 = vmatpush.xpose.msra.mxu0 0.0
        %2223 = vmatpush.xpose.msra.mxu0 %v2206
        %2224 = vmatmul.f32.gmra.mxu0 %v2204
        %v2225 = vpop.f32.mrf.mxu0
        %v2226 = vadd.f32 %v383, %v2225
        %2227 = vdwg.mxu0
        %2228 = vrot.lane.b32.xlu0 %v463, 104
        %v2229 = vpop.permute.xlu0 %2228
        %2230 = vrot.lane.b32.xlu0 %v476, 72
        %v2231 = vpop.permute.xlu0 %2230
        %v2232 = vsel %vm494, %v2229, 0
        %v2234 = vsel %vm494, %v2231, 0
        %2236 = vmatpush.xpose.msra.mxu0 0.0
        %2237 = vmatpush.xpose.msra.mxu0 0.0
        %2238 = vmatpush.xpose.msra.mxu0 0.0
        %2239 = vmatpush.xpose.msra.mxu0 0.0
        %2240 = vmatpush.xpose.msra.mxu0 0.0
        %2241 = vmatpush.xpose.msra.mxu0 0.0
        %2242 = vmatpush.xpose.msra.mxu0 0.0
        %2243 = vmatpush.xpose.msra.mxu0 0.0
        %2244 = vmatpush.xpose.msra.mxu0 0.0
        %2245 = vmatpush.xpose.msra.mxu0 0.0
        %2246 = vmatpush.xpose.msra.mxu0 0.0
        %2247 = vmatpush.xpose.msra.mxu0 0.0
        %2248 = vmatpush.xpose.msra.mxu0 0.0
        %2249 = vmatpush.xpose.msra.mxu0 0.0
        %2250 = vmatpush.xpose.msra.mxu0 0.0
        %2251 = vmatpush.xpose.msra.mxu0 %v2234
        %2252 = vmatmul.f32.gmra.mxu0 %v2232
        %v2253 = vpop.f32.mrf.mxu0
        %v2254 = vadd.f32 %v383, %v2253
        %2255 = vdwg.mxu0
        %2256 = vrot.lane.b32.xlu0 %v464, 104
        %v2257 = vpop.permute.xlu0 %2256
        %2258 = vrot.lane.b32.xlu0 %v477, 72
        %v2259 = vpop.permute.xlu0 %2258
        %v2260 = vsel %vm494, %v2257, 0
        %v2262 = vsel %vm494, %v2259, 0
        %2264 = vmatpush.xpose.msra.mxu0 0.0
        %2265 = vmatpush.xpose.msra.mxu0 0.0
        %2266 = vmatpush.xpose.msra.mxu0 0.0
        %2267 = vmatpush.xpose.msra.mxu0 0.0
        %2268 = vmatpush.xpose.msra.mxu0 0.0
        %2269 = vmatpush.xpose.msra.mxu0 0.0
        %2270 = vmatpush.xpose.msra.mxu0 0.0
        %2271 = vmatpush.xpose.msra.mxu0 0.0
        %2272 = vmatpush.xpose.msra.mxu0 0.0
        %2273 = vmatpush.xpose.msra.mxu0 0.0
        %2274 = vmatpush.xpose.msra.mxu0 0.0
        %2275 = vmatpush.xpose.msra.mxu0 0.0
        %2276 = vmatpush.xpose.msra.mxu0 0.0
        %2277 = vmatpush.xpose.msra.mxu0 0.0
        %2278 = vmatpush.xpose.msra.mxu0 0.0
        %2279 = vmatpush.xpose.msra.mxu0 %v2262
        %2280 = vmatmul.f32.gmra.mxu0 %v2260
        %v2281 = vpop.f32.mrf.mxu0
        %v2282 = vadd.f32 %v383, %v2281
        %2283 = vdwg.mxu0
        %v2284 = vsel %vm494, %v2086, -inf
        %2285 = vmax.xlane.f32.xlu0 %v2284
        %v2286 = vpop.xlane.xlu0 %2285
        %v2287 = vsel %vm494, %v2114, -inf
        %2288 = vmax.xlane.f32.xlu0 %v2287
        %v2289 = vpop.xlane.xlu0 %2288
        %v2290 = vsel %vm494, %v2142, -inf
        %2291 = vmax.xlane.f32.xlu0 %v2290
        %v2292 = vpop.xlane.xlu0 %2291
        %v2293 = vsel %vm494, %v2170, -inf
        %2294 = vmax.xlane.f32.xlu0 %v2293
        %v2295 = vpop.xlane.xlu0 %2294
        %v2296 = vsel %vm494, %v2198, -inf
        %2297 = vmax.xlane.f32.xlu0 %v2296
        %v2298 = vpop.xlane.xlu0 %2297
        %v2299 = vsel %vm494, %v2226, -inf
        %2300 = vmax.xlane.f32.xlu0 %v2299
        %v2301 = vpop.xlane.xlu0 %2300
        %v2302 = vsel %vm494, %v2254, -inf
        %2303 = vmax.xlane.f32.xlu0 %v2302
        %v2304 = vpop.xlane.xlu0 %2303
        %v2305 = vsel %vm494, %v2282, -inf
        %2306 = vmax.xlane.f32.xlu0 %v2305
        %v2307 = vpop.xlane.xlu0 %2306
        %v2308 = vsub.f32 %v2086, %v2286
        %v2309 = vsub.f32 %v2114, %v2289
        %v2310 = vsub.f32 %v2142, %v2292
        %v2311 = vsub.f32 %v2170, %v2295
        %v2312 = vsub.f32 %v2198, %v2298
        %v2313 = vsub.f32 %v2226, %v2301
        %v2314 = vsub.f32 %v2254, %v2304
        %v2315 = vsub.f32 %v2282, %v2307
        %v2316 = vmul.f32 %v2308, 1.442695
        %v2317 = vpow.pop %v2316
        %v2318 = vmul.f32 %v2309, 1.442695
        %v2319 = vpow.pop %v2318
        %v2320 = vmul.f32 %v2310, 1.442695
        %v2321 = vpow.pop %v2320
        %v2322 = vmul.f32 %v2311, 1.442695
        %v2323 = vpow.pop %v2322
        %v2324 = vmul.f32 %v2312, 1.442695
        %v2325 = vpow.pop %v2324
        %v2326 = vmul.f32 %v2313, 1.442695
        %v2327 = vpow.pop %v2326
        %v2328 = vmul.f32 %v2314, 1.442695
        %v2329 = vpow.pop %v2328
        %v2330 = vmul.f32 %v2315, 1.442695
        %v2331 = vpow.pop %v2330
        %v2332 = vsel %vm494, %v2317, 0.0
        %2333 = vadd.xlane.f32.xlu0 %v2332
        %v2334 = vpop.xlane.xlu0 %2333
        %v2335 = vsel %vm494, %v2319, 0.0
        %2336 = vadd.xlane.f32.xlu0 %v2335
        %v2337 = vpop.xlane.xlu0 %2336
        %v2338 = vsel %vm494, %v2321, 0.0
        %2339 = vadd.xlane.f32.xlu0 %v2338
        %v2340 = vpop.xlane.xlu0 %2339
        %v2341 = vsel %vm494, %v2323, 0.0
        %2342 = vadd.xlane.f32.xlu0 %v2341
        %v2343 = vpop.xlane.xlu0 %2342
        %v2344 = vsel %vm494, %v2325, 0.0
        %2345 = vadd.xlane.f32.xlu0 %v2344
        %v2346 = vpop.xlane.xlu0 %2345
        %v2347 = vsel %vm494, %v2327, 0.0
        %2348 = vadd.xlane.f32.xlu0 %v2347
        %v2349 = vpop.xlane.xlu0 %2348
        %v2350 = vsel %vm494, %v2329, 0.0
        %2351 = vadd.xlane.f32.xlu0 %v2350
        %v2352 = vpop.xlane.xlu0 %2351
        %v2353 = vsel %vm494, %v2331, 0.0
        %2354 = vadd.xlane.f32.xlu0 %v2353
        %v2355 = vpop.xlane.xlu0 %2354
        %v2356 = vrcp.pop %v2334
        %v2357 = vrcp.pop %v2337
        %v2358 = vrcp.pop %v2340
        %v2359 = vrcp.pop %v2343
        %v2360 = vrcp.pop %v2346
        %v2361 = vrcp.pop %v2349
        %v2362 = vrcp.pop %v2352
        %v2363 = vrcp.pop %v2355
        %v2364 = vmul.f32 %v2317, %v2356
        %v2365 = vmul.f32 %v2319, %v2357
        %v2366 = vmul.f32 %v2321, %v2358
        %v2367 = vmul.f32 %v2323, %v2359
        %v2368 = vmul.f32 %v2325, %v2360
        %v2369 = vmul.f32 %v2327, %v2361
        %v2370 = vmul.f32 %v2329, %v2362
        %v2371 = vmul.f32 %v2331, %v2363
        %2372 = vrot.lane.b32.xlu0 %v483, 40
        %v2373 = vpop.permute.xlu0 %2372
        %v2376 = vsel %vm494, %v2364, 0
        %2378 = vmatpush.msra.mxu0 0.0
        %2379 = vmatpush.msra.mxu0 0.0
        %2380 = vmatpush.msra.mxu0 0.0
        %2381 = vmatpush.msra.mxu0 0.0
        %2382 = vmatpush.msra.mxu0 0.0
        %2383 = vmatpush.msra.mxu0 0.0
        %2384 = vmatpush.msra.mxu0 0.0
        %2385 = vmatpush.msra.mxu0 0.0
        %2386 = vmatpush.msra.mxu0 0.0
        %2387 = vmatpush.msra.mxu0 0.0
        %2388 = vmatpush.msra.mxu0 0.0
        %2389 = vmatpush.msra.mxu0 0.0
        %2390 = vmatpush.msra.mxu0 0.0
        %2391 = vmatpush.msra.mxu0 0.0
        %2392 = vmatpush.msra.mxu0 0.0
        %2393 = vmatpush.msra.mxu0 %v2373
        %2394 = vmatmul.f32.gmra.mxu0 %v2376
        %v2395 = vpop.f32.mrf.mxu0
        %v2396 = vadd.f32 0.0, %v2395
        %2397 = vdwg.mxu0
        %2398 = vrot.lane.b32.xlu0 %v484, 40
        %v2399 = vpop.permute.xlu0 %2398
        %v2402 = vsel %vm494, %v2365, 0
        %2404 = vmatpush.msra.mxu0 0.0
        %2405 = vmatpush.msra.mxu0 0.0
        %2406 = vmatpush.msra.mxu0 0.0
        %2407 = vmatpush.msra.mxu0 0.0
        %2408 = vmatpush.msra.mxu0 0.0
        %2409 = vmatpush.msra.mxu0 0.0
        %2410 = vmatpush.msra.mxu0 0.0
        %2411 = vmatpush.msra.mxu0 0.0
        %2412 = vmatpush.msra.mxu0 0.0
        %2413 = vmatpush.msra.mxu0 0.0
        %2414 = vmatpush.msra.mxu0 0.0
        %2415 = vmatpush.msra.mxu0 0.0
        %2416 = vmatpush.msra.mxu0 0.0
        %2417 = vmatpush.msra.mxu0 0.0
        %2418 = vmatpush.msra.mxu0 0.0
        %2419 = vmatpush.msra.mxu0 %v2399
        %2420 = vmatmul.f32.gmra.mxu0 %v2402
        %v2421 = vpop.f32.mrf.mxu0
        %v2422 = vadd.f32 0.0, %v2421
        %2423 = vdwg.mxu0
        %2424 = vrot.lane.b32.xlu0 %v485, 40
        %v2425 = vpop.permute.xlu0 %2424
        %v2428 = vsel %vm494, %v2366, 0
        %2430 = vmatpush.msra.mxu0 0.0
        %2431 = vmatpush.msra.mxu0 0.0
        %2432 = vmatpush.msra.mxu0 0.0
        %2433 = vmatpush.msra.mxu0 0.0
        %2434 = vmatpush.msra.mxu0 0.0
        %2435 = vmatpush.msra.mxu0 0.0
        %2436 = vmatpush.msra.mxu0 0.0
        %2437 = vmatpush.msra.mxu0 0.0
        %2438 = vmatpush.msra.mxu0 0.0
        %2439 = vmatpush.msra.mxu0 0.0
        %2440 = vmatpush.msra.mxu0 0.0
        %2441 = vmatpush.msra.mxu0 0.0
        %2442 = vmatpush.msra.mxu0 0.0
        %2443 = vmatpush.msra.mxu0 0.0
        %2444 = vmatpush.msra.mxu0 0.0
        %2445 = vmatpush.msra.mxu0 %v2425
        %2446 = vmatmul.f32.gmra.mxu0 %v2428
        %v2447 = vpop.f32.mrf.mxu0
        %v2448 = vadd.f32 0.0, %v2447
        %2449 = vdwg.mxu0
        %2450 = vrot.lane.b32.xlu0 %v486, 40
        %v2451 = vpop.permute.xlu0 %2450
        %v2454 = vsel %vm494, %v2367, 0
        %2456 = vmatpush.msra.mxu0 0.0
        %2457 = vmatpush.msra.mxu0 0.0
        %2458 = vmatpush.msra.mxu0 0.0
        %2459 = vmatpush.msra.mxu0 0.0
        %2460 = vmatpush.msra.mxu0 0.0
        %2461 = vmatpush.msra.mxu0 0.0
        %2462 = vmatpush.msra.mxu0 0.0
        %2463 = vmatpush.msra.mxu0 0.0
        %2464 = vmatpush.msra.mxu0 0.0
        %2465 = vmatpush.msra.mxu0 0.0
        %2466 = vmatpush.msra.mxu0 0.0
        %2467 = vmatpush.msra.mxu0 0.0
        %2468 = vmatpush.msra.mxu0 0.0
        %2469 = vmatpush.msra.mxu0 0.0
        %2470 = vmatpush.msra.mxu0 0.0
        %2471 = vmatpush.msra.mxu0 %v2451
        %2472 = vmatmul.f32.gmra.mxu0 %v2454
        %v2473 = vpop.f32.mrf.mxu0
        %v2474 = vadd.f32 0.0, %v2473
        %2475 = vdwg.mxu0
        %2476 = vrot.lane.b32.xlu0 %v487, 40
        %v2477 = vpop.permute.xlu0 %2476
        %v2480 = vsel %vm494, %v2368, 0
        %2482 = vmatpush.msra.mxu0 0.0
        %2483 = vmatpush.msra.mxu0 0.0
        %2484 = vmatpush.msra.mxu0 0.0
        %2485 = vmatpush.msra.mxu0 0.0
        %2486 = vmatpush.msra.mxu0 0.0
        %2487 = vmatpush.msra.mxu0 0.0
        %2488 = vmatpush.msra.mxu0 0.0
        %2489 = vmatpush.msra.mxu0 0.0
        %2490 = vmatpush.msra.mxu0 0.0
        %2491 = vmatpush.msra.mxu0 0.0
        %2492 = vmatpush.msra.mxu0 0.0
        %2493 = vmatpush.msra.mxu0 0.0
        %2494 = vmatpush.msra.mxu0 0.0
        %2495 = vmatpush.msra.mxu0 0.0
        %2496 = vmatpush.msra.mxu0 0.0
        %2497 = vmatpush.msra.mxu0 %v2477
        %2498 = vmatmul.f32.gmra.mxu0 %v2480
        %v2499 = vpop.f32.mrf.mxu0
        %v2500 = vadd.f32 0.0, %v2499
        %2501 = vdwg.mxu0
        %2502 = vrot.lane.b32.xlu0 %v488, 40
        %v2503 = vpop.permute.xlu0 %2502
        %v2506 = vsel %vm494, %v2369, 0
        %2508 = vmatpush.msra.mxu0 0.0
        %2509 = vmatpush.msra.mxu0 0.0
        %2510 = vmatpush.msra.mxu0 0.0
        %2511 = vmatpush.msra.mxu0 0.0
        %2512 = vmatpush.msra.mxu0 0.0
        %2513 = vmatpush.msra.mxu0 0.0
        %2514 = vmatpush.msra.mxu0 0.0
        %2515 = vmatpush.msra.mxu0 0.0
        %2516 = vmatpush.msra.mxu0 0.0
        %2517 = vmatpush.msra.mxu0 0.0
        %2518 = vmatpush.msra.mxu0 0.0
        %2519 = vmatpush.msra.mxu0 0.0
        %2520 = vmatpush.msra.mxu0 0.0
        %2521 = vmatpush.msra.mxu0 0.0
        %2522 = vmatpush.msra.mxu0 0.0
        %2523 = vmatpush.msra.mxu0 %v2503
        %2524 = vmatmul.f32.gmra.mxu0 %v2506
        %v2525 = vpop.f32.mrf.mxu0
        %v2526 = vadd.f32 0.0, %v2525
        %2527 = vdwg.mxu0
        %2528 = vrot.lane.b32.xlu0 %v489, 40
        %v2529 = vpop.permute.xlu0 %2528
        %v2532 = vsel %vm494, %v2370, 0
        %2534 = vmatpush.msra.mxu0 0.0
        %2535 = vmatpush.msra.mxu0 0.0
        %2536 = vmatpush.msra.mxu0 0.0
        %2537 = vmatpush.msra.mxu0 0.0
        %2538 = vmatpush.msra.mxu0 0.0
        %2539 = vmatpush.msra.mxu0 0.0
        %2540 = vmatpush.msra.mxu0 0.0
        %2541 = vmatpush.msra.mxu0 0.0
        %2542 = vmatpush.msra.mxu0 0.0
        %2543 = vmatpush.msra.mxu0 0.0
        %2544 = vmatpush.msra.mxu0 0.0
        %2545 = vmatpush.msra.mxu0 0.0
        %2546 = vmatpush.msra.mxu0 0.0
        %2547 = vmatpush.msra.mxu0 0.0
        %2548 = vmatpush.msra.mxu0 0.0
        %2549 = vmatpush.msra.mxu0 %v2529
        %2550 = vmatmul.f32.gmra.mxu0 %v2532
        %v2551 = vpop.f32.mrf.mxu0
        %v2552 = vadd.f32 0.0, %v2551
        %2553 = vdwg.mxu0
        %2554 = vrot.lane.b32.xlu0 %v490, 40
        %v2555 = vpop.permute.xlu0 %2554
        %v2558 = vsel %vm494, %v2371, 0
        %2560 = vmatpush.msra.mxu0 0.0
        %2561 = vmatpush.msra.mxu0 0.0
        %2562 = vmatpush.msra.mxu0 0.0
        %2563 = vmatpush.msra.mxu0 0.0
        %2564 = vmatpush.msra.mxu0 0.0
        %2565 = vmatpush.msra.mxu0 0.0
        %2566 = vmatpush.msra.mxu0 0.0
        %2567 = vmatpush.msra.mxu0 0.0
        %2568 = vmatpush.msra.mxu0 0.0
        %2569 = vmatpush.msra.mxu0 0.0
        %2570 = vmatpush.msra.mxu0 0.0
        %2571 = vmatpush.msra.mxu0 0.0
        %2572 = vmatpush.msra.mxu0 0.0
        %2573 = vmatpush.msra.mxu0 0.0
        %2574 = vmatpush.msra.mxu0 0.0
        %2575 = vmatpush.msra.mxu0 %v2555
        %2576 = vmatmul.f32.gmra.mxu0 %v2558
        %v2577 = vpop.f32.mrf.mxu0
        %v2578 = vadd.f32 0.0, %v2577
        %2579 = vdwg.mxu0
        %2588 = vrot.lane.b32.xlu0 %v1356, 8
        %v2589 = vpop.permute.xlu0 %2588
        %2590 = vrot.lane.b32.xlu0 %v1382, 8
        %v2591 = vpop.permute.xlu0 %2590
        %2592 = vrot.lane.b32.xlu0 %v1408, 8
        %v2593 = vpop.permute.xlu0 %2592
        %2594 = vrot.lane.b32.xlu0 %v1434, 8
        %v2595 = vpop.permute.xlu0 %2594
        %2596 = vrot.lane.b32.xlu0 %v1460, 8
        %v2597 = vpop.permute.xlu0 %2596
        %2598 = vrot.lane.b32.xlu0 %v1486, 8
        %v2599 = vpop.permute.xlu0 %2598
        %2600 = vrot.lane.b32.xlu0 %v1512, 8
        %v2601 = vpop.permute.xlu0 %2600
        %2602 = vrot.lane.b32.xlu0 %v1538, 8
        %v2603 = vpop.permute.xlu0 %2602
        %2620 = vrot.lane.b32.xlu0 %v1876, 16
        %v2621 = vpop.permute.xlu0 %2620
        %2622 = vrot.lane.b32.xlu0 %v1902, 16
        %v2623 = vpop.permute.xlu0 %2622
        %2624 = vrot.lane.b32.xlu0 %v1928, 16
        %v2625 = vpop.permute.xlu0 %2624
        %2626 = vrot.lane.b32.xlu0 %v1954, 16
        %v2627 = vpop.permute.xlu0 %2626
        %2628 = vrot.lane.b32.xlu0 %v1980, 16
        %v2629 = vpop.permute.xlu0 %2628
        %2630 = vrot.lane.b32.xlu0 %v2006, 16
        %v2631 = vpop.permute.xlu0 %2630
        %2632 = vrot.lane.b32.xlu0 %v2032, 16
        %v2633 = vpop.permute.xlu0 %2632
        %2634 = vrot.lane.b32.xlu0 %v2058, 16
        %v2635 = vpop.permute.xlu0 %2634
        %2652 = vrot.lane.b32.xlu0 %v2396, 24
        %v2653 = vpop.permute.xlu0 %2652
        %2654 = vrot.lane.b32.xlu0 %v2422, 24
        %v2655 = vpop.permute.xlu0 %2654
        %2656 = vrot.lane.b32.xlu0 %v2448, 24
        %v2657 = vpop.permute.xlu0 %2656
        %2658 = vrot.lane.b32.xlu0 %v2474, 24
        %v2659 = vpop.permute.xlu0 %2658
        %2660 = vrot.lane.b32.xlu0 %v2500, 24
        %v2661 = vpop.permute.xlu0 %2660
        %2662 = vrot.lane.b32.xlu0 %v2526, 24
        %v2663 = vpop.permute.xlu0 %2662
        %2664 = vrot.lane.b32.xlu0 %v2552, 24
        %v2665 = vpop.permute.xlu0 %2664
        %2666 = vrot.lane.b32.xlu0 %v2578, 24
        %v2667 = vpop.permute.xlu0 %2666
        %v2676 = vsel %vm494, %v829, %v2589
        %v2677 = vsel %vm494, %v856, %v2591
        %v2678 = vsel %vm494, %v883, %v2593
        %v2679 = vsel %vm494, %v910, %v2595
        %v2680 = vsel %vm494, %v937, %v2597
        %v2681 = vsel %vm494, %v964, %v2599
        %v2682 = vsel %vm494, %v991, %v2601
        %v2683 = vsel %vm494, %v1018, %v2603
        %vm2684 = vcmask 130048
        %v2685 = vsel %vm2684, %v2676, %v2621
        %v2686 = vsel %vm2684, %v2677, %v2623
        %v2687 = vsel %vm2684, %v2678, %v2625
        %v2688 = vsel %vm2684, %v2679, %v2627
        %v2689 = vsel %vm2684, %v2680, %v2629
        %v2690 = vsel %vm2684, %v2681, %v2631
        %v2691 = vsel %vm2684, %v2682, %v2633
        %v2692 = vsel %vm2684, %v2683, %v2635
        %vm2693 = vcmask 195584
        %v2694 = vsel %vm2693, %v2685, %v2653
        %v2695 = vsel %vm2693, %v2686, %v2655
        %v2696 = vsel %vm2693, %v2687, %v2657
        %v2697 = vsel %vm2693, %v2688, %v2659
        %v2698 = vsel %vm2693, %v2689, %v2661
        %v2699 = vsel %vm2693, %v2690, %v2663
        %v2700 = vsel %vm2693, %v2691, %v2665
        %v2701 = vsel %vm2693, %v2692, %v2667
        %v2702 = vld [vmem:[#allocation5] sm:$0xff]
        %v2703 = vld [vmem:[#allocation5 + $0x8] sm:$0xff]
        %v2704 = vld [vmem:[#allocation5 + $0x10] sm:$0xff]
        %v2705 = vld [vmem:[#allocation5 + $0x18] sm:$0xff]
        %v2706 = vperm.slane %v384, 3
        %v2708 = vsel %vm390, %v2694, 0
        %v2711 = vsel %vm390, %v2695, 0
        %v2714 = vsel %vm390, %v2696, 0
        %v2717 = vsel %vm390, %v2697, 0
        %v2720 = vsel %vm390, %v2698, 0
        %v2723 = vsel %vm390, %v2699, 0
        %v2726 = vsel %vm390, %v2700, 0
        %v2729 = vsel %vm390, %v2701, 0
        %2731 = vmatpush.msra.mxu0 0.0
        %2732 = vmatpush.msra.mxu0 0.0
        %2733 = vmatpush.msra.mxu0 0.0
        %2734 = vmatpush.msra.mxu0 0.0
        %2735 = vmatpush.msra.mxu0 0.0
        %2736 = vmatpush.msra.mxu0 0.0
        %2737 = vmatpush.msra.mxu0 0.0
        %2738 = vmatpush.msra.mxu0 0.0
        %2739 = vmatpush.msra.mxu0 0.0
        %2740 = vmatpush.msra.mxu0 0.0
        %2741 = vmatpush.msra.mxu0 0.0
        %2742 = vmatpush.msra.mxu0 0.0
        %2743 = vmatpush.msra.mxu0 %v2705
        %2744 = vmatpush.msra.mxu0 %v2704
        %2745 = vmatpush.msra.mxu0 %v2703
        %2746 = vmatpush.msra.mxu0 %v2702
        %2747 = vmatmul.f32.gmra.mxu0 %v2708
        %v2748 = vpop.f32.mrf.mxu0
        %v2749 = vadd.f32 %v2706, %v2748
        %2750 = vmatmul.f32.gmra.mxu0 %v2711
        %v2751 = vpop.f32.mrf.mxu0
        %v2752 = vadd.f32 %v2706, %v2751
        %2753 = vmatmul.f32.gmra.mxu0 %v2714
        %v2754 = vpop.f32.mrf.mxu0
        %v2755 = vadd.f32 %v2706, %v2754
        %2756 = vmatmul.f32.gmra.mxu0 %v2717
        %v2757 = vpop.f32.mrf.mxu0
        %v2758 = vadd.f32 %v2706, %v2757
        %2759 = vmatmul.f32.gmra.mxu0 %v2720
        %v2760 = vpop.f32.mrf.mxu0
        %v2761 = vadd.f32 %v2706, %v2760
        %2762 = vmatmul.f32.gmra.mxu0 %v2723
        %v2763 = vpop.f32.mrf.mxu0
        %v2764 = vadd.f32 %v2706, %v2763
        %2765 = vmatmul.f32.gmra.mxu0 %v2726
        %v2766 = vpop.f32.mrf.mxu0
        %v2767 = vadd.f32 %v2706, %v2766
        %2768 = vmatmul.f32.gmra.mxu0 %v2729
        %v2769 = vpop.f32.mrf.mxu0
        %v2770 = vadd.f32 %v2706, %v2769
        %2771 = vdwg.mxu0
        %v2772 = vadd.f32 %v372, %v2749
        %v2773 = vadd.f32 %v373, %v2752
        %v2774 = vadd.f32 %v374, %v2755
        %v2775 = vadd.f32 %v375, %v2758
        %v2776 = vadd.f32 %v376, %v2761
        %v2777 = vadd.f32 %v377, %v2764
        %v2778 = vadd.f32 %v378, %v2767
        %v2779 = vadd.f32 %v379, %v2770
        %v2780 = vsel %vm390, %v2772, 0.0
        %2781 = vadd.xlane.f32.xlu0 %v2780
        %v2782 = vpop.xlane.xlu0 %2781
        %v2783 = vsel %vm390, %v2773, 0.0
        %2784 = vadd.xlane.f32.xlu0 %v2783
        %v2785 = vpop.xlane.xlu0 %2784
        %v2786 = vsel %vm390, %v2774, 0.0
        %2787 = vadd.xlane.f32.xlu0 %v2786
        %v2788 = vpop.xlane.xlu0 %2787
        %v2789 = vsel %vm390, %v2775, 0.0
        %2790 = vadd.xlane.f32.xlu0 %v2789
        %v2791 = vpop.xlane.xlu0 %2790
        %v2792 = vsel %vm390, %v2776, 0.0
        %2793 = vadd.xlane.f32.xlu0 %v2792
        %v2794 = vpop.xlane.xlu0 %2793
        %v2795 = vsel %vm390, %v2777, 0.0
        %2796 = vadd.xlane.f32.xlu0 %v2795
        %v2797 = vpop.xlane.xlu0 %2796
        %v2798 = vsel %vm390, %v2778, 0.0
        %2799 = vadd.xlane.f32.xlu0 %v2798
        %v2800 = vpop.xlane.xlu0 %2799
        %v2801 = vsel %vm390, %v2779, 0.0
        %2802 = vadd.xlane.f32.xlu0 %v2801
        %v2803 = vpop.xlane.xlu0 %2802
        %v2804 = vrcp.pop 32.0
        %v2805 = vmul.f32 32.0, %v2804
        %v2806 = vsub.f32 1.0, %v2805
        %v2807 = vmul.f32 %v2804, %v2806
        %v2808 = vadd.f32 %v2804, %v2807
        %vm2809 = vweird.f32 %v2804
        %v2810 = vsel %vm2809, %v2804, %v2808
        %v2811 = vmul.f32 %v2782, %v2810
        %v2812 = vmul.f32 %v2785, %v2810
        %v2813 = vmul.f32 %v2788, %v2810
        %v2814 = vmul.f32 %v2791, %v2810
        %v2815 = vmul.f32 %v2794, %v2810
        %v2816 = vmul.f32 %v2797, %v2810
        %v2817 = vmul.f32 %v2800, %v2810
        %v2818 = vmul.f32 %v2803, %v2810
        %v2819 = vsub.f32 %v2772, %v2811
        %v2820 = vsub.f32 %v2773, %v2812
        %v2821 = vsub.f32 %v2774, %v2813
        %v2822 = vsub.f32 %v2775, %v2814
        %v2823 = vsub.f32 %v2776, %v2815
        %v2824 = vsub.f32 %v2777, %v2816
        %v2825 = vsub.f32 %v2778, %v2817
        %v2826 = vsub.f32 %v2779, %v2818
        %v2827 = vmul.f32 %v2819, %v2819
        %v2828 = vmul.f32 %v2820, %v2820
        %v2829 = vmul.f32 %v2821, %v2821
        %v2830 = vmul.f32 %v2822, %v2822
        %v2831 = vmul.f32 %v2823, %v2823
        %v2832 = vmul.f32 %v2824, %v2824
        %v2833 = vmul.f32 %v2825, %v2825
        %v2834 = vmul.f32 %v2826, %v2826
        %v2835 = vsel %vm390, %v2827, 0.0
        %2836 = vadd.xlane.f32.xlu0 %v2835
        %v2837 = vpop.xlane.xlu0 %2836
        %v2838 = vsel %vm390, %v2828, 0.0
        %2839 = vadd.xlane.f32.xlu0 %v2838
        %v2840 = vpop.xlane.xlu0 %2839
        %v2841 = vsel %vm390, %v2829, 0.0
        %2842 = vadd.xlane.f32.xlu0 %v2841
        %v2843 = vpop.xlane.xlu0 %2842
        %v2844 = vsel %vm390, %v2830, 0.0
        %2845 = vadd.xlane.f32.xlu0 %v2844
        %v2846 = vpop.xlane.xlu0 %2845
        %v2847 = vsel %vm390, %v2831, 0.0
        %2848 = vadd.xlane.f32.xlu0 %v2847
        %v2849 = vpop.xlane.xlu0 %2848
        %v2850 = vsel %vm390, %v2832, 0.0
        %2851 = vadd.xlane.f32.xlu0 %v2850
        %v2852 = vpop.xlane.xlu0 %2851
        %v2853 = vsel %vm390, %v2833, 0.0
        %2854 = vadd.xlane.f32.xlu0 %v2853
        %v2855 = vpop.xlane.xlu0 %2854
        %v2856 = vsel %vm390, %v2834, 0.0
        %2857 = vadd.xlane.f32.xlu0 %v2856
        %v2858 = vpop.xlane.xlu0 %2857
        %v2859 = vmul.f32 %v2837, %v2810
        %v2860 = vmul.f32 %v2840, %v2810
        %v2861 = vmul.f32 %v2843, %v2810
        %v2862 = vmul.f32 %v2846, %v2810
        %v2863 = vmul.f32 %v2849, %v2810
        %v2864 = vmul.f32 %v2852, %v2810
        %v2865 = vmul.f32 %v2855, %v2810
        %v2866 = vmul.f32 %v2858, %v2810
        %v2867 = vadd.f32 %v2859, 1e-05
        %v2868 = vadd.f32 %v2860, 1e-05
        %v2869 = vadd.f32 %v2861, 1e-05
        %v2870 = vadd.f32 %v2862, 1e-05
        %v2871 = vadd.f32 %v2863, 1e-05
        %v2872 = vadd.f32 %v2864, 1e-05
        %v2873 = vadd.f32 %v2865, 1e-05
        %v2874 = vadd.f32 %v2866, 1e-05
        %v2875 = vrsqrt.pop %v2867
        %v2876 = vmul.f32 %v2875, %v2867
        %v2877 = vmul.f32 %v2876, %v2875
        %v2878 = vmul.f32 0.5, %v2877
        %v2879 = vsub.f32 1.5, %v2878
        %v2880 = vmul.f32 %v2875, %v2879
        %vm2881 = vweird.f32 %v2867
        %vm2882 = vweird.f32 %v2875
        %vm2883 = vmor %vm2881, %vm2882
        %v2884 = vsel %vm2883, %v2875, %v2880
        %v2885 = vrsqrt.pop %v2868
        %v2886 = vmul.f32 %v2885, %v2868
        %v2887 = vmul.f32 %v2886, %v2885
        %v2888 = vmul.f32 0.5, %v2887
        %v2889 = vsub.f32 1.5, %v2888
        %v2890 = vmul.f32 %v2885, %v2889
        %vm2891 = vweird.f32 %v2868
        %vm2892 = vweird.f32 %v2885
        %vm2893 = vmor %vm2891, %vm2892
        %v2894 = vsel %vm2893, %v2885, %v2890
        %v2895 = vrsqrt.pop %v2869
        %v2896 = vmul.f32 %v2895, %v2869
        %v2897 = vmul.f32 %v2896, %v2895
        %v2898 = vmul.f32 0.5, %v2897
        %v2899 = vsub.f32 1.5, %v2898
        %v2900 = vmul.f32 %v2895, %v2899
        %vm2901 = vweird.f32 %v2869
        %vm2902 = vweird.f32 %v2895
        %vm2903 = vmor %vm2901, %vm2902
        %v2904 = vsel %vm2903, %v2895, %v2900
        %v2905 = vrsqrt.pop %v2870
        %v2906 = vmul.f32 %v2905, %v2870
        %v2907 = vmul.f32 %v2906, %v2905
        %v2908 = vmul.f32 0.5, %v2907
        %v2909 = vsub.f32 1.5, %v2908
        %v2910 = vmul.f32 %v2905, %v2909
        %vm2911 = vweird.f32 %v2870
        %vm2912 = vweird.f32 %v2905
        %vm2913 = vmor %vm2911, %vm2912
        %v2914 = vsel %vm2913, %v2905, %v2910
        %v2915 = vrsqrt.pop %v2871
        %v2916 = vmul.f32 %v2915, %v2871
        %v2917 = vmul.f32 %v2916, %v2915
        %v2918 = vmul.f32 0.5, %v2917
        %v2919 = vsub.f32 1.5, %v2918
        %v2920 = vmul.f32 %v2915, %v2919
        %vm2921 = vweird.f32 %v2871
        %vm2922 = vweird.f32 %v2915
        %vm2923 = vmor %vm2921, %vm2922
        %v2924 = vsel %vm2923, %v2915, %v2920
        %v2925 = vrsqrt.pop %v2872
        %v2926 = vmul.f32 %v2925, %v2872
        %v2927 = vmul.f32 %v2926, %v2925
        %v2928 = vmul.f32 0.5, %v2927
        %v2929 = vsub.f32 1.5, %v2928
        %v2930 = vmul.f32 %v2925, %v2929
        %vm2931 = vweird.f32 %v2872
        %vm2932 = vweird.f32 %v2925
        %vm2933 = vmor %vm2931, %vm2932
        %v2934 = vsel %vm2933, %v2925, %v2930
        %v2935 = vrsqrt.pop %v2873
        %v2936 = vmul.f32 %v2935, %v2873
        %v2937 = vmul.f32 %v2936, %v2935
        %v2938 = vmul.f32 0.5, %v2937
        %v2939 = vsub.f32 1.5, %v2938
        %v2940 = vmul.f32 %v2935, %v2939
        %vm2941 = vweird.f32 %v2873
        %vm2942 = vweird.f32 %v2935
        %vm2943 = vmor %vm2941, %vm2942
        %v2944 = vsel %vm2943, %v2935, %v2940
        %v2945 = vrsqrt.pop %v2874
        %v2946 = vmul.f32 %v2945, %v2874
        %v2947 = vmul.f32 %v2946, %v2945
        %v2948 = vmul.f32 0.5, %v2947
        %v2949 = vsub.f32 1.5, %v2948
        %v2950 = vmul.f32 %v2945, %v2949
        %vm2951 = vweird.f32 %v2874
        %vm2952 = vweird.f32 %v2945
        %vm2953 = vmor %vm2951, %vm2952
        %v2954 = vsel %vm2953, %v2945, %v2950
        %v2955 = vmul.f32 %v2819, %v2884
        %v2956 = vmul.f32 %v2820, %v2894
        %v2957 = vmul.f32 %v2821, %v2904
        %v2958 = vmul.f32 %v2822, %v2914
        %v2959 = vmul.f32 %v2823, %v2924
        %v2960 = vmul.f32 %v2824, %v2934
        %v2961 = vmul.f32 %v2825, %v2944
        %v2962 = vmul.f32 %v2826, %v2954
        %v2963 = vperm.slane %v384, 6
        %v2964 = vmul.f32 %v2955, %v2963
        %v2965 = vmul.f32 %v2956, %v2963
        %v2966 = vmul.f32 %v2957, %v2963
        %v2967 = vmul.f32 %v2958, %v2963
        %v2968 = vmul.f32 %v2959, %v2963
        %v2969 = vmul.f32 %v2960, %v2963
        %v2970 = vmul.f32 %v2961, %v2963
        %v2971 = vmul.f32 %v2962, %v2963
        %v2972 = vperm.slane %v384, 7
        %v2973 = vadd.f32 %v2964, %v2972
        %v2974 = vadd.f32 %v2965, %v2972
        %v2975 = vadd.f32 %v2966, %v2972
        %v2976 = vadd.f32 %v2967, %v2972
        %v2977 = vadd.f32 %v2968, %v2972
        %v2978 = vadd.f32 %v2969, %v2972
        %v2979 = vadd.f32 %v2970, %v2972
        %v2980 = vadd.f32 %v2971, %v2972
        %v2981 = vld [vmem:[#allocation7] sm:$0xff]
        %v2982 = vld [vmem:[#allocation7 + $0x8] sm:$0xff]
        %v2983 = vld [vmem:[#allocation7 + $0x10] sm:$0xff]
        %v2984 = vld [vmem:[#allocation7 + $0x18] sm:$0xff]
        %v2985 = vperm.slane %v384, 4
        %v2987 = vsel %vm390, %v2973, 0
        %v2990 = vsel %vm390, %v2974, 0
        %v2993 = vsel %vm390, %v2975, 0
        %v2996 = vsel %vm390, %v2976, 0
        %v2999 = vsel %vm390, %v2977, 0
        %v3002 = vsel %vm390, %v2978, 0
        %v3005 = vsel %vm390, %v2979, 0
        %v3008 = vsel %vm390, %v2980, 0
        %3010 = vmatpush.msra.mxu0 0.0
        %3011 = vmatpush.msra.mxu0 0.0
        %3012 = vmatpush.msra.mxu0 0.0
        %3013 = vmatpush.msra.mxu0 0.0
        %3014 = vmatpush.msra.mxu0 0.0
        %3015 = vmatpush.msra.mxu0 0.0
        %3016 = vmatpush.msra.mxu0 0.0
        %3017 = vmatpush.msra.mxu0 0.0
        %3018 = vmatpush.msra.mxu0 0.0
        %3019 = vmatpush.msra.mxu0 0.0
        %3020 = vmatpush.msra.mxu0 0.0
        %3021 = vmatpush.msra.mxu0 0.0
        %3022 = vmatpush.msra.mxu0 %v2984
        %3023 = vmatpush.msra.mxu0 %v2983
        %3024 = vmatpush.msra.mxu0 %v2982
        %3025 = vmatpush.msra.mxu0 %v2981
        %3026 = vmatmul.f32.gmra.mxu0 %v2987
        %v3027 = vpop.f32.mrf.mxu0
        %v3028 = vadd.f32 %v2985, %v3027
        %3029 = vmatmul.f32.gmra.mxu0 %v2990
        %v3030 = vpop.f32.mrf.mxu0
        %v3031 = vadd.f32 %v2985, %v3030
        %3032 = vmatmul.f32.gmra.mxu0 %v2993
        %v3033 = vpop.f32.mrf.mxu0
        %v3034 = vadd.f32 %v2985, %v3033
        %3035 = vmatmul.f32.gmra.mxu0 %v2996
        %v3036 = vpop.f32.mrf.mxu0
        %v3037 = vadd.f32 %v2985, %v3036
        %3038 = vmatmul.f32.gmra.mxu0 %v2999
        %v3039 = vpop.f32.mrf.mxu0
        %v3040 = vadd.f32 %v2985, %v3039
        %3041 = vmatmul.f32.gmra.mxu0 %v3002
        %v3042 = vpop.f32.mrf.mxu0
        %v3043 = vadd.f32 %v2985, %v3042
        %3044 = vmatmul.f32.gmra.mxu0 %v3005
        %v3045 = vpop.f32.mrf.mxu0
        %v3046 = vadd.f32 %v2985, %v3045
        %3047 = vmatmul.f32.gmra.mxu0 %v3008
        %v3048 = vpop.f32.mrf.mxu0
        %v3049 = vadd.f32 %v2985, %v3048
        %3050 = vdwg.mxu0
        %v3051 = vmax.f32 %v3028, 0.0
        %v3052 = vmax.f32 %v3031, 0.0
        %v3053 = vmax.f32 %v3034, 0.0
        %v3054 = vmax.f32 %v3037, 0.0
        %v3055 = vmax.f32 %v3040, 0.0
        %v3056 = vmax.f32 %v3043, 0.0
        %v3057 = vmax.f32 %v3046, 0.0
        %v3058 = vmax.f32 %v3049, 0.0
        %v3059 = vld [vmem:[#allocation8] sm:$0xff]
        %v3060 = vld [vmem:[#allocation8 + $0x8] sm:$0xff]
        %v3061 = vld [vmem:[#allocation8 + $0x10] sm:$0xff]
        %v3062 = vld [vmem:[#allocation8 + $0x18] sm:$0xff]
        %v3063 = vperm.slane %v384, 5
        %v3065 = vsel %vm390, %v3051, 0
        %v3068 = vsel %vm390, %v3052, 0
        %v3071 = vsel %vm390, %v3053, 0
        %v3074 = vsel %vm390, %v3054, 0
        %v3077 = vsel %vm390, %v3055, 0
        %v3080 = vsel %vm390, %v3056, 0
        %v3083 = vsel %vm390, %v3057, 0
        %v3086 = vsel %vm390, %v3058, 0
        %3088 = vmatpush.msra.mxu0 0.0
        %3089 = vmatpush.msra.mxu0 0.0
        %3090 = vmatpush.msra.mxu0 0.0
        %3091 = vmatpush.msra.mxu0 0.0
        %3092 = vmatpush.msra.mxu0 0.0
        %3093 = vmatpush.msra.mxu0 0.0
        %3094 = vmatpush.msra.mxu0 0.0
        %3095 = vmatpush.msra.mxu0 0.0
        %3096 = vmatpush.msra.mxu0 0.0
        %3097 = vmatpush.msra.mxu0 0.0
        %3098 = vmatpush.msra.mxu0 0.0
        %3099 = vmatpush.msra.mxu0 0.0
        %3100 = vmatpush.msra.mxu0 %v3062
        %3101 = vmatpush.msra.mxu0 %v3061
        %3102 = vmatpush.msra.mxu0 %v3060
        %3103 = vmatpush.msra.mxu0 %v3059
        %3104 = vmatmul.f32.gmra.mxu0 %v3065
        %v3105 = vpop.f32.mrf.mxu0
        %v3106 = vadd.f32 %v3063, %v3105
        %3107 = vmatmul.f32.gmra.mxu0 %v3068
        %v3108 = vpop.f32.mrf.mxu0
        %v3109 = vadd.f32 %v3063, %v3108
        %3110 = vmatmul.f32.gmra.mxu0 %v3071
        %v3111 = vpop.f32.mrf.mxu0
        %v3112 = vadd.f32 %v3063, %v3111
        %3113 = vmatmul.f32.gmra.mxu0 %v3074
        %v3114 = vpop.f32.mrf.mxu0
        %v3115 = vadd.f32 %v3063, %v3114
        %3116 = vmatmul.f32.gmra.mxu0 %v3077
        %v3117 = vpop.f32.mrf.mxu0
        %v3118 = vadd.f32 %v3063, %v3117
        %3119 = vmatmul.f32.gmra.mxu0 %v3080
        %v3120 = vpop.f32.mrf.mxu0
        %v3121 = vadd.f32 %v3063, %v3120
        %3122 = vmatmul.f32.gmra.mxu0 %v3083
        %v3123 = vpop.f32.mrf.mxu0
        %v3124 = vadd.f32 %v3063, %v3123
        %3125 = vmatmul.f32.gmra.mxu0 %v3086
        %v3126 = vpop.f32.mrf.mxu0
        %v3127 = vadd.f32 %v3063, %v3126
        %3128 = vdwg.mxu0
        %v3129 = vadd.f32 %v2973, %v3106
        %v3130 = vadd.f32 %v2974, %v3109
        %v3131 = vadd.f32 %v2975, %v3112
        %v3132 = vadd.f32 %v2976, %v3115
        %v3133 = vadd.f32 %v2977, %v3118
        %v3134 = vadd.f32 %v2978, %v3121
        %v3135 = vadd.f32 %v2979, %v3124
        %v3136 = vadd.f32 %v2980, %v3127
        %v3137 = vsel %vm390, %v3129, 0.0
        %3138 = vadd.xlane.f32.xlu0 %v3137
        %v3139 = vpop.xlane.xlu0 %3138
        %v3140 = vsel %vm390, %v3130, 0.0
        %3141 = vadd.xlane.f32.xlu0 %v3140
        %v3142 = vpop.xlane.xlu0 %3141
        %v3143 = vsel %vm390, %v3131, 0.0
        %3144 = vadd.xlane.f32.xlu0 %v3143
        %v3145 = vpop.xlane.xlu0 %3144
        %v3146 = vsel %vm390, %v3132, 0.0
        %3147 = vadd.xlane.f32.xlu0 %v3146
        %v3148 = vpop.xlane.xlu0 %3147
        %v3149 = vsel %vm390, %v3133, 0.0
        %3150 = vadd.xlane.f32.xlu0 %v3149
        %v3151 = vpop.xlane.xlu0 %3150
        %v3152 = vsel %vm390, %v3134, 0.0
        %3153 = vadd.xlane.f32.xlu0 %v3152
        %v3154 = vpop.xlane.xlu0 %3153
        %v3155 = vsel %vm390, %v3135, 0.0
        %3156 = vadd.xlane.f32.xlu0 %v3155
        %v3157 = vpop.xlane.xlu0 %3156
        %v3158 = vsel %vm390, %v3136, 0.0
        %3159 = vadd.xlane.f32.xlu0 %v3158
        %v3160 = vpop.xlane.xlu0 %3159
        %v3161 = vmul.f32 %v3139, %v2810
        %v3162 = vmul.f32 %v3142, %v2810
        %v3163 = vmul.f32 %v3145, %v2810
        %v3164 = vmul.f32 %v3148, %v2810
        %v3165 = vmul.f32 %v3151, %v2810
        %v3166 = vmul.f32 %v3154, %v2810
        %v3167 = vmul.f32 %v3157, %v2810
        %v3168 = vmul.f32 %v3160, %v2810
        %v3169 = vsub.f32 %v3129, %v3161
        %v3170 = vsub.f32 %v3130, %v3162
        %v3171 = vsub.f32 %v3131, %v3163
        %v3172 = vsub.f32 %v3132, %v3164
        %v3173 = vsub.f32 %v3133, %v3165
        %v3174 = vsub.f32 %v3134, %v3166
        %v3175 = vsub.f32 %v3135, %v3167
        %v3176 = vsub.f32 %v3136, %v3168
        %v3177 = vmul.f32 %v3169, %v3169
        %v3178 = vmul.f32 %v3170, %v3170
        %v3179 = vmul.f32 %v3171, %v3171
        %v3180 = vmul.f32 %v3172, %v3172
        %v3181 = vmul.f32 %v3173, %v3173
        %v3182 = vmul.f32 %v3174, %v3174
        %v3183 = vmul.f32 %v3175, %v3175
        %v3184 = vmul.f32 %v3176, %v3176
        %v3185 = vsel %vm390, %v3177, 0.0
        %3186 = vadd.xlane.f32.xlu0 %v3185
        %v3187 = vpop.xlane.xlu0 %3186
        %v3188 = vsel %vm390, %v3178, 0.0
        %3189 = vadd.xlane.f32.xlu0 %v3188
        %v3190 = vpop.xlane.xlu0 %3189
        %v3191 = vsel %vm390, %v3179, 0.0
        %3192 = vadd.xlane.f32.xlu0 %v3191
        %v3193 = vpop.xlane.xlu0 %3192
        %v3194 = vsel %vm390, %v3180, 0.0
        %3195 = vadd.xlane.f32.xlu0 %v3194
        %v3196 = vpop.xlane.xlu0 %3195
        %v3197 = vsel %vm390, %v3181, 0.0
        %3198 = vadd.xlane.f32.xlu0 %v3197
        %v3199 = vpop.xlane.xlu0 %3198
        %v3200 = vsel %vm390, %v3182, 0.0
        %3201 = vadd.xlane.f32.xlu0 %v3200
        %v3202 = vpop.xlane.xlu0 %3201
        %v3203 = vsel %vm390, %v3183, 0.0
        %3204 = vadd.xlane.f32.xlu0 %v3203
        %v3205 = vpop.xlane.xlu0 %3204
        %v3206 = vsel %vm390, %v3184, 0.0
        %3207 = vadd.xlane.f32.xlu0 %v3206
        %v3208 = vpop.xlane.xlu0 %3207
        %v3209 = vmul.f32 %v3187, %v2810
        %v3210 = vmul.f32 %v3190, %v2810
        %v3211 = vmul.f32 %v3193, %v2810
        %v3212 = vmul.f32 %v3196, %v2810
        %v3213 = vmul.f32 %v3199, %v2810
        %v3214 = vmul.f32 %v3202, %v2810
        %v3215 = vmul.f32 %v3205, %v2810
        %v3216 = vmul.f32 %v3208, %v2810
        %v3217 = vadd.f32 %v3209, 1e-05
        %v3218 = vadd.f32 %v3210, 1e-05
        %v3219 = vadd.f32 %v3211, 1e-05
        %v3220 = vadd.f32 %v3212, 1e-05
        %v3221 = vadd.f32 %v3213, 1e-05
        %v3222 = vadd.f32 %v3214, 1e-05
        %v3223 = vadd.f32 %v3215, 1e-05
        %v3224 = vadd.f32 %v3216, 1e-05
        %v3225 = vrsqrt.pop %v3217
        %v3226 = vmul.f32 %v3225, %v3217
        %v3227 = vmul.f32 %v3226, %v3225
        %v3228 = vmul.f32 0.5, %v3227
        %v3229 = vsub.f32 1.5, %v3228
        %v3230 = vmul.f32 %v3225, %v3229
        %vm3231 = vweird.f32 %v3217
        %vm3232 = vweird.f32 %v3225
        %vm3233 = vmor %vm3231, %vm3232
        %v3234 = vsel %vm3233, %v3225, %v3230
        %v3235 = vrsqrt.pop %v3218
        %v3236 = vmul.f32 %v3235, %v3218
        %v3237 = vmul.f32 %v3236, %v3235
        %v3238 = vmul.f32 0.5, %v3237
        %v3239 = vsub.f32 1.5, %v3238
        %v3240 = vmul.f32 %v3235, %v3239
        %vm3241 = vweird.f32 %v3218
        %vm3242 = vweird.f32 %v3235
        %vm3243 = vmor %vm3241, %vm3242
        %v3244 = vsel %vm3243, %v3235, %v3240
        %v3245 = vrsqrt.pop %v3219
        %v3246 = vmul.f32 %v3245, %v3219
        %v3247 = vmul.f32 %v3246, %v3245
        %v3248 = vmul.f32 0.5, %v3247
        %v3249 = vsub.f32 1.5, %v3248
        %v3250 = vmul.f32 %v3245, %v3249
        %vm3251 = vweird.f32 %v3219
        %vm3252 = vweird.f32 %v3245
        %vm3253 = vmor %vm3251, %vm3252
        %v3254 = vsel %vm3253, %v3245, %v3250
        %v3255 = vrsqrt.pop %v3220
        %v3256 = vmul.f32 %v3255, %v3220
        %v3257 = vmul.f32 %v3256, %v3255
        %v3258 = vmul.f32 0.5, %v3257
        %v3259 = vsub.f32 1.5, %v3258
        %v3260 = vmul.f32 %v3255, %v3259
        %vm3261 = vweird.f32 %v3220
        %vm3262 = vweird.f32 %v3255
        %vm3263 = vmor %vm3261, %vm3262
        %v3264 = vsel %vm3263, %v3255, %v3260
        %v3265 = vrsqrt.pop %v3221
        %v3266 = vmul.f32 %v3265, %v3221
        %v3267 = vmul.f32 %v3266, %v3265
        %v3268 = vmul.f32 0.5, %v3267
        %v3269 = vsub.f32 1.5, %v3268
        %v3270 = vmul.f32 %v3265, %v3269
        %vm3271 = vweird.f32 %v3221
        %vm3272 = vweird.f32 %v3265
        %vm3273 = vmor %vm3271, %vm3272
        %v3274 = vsel %vm3273, %v3265, %v3270
        %v3275 = vrsqrt.pop %v3222
        %v3276 = vmul.f32 %v3275, %v3222
        %v3277 = vmul.f32 %v3276, %v3275
        %v3278 = vmul.f32 0.5, %v3277
        %v3279 = vsub.f32 1.5, %v3278
        %v3280 = vmul.f32 %v3275, %v3279
        %vm3281 = vweird.f32 %v3222
        %vm3282 = vweird.f32 %v3275
        %vm3283 = vmor %vm3281, %vm3282
        %v3284 = vsel %vm3283, %v3275, %v3280
        %v3285 = vrsqrt.pop %v3223
        %v3286 = vmul.f32 %v3285, %v3223
        %v3287 = vmul.f32 %v3286, %v3285
        %v3288 = vmul.f32 0.5, %v3287
        %v3289 = vsub.f32 1.5, %v3288
        %v3290 = vmul.f32 %v3285, %v3289
        %vm3291 = vweird.f32 %v3223
        %vm3292 = vweird.f32 %v3285
        %vm3293 = vmor %vm3291, %vm3292
        %v3294 = vsel %vm3293, %v3285, %v3290
        %v3295 = vrsqrt.pop %v3224
        %v3296 = vmul.f32 %v3295, %v3224
        %v3297 = vmul.f32 %v3296, %v3295
        %v3298 = vmul.f32 0.5, %v3297
        %v3299 = vsub.f32 1.5, %v3298
        %v3300 = vmul.f32 %v3295, %v3299
        %vm3301 = vweird.f32 %v3224
        %vm3302 = vweird.f32 %v3295
        %vm3303 = vmor %vm3301, %vm3302
        %v3304 = vsel %vm3303, %v3295, %v3300
        %v3305 = vmul.f32 %v3169, %v3234
        %v3306 = vmul.f32 %v3170, %v3244
        %v3307 = vmul.f32 %v3171, %v3254
        %v3308 = vmul.f32 %v3172, %v3264
        %v3309 = vmul.f32 %v3173, %v3274
        %v3310 = vmul.f32 %v3174, %v3284
        %v3311 = vmul.f32 %v3175, %v3294
        %v3312 = vmul.f32 %v3176, %v3304
        %v3313 = vperm.slane %v385, 0
        %v3314 = vmul.f32 %v3305, %v3313
        %v3315 = vmul.f32 %v3306, %v3313
        %v3316 = vmul.f32 %v3307, %v3313
        %v3317 = vmul.f32 %v3308, %v3313
        %v3318 = vmul.f32 %v3309, %v3313
        %v3319 = vmul.f32 %v3310, %v3313
        %v3320 = vmul.f32 %v3311, %v3313
        %v3321 = vmul.f32 %v3312, %v3313
        %v3322 = vperm.slane %v385, 1
        %v3323 = vadd.f32 %v3314, %v3322
        %v3324 = vadd.f32 %v3315, %v3322
        %v3325 = vadd.f32 %v3316, %v3322
        %v3326 = vadd.f32 %v3317, %v3322
        %v3327 = vadd.f32 %v3318, %v3322
        %v3328 = vadd.f32 %v3319, %v3322
        %v3329 = vadd.f32 %v3320, %v3322
        %v3330 = vadd.f32 %v3321, %v3322
        %v3331 = vsel %vm390, %v3323, 0.0
        %3332 = vadd.xlane.f32.xlu0 %v3331
        %v3333 = vpop.xlane.xlu0 %3332
        %v3334 = vsel %vm390, %v3324, 0.0
        %3335 = vadd.xlane.f32.xlu0 %v3334
        %v3336 = vpop.xlane.xlu0 %3335
        %v3337 = vsel %vm390, %v3325, 0.0
        %3338 = vadd.xlane.f32.xlu0 %v3337
        %v3339 = vpop.xlane.xlu0 %3338
        %v3340 = vsel %vm390, %v3326, 0.0
        %3341 = vadd.xlane.f32.xlu0 %v3340
        %v3342 = vpop.xlane.xlu0 %3341
        %v3343 = vsel %vm390, %v3327, 0.0
        %3344 = vadd.xlane.f32.xlu0 %v3343
        %v3345 = vpop.xlane.xlu0 %3344
        %v3346 = vsel %vm390, %v3328, 0.0
        %3347 = vadd.xlane.f32.xlu0 %v3346
        %v3348 = vpop.xlane.xlu0 %3347
        %v3349 = vsel %vm390, %v3329, 0.0
        %3350 = vadd.xlane.f32.xlu0 %v3349
        %v3351 = vpop.xlane.xlu0 %3350
        %v3352 = vsel %vm390, %v3330, 0.0
        %3353 = vadd.xlane.f32.xlu0 %v3352
        %v3354 = vpop.xlane.xlu0 %3353
        %v3355 = vmul.f32 %v3333, %v2810
        %v3356 = vmul.f32 %v3336, %v2810
        %v3357 = vmul.f32 %v3339, %v2810
        %v3358 = vmul.f32 %v3342, %v2810
        %v3359 = vmul.f32 %v3345, %v2810
        %v3360 = vmul.f32 %v3348, %v2810
        %v3361 = vmul.f32 %v3351, %v2810
        %v3362 = vmul.f32 %v3354, %v2810
        %v3363 = vsub.f32 %v3323, %v3355
        %v3364 = vsub.f32 %v3324, %v3356
        %v3365 = vsub.f32 %v3325, %v3357
        %v3366 = vsub.f32 %v3326, %v3358
        %v3367 = vsub.f32 %v3327, %v3359
        %v3368 = vsub.f32 %v3328, %v3360
        %v3369 = vsub.f32 %v3329, %v3361
        %v3370 = vsub.f32 %v3330, %v3362
        %v3371 = vmul.f32 %v3363, %v3363
        %v3372 = vmul.f32 %v3364, %v3364
        %v3373 = vmul.f32 %v3365, %v3365
        %v3374 = vmul.f32 %v3366, %v3366
        %v3375 = vmul.f32 %v3367, %v3367
        %v3376 = vmul.f32 %v3368, %v3368
        %v3377 = vmul.f32 %v3369, %v3369
        %v3378 = vmul.f32 %v3370, %v3370
        %v3379 = vsel %vm390, %v3371, 0.0
        %3380 = vadd.xlane.f32.xlu0 %v3379
        %v3381 = vpop.xlane.xlu0 %3380
        %v3382 = vsel %vm390, %v3372, 0.0
        %3383 = vadd.xlane.f32.xlu0 %v3382
        %v3384 = vpop.xlane.xlu0 %3383
        %v3385 = vsel %vm390, %v3373, 0.0
        %3386 = vadd.xlane.f32.xlu0 %v3385
        %v3387 = vpop.xlane.xlu0 %3386
        %v3388 = vsel %vm390, %v3374, 0.0
        %3389 = vadd.xlane.f32.xlu0 %v3388
        %v3390 = vpop.xlane.xlu0 %3389
        %v3391 = vsel %vm390, %v3375, 0.0
        %3392 = vadd.xlane.f32.xlu0 %v3391
        %v3393 = vpop.xlane.xlu0 %3392
        %v3394 = vsel %vm390, %v3376, 0.0
        %3395 = vadd.xlane.f32.xlu0 %v3394
        %v3396 = vpop.xlane.xlu0 %3395
        %v3397 = vsel %vm390, %v3377, 0.0
        %3398 = vadd.xlane.f32.xlu0 %v3397
        %v3399 = vpop.xlane.xlu0 %3398
        %v3400 = vsel %vm390, %v3378, 0.0
        %3401 = vadd.xlane.f32.xlu0 %v3400
        %v3402 = vpop.xlane.xlu0 %3401
        %v3403 = vmul.f32 %v3381, %v2810
        %v3404 = vmul.f32 %v3384, %v2810
        %v3405 = vmul.f32 %v3387, %v2810
        %v3406 = vmul.f32 %v3390, %v2810
        %v3407 = vmul.f32 %v3393, %v2810
        %v3408 = vmul.f32 %v3396, %v2810
        %v3409 = vmul.f32 %v3399, %v2810
        %v3410 = vmul.f32 %v3402, %v2810
        %v3411 = vadd.f32 %v3403, 1e-05
        %v3412 = vadd.f32 %v3404, 1e-05
        %v3413 = vadd.f32 %v3405, 1e-05
        %v3414 = vadd.f32 %v3406, 1e-05
        %v3415 = vadd.f32 %v3407, 1e-05
        %v3416 = vadd.f32 %v3408, 1e-05
        %v3417 = vadd.f32 %v3409, 1e-05
        %v3418 = vadd.f32 %v3410, 1e-05
        %v3419 = vrsqrt.pop %v3411
        %v3420 = vmul.f32 %v3419, %v3411
        %v3421 = vmul.f32 %v3420, %v3419
        %v3422 = vmul.f32 0.5, %v3421
        %v3423 = vsub.f32 1.5, %v3422
        %v3424 = vmul.f32 %v3419, %v3423
        %vm3425 = vweird.f32 %v3411
        %vm3426 = vweird.f32 %v3419
        %vm3427 = vmor %vm3425, %vm3426
        %v3428 = vsel %vm3427, %v3419, %v3424
        %v3429 = vrsqrt.pop %v3412
        %v3430 = vmul.f32 %v3429, %v3412
        %v3431 = vmul.f32 %v3430, %v3429
        %v3432 = vmul.f32 0.5, %v3431
        %v3433 = vsub.f32 1.5, %v3432
        %v3434 = vmul.f32 %v3429, %v3433
        %vm3435 = vweird.f32 %v3412
        %vm3436 = vweird.f32 %v3429
        %vm3437 = vmor %vm3435, %vm3436
        %v3438 = vsel %vm3437, %v3429, %v3434
        %v3439 = vrsqrt.pop %v3413
        %v3440 = vmul.f32 %v3439, %v3413
        %v3441 = vmul.f32 %v3440, %v3439
        %v3442 = vmul.f32 0.5, %v3441
        %v3443 = vsub.f32 1.5, %v3442
        %v3444 = vmul.f32 %v3439, %v3443
        %vm3445 = vweird.f32 %v3413
        %vm3446 = vweird.f32 %v3439
        %vm3447 = vmor %vm3445, %vm3446
        %v3448 = vsel %vm3447, %v3439, %v3444
        %v3449 = vrsqrt.pop %v3414
        %v3450 = vmul.f32 %v3449, %v3414
        %v3451 = vmul.f32 %v3450, %v3449
        %v3452 = vmul.f32 0.5, %v3451
        %v3453 = vsub.f32 1.5, %v3452
        %v3454 = vmul.f32 %v3449, %v3453
        %vm3455 = vweird.f32 %v3414
        %vm3456 = vweird.f32 %v3449
        %vm3457 = vmor %vm3455, %vm3456
        %v3458 = vsel %vm3457, %v3449, %v3454
        %v3459 = vrsqrt.pop %v3415
        %v3460 = vmul.f32 %v3459, %v3415
        %v3461 = vmul.f32 %v3460, %v3459
        %v3462 = vmul.f32 0.5, %v3461
        %v3463 = vsub.f32 1.5, %v3462
        %v3464 = vmul.f32 %v3459, %v3463
        %vm3465 = vweird.f32 %v3415
        %vm3466 = vweird.f32 %v3459
        %vm3467 = vmor %vm3465, %vm3466
        %v3468 = vsel %vm3467, %v3459, %v3464
        %v3469 = vrsqrt.pop %v3416
        %v3470 = vmul.f32 %v3469, %v3416
        %v3471 = vmul.f32 %v3470, %v3469
        %v3472 = vmul.f32 0.5, %v3471
        %v3473 = vsub.f32 1.5, %v3472
        %v3474 = vmul.f32 %v3469, %v3473
        %vm3475 = vweird.f32 %v3416
        %vm3476 = vweird.f32 %v3469
        %vm3477 = vmor %vm3475, %vm3476
        %v3478 = vsel %vm3477, %v3469, %v3474
        %v3479 = vrsqrt.pop %v3417
        %v3480 = vmul.f32 %v3479, %v3417
        %v3481 = vmul.f32 %v3480, %v3479
        %v3482 = vmul.f32 0.5, %v3481
        %v3483 = vsub.f32 1.5, %v3482
        %v3484 = vmul.f32 %v3479, %v3483
        %vm3485 = vweird.f32 %v3417
        %vm3486 = vweird.f32 %v3479
        %vm3487 = vmor %vm3485, %vm3486
        %v3488 = vsel %vm3487, %v3479, %v3484
        %v3489 = vrsqrt.pop %v3418
        %v3490 = vmul.f32 %v3489, %v3418
        %v3491 = vmul.f32 %v3490, %v3489
        %v3492 = vmul.f32 0.5, %v3491
        %v3493 = vsub.f32 1.5, %v3492
        %v3494 = vmul.f32 %v3489, %v3493
        %vm3495 = vweird.f32 %v3418
        %vm3496 = vweird.f32 %v3489
        %vm3497 = vmor %vm3495, %vm3496
        %v3498 = vsel %vm3497, %v3489, %v3494
        %v3499 = vmul.f32 %v3363, %v3428
        %v3500 = vmul.f32 %v3364, %v3438
        %v3501 = vmul.f32 %v3365, %v3448
        %v3502 = vmul.f32 %v3366, %v3458
        %v3503 = vmul.f32 %v3367, %v3468
        %v3504 = vmul.f32 %v3368, %v3478
        %v3505 = vmul.f32 %v3369, %v3488
        %v3506 = vmul.f32 %v3370, %v3498
        %v3507 = vperm.slane %v385, 2
        %v3508 = vmul.f32 %v3499, %v3507
        %v3509 = vmul.f32 %v3500, %v3507
        %v3510 = vmul.f32 %v3501, %v3507
        %v3511 = vmul.f32 %v3502, %v3507
        %v3512 = vmul.f32 %v3503, %v3507
        %v3513 = vmul.f32 %v3504, %v3507
        %v3514 = vmul.f32 %v3505, %v3507
        %v3515 = vmul.f32 %v3506, %v3507
        %v3516 = vperm.slane %v385, 3
        %v3517 = vadd.f32 %v3508, %v3516
        %v3518 = vadd.f32 %v3509, %v3516
        %v3519 = vadd.f32 %v3510, %v3516
        %v3520 = vadd.f32 %v3511, %v3516
        %v3521 = vadd.f32 %v3512, %v3516
        %v3522 = vadd.f32 %v3513, %v3516
        %v3523 = vadd.f32 %v3514, %v3516
        %v3524 = vadd.f32 %v3515, %v3516
        %s3525 = scalar_lea.vmem %s6, 16
        %v3526 = vld [vmem:[%s3525] sm:$0xff]
        %v3527 = vld [vmem:[%s3525 + $0x8] sm:$0xf]
        %s3528 = scalar_lea.vmem %s2, 32
        %v3529 = vld [vmem:[%s3528] sm:$0xff]
        %v3530 = vld [vmem:[%s3528 + $0x8] sm:$0xff]
        %v3531 = vld [vmem:[%s3528 + $0x10] sm:$0xff]
        %v3532 = vld [vmem:[%s3528 + $0x18] sm:$0xff]
        %v3534 = vsel %vm390, %v3517, 0
        %v3537 = vsel %vm390, %v3518, 0
        %v3540 = vsel %vm390, %v3519, 0
        %v3543 = vsel %vm390, %v3520, 0
        %v3546 = vsel %vm390, %v3521, 0
        %v3549 = vsel %vm390, %v3522, 0
        %v3552 = vsel %vm390, %v3523, 0
        %v3555 = vsel %vm390, %v3524, 0
        %3557 = vmatpush.msra.mxu0 0.0
        %3558 = vmatpush.msra.mxu0 0.0
        %3559 = vmatpush.msra.mxu0 0.0
        %3560 = vmatpush.msra.mxu0 0.0
        %3561 = vmatpush.msra.mxu0 0.0
        %3562 = vmatpush.msra.mxu0 0.0
        %3563 = vmatpush.msra.mxu0 0.0
        %3564 = vmatpush.msra.mxu0 0.0
        %3565 = vmatpush.msra.mxu0 0.0
        %3566 = vmatpush.msra.mxu0 0.0
        %3567 = vmatpush.msra.mxu0 0.0
        %3568 = vmatpush.msra.mxu0 0.0
        %3569 = vmatpush.msra.mxu0 %v3532
        %3570 = vmatpush.msra.mxu0 %v3531
        %3571 = vmatpush.msra.mxu0 %v3530
        %3572 = vmatpush.msra.mxu0 %v3529
        %3573 = vmatmul.f32.gmra.mxu0 %v3534
        %v3574 = vpop.f32.mrf.mxu0
        %v3575 = vadd.f32 0.0, %v3574
        %3576 = vmatmul.f32.gmra.mxu0 %v3537
        %v3577 = vpop.f32.mrf.mxu0
        %v3578 = vadd.f32 0.0, %v3577
        %3579 = vmatmul.f32.gmra.mxu0 %v3540
        %v3580 = vpop.f32.mrf.mxu0
        %v3581 = vadd.f32 0.0, %v3580
        %3582 = vmatmul.f32.gmra.mxu0 %v3543
        %v3583 = vpop.f32.mrf.mxu0
        %v3584 = vadd.f32 0.0, %v3583
        %3585 = vmatmul.f32.gmra.mxu0 %v3546
        %v3586 = vpop.f32.mrf.mxu0
        %v3587 = vadd.f32 0.0, %v3586
        %3588 = vmatmul.f32.gmra.mxu0 %v3549
        %v3589 = vpop.f32.mrf.mxu0
        %v3590 = vadd.f32 0.0, %v3589
        %3591 = vmatmul.f32.gmra.mxu0 %v3552
        %v3592 = vpop.f32.mrf.mxu0
        %v3593 = vadd.f32 0.0, %v3592
        %3594 = vmatmul.f32.gmra.mxu0 %v3555
        %v3595 = vpop.f32.mrf.mxu0
        %v3596 = vadd.f32 0.0, %v3595
        %3597 = vdwg.mxu0
        %v3598 = vperm.slane %v3526, 0
        %v3599 = vadd.f32 %v3575, %v3598
        %v3600 = vadd.f32 %v3578, %v3598
        %v3601 = vadd.f32 %v3581, %v3598
        %v3602 = vadd.f32 %v3584, %v3598
        %v3603 = vadd.f32 %v3587, %v3598
        %v3604 = vadd.f32 %v3590, %v3598
        %v3605 = vadd.f32 %v3593, %v3598
        %v3606 = vadd.f32 %v3596, %v3598
        %v3607 = vperm.slane %v3526, 1
        %3609 = vrot.lane.b32.xlu0 %v3607, 32
        %v3610 = vpop.permute.xlu0 %3609
        %v3612 = vadd.f32 %v3575, %v3610
        %v3613 = vadd.f32 %v3578, %v3610
        %v3614 = vadd.f32 %v3581, %v3610
        %v3615 = vadd.f32 %v3584, %v3610
        %v3616 = vadd.f32 %v3587, %v3610
        %v3617 = vadd.f32 %v3590, %v3610
        %v3618 = vadd.f32 %v3593, %v3610
        %v3619 = vadd.f32 %v3596, %v3610
        %v3620 = vperm.slane %v3526, 2
        %3622 = vrot.lane.b32.xlu0 %v3620, 64
        %v3623 = vpop.permute.xlu0 %3622
        %v3625 = vadd.f32 %v3575, %v3623
        %v3626 = vadd.f32 %v3578, %v3623
        %v3627 = vadd.f32 %v3581, %v3623
        %v3628 = vadd.f32 %v3584, %v3623
        %v3629 = vadd.f32 %v3587, %v3623
        %v3630 = vadd.f32 %v3590, %v3623
        %v3631 = vadd.f32 %v3593, %v3623
        %v3632 = vadd.f32 %v3596, %v3623
        %3634 = vrot.lane.b32.xlu0 %v3612, 96
        %v3635 = vpop.permute.xlu0 %3634
        %v3637 = vsel %vm494, %v3599, 0
        %v3639 = vsel %vm494, %v3635, 0
        %3641 = vmatpush.xpose.msra.mxu0 0.0
        %3642 = vmatpush.xpose.msra.mxu0 0.0
        %3643 = vmatpush.xpose.msra.mxu0 0.0
        %3644 = vmatpush.xpose.msra.mxu0 0.0
        %3645 = vmatpush.xpose.msra.mxu0 0.0
        %3646 = vmatpush.xpose.msra.mxu0 0.0
        %3647 = vmatpush.xpose.msra.mxu0 0.0
        %3648 = vmatpush.xpose.msra.mxu0 0.0
        %3649 = vmatpush.xpose.msra.mxu0 0.0
        %3650 = vmatpush.xpose.msra.mxu0 0.0
        %3651 = vmatpush.xpose.msra.mxu0 0.0
        %3652 = vmatpush.xpose.msra.mxu0 0.0
        %3653 = vmatpush.xpose.msra.mxu0 0.0
        %3654 = vmatpush.xpose.msra.mxu0 0.0
        %3655 = vmatpush.xpose.msra.mxu0 0.0
        %3656 = vmatpush.xpose.msra.mxu0 %v3639
        %3657 = vmatmul.f32.gmra.mxu0 %v3637
        %v3658 = vpop.f32.mrf.mxu0
        %v3659 = vadd.f32 %v383, %v3658
        %3660 = vdwg.mxu0
        %3662 = vrot.lane.b32.xlu0 %v3613, 96
        %v3663 = vpop.permute.xlu0 %3662
        %v3665 = vsel %vm494, %v3600, 0
        %v3667 = vsel %vm494, %v3663, 0
        %3669 = vmatpush.xpose.msra.mxu0 0.0
        %3670 = vmatpush.xpose.msra.mxu0 0.0
        %3671 = vmatpush.xpose.msra.mxu0 0.0
        %3672 = vmatpush.xpose.msra.mxu0 0.0
        %3673 = vmatpush.xpose.msra.mxu0 0.0
        %3674 = vmatpush.xpose.msra.mxu0 0.0
        %3675 = vmatpush.xpose.msra.mxu0 0.0
        %3676 = vmatpush.xpose.msra.mxu0 0.0
        %3677 = vmatpush.xpose.msra.mxu0 0.0
        %3678 = vmatpush.xpose.msra.mxu0 0.0
        %3679 = vmatpush.xpose.msra.mxu0 0.0
        %3680 = vmatpush.xpose.msra.mxu0 0.0
        %3681 = vmatpush.xpose.msra.mxu0 0.0
        %3682 = vmatpush.xpose.msra.mxu0 0.0
        %3683 = vmatpush.xpose.msra.mxu0 0.0
        %3684 = vmatpush.xpose.msra.mxu0 %v3667
        %3685 = vmatmul.f32.gmra.mxu0 %v3665
        %v3686 = vpop.f32.mrf.mxu0
        %v3687 = vadd.f32 %v383, %v3686
        %3688 = vdwg.mxu0
        %3690 = vrot.lane.b32.xlu0 %v3614, 96
        %v3691 = vpop.permute.xlu0 %3690
        %v3693 = vsel %vm494, %v3601, 0
        %v3695 = vsel %vm494, %v3691, 0
        %3697 = vmatpush.xpose.msra.mxu0 0.0
        %3698 = vmatpush.xpose.msra.mxu0 0.0
        %3699 = vmatpush.xpose.msra.mxu0 0.0
        %3700 = vmatpush.xpose.msra.mxu0 0.0
        %3701 = vmatpush.xpose.msra.mxu0 0.0
        %3702 = vmatpush.xpose.msra.mxu0 0.0
        %3703 = vmatpush.xpose.msra.mxu0 0.0
        %3704 = vmatpush.xpose.msra.mxu0 0.0
        %3705 = vmatpush.xpose.msra.mxu0 0.0
        %3706 = vmatpush.xpose.msra.mxu0 0.0
        %3707 = vmatpush.xpose.msra.mxu0 0.0
        %3708 = vmatpush.xpose.msra.mxu0 0.0
        %3709 = vmatpush.xpose.msra.mxu0 0.0
        %3710 = vmatpush.xpose.msra.mxu0 0.0
        %3711 = vmatpush.xpose.msra.mxu0 0.0
        %3712 = vmatpush.xpose.msra.mxu0 %v3695
        %3713 = vmatmul.f32.gmra.mxu0 %v3693
        %v3714 = vpop.f32.mrf.mxu0
        %v3715 = vadd.f32 %v383, %v3714
        %3716 = vdwg.mxu0
        %3718 = vrot.lane.b32.xlu0 %v3615, 96
        %v3719 = vpop.permute.xlu0 %3718
        %v3721 = vsel %vm494, %v3602, 0
        %v3723 = vsel %vm494, %v3719, 0
        %3725 = vmatpush.xpose.msra.mxu0 0.0
        %3726 = vmatpush.xpose.msra.mxu0 0.0
        %3727 = vmatpush.xpose.msra.mxu0 0.0
        %3728 = vmatpush.xpose.msra.mxu0 0.0
        %3729 = vmatpush.xpose.msra.mxu0 0.0
        %3730 = vmatpush.xpose.msra.mxu0 0.0
        %3731 = vmatpush.xpose.msra.mxu0 0.0
        %3732 = vmatpush.xpose.msra.mxu0 0.0
        %3733 = vmatpush.xpose.msra.mxu0 0.0
        %3734 = vmatpush.xpose.msra.mxu0 0.0
        %3735 = vmatpush.xpose.msra.mxu0 0.0
        %3736 = vmatpush.xpose.msra.mxu0 0.0
        %3737 = vmatpush.xpose.msra.mxu0 0.0
        %3738 = vmatpush.xpose.msra.mxu0 0.0
        %3739 = vmatpush.xpose.msra.mxu0 0.0
        %3740 = vmatpush.xpose.msra.mxu0 %v3723
        %3741 = vmatmul.f32.gmra.mxu0 %v3721
        %v3742 = vpop.f32.mrf.mxu0
        %v3743 = vadd.f32 %v383, %v3742
        %3744 = vdwg.mxu0
        %3746 = vrot.lane.b32.xlu0 %v3616, 96
        %v3747 = vpop.permute.xlu0 %3746
        %v3749 = vsel %vm494, %v3603, 0
        %v3751 = vsel %vm494, %v3747, 0
        %3753 = vmatpush.xpose.msra.mxu0 0.0
        %3754 = vmatpush.xpose.msra.mxu0 0.0
        %3755 = vmatpush.xpose.msra.mxu0 0.0
        %3756 = vmatpush.xpose.msra.mxu0 0.0
        %3757 = vmatpush.xpose.msra.mxu0 0.0
        %3758 = vmatpush.xpose.msra.mxu0 0.0
        %3759 = vmatpush.xpose.msra.mxu0 0.0
        %3760 = vmatpush.xpose.msra.mxu0 0.0
        %3761 = vmatpush.xpose.msra.mxu0 0.0
        %3762 = vmatpush.xpose.msra.mxu0 0.0
        %3763 = vmatpush.xpose.msra.mxu0 0.0
        %3764 = vmatpush.xpose.msra.mxu0 0.0
        %3765 = vmatpush.xpose.msra.mxu0 0.0
        %3766 = vmatpush.xpose.msra.mxu0 0.0
        %3767 = vmatpush.xpose.msra.mxu0 0.0
        %3768 = vmatpush.xpose.msra.mxu0 %v3751
        %3769 = vmatmul.f32.gmra.mxu0 %v3749
        %v3770 = vpop.f32.mrf.mxu0
        %v3771 = vadd.f32 %v383, %v3770
        %3772 = vdwg.mxu0
        %3774 = vrot.lane.b32.xlu0 %v3617, 96
        %v3775 = vpop.permute.xlu0 %3774
        %v3777 = vsel %vm494, %v3604, 0
        %v3779 = vsel %vm494, %v3775, 0
        %3781 = vmatpush.xpose.msra.mxu0 0.0
        %3782 = vmatpush.xpose.msra.mxu0 0.0
        %3783 = vmatpush.xpose.msra.mxu0 0.0
        %3784 = vmatpush.xpose.msra.mxu0 0.0
        %3785 = vmatpush.xpose.msra.mxu0 0.0
        %3786 = vmatpush.xpose.msra.mxu0 0.0
        %3787 = vmatpush.xpose.msra.mxu0 0.0
        %3788 = vmatpush.xpose.msra.mxu0 0.0
        %3789 = vmatpush.xpose.msra.mxu0 0.0
        %3790 = vmatpush.xpose.msra.mxu0 0.0
        %3791 = vmatpush.xpose.msra.mxu0 0.0
        %3792 = vmatpush.xpose.msra.mxu0 0.0
        %3793 = vmatpush.xpose.msra.mxu0 0.0
        %3794 = vmatpush.xpose.msra.mxu0 0.0
        %3795 = vmatpush.xpose.msra.mxu0 0.0
        %3796 = vmatpush.xpose.msra.mxu0 %v3779
        %3797 = vmatmul.f32.gmra.mxu0 %v3777
        %v3798 = vpop.f32.mrf.mxu0
        %v3799 = vadd.f32 %v383, %v3798
        %3800 = vdwg.mxu0
        %3802 = vrot.lane.b32.xlu0 %v3618, 96
        %v3803 = vpop.permute.xlu0 %3802
        %v3805 = vsel %vm494, %v3605, 0
        %v3807 = vsel %vm494, %v3803, 0
        %3809 = vmatpush.xpose.msra.mxu0 0.0
        %3810 = vmatpush.xpose.msra.mxu0 0.0
        %3811 = vmatpush.xpose.msra.mxu0 0.0
        %3812 = vmatpush.xpose.msra.mxu0 0.0
        %3813 = vmatpush.xpose.msra.mxu0 0.0
        %3814 = vmatpush.xpose.msra.mxu0 0.0
        %3815 = vmatpush.xpose.msra.mxu0 0.0
        %3816 = vmatpush.xpose.msra.mxu0 0.0
        %3817 = vmatpush.xpose.msra.mxu0 0.0
        %3818 = vmatpush.xpose.msra.mxu0 0.0
        %3819 = vmatpush.xpose.msra.mxu0 0.0
        %3820 = vmatpush.xpose.msra.mxu0 0.0
        %3821 = vmatpush.xpose.msra.mxu0 0.0
        %3822 = vmatpush.xpose.msra.mxu0 0.0
        %3823 = vmatpush.xpose.msra.mxu0 0.0
        %3824 = vmatpush.xpose.msra.mxu0 %v3807
        %3825 = vmatmul.f32.gmra.mxu0 %v3805
        %v3826 = vpop.f32.mrf.mxu0
        %v3827 = vadd.f32 %v383, %v3826
        %3828 = vdwg.mxu0
        %3830 = vrot.lane.b32.xlu0 %v3619, 96
        %v3831 = vpop.permute.xlu0 %3830
        %v3833 = vsel %vm494, %v3606, 0
        %v3835 = vsel %vm494, %v3831, 0
        %3837 = vmatpush.xpose.msra.mxu0 0.0
        %3838 = vmatpush.xpose.msra.mxu0 0.0
        %3839 = vmatpush.xpose.msra.mxu0 0.0
        %3840 = vmatpush.xpose.msra.mxu0 0.0
        %3841 = vmatpush.xpose.msra.mxu0 0.0
        %3842 = vmatpush.xpose.msra.mxu0 0.0
        %3843 = vmatpush.xpose.msra.mxu0 0.0
        %3844 = vmatpush.xpose.msra.mxu0 0.0
        %3845 = vmatpush.xpose.msra.mxu0 0.0
        %3846 = vmatpush.xpose.msra.mxu0 0.0
        %3847 = vmatpush.xpose.msra.mxu0 0.0
        %3848 = vmatpush.xpose.msra.mxu0 0.0
        %3849 = vmatpush.xpose.msra.mxu0 0.0
        %3850 = vmatpush.xpose.msra.mxu0 0.0
        %3851 = vmatpush.xpose.msra.mxu0 0.0
        %3852 = vmatpush.xpose.msra.mxu0 %v3835
        %3853 = vmatmul.f32.gmra.mxu0 %v3833
        %v3854 = vpop.f32.mrf.mxu0
        %v3855 = vadd.f32 %v383, %v3854
        %3856 = vdwg.mxu0
        %v3857 = vsel %vm494, %v3659, -inf
        %3858 = vmax.xlane.f32.xlu0 %v3857
        %v3859 = vpop.xlane.xlu0 %3858
        %v3860 = vsel %vm494, %v3687, -inf
        %3861 = vmax.xlane.f32.xlu0 %v3860
        %v3862 = vpop.xlane.xlu0 %3861
        %v3863 = vsel %vm494, %v3715, -inf
        %3864 = vmax.xlane.f32.xlu0 %v3863
        %v3865 = vpop.xlane.xlu0 %3864
        %v3866 = vsel %vm494, %v3743, -inf
        %3867 = vmax.xlane.f32.xlu0 %v3866
        %v3868 = vpop.xlane.xlu0 %3867
        %v3869 = vsel %vm494, %v3771, -inf
        %3870 = vmax.xlane.f32.xlu0 %v3869
        %v3871 = vpop.xlane.xlu0 %3870
        %v3872 = vsel %vm494, %v3799, -inf
        %3873 = vmax.xlane.f32.xlu0 %v3872
        %v3874 = vpop.xlane.xlu0 %3873
        %v3875 = vsel %vm494, %v3827, -inf
        %3876 = vmax.xlane.f32.xlu0 %v3875
        %v3877 = vpop.xlane.xlu0 %3876
        %v3878 = vsel %vm494, %v3855, -inf
        %3879 = vmax.xlane.f32.xlu0 %v3878
        %v3880 = vpop.xlane.xlu0 %3879
        %v3881 = vsub.f32 %v3659, %v3859
        %v3882 = vsub.f32 %v3687, %v3862
        %v3883 = vsub.f32 %v3715, %v3865
        %v3884 = vsub.f32 %v3743, %v3868
        %v3885 = vsub.f32 %v3771, %v3871
        %v3886 = vsub.f32 %v3799, %v3874
        %v3887 = vsub.f32 %v3827, %v3877
        %v3888 = vsub.f32 %v3855, %v3880
        %v3889 = vmul.f32 %v3881, 1.442695
        %v3890 = vpow.pop %v3889
        %v3891 = vmul.f32 %v3882, 1.442695
        %v3892 = vpow.pop %v3891
        %v3893 = vmul.f32 %v3883, 1.442695
        %v3894 = vpow.pop %v3893
        %v3895 = vmul.f32 %v3884, 1.442695
        %v3896 = vpow.pop %v3895
        %v3897 = vmul.f32 %v3885, 1.442695
        %v3898 = vpow.pop %v3897
        %v3899 = vmul.f32 %v3886, 1.442695
        %v3900 = vpow.pop %v3899
        %v3901 = vmul.f32 %v3887, 1.442695
        %v3902 = vpow.pop %v3901
        %v3903 = vmul.f32 %v3888, 1.442695
        %v3904 = vpow.pop %v3903
        %v3905 = vsel %vm494, %v3890, 0.0
        %3906 = vadd.xlane.f32.xlu0 %v3905
        %v3907 = vpop.xlane.xlu0 %3906
        %v3908 = vsel %vm494, %v3892, 0.0
        %3909 = vadd.xlane.f32.xlu0 %v3908
        %v3910 = vpop.xlane.xlu0 %3909
        %v3911 = vsel %vm494, %v3894, 0.0
        %3912 = vadd.xlane.f32.xlu0 %v3911
        %v3913 = vpop.xlane.xlu0 %3912
        %v3914 = vsel %vm494, %v3896, 0.0
        %3915 = vadd.xlane.f32.xlu0 %v3914
        %v3916 = vpop.xlane.xlu0 %3915
        %v3917 = vsel %vm494, %v3898, 0.0
        %3918 = vadd.xlane.f32.xlu0 %v3917
        %v3919 = vpop.xlane.xlu0 %3918
        %v3920 = vsel %vm494, %v3900, 0.0
        %3921 = vadd.xlane.f32.xlu0 %v3920
        %v3922 = vpop.xlane.xlu0 %3921
        %v3923 = vsel %vm494, %v3902, 0.0
        %3924 = vadd.xlane.f32.xlu0 %v3923
        %v3925 = vpop.xlane.xlu0 %3924
        %v3926 = vsel %vm494, %v3904, 0.0
        %3927 = vadd.xlane.f32.xlu0 %v3926
        %v3928 = vpop.xlane.xlu0 %3927
        %v3929 = vrcp.pop %v3907
        %v3930 = vrcp.pop %v3910
        %v3931 = vrcp.pop %v3913
        %v3932 = vrcp.pop %v3916
        %v3933 = vrcp.pop %v3919
        %v3934 = vrcp.pop %v3922
        %v3935 = vrcp.pop %v3925
        %v3936 = vrcp.pop %v3928
        %v3937 = vmul.f32 %v3890, %v3929
        %v3938 = vmul.f32 %v3892, %v3930
        %v3939 = vmul.f32 %v3894, %v3931
        %v3940 = vmul.f32 %v3896, %v3932
        %v3941 = vmul.f32 %v3898, %v3933
        %v3942 = vmul.f32 %v3900, %v3934
        %v3943 = vmul.f32 %v3902, %v3935
        %v3944 = vmul.f32 %v3904, %v3936
        %3946 = vrot.lane.b32.xlu0 %v3625, 64
        %v3947 = vpop.permute.xlu0 %3946
        %v3950 = vsel %vm494, %v3937, 0
        %3952 = vmatpush.msra.mxu0 0.0
        %3953 = vmatpush.msra.mxu0 0.0
        %3954 = vmatpush.msra.mxu0 0.0
        %3955 = vmatpush.msra.mxu0 0.0
        %3956 = vmatpush.msra.mxu0 0.0
        %3957 = vmatpush.msra.mxu0 0.0
        %3958 = vmatpush.msra.mxu0 0.0
        %3959 = vmatpush.msra.mxu0 0.0
        %3960 = vmatpush.msra.mxu0 0.0
        %3961 = vmatpush.msra.mxu0 0.0
        %3962 = vmatpush.msra.mxu0 0.0
        %3963 = vmatpush.msra.mxu0 0.0
        %3964 = vmatpush.msra.mxu0 0.0
        %3965 = vmatpush.msra.mxu0 0.0
        %3966 = vmatpush.msra.mxu0 0.0
        %3967 = vmatpush.msra.mxu0 %v3947
        %3968 = vmatmul.f32.gmra.mxu0 %v3950
        %v3969 = vpop.f32.mrf.mxu0
        %v3970 = vadd.f32 0.0, %v3969
        %3971 = vdwg.mxu0
        %3973 = vrot.lane.b32.xlu0 %v3626, 64
        %v3974 = vpop.permute.xlu0 %3973
        %v3977 = vsel %vm494, %v3938, 0
        %3979 = vmatpush.msra.mxu0 0.0
        %3980 = vmatpush.msra.mxu0 0.0
        %3981 = vmatpush.msra.mxu0 0.0
        %3982 = vmatpush.msra.mxu0 0.0
        %3983 = vmatpush.msra.mxu0 0.0
        %3984 = vmatpush.msra.mxu0 0.0
        %3985 = vmatpush.msra.mxu0 0.0
        %3986 = vmatpush.msra.mxu0 0.0
        %3987 = vmatpush.msra.mxu0 0.0
        %3988 = vmatpush.msra.mxu0 0.0
        %3989 = vmatpush.msra.mxu0 0.0
        %3990 = vmatpush.msra.mxu0 0.0
        %3991 = vmatpush.msra.mxu0 0.0
        %3992 = vmatpush.msra.mxu0 0.0
        %3993 = vmatpush.msra.mxu0 0.0
        %3994 = vmatpush.msra.mxu0 %v3974
        %3995 = vmatmul.f32.gmra.mxu0 %v3977
        %v3996 = vpop.f32.mrf.mxu0
        %v3997 = vadd.f32 0.0, %v3996
        %3998 = vdwg.mxu0
        %4000 = vrot.lane.b32.xlu0 %v3627, 64
        %v4001 = vpop.permute.xlu0 %4000
        %v4004 = vsel %vm494, %v3939, 0
        %4006 = vmatpush.msra.mxu0 0.0
        %4007 = vmatpush.msra.mxu0 0.0
        %4008 = vmatpush.msra.mxu0 0.0
        %4009 = vmatpush.msra.mxu0 0.0
        %4010 = vmatpush.msra.mxu0 0.0
        %4011 = vmatpush.msra.mxu0 0.0
        %4012 = vmatpush.msra.mxu0 0.0
        %4013 = vmatpush.msra.mxu0 0.0
        %4014 = vmatpush.msra.mxu0 0.0
        %4015 = vmatpush.msra.mxu0 0.0
        %4016 = vmatpush.msra.mxu0 0.0
        %4017 = vmatpush.msra.mxu0 0.0
        %4018 = vmatpush.msra.mxu0 0.0
        %4019 = vmatpush.msra.mxu0 0.0
        %4020 = vmatpush.msra.mxu0 0.0
        %4021 = vmatpush.msra.mxu0 %v4001
        %4022 = vmatmul.f32.gmra.mxu0 %v4004
        %v4023 = vpop.f32.mrf.mxu0
        %v4024 = vadd.f32 0.0, %v4023
        %4025 = vdwg.mxu0
        %4027 = vrot.lane.b32.xlu0 %v3628, 64
        %v4028 = vpop.permute.xlu0 %4027
        %v4031 = vsel %vm494, %v3940, 0
        %4033 = vmatpush.msra.mxu0 0.0
        %4034 = vmatpush.msra.mxu0 0.0
        %4035 = vmatpush.msra.mxu0 0.0
        %4036 = vmatpush.msra.mxu0 0.0
        %4037 = vmatpush.msra.mxu0 0.0
        %4038 = vmatpush.msra.mxu0 0.0
        %4039 = vmatpush.msra.mxu0 0.0
        %4040 = vmatpush.msra.mxu0 0.0
        %4041 = vmatpush.msra.mxu0 0.0
        %4042 = vmatpush.msra.mxu0 0.0
        %4043 = vmatpush.msra.mxu0 0.0
        %4044 = vmatpush.msra.mxu0 0.0
        %4045 = vmatpush.msra.mxu0 0.0
        %4046 = vmatpush.msra.mxu0 0.0
        %4047 = vmatpush.msra.mxu0 0.0
        %4048 = vmatpush.msra.mxu0 %v4028
        %4049 = vmatmul.f32.gmra.mxu0 %v4031
        %v4050 = vpop.f32.mrf.mxu0
        %v4051 = vadd.f32 0.0, %v4050
        %4052 = vdwg.mxu0
        %4054 = vrot.lane.b32.xlu0 %v3629, 64
        %v4055 = vpop.permute.xlu0 %4054
        %v4058 = vsel %vm494, %v3941, 0
        %4060 = vmatpush.msra.mxu0 0.0
        %4061 = vmatpush.msra.mxu0 0.0
        %4062 = vmatpush.msra.mxu0 0.0
        %4063 = vmatpush.msra.mxu0 0.0
        %4064 = vmatpush.msra.mxu0 0.0
        %4065 = vmatpush.msra.mxu0 0.0
        %4066 = vmatpush.msra.mxu0 0.0
        %4067 = vmatpush.msra.mxu0 0.0
        %4068 = vmatpush.msra.mxu0 0.0
        %4069 = vmatpush.msra.mxu0 0.0
        %4070 = vmatpush.msra.mxu0 0.0
        %4071 = vmatpush.msra.mxu0 0.0
        %4072 = vmatpush.msra.mxu0 0.0
        %4073 = vmatpush.msra.mxu0 0.0
        %4074 = vmatpush.msra.mxu0 0.0
        %4075 = vmatpush.msra.mxu0 %v4055
        %4076 = vmatmul.f32.gmra.mxu0 %v4058
        %v4077 = vpop.f32.mrf.mxu0
        %v4078 = vadd.f32 0.0, %v4077
        %4079 = vdwg.mxu0
        %4081 = vrot.lane.b32.xlu0 %v3630, 64
        %v4082 = vpop.permute.xlu0 %4081
        %v4085 = vsel %vm494, %v3942, 0
        %4087 = vmatpush.msra.mxu0 0.0
        %4088 = vmatpush.msra.mxu0 0.0
        %4089 = vmatpush.msra.mxu0 0.0
        %4090 = vmatpush.msra.mxu0 0.0
        %4091 = vmatpush.msra.mxu0 0.0
        %4092 = vmatpush.msra.mxu0 0.0
        %4093 = vmatpush.msra.mxu0 0.0
        %4094 = vmatpush.msra.mxu0 0.0
        %4095 = vmatpush.msra.mxu0 0.0
        %4096 = vmatpush.msra.mxu0 0.0
        %4097 = vmatpush.msra.mxu0 0.0
        %4098 = vmatpush.msra.mxu0 0.0
        %4099 = vmatpush.msra.mxu0 0.0
        %4100 = vmatpush.msra.mxu0 0.0
        %4101 = vmatpush.msra.mxu0 0.0
        %4102 = vmatpush.msra.mxu0 %v4082
        %4103 = vmatmul.f32.gmra.mxu0 %v4085
        %v4104 = vpop.f32.mrf.mxu0
        %v4105 = vadd.f32 0.0, %v4104
        %4106 = vdwg.mxu0
        %4108 = vrot.lane.b32.xlu0 %v3631, 64
        %v4109 = vpop.permute.xlu0 %4108
        %v4112 = vsel %vm494, %v3943, 0
        %4114 = vmatpush.msra.mxu0 0.0
        %4115 = vmatpush.msra.mxu0 0.0
        %4116 = vmatpush.msra.mxu0 0.0
        %4117 = vmatpush.msra.mxu0 0.0
        %4118 = vmatpush.msra.mxu0 0.0
        %4119 = vmatpush.msra.mxu0 0.0
        %4120 = vmatpush.msra.mxu0 0.0
        %4121 = vmatpush.msra.mxu0 0.0
        %4122 = vmatpush.msra.mxu0 0.0
        %4123 = vmatpush.msra.mxu0 0.0
        %4124 = vmatpush.msra.mxu0 0.0
        %4125 = vmatpush.msra.mxu0 0.0
        %4126 = vmatpush.msra.mxu0 0.0
        %4127 = vmatpush.msra.mxu0 0.0
        %4128 = vmatpush.msra.mxu0 0.0
        %4129 = vmatpush.msra.mxu0 %v4109
        %4130 = vmatmul.f32.gmra.mxu0 %v4112
        %v4131 = vpop.f32.mrf.mxu0
        %v4132 = vadd.f32 0.0, %v4131
        %4133 = vdwg.mxu0
        %4135 = vrot.lane.b32.xlu0 %v3632, 64
        %v4136 = vpop.permute.xlu0 %4135
        %v4139 = vsel %vm494, %v3944, 0
        %4141 = vmatpush.msra.mxu0 0.0
        %4142 = vmatpush.msra.mxu0 0.0
        %4143 = vmatpush.msra.mxu0 0.0
        %4144 = vmatpush.msra.mxu0 0.0
        %4145 = vmatpush.msra.mxu0 0.0
        %4146 = vmatpush.msra.mxu0 0.0
        %4147 = vmatpush.msra.mxu0 0.0
        %4148 = vmatpush.msra.mxu0 0.0
        %4149 = vmatpush.msra.mxu0 0.0
        %4150 = vmatpush.msra.mxu0 0.0
        %4151 = vmatpush.msra.mxu0 0.0
        %4152 = vmatpush.msra.mxu0 0.0
        %4153 = vmatpush.msra.mxu0 0.0
        %4154 = vmatpush.msra.mxu0 0.0
        %4155 = vmatpush.msra.mxu0 0.0
        %4156 = vmatpush.msra.mxu0 %v4136
        %4157 = vmatmul.f32.gmra.mxu0 %v4139
        %v4158 = vpop.f32.mrf.mxu0
        %v4159 = vadd.f32 0.0, %v4158
        %4160 = vdwg.mxu0
        %4161 = vrot.lane.b32.xlu0 %v3599, 120
        %v4162 = vpop.permute.xlu0 %4161
        %4163 = vrot.lane.b32.xlu0 %v3612, 88
        %v4164 = vpop.permute.xlu0 %4163
        %v4165 = vsel %vm494, %v4162, 0
        %v4167 = vsel %vm494, %v4164, 0
        %4169 = vmatpush.xpose.msra.mxu0 0.0
        %4170 = vmatpush.xpose.msra.mxu0 0.0
        %4171 = vmatpush.xpose.msra.mxu0 0.0
        %4172 = vmatpush.xpose.msra.mxu0 0.0
        %4173 = vmatpush.xpose.msra.mxu0 0.0
        %4174 = vmatpush.xpose.msra.mxu0 0.0
        %4175 = vmatpush.xpose.msra.mxu0 0.0
        %4176 = vmatpush.xpose.msra.mxu0 0.0
        %4177 = vmatpush.xpose.msra.mxu0 0.0
        %4178 = vmatpush.xpose.msra.mxu0 0.0
        %4179 = vmatpush.xpose.msra.mxu0 0.0
        %4180 = vmatpush.xpose.msra.mxu0 0.0
        %4181 = vmatpush.xpose.msra.mxu0 0.0
        %4182 = vmatpush.xpose.msra.mxu0 0.0
        %4183 = vmatpush.xpose.msra.mxu0 0.0
        %4184 = vmatpush.xpose.msra.mxu0 %v4167
        %4185 = vmatmul.f32.gmra.mxu0 %v4165
        %v4186 = vpop.f32.mrf.mxu0
        %v4187 = vadd.f32 %v383, %v4186
        %4188 = vdwg.mxu0
        %4189 = vrot.lane.b32.xlu0 %v3600, 120
        %v4190 = vpop.permute.xlu0 %4189
        %4191 = vrot.lane.b32.xlu0 %v3613, 88
        %v4192 = vpop.permute.xlu0 %4191
        %v4193 = vsel %vm494, %v4190, 0
        %v4195 = vsel %vm494, %v4192, 0
        %4197 = vmatpush.xpose.msra.mxu0 0.0
        %4198 = vmatpush.xpose.msra.mxu0 0.0
        %4199 = vmatpush.xpose.msra.mxu0 0.0
        %4200 = vmatpush.xpose.msra.mxu0 0.0
        %4201 = vmatpush.xpose.msra.mxu0 0.0
        %4202 = vmatpush.xpose.msra.mxu0 0.0
        %4203 = vmatpush.xpose.msra.mxu0 0.0
        %4204 = vmatpush.xpose.msra.mxu0 0.0
        %4205 = vmatpush.xpose.msra.mxu0 0.0
        %4206 = vmatpush.xpose.msra.mxu0 0.0
        %4207 = vmatpush.xpose.msra.mxu0 0.0
        %4208 = vmatpush.xpose.msra.mxu0 0.0
        %4209 = vmatpush.xpose.msra.mxu0 0.0
        %4210 = vmatpush.xpose.msra.mxu0 0.0
        %4211 = vmatpush.xpose.msra.mxu0 0.0
        %4212 = vmatpush.xpose.msra.mxu0 %v4195
        %4213 = vmatmul.f32.gmra.mxu0 %v4193
        %v4214 = vpop.f32.mrf.mxu0
        %v4215 = vadd.f32 %v383, %v4214
        %4216 = vdwg.mxu0
        %4217 = vrot.lane.b32.xlu0 %v3601, 120
        %v4218 = vpop.permute.xlu0 %4217
        %4219 = vrot.lane.b32.xlu0 %v3614, 88
        %v4220 = vpop.permute.xlu0 %4219
        %v4221 = vsel %vm494, %v4218, 0
        %v4223 = vsel %vm494, %v4220, 0
        %4225 = vmatpush.xpose.msra.mxu0 0.0
        %4226 = vmatpush.xpose.msra.mxu0 0.0
        %4227 = vmatpush.xpose.msra.mxu0 0.0
        %4228 = vmatpush.xpose.msra.mxu0 0.0
        %4229 = vmatpush.xpose.msra.mxu0 0.0
        %4230 = vmatpush.xpose.msra.mxu0 0.0
        %4231 = vmatpush.xpose.msra.mxu0 0.0
        %4232 = vmatpush.xpose.msra.mxu0 0.0
        %4233 = vmatpush.xpose.msra.mxu0 0.0
        %4234 = vmatpush.xpose.msra.mxu0 0.0
        %4235 = vmatpush.xpose.msra.mxu0 0.0
        %4236 = vmatpush.xpose.msra.mxu0 0.0
        %4237 = vmatpush.xpose.msra.mxu0 0.0
        %4238 = vmatpush.xpose.msra.mxu0 0.0
        %4239 = vmatpush.xpose.msra.mxu0 0.0
        %4240 = vmatpush.xpose.msra.mxu0 %v4223
        %4241 = vmatmul.f32.gmra.mxu0 %v4221
        %v4242 = vpop.f32.mrf.mxu0
        %v4243 = vadd.f32 %v383, %v4242
        %4244 = vdwg.mxu0
        %4245 = vrot.lane.b32.xlu0 %v3602, 120
        %v4246 = vpop.permute.xlu0 %4245
        %4247 = vrot.lane.b32.xlu0 %v3615, 88
        %v4248 = vpop.permute.xlu0 %4247
        %v4249 = vsel %vm494, %v4246, 0
        %v4251 = vsel %vm494, %v4248, 0
        %4253 = vmatpush.xpose.msra.mxu0 0.0
        %4254 = vmatpush.xpose.msra.mxu0 0.0
        %4255 = vmatpush.xpose.msra.mxu0 0.0
        %4256 = vmatpush.xpose.msra.mxu0 0.0
        %4257 = vmatpush.xpose.msra.mxu0 0.0
        %4258 = vmatpush.xpose.msra.mxu0 0.0
        %4259 = vmatpush.xpose.msra.mxu0 0.0
        %4260 = vmatpush.xpose.msra.mxu0 0.0
        %4261 = vmatpush.xpose.msra.mxu0 0.0
        %4262 = vmatpush.xpose.msra.mxu0 0.0
        %4263 = vmatpush.xpose.msra.mxu0 0.0
        %4264 = vmatpush.xpose.msra.mxu0 0.0
        %4265 = vmatpush.xpose.msra.mxu0 0.0
        %4266 = vmatpush.xpose.msra.mxu0 0.0
        %4267 = vmatpush.xpose.msra.mxu0 0.0
        %4268 = vmatpush.xpose.msra.mxu0 %v4251
        %4269 = vmatmul.f32.gmra.mxu0 %v4249
        %v4270 = vpop.f32.mrf.mxu0
        %v4271 = vadd.f32 %v383, %v4270
        %4272 = vdwg.mxu0
        %4273 = vrot.lane.b32.xlu0 %v3603, 120
        %v4274 = vpop.permute.xlu0 %4273
        %4275 = vrot.lane.b32.xlu0 %v3616, 88
        %v4276 = vpop.permute.xlu0 %4275
        %v4277 = vsel %vm494, %v4274, 0
        %v4279 = vsel %vm494, %v4276, 0
        %4281 = vmatpush.xpose.msra.mxu0 0.0
        %4282 = vmatpush.xpose.msra.mxu0 0.0
        %4283 = vmatpush.xpose.msra.mxu0 0.0
        %4284 = vmatpush.xpose.msra.mxu0 0.0
        %4285 = vmatpush.xpose.msra.mxu0 0.0
        %4286 = vmatpush.xpose.msra.mxu0 0.0
        %4287 = vmatpush.xpose.msra.mxu0 0.0
        %4288 = vmatpush.xpose.msra.mxu0 0.0
        %4289 = vmatpush.xpose.msra.mxu0 0.0
        %4290 = vmatpush.xpose.msra.mxu0 0.0
        %4291 = vmatpush.xpose.msra.mxu0 0.0
        %4292 = vmatpush.xpose.msra.mxu0 0.0
        %4293 = vmatpush.xpose.msra.mxu0 0.0
        %4294 = vmatpush.xpose.msra.mxu0 0.0
        %4295 = vmatpush.xpose.msra.mxu0 0.0
        %4296 = vmatpush.xpose.msra.mxu0 %v4279
        %4297 = vmatmul.f32.gmra.mxu0 %v4277
        %v4298 = vpop.f32.mrf.mxu0
        %v4299 = vadd.f32 %v383, %v4298
        %4300 = vdwg.mxu0
        %4301 = vrot.lane.b32.xlu0 %v3604, 120
        %v4302 = vpop.permute.xlu0 %4301
        %4303 = vrot.lane.b32.xlu0 %v3617, 88
        %v4304 = vpop.permute.xlu0 %4303
        %v4305 = vsel %vm494, %v4302, 0
        %v4307 = vsel %vm494, %v4304, 0
        %4309 = vmatpush.xpose.msra.mxu0 0.0
        %4310 = vmatpush.xpose.msra.mxu0 0.0
        %4311 = vmatpush.xpose.msra.mxu0 0.0
        %4312 = vmatpush.xpose.msra.mxu0 0.0
        %4313 = vmatpush.xpose.msra.mxu0 0.0
        %4314 = vmatpush.xpose.msra.mxu0 0.0
        %4315 = vmatpush.xpose.msra.mxu0 0.0
        %4316 = vmatpush.xpose.msra.mxu0 0.0
        %4317 = vmatpush.xpose.msra.mxu0 0.0
        %4318 = vmatpush.xpose.msra.mxu0 0.0
        %4319 = vmatpush.xpose.msra.mxu0 0.0
        %4320 = vmatpush.xpose.msra.mxu0 0.0
        %4321 = vmatpush.xpose.msra.mxu0 0.0
        %4322 = vmatpush.xpose.msra.mxu0 0.0
        %4323 = vmatpush.xpose.msra.mxu0 0.0
        %4324 = vmatpush.xpose.msra.mxu0 %v4307
        %4325 = vmatmul.f32.gmra.mxu0 %v4305
        %v4326 = vpop.f32.mrf.mxu0
        %v4327 = vadd.f32 %v383, %v4326
        %4328 = vdwg.mxu0
        %4329 = vrot.lane.b32.xlu0 %v3605, 120
        %v4330 = vpop.permute.xlu0 %4329
        %4331 = vrot.lane.b32.xlu0 %v3618, 88
        %v4332 = vpop.permute.xlu0 %4331
        %v4333 = vsel %vm494, %v4330, 0
        %v4335 = vsel %vm494, %v4332, 0
        %4337 = vmatpush.xpose.msra.mxu0 0.0
        %4338 = vmatpush.xpose.msra.mxu0 0.0
        %4339 = vmatpush.xpose.msra.mxu0 0.0
        %4340 = vmatpush.xpose.msra.mxu0 0.0
        %4341 = vmatpush.xpose.msra.mxu0 0.0
        %4342 = vmatpush.xpose.msra.mxu0 0.0
        %4343 = vmatpush.xpose.msra.mxu0 0.0
        %4344 = vmatpush.xpose.msra.mxu0 0.0
        %4345 = vmatpush.xpose.msra.mxu0 0.0
        %4346 = vmatpush.xpose.msra.mxu0 0.0
        %4347 = vmatpush.xpose.msra.mxu0 0.0
        %4348 = vmatpush.xpose.msra.mxu0 0.0
        %4349 = vmatpush.xpose.msra.mxu0 0.0
        %4350 = vmatpush.xpose.msra.mxu0 0.0
        %4351 = vmatpush.xpose.msra.mxu0 0.0
        %4352 = vmatpush.xpose.msra.mxu0 %v4335
        %4353 = vmatmul.f32.gmra.mxu0 %v4333
        %v4354 = vpop.f32.mrf.mxu0
        %v4355 = vadd.f32 %v383, %v4354
        %4356 = vdwg.mxu0
        %4357 = vrot.lane.b32.xlu0 %v3606, 120
        %v4358 = vpop.permute.xlu0 %4357
        %4359 = vrot.lane.b32.xlu0 %v3619, 88
        %v4360 = vpop.permute.xlu0 %4359
        %v4361 = vsel %vm494, %v4358, 0
        %v4363 = vsel %vm494, %v4360, 0
        %4365 = vmatpush.xpose.msra.mxu0 0.0
        %4366 = vmatpush.xpose.msra.mxu0 0.0
        %4367 = vmatpush.xpose.msra.mxu0 0.0
        %4368 = vmatpush.xpose.msra.mxu0 0.0
        %4369 = vmatpush.xpose.msra.mxu0 0.0
        %4370 = vmatpush.xpose.msra.mxu0 0.0
        %4371 = vmatpush.xpose.msra.mxu0 0.0
        %4372 = vmatpush.xpose.msra.mxu0 0.0
        %4373 = vmatpush.xpose.msra.mxu0 0.0
        %4374 = vmatpush.xpose.msra.mxu0 0.0
        %4375 = vmatpush.xpose.msra.mxu0 0.0
        %4376 = vmatpush.xpose.msra.mxu0 0.0
        %4377 = vmatpush.xpose.msra.mxu0 0.0
        %4378 = vmatpush.xpose.msra.mxu0 0.0
        %4379 = vmatpush.xpose.msra.mxu0 0.0
        %4380 = vmatpush.xpose.msra.mxu0 %v4363
        %4381 = vmatmul.f32.gmra.mxu0 %v4361
        %v4382 = vpop.f32.mrf.mxu0
        %v4383 = vadd.f32 %v383, %v4382
        %4384 = vdwg.mxu0
        %v4385 = vsel %vm494, %v4187, -inf
        %4386 = vmax.xlane.f32.xlu0 %v4385
        %v4387 = vpop.xlane.xlu0 %4386
        %v4388 = vsel %vm494, %v4215, -inf
        %4389 = vmax.xlane.f32.xlu0 %v4388
        %v4390 = vpop.xlane.xlu0 %4389
        %v4391 = vsel %vm494, %v4243, -inf
        %4392 = vmax.xlane.f32.xlu0 %v4391
        %v4393 = vpop.xlane.xlu0 %4392
        %v4394 = vsel %vm494, %v4271, -inf
        %4395 = vmax.xlane.f32.xlu0 %v4394
        %v4396 = vpop.xlane.xlu0 %4395
        %v4397 = vsel %vm494, %v4299, -inf
        %4398 = vmax.xlane.f32.xlu0 %v4397
        %v4399 = vpop.xlane.xlu0 %4398
        %v4400 = vsel %vm494, %v4327, -inf
        %4401 = vmax.xlane.f32.xlu0 %v4400
        %v4402 = vpop.xlane.xlu0 %4401
        %v4403 = vsel %vm494, %v4355, -inf
        %4404 = vmax.xlane.f32.xlu0 %v4403
        %v4405 = vpop.xlane.xlu0 %4404
        %v4406 = vsel %vm494, %v4383, -inf
        %4407 = vmax.xlane.f32.xlu0 %v4406
        %v4408 = vpop.xlane.xlu0 %4407
        %v4409 = vsub.f32 %v4187, %v4387
        %v4410 = vsub.f32 %v4215, %v4390
        %v4411 = vsub.f32 %v4243, %v4393
        %v4412 = vsub.f32 %v4271, %v4396
        %v4413 = vsub.f32 %v4299, %v4399
        %v4414 = vsub.f32 %v4327, %v4402
        %v4415 = vsub.f32 %v4355, %v4405
        %v4416 = vsub.f32 %v4383, %v4408
        %v4417 = vmul.f32 %v4409, 1.442695
        %v4418 = vpow.pop %v4417
        %v4419 = vmul.f32 %v4410, 1.442695
        %v4420 = vpow.pop %v4419
        %v4421 = vmul.f32 %v4411, 1.442695
        %v4422 = vpow.pop %v4421
        %v4423 = vmul.f32 %v4412, 1.442695
        %v4424 = vpow.pop %v4423
        %v4425 = vmul.f32 %v4413, 1.442695
        %v4426 = vpow.pop %v4425
        %v4427 = vmul.f32 %v4414, 1.442695
        %v4428 = vpow.pop %v4427
        %v4429 = vmul.f32 %v4415, 1.442695
        %v4430 = vpow.pop %v4429
        %v4431 = vmul.f32 %v4416, 1.442695
        %v4432 = vpow.pop %v4431
        %v4433 = vsel %vm494, %v4418, 0.0
        %4434 = vadd.xlane.f32.xlu0 %v4433
        %v4435 = vpop.xlane.xlu0 %4434
        %v4436 = vsel %vm494, %v4420, 0.0
        %4437 = vadd.xlane.f32.xlu0 %v4436
        %v4438 = vpop.xlane.xlu0 %4437
        %v4439 = vsel %vm494, %v4422, 0.0
        %4440 = vadd.xlane.f32.xlu0 %v4439
        %v4441 = vpop.xlane.xlu0 %4440
        %v4442 = vsel %vm494, %v4424, 0.0
        %4443 = vadd.xlane.f32.xlu0 %v4442
        %v4444 = vpop.xlane.xlu0 %4443
        %v4445 = vsel %vm494, %v4426, 0.0
        %4446 = vadd.xlane.f32.xlu0 %v4445
        %v4447 = vpop.xlane.xlu0 %4446
        %v4448 = vsel %vm494, %v4428, 0.0
        %4449 = vadd.xlane.f32.xlu0 %v4448
        %v4450 = vpop.xlane.xlu0 %4449
        %v4451 = vsel %vm494, %v4430, 0.0
        %4452 = vadd.xlane.f32.xlu0 %v4451
        %v4453 = vpop.xlane.xlu0 %4452
        %v4454 = vsel %vm494, %v4432, 0.0
        %4455 = vadd.xlane.f32.xlu0 %v4454
        %v4456 = vpop.xlane.xlu0 %4455
        %v4457 = vrcp.pop %v4435
        %v4458 = vrcp.pop %v4438
        %v4459 = vrcp.pop %v4441
        %v4460 = vrcp.pop %v4444
        %v4461 = vrcp.pop %v4447
        %v4462 = vrcp.pop %v4450
        %v4463 = vrcp.pop %v4453
        %v4464 = vrcp.pop %v4456
        %v4465 = vmul.f32 %v4418, %v4457
        %v4466 = vmul.f32 %v4420, %v4458
        %v4467 = vmul.f32 %v4422, %v4459
        %v4468 = vmul.f32 %v4424, %v4460
        %v4469 = vmul.f32 %v4426, %v4461
        %v4470 = vmul.f32 %v4428, %v4462
        %v4471 = vmul.f32 %v4430, %v4463
        %v4472 = vmul.f32 %v4432, %v4464
        %4473 = vrot.lane.b32.xlu0 %v3625, 56
        %v4474 = vpop.permute.xlu0 %4473
        %v4477 = vsel %vm494, %v4465, 0
        %4479 = vmatpush.msra.mxu0 0.0
        %4480 = vmatpush.msra.mxu0 0.0
        %4481 = vmatpush.msra.mxu0 0.0
        %4482 = vmatpush.msra.mxu0 0.0
        %4483 = vmatpush.msra.mxu0 0.0
        %4484 = vmatpush.msra.mxu0 0.0
        %4485 = vmatpush.msra.mxu0 0.0
        %4486 = vmatpush.msra.mxu0 0.0
        %4487 = vmatpush.msra.mxu0 0.0
        %4488 = vmatpush.msra.mxu0 0.0
        %4489 = vmatpush.msra.mxu0 0.0
        %4490 = vmatpush.msra.mxu0 0.0
        %4491 = vmatpush.msra.mxu0 0.0
        %4492 = vmatpush.msra.mxu0 0.0
        %4493 = vmatpush.msra.mxu0 0.0
        %4494 = vmatpush.msra.mxu0 %v4474
        %4495 = vmatmul.f32.gmra.mxu0 %v4477
        %v4496 = vpop.f32.mrf.mxu0
        %v4497 = vadd.f32 0.0, %v4496
        %4498 = vdwg.mxu0
        %4499 = vrot.lane.b32.xlu0 %v3626, 56
        %v4500 = vpop.permute.xlu0 %4499
        %v4503 = vsel %vm494, %v4466, 0
        %4505 = vmatpush.msra.mxu0 0.0
        %4506 = vmatpush.msra.mxu0 0.0
        %4507 = vmatpush.msra.mxu0 0.0
        %4508 = vmatpush.msra.mxu0 0.0
        %4509 = vmatpush.msra.mxu0 0.0
        %4510 = vmatpush.msra.mxu0 0.0
        %4511 = vmatpush.msra.mxu0 0.0
        %4512 = vmatpush.msra.mxu0 0.0
        %4513 = vmatpush.msra.mxu0 0.0
        %4514 = vmatpush.msra.mxu0 0.0
        %4515 = vmatpush.msra.mxu0 0.0
        %4516 = vmatpush.msra.mxu0 0.0
        %4517 = vmatpush.msra.mxu0 0.0
        %4518 = vmatpush.msra.mxu0 0.0
        %4519 = vmatpush.msra.mxu0 0.0
        %4520 = vmatpush.msra.mxu0 %v4500
        %4521 = vmatmul.f32.gmra.mxu0 %v4503
        %v4522 = vpop.f32.mrf.mxu0
        %v4523 = vadd.f32 0.0, %v4522
        %4524 = vdwg.mxu0
        %4525 = vrot.lane.b32.xlu0 %v3627, 56
        %v4526 = vpop.permute.xlu0 %4525
        %v4529 = vsel %vm494, %v4467, 0
        %4531 = vmatpush.msra.mxu0 0.0
        %4532 = vmatpush.msra.mxu0 0.0
        %4533 = vmatpush.msra.mxu0 0.0
        %4534 = vmatpush.msra.mxu0 0.0
        %4535 = vmatpush.msra.mxu0 0.0
        %4536 = vmatpush.msra.mxu0 0.0
        %4537 = vmatpush.msra.mxu0 0.0
        %4538 = vmatpush.msra.mxu0 0.0
        %4539 = vmatpush.msra.mxu0 0.0
        %4540 = vmatpush.msra.mxu0 0.0
        %4541 = vmatpush.msra.mxu0 0.0
        %4542 = vmatpush.msra.mxu0 0.0
        %4543 = vmatpush.msra.mxu0 0.0
        %4544 = vmatpush.msra.mxu0 0.0
        %4545 = vmatpush.msra.mxu0 0.0
        %4546 = vmatpush.msra.mxu0 %v4526
        %4547 = vmatmul.f32.gmra.mxu0 %v4529
        %v4548 = vpop.f32.mrf.mxu0
        %v4549 = vadd.f32 0.0, %v4548
        %4550 = vdwg.mxu0
        %4551 = vrot.lane.b32.xlu0 %v3628, 56
        %v4552 = vpop.permute.xlu0 %4551
        %v4555 = vsel %vm494, %v4468, 0
        %4557 = vmatpush.msra.mxu0 0.0
        %4558 = vmatpush.msra.mxu0 0.0
        %4559 = vmatpush.msra.mxu0 0.0
        %4560 = vmatpush.msra.mxu0 0.0
        %4561 = vmatpush.msra.mxu0 0.0
        %4562 = vmatpush.msra.mxu0 0.0
        %4563 = vmatpush.msra.mxu0 0.0
        %4564 = vmatpush.msra.mxu0 0.0
        %4565 = vmatpush.msra.mxu0 0.0
        %4566 = vmatpush.msra.mxu0 0.0
        %4567 = vmatpush.msra.mxu0 0.0
        %4568 = vmatpush.msra.mxu0 0.0
        %4569 = vmatpush.msra.mxu0 0.0
        %4570 = vmatpush.msra.mxu0 0.0
        %4571 = vmatpush.msra.mxu0 0.0
        %4572 = vmatpush.msra.mxu0 %v4552
        %4573 = vmatmul.f32.gmra.mxu0 %v4555
        %v4574 = vpop.f32.mrf.mxu0
        %v4575 = vadd.f32 0.0, %v4574
        %4576 = vdwg.mxu0
        %4577 = vrot.lane.b32.xlu0 %v3629, 56
        %v4578 = vpop.permute.xlu0 %4577
        %v4581 = vsel %vm494, %v4469, 0
        %4583 = vmatpush.msra.mxu0 0.0
        %4584 = vmatpush.msra.mxu0 0.0
        %4585 = vmatpush.msra.mxu0 0.0
        %4586 = vmatpush.msra.mxu0 0.0
        %4587 = vmatpush.msra.mxu0 0.0
        %4588 = vmatpush.msra.mxu0 0.0
        %4589 = vmatpush.msra.mxu0 0.0
        %4590 = vmatpush.msra.mxu0 0.0
        %4591 = vmatpush.msra.mxu0 0.0
        %4592 = vmatpush.msra.mxu0 0.0
        %4593 = vmatpush.msra.mxu0 0.0
        %4594 = vmatpush.msra.mxu0 0.0
        %4595 = vmatpush.msra.mxu0 0.0
        %4596 = vmatpush.msra.mxu0 0.0
        %4597 = vmatpush.msra.mxu0 0.0
        %4598 = vmatpush.msra.mxu0 %v4578
        %4599 = vmatmul.f32.gmra.mxu0 %v4581
        %v4600 = vpop.f32.mrf.mxu0
        %v4601 = vadd.f32 0.0, %v4600
        %4602 = vdwg.mxu0
        %4603 = vrot.lane.b32.xlu0 %v3630, 56
        %v4604 = vpop.permute.xlu0 %4603
        %v4607 = vsel %vm494, %v4470, 0
        %4609 = vmatpush.msra.mxu0 0.0
        %4610 = vmatpush.msra.mxu0 0.0
        %4611 = vmatpush.msra.mxu0 0.0
        %4612 = vmatpush.msra.mxu0 0.0
        %4613 = vmatpush.msra.mxu0 0.0
        %4614 = vmatpush.msra.mxu0 0.0
        %4615 = vmatpush.msra.mxu0 0.0
        %4616 = vmatpush.msra.mxu0 0.0
        %4617 = vmatpush.msra.mxu0 0.0
        %4618 = vmatpush.msra.mxu0 0.0
        %4619 = vmatpush.msra.mxu0 0.0
        %4620 = vmatpush.msra.mxu0 0.0
        %4621 = vmatpush.msra.mxu0 0.0
        %4622 = vmatpush.msra.mxu0 0.0
        %4623 = vmatpush.msra.mxu0 0.0
        %4624 = vmatpush.msra.mxu0 %v4604
        %4625 = vmatmul.f32.gmra.mxu0 %v4607
        %v4626 = vpop.f32.mrf.mxu0
        %v4627 = vadd.f32 0.0, %v4626
        %4628 = vdwg.mxu0
        %4629 = vrot.lane.b32.xlu0 %v3631, 56
        %v4630 = vpop.permute.xlu0 %4629
        %v4633 = vsel %vm494, %v4471, 0
        %4635 = vmatpush.msra.mxu0 0.0
        %4636 = vmatpush.msra.mxu0 0.0
        %4637 = vmatpush.msra.mxu0 0.0
        %4638 = vmatpush.msra.mxu0 0.0
        %4639 = vmatpush.msra.mxu0 0.0
        %4640 = vmatpush.msra.mxu0 0.0
        %4641 = vmatpush.msra.mxu0 0.0
        %4642 = vmatpush.msra.mxu0 0.0
        %4643 = vmatpush.msra.mxu0 0.0
        %4644 = vmatpush.msra.mxu0 0.0
        %4645 = vmatpush.msra.mxu0 0.0
        %4646 = vmatpush.msra.mxu0 0.0
        %4647 = vmatpush.msra.mxu0 0.0
        %4648 = vmatpush.msra.mxu0 0.0
        %4649 = vmatpush.msra.mxu0 0.0
        %4650 = vmatpush.msra.mxu0 %v4630
        %4651 = vmatmul.f32.gmra.mxu0 %v4633
        %v4652 = vpop.f32.mrf.mxu0
        %v4653 = vadd.f32 0.0, %v4652
        %4654 = vdwg.mxu0
        %4655 = vrot.lane.b32.xlu0 %v3632, 56
        %v4656 = vpop.permute.xlu0 %4655
        %v4659 = vsel %vm494, %v4472, 0
        %4661 = vmatpush.msra.mxu0 0.0
        %4662 = vmatpush.msra.mxu0 0.0
        %4663 = vmatpush.msra.mxu0 0.0
        %4664 = vmatpush.msra.mxu0 0.0
        %4665 = vmatpush.msra.mxu0 0.0
        %4666 = vmatpush.msra.mxu0 0.0
        %4667 = vmatpush.msra.mxu0 0.0
        %4668 = vmatpush.msra.mxu0 0.0
        %4669 = vmatpush.msra.mxu0 0.0
        %4670 = vmatpush.msra.mxu0 0.0
        %4671 = vmatpush.msra.mxu0 0.0
        %4672 = vmatpush.msra.mxu0 0.0
        %4673 = vmatpush.msra.mxu0 0.0
        %4674 = vmatpush.msra.mxu0 0.0
        %4675 = vmatpush.msra.mxu0 0.0
        %4676 = vmatpush.msra.mxu0 %v4656
        %4677 = vmatmul.f32.gmra.mxu0 %v4659
        %v4678 = vpop.f32.mrf.mxu0
        %v4679 = vadd.f32 0.0, %v4678
        %4680 = vdwg.mxu0
        %4681 = vrot.lane.b32.xlu0 %v3599, 112
        %v4682 = vpop.permute.xlu0 %4681
        %4683 = vrot.lane.b32.xlu0 %v3612, 80
        %v4684 = vpop.permute.xlu0 %4683
        %v4685 = vsel %vm494, %v4682, 0
        %v4687 = vsel %vm494, %v4684, 0
        %4689 = vmatpush.xpose.msra.mxu0 0.0
        %4690 = vmatpush.xpose.msra.mxu0 0.0
        %4691 = vmatpush.xpose.msra.mxu0 0.0
        %4692 = vmatpush.xpose.msra.mxu0 0.0
        %4693 = vmatpush.xpose.msra.mxu0 0.0
        %4694 = vmatpush.xpose.msra.mxu0 0.0
        %4695 = vmatpush.xpose.msra.mxu0 0.0
        %4696 = vmatpush.xpose.msra.mxu0 0.0
        %4697 = vmatpush.xpose.msra.mxu0 0.0
        %4698 = vmatpush.xpose.msra.mxu0 0.0
        %4699 = vmatpush.xpose.msra.mxu0 0.0
        %4700 = vmatpush.xpose.msra.mxu0 0.0
        %4701 = vmatpush.xpose.msra.mxu0 0.0
        %4702 = vmatpush.xpose.msra.mxu0 0.0
        %4703 = vmatpush.xpose.msra.mxu0 0.0
        %4704 = vmatpush.xpose.msra.mxu0 %v4687
        %4705 = vmatmul.f32.gmra.mxu0 %v4685
        %v4706 = vpop.f32.mrf.mxu0
        %v4707 = vadd.f32 %v383, %v4706
        %4708 = vdwg.mxu0
        %4709 = vrot.lane.b32.xlu0 %v3600, 112
        %v4710 = vpop.permute.xlu0 %4709
        %4711 = vrot.lane.b32.xlu0 %v3613, 80
        %v4712 = vpop.permute.xlu0 %4711
        %v4713 = vsel %vm494, %v4710, 0
        %v4715 = vsel %vm494, %v4712, 0
        %4717 = vmatpush.xpose.msra.mxu0 0.0
        %4718 = vmatpush.xpose.msra.mxu0 0.0
        %4719 = vmatpush.xpose.msra.mxu0 0.0
        %4720 = vmatpush.xpose.msra.mxu0 0.0
        %4721 = vmatpush.xpose.msra.mxu0 0.0
        %4722 = vmatpush.xpose.msra.mxu0 0.0
        %4723 = vmatpush.xpose.msra.mxu0 0.0
        %4724 = vmatpush.xpose.msra.mxu0 0.0
        %4725 = vmatpush.xpose.msra.mxu0 0.0
        %4726 = vmatpush.xpose.msra.mxu0 0.0
        %4727 = vmatpush.xpose.msra.mxu0 0.0
        %4728 = vmatpush.xpose.msra.mxu0 0.0
        %4729 = vmatpush.xpose.msra.mxu0 0.0
        %4730 = vmatpush.xpose.msra.mxu0 0.0
        %4731 = vmatpush.xpose.msra.mxu0 0.0
        %4732 = vmatpush.xpose.msra.mxu0 %v4715
        %4733 = vmatmul.f32.gmra.mxu0 %v4713
        %v4734 = vpop.f32.mrf.mxu0
        %v4735 = vadd.f32 %v383, %v4734
        %4736 = vdwg.mxu0
        %4737 = vrot.lane.b32.xlu0 %v3601, 112
        %v4738 = vpop.permute.xlu0 %4737
        %4739 = vrot.lane.b32.xlu0 %v3614, 80
        %v4740 = vpop.permute.xlu0 %4739
        %v4741 = vsel %vm494, %v4738, 0
        %v4743 = vsel %vm494, %v4740, 0
        %4745 = vmatpush.xpose.msra.mxu0 0.0
        %4746 = vmatpush.xpose.msra.mxu0 0.0
        %4747 = vmatpush.xpose.msra.mxu0 0.0
        %4748 = vmatpush.xpose.msra.mxu0 0.0
        %4749 = vmatpush.xpose.msra.mxu0 0.0
        %4750 = vmatpush.xpose.msra.mxu0 0.0
        %4751 = vmatpush.xpose.msra.mxu0 0.0
        %4752 = vmatpush.xpose.msra.mxu0 0.0
        %4753 = vmatpush.xpose.msra.mxu0 0.0
        %4754 = vmatpush.xpose.msra.mxu0 0.0
        %4755 = vmatpush.xpose.msra.mxu0 0.0
        %4756 = vmatpush.xpose.msra.mxu0 0.0
        %4757 = vmatpush.xpose.msra.mxu0 0.0
        %4758 = vmatpush.xpose.msra.mxu0 0.0
        %4759 = vmatpush.xpose.msra.mxu0 0.0
        %4760 = vmatpush.xpose.msra.mxu0 %v4743
        %4761 = vmatmul.f32.gmra.mxu0 %v4741
        %v4762 = vpop.f32.mrf.mxu0
        %v4763 = vadd.f32 %v383, %v4762
        %4764 = vdwg.mxu0
        %4765 = vrot.lane.b32.xlu0 %v3602, 112
        %v4766 = vpop.permute.xlu0 %4765
        %4767 = vrot.lane.b32.xlu0 %v3615, 80
        %v4768 = vpop.permute.xlu0 %4767
        %v4769 = vsel %vm494, %v4766, 0
        %v4771 = vsel %vm494, %v4768, 0
        %4773 = vmatpush.xpose.msra.mxu0 0.0
        %4774 = vmatpush.xpose.msra.mxu0 0.0
        %4775 = vmatpush.xpose.msra.mxu0 0.0
        %4776 = vmatpush.xpose.msra.mxu0 0.0
        %4777 = vmatpush.xpose.msra.mxu0 0.0
        %4778 = vmatpush.xpose.msra.mxu0 0.0
        %4779 = vmatpush.xpose.msra.mxu0 0.0
        %4780 = vmatpush.xpose.msra.mxu0 0.0
        %4781 = vmatpush.xpose.msra.mxu0 0.0
        %4782 = vmatpush.xpose.msra.mxu0 0.0
        %4783 = vmatpush.xpose.msra.mxu0 0.0
        %4784 = vmatpush.xpose.msra.mxu0 0.0
        %4785 = vmatpush.xpose.msra.mxu0 0.0
        %4786 = vmatpush.xpose.msra.mxu0 0.0
        %4787 = vmatpush.xpose.msra.mxu0 0.0
        %4788 = vmatpush.xpose.msra.mxu0 %v4771
        %4789 = vmatmul.f32.gmra.mxu0 %v4769
        %v4790 = vpop.f32.mrf.mxu0
        %v4791 = vadd.f32 %v383, %v4790
        %4792 = vdwg.mxu0
        %4793 = vrot.lane.b32.xlu0 %v3603, 112
        %v4794 = vpop.permute.xlu0 %4793
        %4795 = vrot.lane.b32.xlu0 %v3616, 80
        %v4796 = vpop.permute.xlu0 %4795
        %v4797 = vsel %vm494, %v4794, 0
        %v4799 = vsel %vm494, %v4796, 0
        %4801 = vmatpush.xpose.msra.mxu0 0.0
        %4802 = vmatpush.xpose.msra.mxu0 0.0
        %4803 = vmatpush.xpose.msra.mxu0 0.0
        %4804 = vmatpush.xpose.msra.mxu0 0.0
        %4805 = vmatpush.xpose.msra.mxu0 0.0
        %4806 = vmatpush.xpose.msra.mxu0 0.0
        %4807 = vmatpush.xpose.msra.mxu0 0.0
        %4808 = vmatpush.xpose.msra.mxu0 0.0
        %4809 = vmatpush.xpose.msra.mxu0 0.0
        %4810 = vmatpush.xpose.msra.mxu0 0.0
        %4811 = vmatpush.xpose.msra.mxu0 0.0
        %4812 = vmatpush.xpose.msra.mxu0 0.0
        %4813 = vmatpush.xpose.msra.mxu0 0.0
        %4814 = vmatpush.xpose.msra.mxu0 0.0
        %4815 = vmatpush.xpose.msra.mxu0 0.0
        %4816 = vmatpush.xpose.msra.mxu0 %v4799
        %4817 = vmatmul.f32.gmra.mxu0 %v4797
        %v4818 = vpop.f32.mrf.mxu0
        %v4819 = vadd.f32 %v383, %v4818
        %4820 = vdwg.mxu0
        %4821 = vrot.lane.b32.xlu0 %v3604, 112
        %v4822 = vpop.permute.xlu0 %4821
        %4823 = vrot.lane.b32.xlu0 %v3617, 80
        %v4824 = vpop.permute.xlu0 %4823
        %v4825 = vsel %vm494, %v4822, 0
        %v4827 = vsel %vm494, %v4824, 0
        %4829 = vmatpush.xpose.msra.mxu0 0.0
        %4830 = vmatpush.xpose.msra.mxu0 0.0
        %4831 = vmatpush.xpose.msra.mxu0 0.0
        %4832 = vmatpush.xpose.msra.mxu0 0.0
        %4833 = vmatpush.xpose.msra.mxu0 0.0
        %4834 = vmatpush.xpose.msra.mxu0 0.0
        %4835 = vmatpush.xpose.msra.mxu0 0.0
        %4836 = vmatpush.xpose.msra.mxu0 0.0
        %4837 = vmatpush.xpose.msra.mxu0 0.0
        %4838 = vmatpush.xpose.msra.mxu0 0.0
        %4839 = vmatpush.xpose.msra.mxu0 0.0
        %4840 = vmatpush.xpose.msra.mxu0 0.0
        %4841 = vmatpush.xpose.msra.mxu0 0.0
        %4842 = vmatpush.xpose.msra.mxu0 0.0
        %4843 = vmatpush.xpose.msra.mxu0 0.0
        %4844 = vmatpush.xpose.msra.mxu0 %v4827
        %4845 = vmatmul.f32.gmra.mxu0 %v4825
        %v4846 = vpop.f32.mrf.mxu0
        %v4847 = vadd.f32 %v383, %v4846
        %4848 = vdwg.mxu0
        %4849 = vrot.lane.b32.xlu0 %v3605, 112
        %v4850 = vpop.permute.xlu0 %4849
        %4851 = vrot.lane.b32.xlu0 %v3618, 80
        %v4852 = vpop.permute.xlu0 %4851
        %v4853 = vsel %vm494, %v4850, 0
        %v4855 = vsel %vm494, %v4852, 0
        %4857 = vmatpush.xpose.msra.mxu0 0.0
        %4858 = vmatpush.xpose.msra.mxu0 0.0
        %4859 = vmatpush.xpose.msra.mxu0 0.0
        %4860 = vmatpush.xpose.msra.mxu0 0.0
        %4861 = vmatpush.xpose.msra.mxu0 0.0
        %4862 = vmatpush.xpose.msra.mxu0 0.0
        %4863 = vmatpush.xpose.msra.mxu0 0.0
        %4864 = vmatpush.xpose.msra.mxu0 0.0
        %4865 = vmatpush.xpose.msra.mxu0 0.0
        %4866 = vmatpush.xpose.msra.mxu0 0.0
        %4867 = vmatpush.xpose.msra.mxu0 0.0
        %4868 = vmatpush.xpose.msra.mxu0 0.0
        %4869 = vmatpush.xpose.msra.mxu0 0.0
        %4870 = vmatpush.xpose.msra.mxu0 0.0
        %4871 = vmatpush.xpose.msra.mxu0 0.0
        %4872 = vmatpush.xpose.msra.mxu0 %v4855
        %4873 = vmatmul.f32.gmra.mxu0 %v4853
        %v4874 = vpop.f32.mrf.mxu0
        %v4875 = vadd.f32 %v383, %v4874
        %4876 = vdwg.mxu0
        %4877 = vrot.lane.b32.xlu0 %v3606, 112
        %v4878 = vpop.permute.xlu0 %4877
        %4879 = vrot.lane.b32.xlu0 %v3619, 80
        %v4880 = vpop.permute.xlu0 %4879
        %v4881 = vsel %vm494, %v4878, 0
        %v4883 = vsel %vm494, %v4880, 0
        %4885 = vmatpush.xpose.msra.mxu0 0.0
        %4886 = vmatpush.xpose.msra.mxu0 0.0
        %4887 = vmatpush.xpose.msra.mxu0 0.0
        %4888 = vmatpush.xpose.msra.mxu0 0.0
        %4889 = vmatpush.xpose.msra.mxu0 0.0
        %4890 = vmatpush.xpose.msra.mxu0 0.0
        %4891 = vmatpush.xpose.msra.mxu0 0.0
        %4892 = vmatpush.xpose.msra.mxu0 0.0
        %4893 = vmatpush.xpose.msra.mxu0 0.0
        %4894 = vmatpush.xpose.msra.mxu0 0.0
        %4895 = vmatpush.xpose.msra.mxu0 0.0
        %4896 = vmatpush.xpose.msra.mxu0 0.0
        %4897 = vmatpush.xpose.msra.mxu0 0.0
        %4898 = vmatpush.xpose.msra.mxu0 0.0
        %4899 = vmatpush.xpose.msra.mxu0 0.0
        %4900 = vmatpush.xpose.msra.mxu0 %v4883
        %4901 = vmatmul.f32.gmra.mxu0 %v4881
        %v4902 = vpop.f32.mrf.mxu0
        %v4903 = vadd.f32 %v383, %v4902
        %4904 = vdwg.mxu0
        %v4905 = vsel %vm494, %v4707, -inf
        %4906 = vmax.xlane.f32.xlu0 %v4905
        %v4907 = vpop.xlane.xlu0 %4906
        %v4908 = vsel %vm494, %v4735, -inf
        %4909 = vmax.xlane.f32.xlu0 %v4908
        %v4910 = vpop.xlane.xlu0 %4909
        %v4911 = vsel %vm494, %v4763, -inf
        %4912 = vmax.xlane.f32.xlu0 %v4911
        %v4913 = vpop.xlane.xlu0 %4912
        %v4914 = vsel %vm494, %v4791, -inf
        %4915 = vmax.xlane.f32.xlu0 %v4914
        %v4916 = vpop.xlane.xlu0 %4915
        %v4917 = vsel %vm494, %v4819, -inf
        %4918 = vmax.xlane.f32.xlu0 %v4917
        %v4919 = vpop.xlane.xlu0 %4918
        %v4920 = vsel %vm494, %v4847, -inf
        %4921 = vmax.xlane.f32.xlu0 %v4920
        %v4922 = vpop.xlane.xlu0 %4921
        %v4923 = vsel %vm494, %v4875, -inf
        %4924 = vmax.xlane.f32.xlu0 %v4923
        %v4925 = vpop.xlane.xlu0 %4924
        %v4926 = vsel %vm494, %v4903, -inf
        %4927 = vmax.xlane.f32.xlu0 %v4926
        %v4928 = vpop.xlane.xlu0 %4927
        %v4929 = vsub.f32 %v4707, %v4907
        %v4930 = vsub.f32 %v4735, %v4910
        %v4931 = vsub.f32 %v4763, %v4913
        %v4932 = vsub.f32 %v4791, %v4916
        %v4933 = vsub.f32 %v4819, %v4919
        %v4934 = vsub.f32 %v4847, %v4922
        %v4935 = vsub.f32 %v4875, %v4925
        %v4936 = vsub.f32 %v4903, %v4928
        %v4937 = vmul.f32 %v4929, 1.442695
        %v4938 = vpow.pop %v4937
        %v4939 = vmul.f32 %v4930, 1.442695
        %v4940 = vpow.pop %v4939
        %v4941 = vmul.f32 %v4931, 1.442695
        %v4942 = vpow.pop %v4941
        %v4943 = vmul.f32 %v4932, 1.442695
        %v4944 = vpow.pop %v4943
        %v4945 = vmul.f32 %v4933, 1.442695
        %v4946 = vpow.pop %v4945
        %v4947 = vmul.f32 %v4934, 1.442695
        %v4948 = vpow.pop %v4947
        %v4949 = vmul.f32 %v4935, 1.442695
        %v4950 = vpow.pop %v4949
        %v4951 = vmul.f32 %v4936, 1.442695
        %v4952 = vpow.pop %v4951
        %v4953 = vsel %vm494, %v4938, 0.0
        %4954 = vadd.xlane.f32.xlu0 %v4953
        %v4955 = vpop.xlane.xlu0 %4954
        %v4956 = vsel %vm494, %v4940, 0.0
        %4957 = vadd.xlane.f32.xlu0 %v4956
        %v4958 = vpop.xlane.xlu0 %4957
        %v4959 = vsel %vm494, %v4942, 0.0
        %4960 = vadd.xlane.f32.xlu0 %v4959
        %v4961 = vpop.xlane.xlu0 %4960
        %v4962 = vsel %vm494, %v4944, 0.0
        %4963 = vadd.xlane.f32.xlu0 %v4962
        %v4964 = vpop.xlane.xlu0 %4963
        %v4965 = vsel %vm494, %v4946, 0.0
        %4966 = vadd.xlane.f32.xlu0 %v4965
        %v4967 = vpop.xlane.xlu0 %4966
        %v4968 = vsel %vm494, %v4948, 0.0
        %4969 = vadd.xlane.f32.xlu0 %v4968
        %v4970 = vpop.xlane.xlu0 %4969
        %v4971 = vsel %vm494, %v4950, 0.0
        %4972 = vadd.xlane.f32.xlu0 %v4971
        %v4973 = vpop.xlane.xlu0 %4972
        %v4974 = vsel %vm494, %v4952, 0.0
        %4975 = vadd.xlane.f32.xlu0 %v4974
        %v4976 = vpop.xlane.xlu0 %4975
        %v4977 = vrcp.pop %v4955
        %v4978 = vrcp.pop %v4958
        %v4979 = vrcp.pop %v4961
        %v4980 = vrcp.pop %v4964
        %v4981 = vrcp.pop %v4967
        %v4982 = vrcp.pop %v4970
        %v4983 = vrcp.pop %v4973
        %v4984 = vrcp.pop %v4976
        %v4985 = vmul.f32 %v4938, %v4977
        %v4986 = vmul.f32 %v4940, %v4978
        %v4987 = vmul.f32 %v4942, %v4979
        %v4988 = vmul.f32 %v4944, %v4980
        %v4989 = vmul.f32 %v4946, %v4981
        %v4990 = vmul.f32 %v4948, %v4982
        %v4991 = vmul.f32 %v4950, %v4983
        %v4992 = vmul.f32 %v4952, %v4984
        %4993 = vrot.lane.b32.xlu0 %v3625, 48
        %v4994 = vpop.permute.xlu0 %4993
        %v4997 = vsel %vm494, %v4985, 0
        %4999 = vmatpush.msra.mxu0 0.0
        %5000 = vmatpush.msra.mxu0 0.0
        %5001 = vmatpush.msra.mxu0 0.0
        %5002 = vmatpush.msra.mxu0 0.0
        %5003 = vmatpush.msra.mxu0 0.0
        %5004 = vmatpush.msra.mxu0 0.0
        %5005 = vmatpush.msra.mxu0 0.0
        %5006 = vmatpush.msra.mxu0 0.0
        %5007 = vmatpush.msra.mxu0 0.0
        %5008 = vmatpush.msra.mxu0 0.0
        %5009 = vmatpush.msra.mxu0 0.0
        %5010 = vmatpush.msra.mxu0 0.0
        %5011 = vmatpush.msra.mxu0 0.0
        %5012 = vmatpush.msra.mxu0 0.0
        %5013 = vmatpush.msra.mxu0 0.0
        %5014 = vmatpush.msra.mxu0 %v4994
        %5015 = vmatmul.f32.gmra.mxu0 %v4997
        %v5016 = vpop.f32.mrf.mxu0
        %v5017 = vadd.f32 0.0, %v5016
        %5018 = vdwg.mxu0
        %5019 = vrot.lane.b32.xlu0 %v3626, 48
        %v5020 = vpop.permute.xlu0 %5019
        %v5023 = vsel %vm494, %v4986, 0
        %5025 = vmatpush.msra.mxu0 0.0
        %5026 = vmatpush.msra.mxu0 0.0
        %5027 = vmatpush.msra.mxu0 0.0
        %5028 = vmatpush.msra.mxu0 0.0
        %5029 = vmatpush.msra.mxu0 0.0
        %5030 = vmatpush.msra.mxu0 0.0
        %5031 = vmatpush.msra.mxu0 0.0
        %5032 = vmatpush.msra.mxu0 0.0
        %5033 = vmatpush.msra.mxu0 0.0
        %5034 = vmatpush.msra.mxu0 0.0
        %5035 = vmatpush.msra.mxu0 0.0
        %5036 = vmatpush.msra.mxu0 0.0
        %5037 = vmatpush.msra.mxu0 0.0
        %5038 = vmatpush.msra.mxu0 0.0
        %5039 = vmatpush.msra.mxu0 0.0
        %5040 = vmatpush.msra.mxu0 %v5020
        %5041 = vmatmul.f32.gmra.mxu0 %v5023
        %v5042 = vpop.f32.mrf.mxu0
        %v5043 = vadd.f32 0.0, %v5042
        %5044 = vdwg.mxu0
        %5045 = vrot.lane.b32.xlu0 %v3627, 48
        %v5046 = vpop.permute.xlu0 %5045
        %v5049 = vsel %vm494, %v4987, 0
        %5051 = vmatpush.msra.mxu0 0.0
        %5052 = vmatpush.msra.mxu0 0.0
        %5053 = vmatpush.msra.mxu0 0.0
        %5054 = vmatpush.msra.mxu0 0.0
        %5055 = vmatpush.msra.mxu0 0.0
        %5056 = vmatpush.msra.mxu0 0.0
        %5057 = vmatpush.msra.mxu0 0.0
        %5058 = vmatpush.msra.mxu0 0.0
        %5059 = vmatpush.msra.mxu0 0.0
        %5060 = vmatpush.msra.mxu0 0.0
        %5061 = vmatpush.msra.mxu0 0.0
        %5062 = vmatpush.msra.mxu0 0.0
        %5063 = vmatpush.msra.mxu0 0.0
        %5064 = vmatpush.msra.mxu0 0.0
        %5065 = vmatpush.msra.mxu0 0.0
        %5066 = vmatpush.msra.mxu0 %v5046
        %5067 = vmatmul.f32.gmra.mxu0 %v5049
        %v5068 = vpop.f32.mrf.mxu0
        %v5069 = vadd.f32 0.0, %v5068
        %5070 = vdwg.mxu0
        %5071 = vrot.lane.b32.xlu0 %v3628, 48
        %v5072 = vpop.permute.xlu0 %5071
        %v5075 = vsel %vm494, %v4988, 0
        %5077 = vmatpush.msra.mxu0 0.0
        %5078 = vmatpush.msra.mxu0 0.0
        %5079 = vmatpush.msra.mxu0 0.0
        %5080 = vmatpush.msra.mxu0 0.0
        %5081 = vmatpush.msra.mxu0 0.0
        %5082 = vmatpush.msra.mxu0 0.0
        %5083 = vmatpush.msra.mxu0 0.0
        %5084 = vmatpush.msra.mxu0 0.0
        %5085 = vmatpush.msra.mxu0 0.0
        %5086 = vmatpush.msra.mxu0 0.0
        %5087 = vmatpush.msra.mxu0 0.0
        %5088 = vmatpush.msra.mxu0 0.0
        %5089 = vmatpush.msra.mxu0 0.0
        %5090 = vmatpush.msra.mxu0 0.0
        %5091 = vmatpush.msra.mxu0 0.0
        %5092 = vmatpush.msra.mxu0 %v5072
        %5093 = vmatmul.f32.gmra.mxu0 %v5075
        %v5094 = vpop.f32.mrf.mxu0
        %v5095 = vadd.f32 0.0, %v5094
        %5096 = vdwg.mxu0
        %5097 = vrot.lane.b32.xlu0 %v3629, 48
        %v5098 = vpop.permute.xlu0 %5097
        %v5101 = vsel %vm494, %v4989, 0
        %5103 = vmatpush.msra.mxu0 0.0
        %5104 = vmatpush.msra.mxu0 0.0
        %5105 = vmatpush.msra.mxu0 0.0
        %5106 = vmatpush.msra.mxu0 0.0
        %5107 = vmatpush.msra.mxu0 0.0
        %5108 = vmatpush.msra.mxu0 0.0
        %5109 = vmatpush.msra.mxu0 0.0
        %5110 = vmatpush.msra.mxu0 0.0
        %5111 = vmatpush.msra.mxu0 0.0
        %5112 = vmatpush.msra.mxu0 0.0
        %5113 = vmatpush.msra.mxu0 0.0
        %5114 = vmatpush.msra.mxu0 0.0
        %5115 = vmatpush.msra.mxu0 0.0
        %5116 = vmatpush.msra.mxu0 0.0
        %5117 = vmatpush.msra.mxu0 0.0
        %5118 = vmatpush.msra.mxu0 %v5098
        %5119 = vmatmul.f32.gmra.mxu0 %v5101
        %v5120 = vpop.f32.mrf.mxu0
        %v5121 = vadd.f32 0.0, %v5120
        %5122 = vdwg.mxu0
        %5123 = vrot.lane.b32.xlu0 %v3630, 48
        %v5124 = vpop.permute.xlu0 %5123
        %v5127 = vsel %vm494, %v4990, 0
        %5129 = vmatpush.msra.mxu0 0.0
        %5130 = vmatpush.msra.mxu0 0.0
        %5131 = vmatpush.msra.mxu0 0.0
        %5132 = vmatpush.msra.mxu0 0.0
        %5133 = vmatpush.msra.mxu0 0.0
        %5134 = vmatpush.msra.mxu0 0.0
        %5135 = vmatpush.msra.mxu0 0.0
        %5136 = vmatpush.msra.mxu0 0.0
        %5137 = vmatpush.msra.mxu0 0.0
        %5138 = vmatpush.msra.mxu0 0.0
        %5139 = vmatpush.msra.mxu0 0.0
        %5140 = vmatpush.msra.mxu0 0.0
        %5141 = vmatpush.msra.mxu0 0.0
        %5142 = vmatpush.msra.mxu0 0.0
        %5143 = vmatpush.msra.mxu0 0.0
        %5144 = vmatpush.msra.mxu0 %v5124
        %5145 = vmatmul.f32.gmra.mxu0 %v5127
        %v5146 = vpop.f32.mrf.mxu0
        %v5147 = vadd.f32 0.0, %v5146
        %5148 = vdwg.mxu0
        %5149 = vrot.lane.b32.xlu0 %v3631, 48
        %v5150 = vpop.permute.xlu0 %5149
        %v5153 = vsel %vm494, %v4991, 0
        %5155 = vmatpush.msra.mxu0 0.0
        %5156 = vmatpush.msra.mxu0 0.0
        %5157 = vmatpush.msra.mxu0 0.0
        %5158 = vmatpush.msra.mxu0 0.0
        %5159 = vmatpush.msra.mxu0 0.0
        %5160 = vmatpush.msra.mxu0 0.0
        %5161 = vmatpush.msra.mxu0 0.0
        %5162 = vmatpush.msra.mxu0 0.0
        %5163 = vmatpush.msra.mxu0 0.0
        %5164 = vmatpush.msra.mxu0 0.0
        %5165 = vmatpush.msra.mxu0 0.0
        %5166 = vmatpush.msra.mxu0 0.0
        %5167 = vmatpush.msra.mxu0 0.0
        %5168 = vmatpush.msra.mxu0 0.0
        %5169 = vmatpush.msra.mxu0 0.0
        %5170 = vmatpush.msra.mxu0 %v5150
        %5171 = vmatmul.f32.gmra.mxu0 %v5153
        %v5172 = vpop.f32.mrf.mxu0
        %v5173 = vadd.f32 0.0, %v5172
        %5174 = vdwg.mxu0
        %5175 = vrot.lane.b32.xlu0 %v3632, 48
        %v5176 = vpop.permute.xlu0 %5175
        %v5179 = vsel %vm494, %v4992, 0
        %5181 = vmatpush.msra.mxu0 0.0
        %5182 = vmatpush.msra.mxu0 0.0
        %5183 = vmatpush.msra.mxu0 0.0
        %5184 = vmatpush.msra.mxu0 0.0
        %5185 = vmatpush.msra.mxu0 0.0
        %5186 = vmatpush.msra.mxu0 0.0
        %5187 = vmatpush.msra.mxu0 0.0
        %5188 = vmatpush.msra.mxu0 0.0
        %5189 = vmatpush.msra.mxu0 0.0
        %5190 = vmatpush.msra.mxu0 0.0
        %5191 = vmatpush.msra.mxu0 0.0
        %5192 = vmatpush.msra.mxu0 0.0
        %5193 = vmatpush.msra.mxu0 0.0
        %5194 = vmatpush.msra.mxu0 0.0
        %5195 = vmatpush.msra.mxu0 0.0
        %5196 = vmatpush.msra.mxu0 %v5176
        %5197 = vmatmul.f32.gmra.mxu0 %v5179
        %v5198 = vpop.f32.mrf.mxu0
        %v5199 = vadd.f32 0.0, %v5198
        %5200 = vdwg.mxu0
        %5201 = vrot.lane.b32.xlu0 %v3599, 104
        %v5202 = vpop.permute.xlu0 %5201
        %5203 = vrot.lane.b32.xlu0 %v3612, 72
        %v5204 = vpop.permute.xlu0 %5203
        %v5205 = vsel %vm494, %v5202, 0
        %v5207 = vsel %vm494, %v5204, 0
        %5209 = vmatpush.xpose.msra.mxu0 0.0
        %5210 = vmatpush.xpose.msra.mxu0 0.0
        %5211 = vmatpush.xpose.msra.mxu0 0.0
        %5212 = vmatpush.xpose.msra.mxu0 0.0
        %5213 = vmatpush.xpose.msra.mxu0 0.0
        %5214 = vmatpush.xpose.msra.mxu0 0.0
        %5215 = vmatpush.xpose.msra.mxu0 0.0
        %5216 = vmatpush.xpose.msra.mxu0 0.0
        %5217 = vmatpush.xpose.msra.mxu0 0.0
        %5218 = vmatpush.xpose.msra.mxu0 0.0
        %5219 = vmatpush.xpose.msra.mxu0 0.0
        %5220 = vmatpush.xpose.msra.mxu0 0.0
        %5221 = vmatpush.xpose.msra.mxu0 0.0
        %5222 = vmatpush.xpose.msra.mxu0 0.0
        %5223 = vmatpush.xpose.msra.mxu0 0.0
        %5224 = vmatpush.xpose.msra.mxu0 %v5207
        %5225 = vmatmul.f32.gmra.mxu0 %v5205
        %v5226 = vpop.f32.mrf.mxu0
        %v5227 = vadd.f32 %v383, %v5226
        %5228 = vdwg.mxu0
        %5229 = vrot.lane.b32.xlu0 %v3600, 104
        %v5230 = vpop.permute.xlu0 %5229
        %5231 = vrot.lane.b32.xlu0 %v3613, 72
        %v5232 = vpop.permute.xlu0 %5231
        %v5233 = vsel %vm494, %v5230, 0
        %v5235 = vsel %vm494, %v5232, 0
        %5237 = vmatpush.xpose.msra.mxu0 0.0
        %5238 = vmatpush.xpose.msra.mxu0 0.0
        %5239 = vmatpush.xpose.msra.mxu0 0.0
        %5240 = vmatpush.xpose.msra.mxu0 0.0
        %5241 = vmatpush.xpose.msra.mxu0 0.0
        %5242 = vmatpush.xpose.msra.mxu0 0.0
        %5243 = vmatpush.xpose.msra.mxu0 0.0
        %5244 = vmatpush.xpose.msra.mxu0 0.0
        %5245 = vmatpush.xpose.msra.mxu0 0.0
        %5246 = vmatpush.xpose.msra.mxu0 0.0
        %5247 = vmatpush.xpose.msra.mxu0 0.0
        %5248 = vmatpush.xpose.msra.mxu0 0.0
        %5249 = vmatpush.xpose.msra.mxu0 0.0
        %5250 = vmatpush.xpose.msra.mxu0 0.0
        %5251 = vmatpush.xpose.msra.mxu0 0.0
        %5252 = vmatpush.xpose.msra.mxu0 %v5235
        %5253 = vmatmul.f32.gmra.mxu0 %v5233
        %v5254 = vpop.f32.mrf.mxu0
        %v5255 = vadd.f32 %v383, %v5254
        %5256 = vdwg.mxu0
        %5257 = vrot.lane.b32.xlu0 %v3601, 104
        %v5258 = vpop.permute.xlu0 %5257
        %5259 = vrot.lane.b32.xlu0 %v3614, 72
        %v5260 = vpop.permute.xlu0 %5259
        %v5261 = vsel %vm494, %v5258, 0
        %v5263 = vsel %vm494, %v5260, 0
        %5265 = vmatpush.xpose.msra.mxu0 0.0
        %5266 = vmatpush.xpose.msra.mxu0 0.0
        %5267 = vmatpush.xpose.msra.mxu0 0.0
        %5268 = vmatpush.xpose.msra.mxu0 0.0
        %5269 = vmatpush.xpose.msra.mxu0 0.0
        %5270 = vmatpush.xpose.msra.mxu0 0.0
        %5271 = vmatpush.xpose.msra.mxu0 0.0
        %5272 = vmatpush.xpose.msra.mxu0 0.0
        %5273 = vmatpush.xpose.msra.mxu0 0.0
        %5274 = vmatpush.xpose.msra.mxu0 0.0
        %5275 = vmatpush.xpose.msra.mxu0 0.0
        %5276 = vmatpush.xpose.msra.mxu0 0.0
        %5277 = vmatpush.xpose.msra.mxu0 0.0
        %5278 = vmatpush.xpose.msra.mxu0 0.0
        %5279 = vmatpush.xpose.msra.mxu0 0.0
        %5280 = vmatpush.xpose.msra.mxu0 %v5263
        %5281 = vmatmul.f32.gmra.mxu0 %v5261
        %v5282 = vpop.f32.mrf.mxu0
        %v5283 = vadd.f32 %v383, %v5282
        %5284 = vdwg.mxu0
        %5285 = vrot.lane.b32.xlu0 %v3602, 104
        %v5286 = vpop.permute.xlu0 %5285
        %5287 = vrot.lane.b32.xlu0 %v3615, 72
        %v5288 = vpop.permute.xlu0 %5287
        %v5289 = vsel %vm494, %v5286, 0
        %v5291 = vsel %vm494, %v5288, 0
        %5293 = vmatpush.xpose.msra.mxu0 0.0
        %5294 = vmatpush.xpose.msra.mxu0 0.0
        %5295 = vmatpush.xpose.msra.mxu0 0.0
        %5296 = vmatpush.xpose.msra.mxu0 0.0
        %5297 = vmatpush.xpose.msra.mxu0 0.0
        %5298 = vmatpush.xpose.msra.mxu0 0.0
        %5299 = vmatpush.xpose.msra.mxu0 0.0
        %5300 = vmatpush.xpose.msra.mxu0 0.0
        %5301 = vmatpush.xpose.msra.mxu0 0.0
        %5302 = vmatpush.xpose.msra.mxu0 0.0
        %5303 = vmatpush.xpose.msra.mxu0 0.0
        %5304 = vmatpush.xpose.msra.mxu0 0.0
        %5305 = vmatpush.xpose.msra.mxu0 0.0
        %5306 = vmatpush.xpose.msra.mxu0 0.0
        %5307 = vmatpush.xpose.msra.mxu0 0.0
        %5308 = vmatpush.xpose.msra.mxu0 %v5291
        %5309 = vmatmul.f32.gmra.mxu0 %v5289
        %v5310 = vpop.f32.mrf.mxu0
        %v5311 = vadd.f32 %v383, %v5310
        %5312 = vdwg.mxu0
        %5313 = vrot.lane.b32.xlu0 %v3603, 104
        %v5314 = vpop.permute.xlu0 %5313
        %5315 = vrot.lane.b32.xlu0 %v3616, 72
        %v5316 = vpop.permute.xlu0 %5315
        %v5317 = vsel %vm494, %v5314, 0
        %v5319 = vsel %vm494, %v5316, 0
        %5321 = vmatpush.xpose.msra.mxu0 0.0
        %5322 = vmatpush.xpose.msra.mxu0 0.0
        %5323 = vmatpush.xpose.msra.mxu0 0.0
        %5324 = vmatpush.xpose.msra.mxu0 0.0
        %5325 = vmatpush.xpose.msra.mxu0 0.0
        %5326 = vmatpush.xpose.msra.mxu0 0.0
        %5327 = vmatpush.xpose.msra.mxu0 0.0
        %5328 = vmatpush.xpose.msra.mxu0 0.0
        %5329 = vmatpush.xpose.msra.mxu0 0.0
        %5330 = vmatpush.xpose.msra.mxu0 0.0
        %5331 = vmatpush.xpose.msra.mxu0 0.0
        %5332 = vmatpush.xpose.msra.mxu0 0.0
        %5333 = vmatpush.xpose.msra.mxu0 0.0
        %5334 = vmatpush.xpose.msra.mxu0 0.0
        %5335 = vmatpush.xpose.msra.mxu0 0.0
        %5336 = vmatpush.xpose.msra.mxu0 %v5319
        %5337 = vmatmul.f32.gmra.mxu0 %v5317
        %v5338 = vpop.f32.mrf.mxu0
        %v5339 = vadd.f32 %v383, %v5338
        %5340 = vdwg.mxu0
        %5341 = vrot.lane.b32.xlu0 %v3604, 104
        %v5342 = vpop.permute.xlu0 %5341
        %5343 = vrot.lane.b32.xlu0 %v3617, 72
        %v5344 = vpop.permute.xlu0 %5343
        %v5345 = vsel %vm494, %v5342, 0
        %v5347 = vsel %vm494, %v5344, 0
        %5349 = vmatpush.xpose.msra.mxu0 0.0
        %5350 = vmatpush.xpose.msra.mxu0 0.0
        %5351 = vmatpush.xpose.msra.mxu0 0.0
        %5352 = vmatpush.xpose.msra.mxu0 0.0
        %5353 = vmatpush.xpose.msra.mxu0 0.0
        %5354 = vmatpush.xpose.msra.mxu0 0.0
        %5355 = vmatpush.xpose.msra.mxu0 0.0
        %5356 = vmatpush.xpose.msra.mxu0 0.0
        %5357 = vmatpush.xpose.msra.mxu0 0.0
        %5358 = vmatpush.xpose.msra.mxu0 0.0
        %5359 = vmatpush.xpose.msra.mxu0 0.0
        %5360 = vmatpush.xpose.msra.mxu0 0.0
        %5361 = vmatpush.xpose.msra.mxu0 0.0
        %5362 = vmatpush.xpose.msra.mxu0 0.0
        %5363 = vmatpush.xpose.msra.mxu0 0.0
        %5364 = vmatpush.xpose.msra.mxu0 %v5347
        %5365 = vmatmul.f32.gmra.mxu0 %v5345
        %v5366 = vpop.f32.mrf.mxu0
        %v5367 = vadd.f32 %v383, %v5366
        %5368 = vdwg.mxu0
        %5369 = vrot.lane.b32.xlu0 %v3605, 104
        %v5370 = vpop.permute.xlu0 %5369
        %5371 = vrot.lane.b32.xlu0 %v3618, 72
        %v5372 = vpop.permute.xlu0 %5371
        %v5373 = vsel %vm494, %v5370, 0
        %v5375 = vsel %vm494, %v5372, 0
        %5377 = vmatpush.xpose.msra.mxu0 0.0
        %5378 = vmatpush.xpose.msra.mxu0 0.0
        %5379 = vmatpush.xpose.msra.mxu0 0.0
        %5380 = vmatpush.xpose.msra.mxu0 0.0
        %5381 = vmatpush.xpose.msra.mxu0 0.0
        %5382 = vmatpush.xpose.msra.mxu0 0.0
        %5383 = vmatpush.xpose.msra.mxu0 0.0
        %5384 = vmatpush.xpose.msra.mxu0 0.0
        %5385 = vmatpush.xpose.msra.mxu0 0.0
        %5386 = vmatpush.xpose.msra.mxu0 0.0
        %5387 = vmatpush.xpose.msra.mxu0 0.0
        %5388 = vmatpush.xpose.msra.mxu0 0.0
        %5389 = vmatpush.xpose.msra.mxu0 0.0
        %5390 = vmatpush.xpose.msra.mxu0 0.0
        %5391 = vmatpush.xpose.msra.mxu0 0.0
        %5392 = vmatpush.xpose.msra.mxu0 %v5375
        %5393 = vmatmul.f32.gmra.mxu0 %v5373
        %v5394 = vpop.f32.mrf.mxu0
        %v5395 = vadd.f32 %v383, %v5394
        %5396 = vdwg.mxu0
        %5397 = vrot.lane.b32.xlu0 %v3606, 104
        %v5398 = vpop.permute.xlu0 %5397
        %5399 = vrot.lane.b32.xlu0 %v3619, 72
        %v5400 = vpop.permute.xlu0 %5399
        %v5401 = vsel %vm494, %v5398, 0
        %v5403 = vsel %vm494, %v5400, 0
        %5405 = vmatpush.xpose.msra.mxu0 0.0
        %5406 = vmatpush.xpose.msra.mxu0 0.0
        %5407 = vmatpush.xpose.msra.mxu0 0.0
        %5408 = vmatpush.xpose.msra.mxu0 0.0
        %5409 = vmatpush.xpose.msra.mxu0 0.0
        %5410 = vmatpush.xpose.msra.mxu0 0.0
        %5411 = vmatpush.xpose.msra.mxu0 0.0
        %5412 = vmatpush.xpose.msra.mxu0 0.0
        %5413 = vmatpush.xpose.msra.mxu0 0.0
        %5414 = vmatpush.xpose.msra.mxu0 0.0
        %5415 = vmatpush.xpose.msra.mxu0 0.0
        %5416 = vmatpush.xpose.msra.mxu0 0.0
        %5417 = vmatpush.xpose.msra.mxu0 0.0
        %5418 = vmatpush.xpose.msra.mxu0 0.0
        %5419 = vmatpush.xpose.msra.mxu0 0.0
        %5420 = vmatpush.xpose.msra.mxu0 %v5403
        %5421 = vmatmul.f32.gmra.mxu0 %v5401
        %v5422 = vpop.f32.mrf.mxu0
        %v5423 = vadd.f32 %v383, %v5422
        %5424 = vdwg.mxu0
        %v5425 = vsel %vm494, %v5227, -inf
        %5426 = vmax.xlane.f32.xlu0 %v5425
        %v5427 = vpop.xlane.xlu0 %5426
        %v5428 = vsel %vm494, %v5255, -inf
        %5429 = vmax.xlane.f32.xlu0 %v5428
        %v5430 = vpop.xlane.xlu0 %5429
        %v5431 = vsel %vm494, %v5283, -inf
        %5432 = vmax.xlane.f32.xlu0 %v5431
        %v5433 = vpop.xlane.xlu0 %5432
        %v5434 = vsel %vm494, %v5311, -inf
        %5435 = vmax.xlane.f32.xlu0 %v5434
        %v5436 = vpop.xlane.xlu0 %5435
        %v5437 = vsel %vm494, %v5339, -inf
        %5438 = vmax.xlane.f32.xlu0 %v5437
        %v5439 = vpop.xlane.xlu0 %5438
        %v5440 = vsel %vm494, %v5367, -inf
        %5441 = vmax.xlane.f32.xlu0 %v5440
        %v5442 = vpop.xlane.xlu0 %5441
        %v5443 = vsel %vm494, %v5395, -inf
        %5444 = vmax.xlane.f32.xlu0 %v5443
        %v5445 = vpop.xlane.xlu0 %5444
        %v5446 = vsel %vm494, %v5423, -inf
        %5447 = vmax.xlane.f32.xlu0 %v5446
        %v5448 = vpop.xlane.xlu0 %5447
        %v5449 = vsub.f32 %v5227, %v5427
        %v5450 = vsub.f32 %v5255, %v5430
        %v5451 = vsub.f32 %v5283, %v5433
        %v5452 = vsub.f32 %v5311, %v5436
        %v5453 = vsub.f32 %v5339, %v5439
        %v5454 = vsub.f32 %v5367, %v5442
        %v5455 = vsub.f32 %v5395, %v5445
        %v5456 = vsub.f32 %v5423, %v5448
        %v5457 = vmul.f32 %v5449, 1.442695
        %v5458 = vpow.pop %v5457
        %v5459 = vmul.f32 %v5450, 1.442695
        %v5460 = vpow.pop %v5459
        %v5461 = vmul.f32 %v5451, 1.442695
        %v5462 = vpow.pop %v5461
        %v5463 = vmul.f32 %v5452, 1.442695
        %v5464 = vpow.pop %v5463
        %v5465 = vmul.f32 %v5453, 1.442695
        %v5466 = vpow.pop %v5465
        %v5467 = vmul.f32 %v5454, 1.442695
        %v5468 = vpow.pop %v5467
        %v5469 = vmul.f32 %v5455, 1.442695
        %v5470 = vpow.pop %v5469
        %v5471 = vmul.f32 %v5456, 1.442695
        %v5472 = vpow.pop %v5471
        %v5473 = vsel %vm494, %v5458, 0.0
        %5474 = vadd.xlane.f32.xlu0 %v5473
        %v5475 = vpop.xlane.xlu0 %5474
        %v5476 = vsel %vm494, %v5460, 0.0
        %5477 = vadd.xlane.f32.xlu0 %v5476
        %v5478 = vpop.xlane.xlu0 %5477
        %v5479 = vsel %vm494, %v5462, 0.0
        %5480 = vadd.xlane.f32.xlu0 %v5479
        %v5481 = vpop.xlane.xlu0 %5480
        %v5482 = vsel %vm494, %v5464, 0.0
        %5483 = vadd.xlane.f32.xlu0 %v5482
        %v5484 = vpop.xlane.xlu0 %5483
        %v5485 = vsel %vm494, %v5466, 0.0
        %5486 = vadd.xlane.f32.xlu0 %v5485
        %v5487 = vpop.xlane.xlu0 %5486
        %v5488 = vsel %vm494, %v5468, 0.0
        %5489 = vadd.xlane.f32.xlu0 %v5488
        %v5490 = vpop.xlane.xlu0 %5489
        %v5491 = vsel %vm494, %v5470, 0.0
        %5492 = vadd.xlane.f32.xlu0 %v5491
        %v5493 = vpop.xlane.xlu0 %5492
        %v5494 = vsel %vm494, %v5472, 0.0
        %5495 = vadd.xlane.f32.xlu0 %v5494
        %v5496 = vpop.xlane.xlu0 %5495
        %v5497 = vrcp.pop %v5475
        %v5498 = vrcp.pop %v5478
        %v5499 = vrcp.pop %v5481
        %v5500 = vrcp.pop %v5484
        %v5501 = vrcp.pop %v5487
        %v5502 = vrcp.pop %v5490
        %v5503 = vrcp.pop %v5493
        %v5504 = vrcp.pop %v5496
        %v5505 = vmul.f32 %v5458, %v5497
        %v5506 = vmul.f32 %v5460, %v5498
        %v5507 = vmul.f32 %v5462, %v5499
        %v5508 = vmul.f32 %v5464, %v5500
        %v5509 = vmul.f32 %v5466, %v5501
        %v5510 = vmul.f32 %v5468, %v5502
        %v5511 = vmul.f32 %v5470, %v5503
        %v5512 = vmul.f32 %v5472, %v5504
        %5513 = vrot.lane.b32.xlu0 %v3625, 40
        %v5514 = vpop.permute.xlu0 %5513
        %v5517 = vsel %vm494, %v5505, 0
        %5519 = vmatpush.msra.mxu0 0.0
        %5520 = vmatpush.msra.mxu0 0.0
        %5521 = vmatpush.msra.mxu0 0.0
        %5522 = vmatpush.msra.mxu0 0.0
        %5523 = vmatpush.msra.mxu0 0.0
        %5524 = vmatpush.msra.mxu0 0.0
        %5525 = vmatpush.msra.mxu0 0.0
        %5526 = vmatpush.msra.mxu0 0.0
        %5527 = vmatpush.msra.mxu0 0.0
        %5528 = vmatpush.msra.mxu0 0.0
        %5529 = vmatpush.msra.mxu0 0.0
        %5530 = vmatpush.msra.mxu0 0.0
        %5531 = vmatpush.msra.mxu0 0.0
        %5532 = vmatpush.msra.mxu0 0.0
        %5533 = vmatpush.msra.mxu0 0.0
        %5534 = vmatpush.msra.mxu0 %v5514
        %5535 = vmatmul.f32.gmra.mxu0 %v5517
        %v5536 = vpop.f32.mrf.mxu0
        %v5537 = vadd.f32 0.0, %v5536
        %5538 = vdwg.mxu0
        %5539 = vrot.lane.b32.xlu0 %v3626, 40
        %v5540 = vpop.permute.xlu0 %5539
        %v5543 = vsel %vm494, %v5506, 0
        %5545 = vmatpush.msra.mxu0 0.0
        %5546 = vmatpush.msra.mxu0 0.0
        %5547 = vmatpush.msra.mxu0 0.0
        %5548 = vmatpush.msra.mxu0 0.0
        %5549 = vmatpush.msra.mxu0 0.0
        %5550 = vmatpush.msra.mxu0 0.0
        %5551 = vmatpush.msra.mxu0 0.0
        %5552 = vmatpush.msra.mxu0 0.0
        %5553 = vmatpush.msra.mxu0 0.0
        %5554 = vmatpush.msra.mxu0 0.0
        %5555 = vmatpush.msra.mxu0 0.0
        %5556 = vmatpush.msra.mxu0 0.0
        %5557 = vmatpush.msra.mxu0 0.0
        %5558 = vmatpush.msra.mxu0 0.0
        %5559 = vmatpush.msra.mxu0 0.0
        %5560 = vmatpush.msra.mxu0 %v5540
        %5561 = vmatmul.f32.gmra.mxu0 %v5543
        %v5562 = vpop.f32.mrf.mxu0
        %v5563 = vadd.f32 0.0, %v5562
        %5564 = vdwg.mxu0
        %5565 = vrot.lane.b32.xlu0 %v3627, 40
        %v5566 = vpop.permute.xlu0 %5565
        %v5569 = vsel %vm494, %v5507, 0
        %5571 = vmatpush.msra.mxu0 0.0
        %5572 = vmatpush.msra.mxu0 0.0
        %5573 = vmatpush.msra.mxu0 0.0
        %5574 = vmatpush.msra.mxu0 0.0
        %5575 = vmatpush.msra.mxu0 0.0
        %5576 = vmatpush.msra.mxu0 0.0
        %5577 = vmatpush.msra.mxu0 0.0
        %5578 = vmatpush.msra.mxu0 0.0
        %5579 = vmatpush.msra.mxu0 0.0
        %5580 = vmatpush.msra.mxu0 0.0
        %5581 = vmatpush.msra.mxu0 0.0
        %5582 = vmatpush.msra.mxu0 0.0
        %5583 = vmatpush.msra.mxu0 0.0
        %5584 = vmatpush.msra.mxu0 0.0
        %5585 = vmatpush.msra.mxu0 0.0
        %5586 = vmatpush.msra.mxu0 %v5566
        %5587 = vmatmul.f32.gmra.mxu0 %v5569
        %v5588 = vpop.f32.mrf.mxu0
        %v5589 = vadd.f32 0.0, %v5588
        %5590 = vdwg.mxu0
        %5591 = vrot.lane.b32.xlu0 %v3628, 40
        %v5592 = vpop.permute.xlu0 %5591
        %v5595 = vsel %vm494, %v5508, 0
        %5597 = vmatpush.msra.mxu0 0.0
        %5598 = vmatpush.msra.mxu0 0.0
        %5599 = vmatpush.msra.mxu0 0.0
        %5600 = vmatpush.msra.mxu0 0.0
        %5601 = vmatpush.msra.mxu0 0.0
        %5602 = vmatpush.msra.mxu0 0.0
        %5603 = vmatpush.msra.mxu0 0.0
        %5604 = vmatpush.msra.mxu0 0.0
        %5605 = vmatpush.msra.mxu0 0.0
        %5606 = vmatpush.msra.mxu0 0.0
        %5607 = vmatpush.msra.mxu0 0.0
        %5608 = vmatpush.msra.mxu0 0.0
        %5609 = vmatpush.msra.mxu0 0.0
        %5610 = vmatpush.msra.mxu0 0.0
        %5611 = vmatpush.msra.mxu0 0.0
        %5612 = vmatpush.msra.mxu0 %v5592
        %5613 = vmatmul.f32.gmra.mxu0 %v5595
        %v5614 = vpop.f32.mrf.mxu0
        %v5615 = vadd.f32 0.0, %v5614
        %5616 = vdwg.mxu0
        %5617 = vrot.lane.b32.xlu0 %v3629, 40
        %v5618 = vpop.permute.xlu0 %5617
        %v5621 = vsel %vm494, %v5509, 0
        %5623 = vmatpush.msra.mxu0 0.0
        %5624 = vmatpush.msra.mxu0 0.0
        %5625 = vmatpush.msra.mxu0 0.0
        %5626 = vmatpush.msra.mxu0 0.0
        %5627 = vmatpush.msra.mxu0 0.0
        %5628 = vmatpush.msra.mxu0 0.0
        %5629 = vmatpush.msra.mxu0 0.0
        %5630 = vmatpush.msra.mxu0 0.0
        %5631 = vmatpush.msra.mxu0 0.0
        %5632 = vmatpush.msra.mxu0 0.0
        %5633 = vmatpush.msra.mxu0 0.0
        %5634 = vmatpush.msra.mxu0 0.0
        %5635 = vmatpush.msra.mxu0 0.0
        %5636 = vmatpush.msra.mxu0 0.0
        %5637 = vmatpush.msra.mxu0 0.0
        %5638 = vmatpush.msra.mxu0 %v5618
        %5639 = vmatmul.f32.gmra.mxu0 %v5621
        %v5640 = vpop.f32.mrf.mxu0
        %v5641 = vadd.f32 0.0, %v5640
        %5642 = vdwg.mxu0
        %5643 = vrot.lane.b32.xlu0 %v3630, 40
        %v5644 = vpop.permute.xlu0 %5643
        %v5647 = vsel %vm494, %v5510, 0
        %5649 = vmatpush.msra.mxu0 0.0
        %5650 = vmatpush.msra.mxu0 0.0
        %5651 = vmatpush.msra.mxu0 0.0
        %5652 = vmatpush.msra.mxu0 0.0
        %5653 = vmatpush.msra.mxu0 0.0
        %5654 = vmatpush.msra.mxu0 0.0
        %5655 = vmatpush.msra.mxu0 0.0
        %5656 = vmatpush.msra.mxu0 0.0
        %5657 = vmatpush.msra.mxu0 0.0
        %5658 = vmatpush.msra.mxu0 0.0
        %5659 = vmatpush.msra.mxu0 0.0
        %5660 = vmatpush.msra.mxu0 0.0
        %5661 = vmatpush.msra.mxu0 0.0
        %5662 = vmatpush.msra.mxu0 0.0
        %5663 = vmatpush.msra.mxu0 0.0
        %5664 = vmatpush.msra.mxu0 %v5644
        %5665 = vmatmul.f32.gmra.mxu0 %v5647
        %v5666 = vpop.f32.mrf.mxu0
        %v5667 = vadd.f32 0.0, %v5666
        %5668 = vdwg.mxu0
        %5669 = vrot.lane.b32.xlu0 %v3631, 40
        %v5670 = vpop.permute.xlu0 %5669
        %v5673 = vsel %vm494, %v5511, 0
        %5675 = vmatpush.msra.mxu0 0.0
        %5676 = vmatpush.msra.mxu0 0.0
        %5677 = vmatpush.msra.mxu0 0.0
        %5678 = vmatpush.msra.mxu0 0.0
        %5679 = vmatpush.msra.mxu0 0.0
        %5680 = vmatpush.msra.mxu0 0.0
        %5681 = vmatpush.msra.mxu0 0.0
        %5682 = vmatpush.msra.mxu0 0.0
        %5683 = vmatpush.msra.mxu0 0.0
        %5684 = vmatpush.msra.mxu0 0.0
        %5685 = vmatpush.msra.mxu0 0.0
        %5686 = vmatpush.msra.mxu0 0.0
        %5687 = vmatpush.msra.mxu0 0.0
        %5688 = vmatpush.msra.mxu0 0.0
        %5689 = vmatpush.msra.mxu0 0.0
        %5690 = vmatpush.msra.mxu0 %v5670
        %5691 = vmatmul.f32.gmra.mxu0 %v5673
        %v5692 = vpop.f32.mrf.mxu0
        %v5693 = vadd.f32 0.0, %v5692
        %5694 = vdwg.mxu0
        %5695 = vrot.lane.b32.xlu0 %v3632, 40
        %v5696 = vpop.permute.xlu0 %5695
        %v5699 = vsel %vm494, %v5512, 0
        %5701 = vmatpush.msra.mxu0 0.0
        %5702 = vmatpush.msra.mxu0 0.0
        %5703 = vmatpush.msra.mxu0 0.0
        %5704 = vmatpush.msra.mxu0 0.0
        %5705 = vmatpush.msra.mxu0 0.0
        %5706 = vmatpush.msra.mxu0 0.0
        %5707 = vmatpush.msra.mxu0 0.0
        %5708 = vmatpush.msra.mxu0 0.0
        %5709 = vmatpush.msra.mxu0 0.0
        %5710 = vmatpush.msra.mxu0 0.0
        %5711 = vmatpush.msra.mxu0 0.0
        %5712 = vmatpush.msra.mxu0 0.0
        %5713 = vmatpush.msra.mxu0 0.0
        %5714 = vmatpush.msra.mxu0 0.0
        %5715 = vmatpush.msra.mxu0 0.0
        %5716 = vmatpush.msra.mxu0 %v5696
        %5717 = vmatmul.f32.gmra.mxu0 %v5699
        %v5718 = vpop.f32.mrf.mxu0
        %v5719 = vadd.f32 0.0, %v5718
        %5720 = vdwg.mxu0
        %5729 = vrot.lane.b32.xlu0 %v4497, 8
        %v5730 = vpop.permute.xlu0 %5729
        %5731 = vrot.lane.b32.xlu0 %v4523, 8
        %v5732 = vpop.permute.xlu0 %5731
        %5733 = vrot.lane.b32.xlu0 %v4549, 8
        %v5734 = vpop.permute.xlu0 %5733
        %5735 = vrot.lane.b32.xlu0 %v4575, 8
        %v5736 = vpop.permute.xlu0 %5735
        %5737 = vrot.lane.b32.xlu0 %v4601, 8
        %v5738 = vpop.permute.xlu0 %5737
        %5739 = vrot.lane.b32.xlu0 %v4627, 8
        %v5740 = vpop.permute.xlu0 %5739
        %5741 = vrot.lane.b32.xlu0 %v4653, 8
        %v5742 = vpop.permute.xlu0 %5741
        %5743 = vrot.lane.b32.xlu0 %v4679, 8
        %v5744 = vpop.permute.xlu0 %5743
        %5761 = vrot.lane.b32.xlu0 %v5017, 16
        %v5762 = vpop.permute.xlu0 %5761
        %5763 = vrot.lane.b32.xlu0 %v5043, 16
        %v5764 = vpop.permute.xlu0 %5763
        %5765 = vrot.lane.b32.xlu0 %v5069, 16
        %v5766 = vpop.permute.xlu0 %5765
        %5767 = vrot.lane.b32.xlu0 %v5095, 16
        %v5768 = vpop.permute.xlu0 %5767
        %5769 = vrot.lane.b32.xlu0 %v5121, 16
        %v5770 = vpop.permute.xlu0 %5769
        %5771 = vrot.lane.b32.xlu0 %v5147, 16
        %v5772 = vpop.permute.xlu0 %5771
        %5773 = vrot.lane.b32.xlu0 %v5173, 16
        %v5774 = vpop.permute.xlu0 %5773
        %5775 = vrot.lane.b32.xlu0 %v5199, 16
        %v5776 = vpop.permute.xlu0 %5775
        %5793 = vrot.lane.b32.xlu0 %v5537, 24
        %v5794 = vpop.permute.xlu0 %5793
        %5795 = vrot.lane.b32.xlu0 %v5563, 24
        %v5796 = vpop.permute.xlu0 %5795
        %5797 = vrot.lane.b32.xlu0 %v5589, 24
        %v5798 = vpop.permute.xlu0 %5797
        %5799 = vrot.lane.b32.xlu0 %v5615, 24
        %v5800 = vpop.permute.xlu0 %5799
        %5801 = vrot.lane.b32.xlu0 %v5641, 24
        %v5802 = vpop.permute.xlu0 %5801
        %5803 = vrot.lane.b32.xlu0 %v5667, 24
        %v5804 = vpop.permute.xlu0 %5803
        %5805 = vrot.lane.b32.xlu0 %v5693, 24
        %v5806 = vpop.permute.xlu0 %5805
        %5807 = vrot.lane.b32.xlu0 %v5719, 24
        %v5808 = vpop.permute.xlu0 %5807
        %v5817 = vsel %vm494, %v3970, %v5730
        %v5818 = vsel %vm494, %v3997, %v5732
        %v5819 = vsel %vm494, %v4024, %v5734
        %v5820 = vsel %vm494, %v4051, %v5736
        %v5821 = vsel %vm494, %v4078, %v5738
        %v5822 = vsel %vm494, %v4105, %v5740
        %v5823 = vsel %vm494, %v4132, %v5742
        %v5824 = vsel %vm494, %v4159, %v5744
        %v5825 = vsel %vm2684, %v5817, %v5762
        %v5826 = vsel %vm2684, %v5818, %v5764
        %v5827 = vsel %vm2684, %v5819, %v5766
        %v5828 = vsel %vm2684, %v5820, %v5768
        %v5829 = vsel %vm2684, %v5821, %v5770
        %v5830 = vsel %vm2684, %v5822, %v5772
        %v5831 = vsel %vm2684, %v5823, %v5774
        %v5832 = vsel %vm2684, %v5824, %v5776
        %v5833 = vsel %vm2693, %v5825, %v5794
        %v5834 = vsel %vm2693, %v5826, %v5796
        %v5835 = vsel %vm2693, %v5827, %v5798
        %v5836 = vsel %vm2693, %v5828, %v5800
        %v5837 = vsel %vm2693, %v5829, %v5802
        %v5838 = vsel %vm2693, %v5830, %v5804
        %v5839 = vsel %vm2693, %v5831, %v5806
        %v5840 = vsel %vm2693, %v5832, %v5808
        %s5841 = scalar_lea.vmem [#allocation5], 32
        %v5842 = vld [vmem:[%s5841] sm:$0xff]
        %v5843 = vld [vmem:[%s5841 + $0x8] sm:$0xff]
        %v5844 = vld [vmem:[%s5841 + $0x10] sm:$0xff]
        %v5845 = vld [vmem:[%s5841 + $0x18] sm:$0xff]
        %v5846 = vperm.slane %v3526, 3
        %v5848 = vsel %vm390, %v5833, 0
        %v5851 = vsel %vm390, %v5834, 0
        %v5854 = vsel %vm390, %v5835, 0
        %v5857 = vsel %vm390, %v5836, 0
        %v5860 = vsel %vm390, %v5837, 0
        %v5863 = vsel %vm390, %v5838, 0
        %v5866 = vsel %vm390, %v5839, 0
        %v5869 = vsel %vm390, %v5840, 0
        %5871 = vmatpush.msra.mxu0 0.0
        %5872 = vmatpush.msra.mxu0 0.0
        %5873 = vmatpush.msra.mxu0 0.0
        %5874 = vmatpush.msra.mxu0 0.0
        %5875 = vmatpush.msra.mxu0 0.0
        %5876 = vmatpush.msra.mxu0 0.0
        %5877 = vmatpush.msra.mxu0 0.0
        %5878 = vmatpush.msra.mxu0 0.0
        %5879 = vmatpush.msra.mxu0 0.0
        %5880 = vmatpush.msra.mxu0 0.0
        %5881 = vmatpush.msra.mxu0 0.0
        %5882 = vmatpush.msra.mxu0 0.0
        %5883 = vmatpush.msra.mxu0 %v5845
        %5884 = vmatpush.msra.mxu0 %v5844
        %5885 = vmatpush.msra.mxu0 %v5843
        %5886 = vmatpush.msra.mxu0 %v5842
        %5887 = vmatmul.f32.gmra.mxu0 %v5848
        %v5888 = vpop.f32.mrf.mxu0
        %v5889 = vadd.f32 %v5846, %v5888
        %5890 = vmatmul.f32.gmra.mxu0 %v5851
        %v5891 = vpop.f32.mrf.mxu0
        %v5892 = vadd.f32 %v5846, %v5891
        %5893 = vmatmul.f32.gmra.mxu0 %v5854
        %v5894 = vpop.f32.mrf.mxu0
        %v5895 = vadd.f32 %v5846, %v5894
        %5896 = vmatmul.f32.gmra.mxu0 %v5857
        %v5897 = vpop.f32.mrf.mxu0
        %v5898 = vadd.f32 %v5846, %v5897
        %5899 = vmatmul.f32.gmra.mxu0 %v5860
        %v5900 = vpop.f32.mrf.mxu0
        %v5901 = vadd.f32 %v5846, %v5900
        %5902 = vmatmul.f32.gmra.mxu0 %v5863
        %v5903 = vpop.f32.mrf.mxu0
        %v5904 = vadd.f32 %v5846, %v5903
        %5905 = vmatmul.f32.gmra.mxu0 %v5866
        %v5906 = vpop.f32.mrf.mxu0
        %v5907 = vadd.f32 %v5846, %v5906
        %5908 = vmatmul.f32.gmra.mxu0 %v5869
        %v5909 = vpop.f32.mrf.mxu0
        %v5910 = vadd.f32 %v5846, %v5909
        %5911 = vdwg.mxu0
        %v5912 = vadd.f32 %v3517, %v5889
        %v5913 = vadd.f32 %v3518, %v5892
        %v5914 = vadd.f32 %v3519, %v5895
        %v5915 = vadd.f32 %v3520, %v5898
        %v5916 = vadd.f32 %v3521, %v5901
        %v5917 = vadd.f32 %v3522, %v5904
        %v5918 = vadd.f32 %v3523, %v5907
        %v5919 = vadd.f32 %v3524, %v5910
        %v5920 = vsel %vm390, %v5912, 0.0
        %5921 = vadd.xlane.f32.xlu0 %v5920
        %v5922 = vpop.xlane.xlu0 %5921
        %v5923 = vsel %vm390, %v5913, 0.0
        %5924 = vadd.xlane.f32.xlu0 %v5923
        %v5925 = vpop.xlane.xlu0 %5924
        %v5926 = vsel %vm390, %v5914, 0.0
        %5927 = vadd.xlane.f32.xlu0 %v5926
        %v5928 = vpop.xlane.xlu0 %5927
        %v5929 = vsel %vm390, %v5915, 0.0
        %5930 = vadd.xlane.f32.xlu0 %v5929
        %v5931 = vpop.xlane.xlu0 %5930
        %v5932 = vsel %vm390, %v5916, 0.0
        %5933 = vadd.xlane.f32.xlu0 %v5932
        %v5934 = vpop.xlane.xlu0 %5933
        %v5935 = vsel %vm390, %v5917, 0.0
        %5936 = vadd.xlane.f32.xlu0 %v5935
        %v5937 = vpop.xlane.xlu0 %5936
        %v5938 = vsel %vm390, %v5918, 0.0
        %5939 = vadd.xlane.f32.xlu0 %v5938
        %v5940 = vpop.xlane.xlu0 %5939
        %v5941 = vsel %vm390, %v5919, 0.0
        %5942 = vadd.xlane.f32.xlu0 %v5941
        %v5943 = vpop.xlane.xlu0 %5942
        %v5944 = vmul.f32 %v5922, %v2810
        %v5945 = vmul.f32 %v5925, %v2810
        %v5946 = vmul.f32 %v5928, %v2810
        %v5947 = vmul.f32 %v5931, %v2810
        %v5948 = vmul.f32 %v5934, %v2810
        %v5949 = vmul.f32 %v5937, %v2810
        %v5950 = vmul.f32 %v5940, %v2810
        %v5951 = vmul.f32 %v5943, %v2810
        %v5952 = vsub.f32 %v5912, %v5944
        %v5953 = vsub.f32 %v5913, %v5945
        %v5954 = vsub.f32 %v5914, %v5946
        %v5955 = vsub.f32 %v5915, %v5947
        %v5956 = vsub.f32 %v5916, %v5948
        %v5957 = vsub.f32 %v5917, %v5949
        %v5958 = vsub.f32 %v5918, %v5950
        %v5959 = vsub.f32 %v5919, %v5951
        %v5960 = vmul.f32 %v5952, %v5952
        %v5961 = vmul.f32 %v5953, %v5953
        %v5962 = vmul.f32 %v5954, %v5954
        %v5963 = vmul.f32 %v5955, %v5955
        %v5964 = vmul.f32 %v5956, %v5956
        %v5965 = vmul.f32 %v5957, %v5957
        %v5966 = vmul.f32 %v5958, %v5958
        %v5967 = vmul.f32 %v5959, %v5959
        %v5968 = vsel %vm390, %v5960, 0.0
        %5969 = vadd.xlane.f32.xlu0 %v5968
        %v5970 = vpop.xlane.xlu0 %5969
        %v5971 = vsel %vm390, %v5961, 0.0
        %5972 = vadd.xlane.f32.xlu0 %v5971
        %v5973 = vpop.xlane.xlu0 %5972
        %v5974 = vsel %vm390, %v5962, 0.0
        %5975 = vadd.xlane.f32.xlu0 %v5974
        %v5976 = vpop.xlane.xlu0 %5975
        %v5977 = vsel %vm390, %v5963, 0.0
        %5978 = vadd.xlane.f32.xlu0 %v5977
        %v5979 = vpop.xlane.xlu0 %5978
        %v5980 = vsel %vm390, %v5964, 0.0
        %5981 = vadd.xlane.f32.xlu0 %v5980
        %v5982 = vpop.xlane.xlu0 %5981
        %v5983 = vsel %vm390, %v5965, 0.0
        %5984 = vadd.xlane.f32.xlu0 %v5983
        %v5985 = vpop.xlane.xlu0 %5984
        %v5986 = vsel %vm390, %v5966, 0.0
        %5987 = vadd.xlane.f32.xlu0 %v5986
        %v5988 = vpop.xlane.xlu0 %5987
        %v5989 = vsel %vm390, %v5967, 0.0
        %5990 = vadd.xlane.f32.xlu0 %v5989
        %v5991 = vpop.xlane.xlu0 %5990
        %v5992 = vmul.f32 %v5970, %v2810
        %v5993 = vmul.f32 %v5973, %v2810
        %v5994 = vmul.f32 %v5976, %v2810
        %v5995 = vmul.f32 %v5979, %v2810
        %v5996 = vmul.f32 %v5982, %v2810
        %v5997 = vmul.f32 %v5985, %v2810
        %v5998 = vmul.f32 %v5988, %v2810
        %v5999 = vmul.f32 %v5991, %v2810
        %v6000 = vadd.f32 %v5992, 1e-05
        %v6001 = vadd.f32 %v5993, 1e-05
        %v6002 = vadd.f32 %v5994, 1e-05
        %v6003 = vadd.f32 %v5995, 1e-05
        %v6004 = vadd.f32 %v5996, 1e-05
        %v6005 = vadd.f32 %v5997, 1e-05
        %v6006 = vadd.f32 %v5998, 1e-05
        %v6007 = vadd.f32 %v5999, 1e-05
        %v6008 = vrsqrt.pop %v6000
        %v6009 = vmul.f32 %v6008, %v6000
        %v6010 = vmul.f32 %v6009, %v6008
        %v6011 = vmul.f32 0.5, %v6010
        %v6012 = vsub.f32 1.5, %v6011
        %v6013 = vmul.f32 %v6008, %v6012
        %vm6014 = vweird.f32 %v6000
        %vm6015 = vweird.f32 %v6008
        %vm6016 = vmor %vm6014, %vm6015
        %v6017 = vsel %vm6016, %v6008, %v6013
        %v6018 = vrsqrt.pop %v6001
        %v6019 = vmul.f32 %v6018, %v6001
        %v6020 = vmul.f32 %v6019, %v6018
        %v6021 = vmul.f32 0.5, %v6020
        %v6022 = vsub.f32 1.5, %v6021
        %v6023 = vmul.f32 %v6018, %v6022
        %vm6024 = vweird.f32 %v6001
        %vm6025 = vweird.f32 %v6018
        %vm6026 = vmor %vm6024, %vm6025
        %v6027 = vsel %vm6026, %v6018, %v6023
        %v6028 = vrsqrt.pop %v6002
        %v6029 = vmul.f32 %v6028, %v6002
        %v6030 = vmul.f32 %v6029, %v6028
        %v6031 = vmul.f32 0.5, %v6030
        %v6032 = vsub.f32 1.5, %v6031
        %v6033 = vmul.f32 %v6028, %v6032
        %vm6034 = vweird.f32 %v6002
        %vm6035 = vweird.f32 %v6028
        %vm6036 = vmor %vm6034, %vm6035
        %v6037 = vsel %vm6036, %v6028, %v6033
        %v6038 = vrsqrt.pop %v6003
        %v6039 = vmul.f32 %v6038, %v6003
        %v6040 = vmul.f32 %v6039, %v6038
        %v6041 = vmul.f32 0.5, %v6040
        %v6042 = vsub.f32 1.5, %v6041
        %v6043 = vmul.f32 %v6038, %v6042
        %vm6044 = vweird.f32 %v6003
        %vm6045 = vweird.f32 %v6038
        %vm6046 = vmor %vm6044, %vm6045
        %v6047 = vsel %vm6046, %v6038, %v6043
        %v6048 = vrsqrt.pop %v6004
        %v6049 = vmul.f32 %v6048, %v6004
        %v6050 = vmul.f32 %v6049, %v6048
        %v6051 = vmul.f32 0.5, %v6050
        %v6052 = vsub.f32 1.5, %v6051
        %v6053 = vmul.f32 %v6048, %v6052
        %vm6054 = vweird.f32 %v6004
        %vm6055 = vweird.f32 %v6048
        %vm6056 = vmor %vm6054, %vm6055
        %v6057 = vsel %vm6056, %v6048, %v6053
        %v6058 = vrsqrt.pop %v6005
        %v6059 = vmul.f32 %v6058, %v6005
        %v6060 = vmul.f32 %v6059, %v6058
        %v6061 = vmul.f32 0.5, %v6060
        %v6062 = vsub.f32 1.5, %v6061
        %v6063 = vmul.f32 %v6058, %v6062
        %vm6064 = vweird.f32 %v6005
        %vm6065 = vweird.f32 %v6058
        %vm6066 = vmor %vm6064, %vm6065
        %v6067 = vsel %vm6066, %v6058, %v6063
        %v6068 = vrsqrt.pop %v6006
        %v6069 = vmul.f32 %v6068, %v6006
        %v6070 = vmul.f32 %v6069, %v6068
        %v6071 = vmul.f32 0.5, %v6070
        %v6072 = vsub.f32 1.5, %v6071
        %v6073 = vmul.f32 %v6068, %v6072
        %vm6074 = vweird.f32 %v6006
        %vm6075 = vweird.f32 %v6068
        %vm6076 = vmor %vm6074, %vm6075
        %v6077 = vsel %vm6076, %v6068, %v6073
        %v6078 = vrsqrt.pop %v6007
        %v6079 = vmul.f32 %v6078, %v6007
        %v6080 = vmul.f32 %v6079, %v6078
        %v6081 = vmul.f32 0.5, %v6080
        %v6082 = vsub.f32 1.5, %v6081
        %v6083 = vmul.f32 %v6078, %v6082
        %vm6084 = vweird.f32 %v6007
        %vm6085 = vweird.f32 %v6078
        %vm6086 = vmor %vm6084, %vm6085
        %v6087 = vsel %vm6086, %v6078, %v6083
        %v6088 = vmul.f32 %v5952, %v6017
        %v6089 = vmul.f32 %v5953, %v6027
        %v6090 = vmul.f32 %v5954, %v6037
        %v6091 = vmul.f32 %v5955, %v6047
        %v6092 = vmul.f32 %v5956, %v6057
        %v6093 = vmul.f32 %v5957, %v6067
        %v6094 = vmul.f32 %v5958, %v6077
        %v6095 = vmul.f32 %v5959, %v6087
        %v6096 = vperm.slane %v3526, 6
        %v6097 = vmul.f32 %v6088, %v6096
        %v6098 = vmul.f32 %v6089, %v6096
        %v6099 = vmul.f32 %v6090, %v6096
        %v6100 = vmul.f32 %v6091, %v6096
        %v6101 = vmul.f32 %v6092, %v6096
        %v6102 = vmul.f32 %v6093, %v6096
        %v6103 = vmul.f32 %v6094, %v6096
        %v6104 = vmul.f32 %v6095, %v6096
        %v6105 = vperm.slane %v3526, 7
        %v6106 = vadd.f32 %v6097, %v6105
        %v6107 = vadd.f32 %v6098, %v6105
        %v6108 = vadd.f32 %v6099, %v6105
        %v6109 = vadd.f32 %v6100, %v6105
        %v6110 = vadd.f32 %v6101, %v6105
        %v6111 = vadd.f32 %v6102, %v6105
        %v6112 = vadd.f32 %v6103, %v6105
        %v6113 = vadd.f32 %v6104, %v6105
        %s6114 = scalar_lea.vmem [#allocation7], 32
        %v6115 = vld [vmem:[%s6114] sm:$0xff]
        %v6116 = vld [vmem:[%s6114 + $0x8] sm:$0xff]
        %v6117 = vld [vmem:[%s6114 + $0x10] sm:$0xff]
        %v6118 = vld [vmem:[%s6114 + $0x18] sm:$0xff]
        %v6119 = vperm.slane %v3526, 4
        %v6121 = vsel %vm390, %v6106, 0
        %v6124 = vsel %vm390, %v6107, 0
        %v6127 = vsel %vm390, %v6108, 0
        %v6130 = vsel %vm390, %v6109, 0
        %v6133 = vsel %vm390, %v6110, 0
        %v6136 = vsel %vm390, %v6111, 0
        %v6139 = vsel %vm390, %v6112, 0
        %v6142 = vsel %vm390, %v6113, 0
        %6144 = vmatpush.msra.mxu0 0.0
        %6145 = vmatpush.msra.mxu0 0.0
        %6146 = vmatpush.msra.mxu0 0.0
        %6147 = vmatpush.msra.mxu0 0.0
        %6148 = vmatpush.msra.mxu0 0.0
        %6149 = vmatpush.msra.mxu0 0.0
        %6150 = vmatpush.msra.mxu0 0.0
        %6151 = vmatpush.msra.mxu0 0.0
        %6152 = vmatpush.msra.mxu0 0.0
        %6153 = vmatpush.msra.mxu0 0.0
        %6154 = vmatpush.msra.mxu0 0.0
        %6155 = vmatpush.msra.mxu0 0.0
        %6156 = vmatpush.msra.mxu0 %v6118
        %6157 = vmatpush.msra.mxu0 %v6117
        %6158 = vmatpush.msra.mxu0 %v6116
        %6159 = vmatpush.msra.mxu0 %v6115
        %6160 = vmatmul.f32.gmra.mxu0 %v6121
        %v6161 = vpop.f32.mrf.mxu0
        %v6162 = vadd.f32 %v6119, %v6161
        %6163 = vmatmul.f32.gmra.mxu0 %v6124
        %v6164 = vpop.f32.mrf.mxu0
        %v6165 = vadd.f32 %v6119, %v6164
        %6166 = vmatmul.f32.gmra.mxu0 %v6127
        %v6167 = vpop.f32.mrf.mxu0
        %v6168 = vadd.f32 %v6119, %v6167
        %6169 = vmatmul.f32.gmra.mxu0 %v6130
        %v6170 = vpop.f32.mrf.mxu0
        %v6171 = vadd.f32 %v6119, %v6170
        %6172 = vmatmul.f32.gmra.mxu0 %v6133
        %v6173 = vpop.f32.mrf.mxu0
        %v6174 = vadd.f32 %v6119, %v6173
        %6175 = vmatmul.f32.gmra.mxu0 %v6136
        %v6176 = vpop.f32.mrf.mxu0
        %v6177 = vadd.f32 %v6119, %v6176
        %6178 = vmatmul.f32.gmra.mxu0 %v6139
        %v6179 = vpop.f32.mrf.mxu0
        %v6180 = vadd.f32 %v6119, %v6179
        %6181 = vmatmul.f32.gmra.mxu0 %v6142
        %v6182 = vpop.f32.mrf.mxu0
        %v6183 = vadd.f32 %v6119, %v6182
        %6184 = vdwg.mxu0
        %v6185 = vmax.f32 %v6162, 0.0
        %v6186 = vmax.f32 %v6165, 0.0
        %v6187 = vmax.f32 %v6168, 0.0
        %v6188 = vmax.f32 %v6171, 0.0
        %v6189 = vmax.f32 %v6174, 0.0
        %v6190 = vmax.f32 %v6177, 0.0
        %v6191 = vmax.f32 %v6180, 0.0
        %v6192 = vmax.f32 %v6183, 0.0
        %s6193 = scalar_lea.vmem [#allocation8], 32
        %v6194 = vld [vmem:[%s6193] sm:$0xff]
        %v6195 = vld [vmem:[%s6193 + $0x8] sm:$0xff]
        %v6196 = vld [vmem:[%s6193 + $0x10] sm:$0xff]
        %v6197 = vld [vmem:[%s6193 + $0x18] sm:$0xff]
        %v6198 = vperm.slane %v3526, 5
        %v6200 = vsel %vm390, %v6185, 0
        %v6203 = vsel %vm390, %v6186, 0
        %v6206 = vsel %vm390, %v6187, 0
        %v6209 = vsel %vm390, %v6188, 0
        %v6212 = vsel %vm390, %v6189, 0
        %v6215 = vsel %vm390, %v6190, 0
        %v6218 = vsel %vm390, %v6191, 0
        %v6221 = vsel %vm390, %v6192, 0
        %6223 = vmatpush.msra.mxu0 0.0
        %6224 = vmatpush.msra.mxu0 0.0
        %6225 = vmatpush.msra.mxu0 0.0
        %6226 = vmatpush.msra.mxu0 0.0
        %6227 = vmatpush.msra.mxu0 0.0
        %6228 = vmatpush.msra.mxu0 0.0
        %6229 = vmatpush.msra.mxu0 0.0
        %6230 = vmatpush.msra.mxu0 0.0
        %6231 = vmatpush.msra.mxu0 0.0
        %6232 = vmatpush.msra.mxu0 0.0
        %6233 = vmatpush.msra.mxu0 0.0
        %6234 = vmatpush.msra.mxu0 0.0
        %6235 = vmatpush.msra.mxu0 %v6197
        %6236 = vmatpush.msra.mxu0 %v6196
        %6237 = vmatpush.msra.mxu0 %v6195
        %6238 = vmatpush.msra.mxu0 %v6194
        %6239 = vmatmul.f32.gmra.mxu0 %v6200
        %v6240 = vpop.f32.mrf.mxu0
        %v6241 = vadd.f32 %v6198, %v6240
        %6242 = vmatmul.f32.gmra.mxu0 %v6203
        %v6243 = vpop.f32.mrf.mxu0
        %v6244 = vadd.f32 %v6198, %v6243
        %6245 = vmatmul.f32.gmra.mxu0 %v6206
        %v6246 = vpop.f32.mrf.mxu0
        %v6247 = vadd.f32 %v6198, %v6246
        %6248 = vmatmul.f32.gmra.mxu0 %v6209
        %v6249 = vpop.f32.mrf.mxu0
        %v6250 = vadd.f32 %v6198, %v6249
        %6251 = vmatmul.f32.gmra.mxu0 %v6212
        %v6252 = vpop.f32.mrf.mxu0
        %v6253 = vadd.f32 %v6198, %v6252
        %6254 = vmatmul.f32.gmra.mxu0 %v6215
        %v6255 = vpop.f32.mrf.mxu0
        %v6256 = vadd.f32 %v6198, %v6255
        %6257 = vmatmul.f32.gmra.mxu0 %v6218
        %v6258 = vpop.f32.mrf.mxu0
        %v6259 = vadd.f32 %v6198, %v6258
        %6260 = vmatmul.f32.gmra.mxu0 %v6221
        %v6261 = vpop.f32.mrf.mxu0
        %v6262 = vadd.f32 %v6198, %v6261
        %6263 = vdwg.mxu0
        %v6264 = vadd.f32 %v6106, %v6241
        %v6265 = vadd.f32 %v6107, %v6244
        %v6266 = vadd.f32 %v6108, %v6247
        %v6267 = vadd.f32 %v6109, %v6250
        %v6268 = vadd.f32 %v6110, %v6253
        %v6269 = vadd.f32 %v6111, %v6256
        %v6270 = vadd.f32 %v6112, %v6259
        %v6271 = vadd.f32 %v6113, %v6262
        %v6272 = vsel %vm390, %v6264, 0.0
        %6273 = vadd.xlane.f32.xlu0 %v6272
        %v6274 = vpop.xlane.xlu0 %6273
        %v6275 = vsel %vm390, %v6265, 0.0
        %6276 = vadd.xlane.f32.xlu0 %v6275
        %v6277 = vpop.xlane.xlu0 %6276
        %v6278 = vsel %vm390, %v6266, 0.0
        %6279 = vadd.xlane.f32.xlu0 %v6278
        %v6280 = vpop.xlane.xlu0 %6279
        %v6281 = vsel %vm390, %v6267, 0.0
        %6282 = vadd.xlane.f32.xlu0 %v6281
        %v6283 = vpop.xlane.xlu0 %6282
        %v6284 = vsel %vm390, %v6268, 0.0
        %6285 = vadd.xlane.f32.xlu0 %v6284
        %v6286 = vpop.xlane.xlu0 %6285
        %v6287 = vsel %vm390, %v6269, 0.0
        %6288 = vadd.xlane.f32.xlu0 %v6287
        %v6289 = vpop.xlane.xlu0 %6288
        %v6290 = vsel %vm390, %v6270, 0.0
        %6291 = vadd.xlane.f32.xlu0 %v6290
        %v6292 = vpop.xlane.xlu0 %6291
        %v6293 = vsel %vm390, %v6271, 0.0
        %6294 = vadd.xlane.f32.xlu0 %v6293
        %v6295 = vpop.xlane.xlu0 %6294
        %v6296 = vmul.f32 %v6274, %v2810
        %v6297 = vmul.f32 %v6277, %v2810
        %v6298 = vmul.f32 %v6280, %v2810
        %v6299 = vmul.f32 %v6283, %v2810
        %v6300 = vmul.f32 %v6286, %v2810
        %v6301 = vmul.f32 %v6289, %v2810
        %v6302 = vmul.f32 %v6292, %v2810
        %v6303 = vmul.f32 %v6295, %v2810
        %v6304 = vsub.f32 %v6264, %v6296
        %v6305 = vsub.f32 %v6265, %v6297
        %v6306 = vsub.f32 %v6266, %v6298
        %v6307 = vsub.f32 %v6267, %v6299
        %v6308 = vsub.f32 %v6268, %v6300
        %v6309 = vsub.f32 %v6269, %v6301
        %v6310 = vsub.f32 %v6270, %v6302
        %v6311 = vsub.f32 %v6271, %v6303
        %v6312 = vmul.f32 %v6304, %v6304
        %v6313 = vmul.f32 %v6305, %v6305
        %v6314 = vmul.f32 %v6306, %v6306
        %v6315 = vmul.f32 %v6307, %v6307
        %v6316 = vmul.f32 %v6308, %v6308
        %v6317 = vmul.f32 %v6309, %v6309
        %v6318 = vmul.f32 %v6310, %v6310
        %v6319 = vmul.f32 %v6311, %v6311
        %v6320 = vsel %vm390, %v6312, 0.0
        %6321 = vadd.xlane.f32.xlu0 %v6320
        %v6322 = vpop.xlane.xlu0 %6321
        %v6323 = vsel %vm390, %v6313, 0.0
        %6324 = vadd.xlane.f32.xlu0 %v6323
        %v6325 = vpop.xlane.xlu0 %6324
        %v6326 = vsel %vm390, %v6314, 0.0
        %6327 = vadd.xlane.f32.xlu0 %v6326
        %v6328 = vpop.xlane.xlu0 %6327
        %v6329 = vsel %vm390, %v6315, 0.0
        %6330 = vadd.xlane.f32.xlu0 %v6329
        %v6331 = vpop.xlane.xlu0 %6330
        %v6332 = vsel %vm390, %v6316, 0.0
        %6333 = vadd.xlane.f32.xlu0 %v6332
        %v6334 = vpop.xlane.xlu0 %6333
        %v6335 = vsel %vm390, %v6317, 0.0
        %6336 = vadd.xlane.f32.xlu0 %v6335
        %v6337 = vpop.xlane.xlu0 %6336
        %v6338 = vsel %vm390, %v6318, 0.0
        %6339 = vadd.xlane.f32.xlu0 %v6338
        %v6340 = vpop.xlane.xlu0 %6339
        %v6341 = vsel %vm390, %v6319, 0.0
        %6342 = vadd.xlane.f32.xlu0 %v6341
        %v6343 = vpop.xlane.xlu0 %6342
        %v6344 = vmul.f32 %v6322, %v2810
        %v6345 = vmul.f32 %v6325, %v2810
        %v6346 = vmul.f32 %v6328, %v2810
        %v6347 = vmul.f32 %v6331, %v2810
        %v6348 = vmul.f32 %v6334, %v2810
        %v6349 = vmul.f32 %v6337, %v2810
        %v6350 = vmul.f32 %v6340, %v2810
        %v6351 = vmul.f32 %v6343, %v2810
        %v6352 = vadd.f32 %v6344, 1e-05
        %v6353 = vadd.f32 %v6345, 1e-05
        %v6354 = vadd.f32 %v6346, 1e-05
        %v6355 = vadd.f32 %v6347, 1e-05
        %v6356 = vadd.f32 %v6348, 1e-05
        %v6357 = vadd.f32 %v6349, 1e-05
        %v6358 = vadd.f32 %v6350, 1e-05
        %v6359 = vadd.f32 %v6351, 1e-05
        %v6360 = vrsqrt.pop %v6352
        %v6361 = vmul.f32 %v6360, %v6352
        %v6362 = vmul.f32 %v6361, %v6360
        %v6363 = vmul.f32 0.5, %v6362
        %v6364 = vsub.f32 1.5, %v6363
        %v6365 = vmul.f32 %v6360, %v6364
        %vm6366 = vweird.f32 %v6352
        %vm6367 = vweird.f32 %v6360
        %vm6368 = vmor %vm6366, %vm6367
        %v6369 = vsel %vm6368, %v6360, %v6365
        %v6370 = vrsqrt.pop %v6353
        %v6371 = vmul.f32 %v6370, %v6353
        %v6372 = vmul.f32 %v6371, %v6370
        %v6373 = vmul.f32 0.5, %v6372
        %v6374 = vsub.f32 1.5, %v6373
        %v6375 = vmul.f32 %v6370, %v6374
        %vm6376 = vweird.f32 %v6353
        %vm6377 = vweird.f32 %v6370
        %vm6378 = vmor %vm6376, %vm6377
        %v6379 = vsel %vm6378, %v6370, %v6375
        %v6380 = vrsqrt.pop %v6354
        %v6381 = vmul.f32 %v6380, %v6354
        %v6382 = vmul.f32 %v6381, %v6380
        %v6383 = vmul.f32 0.5, %v6382
        %v6384 = vsub.f32 1.5, %v6383
        %v6385 = vmul.f32 %v6380, %v6384
        %vm6386 = vweird.f32 %v6354
        %vm6387 = vweird.f32 %v6380
        %vm6388 = vmor %vm6386, %vm6387
        %v6389 = vsel %vm6388, %v6380, %v6385
        %v6390 = vrsqrt.pop %v6355
        %v6391 = vmul.f32 %v6390, %v6355
        %v6392 = vmul.f32 %v6391, %v6390
        %v6393 = vmul.f32 0.5, %v6392
        %v6394 = vsub.f32 1.5, %v6393
        %v6395 = vmul.f32 %v6390, %v6394
        %vm6396 = vweird.f32 %v6355
        %vm6397 = vweird.f32 %v6390
        %vm6398 = vmor %vm6396, %vm6397
        %v6399 = vsel %vm6398, %v6390, %v6395
        %v6400 = vrsqrt.pop %v6356
        %v6401 = vmul.f32 %v6400, %v6356
        %v6402 = vmul.f32 %v6401, %v6400
        %v6403 = vmul.f32 0.5, %v6402
        %v6404 = vsub.f32 1.5, %v6403
        %v6405 = vmul.f32 %v6400, %v6404
        %vm6406 = vweird.f32 %v6356
        %vm6407 = vweird.f32 %v6400
        %vm6408 = vmor %vm6406, %vm6407
        %v6409 = vsel %vm6408, %v6400, %v6405
        %v6410 = vrsqrt.pop %v6357
        %v6411 = vmul.f32 %v6410, %v6357
        %v6412 = vmul.f32 %v6411, %v6410
        %v6413 = vmul.f32 0.5, %v6412
        %v6414 = vsub.f32 1.5, %v6413
        %v6415 = vmul.f32 %v6410, %v6414
        %vm6416 = vweird.f32 %v6357
        %vm6417 = vweird.f32 %v6410
        %vm6418 = vmor %vm6416, %vm6417
        %v6419 = vsel %vm6418, %v6410, %v6415
        %v6420 = vrsqrt.pop %v6358
        %v6421 = vmul.f32 %v6420, %v6358
        %v6422 = vmul.f32 %v6421, %v6420
        %v6423 = vmul.f32 0.5, %v6422
        %v6424 = vsub.f32 1.5, %v6423
        %v6425 = vmul.f32 %v6420, %v6424
        %vm6426 = vweird.f32 %v6358
        %vm6427 = vweird.f32 %v6420
        %vm6428 = vmor %vm6426, %vm6427
        %v6429 = vsel %vm6428, %v6420, %v6425
        %v6430 = vrsqrt.pop %v6359
        %v6431 = vmul.f32 %v6430, %v6359
        %v6432 = vmul.f32 %v6431, %v6430
        %v6433 = vmul.f32 0.5, %v6432
        %v6434 = vsub.f32 1.5, %v6433
        %v6435 = vmul.f32 %v6430, %v6434
        %vm6436 = vweird.f32 %v6359
        %vm6437 = vweird.f32 %v6430
        %vm6438 = vmor %vm6436, %vm6437
        %v6439 = vsel %vm6438, %v6430, %v6435
        %v6440 = vmul.f32 %v6304, %v6369
        %v6441 = vmul.f32 %v6305, %v6379
        %v6442 = vmul.f32 %v6306, %v6389
        %v6443 = vmul.f32 %v6307, %v6399
        %v6444 = vmul.f32 %v6308, %v6409
        %v6445 = vmul.f32 %v6309, %v6419
        %v6446 = vmul.f32 %v6310, %v6429
        %v6447 = vmul.f32 %v6311, %v6439
        %v6448 = vperm.slane %v3527, 0
        %v6449 = vmul.f32 %v6440, %v6448
        %v6450 = vmul.f32 %v6441, %v6448
        %v6451 = vmul.f32 %v6442, %v6448
        %v6452 = vmul.f32 %v6443, %v6448
        %v6453 = vmul.f32 %v6444, %v6448
        %v6454 = vmul.f32 %v6445, %v6448
        %v6455 = vmul.f32 %v6446, %v6448
        %v6456 = vmul.f32 %v6447, %v6448
        %v6457 = vperm.slane %v3527, 1
        %v6458 = vadd.f32 %v6449, %v6457
        %v6459 = vadd.f32 %v6450, %v6457
        %v6460 = vadd.f32 %v6451, %v6457
        %v6461 = vadd.f32 %v6452, %v6457
        %v6462 = vadd.f32 %v6453, %v6457
        %v6463 = vadd.f32 %v6454, %v6457
        %v6464 = vadd.f32 %v6455, %v6457
        %v6465 = vadd.f32 %v6456, %v6457
        %v6466 = vsel %vm390, %v6458, 0.0
        %6467 = vadd.xlane.f32.xlu0 %v6466
        %v6468 = vpop.xlane.xlu0 %6467
        %v6469 = vsel %vm390, %v6459, 0.0
        %6470 = vadd.xlane.f32.xlu0 %v6469
        %v6471 = vpop.xlane.xlu0 %6470
        %v6472 = vsel %vm390, %v6460, 0.0
        %6473 = vadd.xlane.f32.xlu0 %v6472
        %v6474 = vpop.xlane.xlu0 %6473
        %v6475 = vsel %vm390, %v6461, 0.0
        %6476 = vadd.xlane.f32.xlu0 %v6475
        %v6477 = vpop.xlane.xlu0 %6476
        %v6478 = vsel %vm390, %v6462, 0.0
        %6479 = vadd.xlane.f32.xlu0 %v6478
        %v6480 = vpop.xlane.xlu0 %6479
        %v6481 = vsel %vm390, %v6463, 0.0
        %6482 = vadd.xlane.f32.xlu0 %v6481
        %v6483 = vpop.xlane.xlu0 %6482
        %v6484 = vsel %vm390, %v6464, 0.0
        %6485 = vadd.xlane.f32.xlu0 %v6484
        %v6486 = vpop.xlane.xlu0 %6485
        %v6487 = vsel %vm390, %v6465, 0.0
        %6488 = vadd.xlane.f32.xlu0 %v6487
        %v6489 = vpop.xlane.xlu0 %6488
        %v6490 = vmul.f32 %v6468, %v2810
        %v6491 = vmul.f32 %v6471, %v2810
        %v6492 = vmul.f32 %v6474, %v2810
        %v6493 = vmul.f32 %v6477, %v2810
        %v6494 = vmul.f32 %v6480, %v2810
        %v6495 = vmul.f32 %v6483, %v2810
        %v6496 = vmul.f32 %v6486, %v2810
        %v6497 = vmul.f32 %v6489, %v2810
        %v6498 = vsub.f32 %v6458, %v6490
        %v6499 = vsub.f32 %v6459, %v6491
        %v6500 = vsub.f32 %v6460, %v6492
        %v6501 = vsub.f32 %v6461, %v6493
        %v6502 = vsub.f32 %v6462, %v6494
        %v6503 = vsub.f32 %v6463, %v6495
        %v6504 = vsub.f32 %v6464, %v6496
        %v6505 = vsub.f32 %v6465, %v6497
        %v6506 = vmul.f32 %v6498, %v6498
        %v6507 = vmul.f32 %v6499, %v6499
        %v6508 = vmul.f32 %v6500, %v6500
        %v6509 = vmul.f32 %v6501, %v6501
        %v6510 = vmul.f32 %v6502, %v6502
        %v6511 = vmul.f32 %v6503, %v6503
        %v6512 = vmul.f32 %v6504, %v6504
        %v6513 = vmul.f32 %v6505, %v6505
        %v6514 = vsel %vm390, %v6506, 0.0
        %6515 = vadd.xlane.f32.xlu0 %v6514
        %v6516 = vpop.xlane.xlu0 %6515
        %v6517 = vsel %vm390, %v6507, 0.0
        %6518 = vadd.xlane.f32.xlu0 %v6517
        %v6519 = vpop.xlane.xlu0 %6518
        %v6520 = vsel %vm390, %v6508, 0.0
        %6521 = vadd.xlane.f32.xlu0 %v6520
        %v6522 = vpop.xlane.xlu0 %6521
        %v6523 = vsel %vm390, %v6509, 0.0
        %6524 = vadd.xlane.f32.xlu0 %v6523
        %v6525 = vpop.xlane.xlu0 %6524
        %v6526 = vsel %vm390, %v6510, 0.0
        %6527 = vadd.xlane.f32.xlu0 %v6526
        %v6528 = vpop.xlane.xlu0 %6527
        %v6529 = vsel %vm390, %v6511, 0.0
        %6530 = vadd.xlane.f32.xlu0 %v6529
        %v6531 = vpop.xlane.xlu0 %6530
        %v6532 = vsel %vm390, %v6512, 0.0
        %6533 = vadd.xlane.f32.xlu0 %v6532
        %v6534 = vpop.xlane.xlu0 %6533
        %v6535 = vsel %vm390, %v6513, 0.0
        %6536 = vadd.xlane.f32.xlu0 %v6535
        %v6537 = vpop.xlane.xlu0 %6536
        %v6538 = vmul.f32 %v6516, %v2810
        %v6539 = vmul.f32 %v6519, %v2810
        %v6540 = vmul.f32 %v6522, %v2810
        %v6541 = vmul.f32 %v6525, %v2810
        %v6542 = vmul.f32 %v6528, %v2810
        %v6543 = vmul.f32 %v6531, %v2810
        %v6544 = vmul.f32 %v6534, %v2810
        %v6545 = vmul.f32 %v6537, %v2810
        %v6546 = vadd.f32 %v6538, 1e-05
        %v6547 = vadd.f32 %v6539, 1e-05
        %v6548 = vadd.f32 %v6540, 1e-05
        %v6549 = vadd.f32 %v6541, 1e-05
        %v6550 = vadd.f32 %v6542, 1e-05
        %v6551 = vadd.f32 %v6543, 1e-05
        %v6552 = vadd.f32 %v6544, 1e-05
        %v6553 = vadd.f32 %v6545, 1e-05
        %v6554 = vrsqrt.pop %v6546
        %v6555 = vmul.f32 %v6554, %v6546
        %v6556 = vmul.f32 %v6555, %v6554
        %v6557 = vmul.f32 0.5, %v6556
        %v6558 = vsub.f32 1.5, %v6557
        %v6559 = vmul.f32 %v6554, %v6558
        %vm6560 = vweird.f32 %v6546
        %vm6561 = vweird.f32 %v6554
        %vm6562 = vmor %vm6560, %vm6561
        %v6563 = vsel %vm6562, %v6554, %v6559
        %v6564 = vrsqrt.pop %v6547
        %v6565 = vmul.f32 %v6564, %v6547
        %v6566 = vmul.f32 %v6565, %v6564
        %v6567 = vmul.f32 0.5, %v6566
        %v6568 = vsub.f32 1.5, %v6567
        %v6569 = vmul.f32 %v6564, %v6568
        %vm6570 = vweird.f32 %v6547
        %vm6571 = vweird.f32 %v6564
        %vm6572 = vmor %vm6570, %vm6571
        %v6573 = vsel %vm6572, %v6564, %v6569
        %v6574 = vrsqrt.pop %v6548
        %v6575 = vmul.f32 %v6574, %v6548
        %v6576 = vmul.f32 %v6575, %v6574
        %v6577 = vmul.f32 0.5, %v6576
        %v6578 = vsub.f32 1.5, %v6577
        %v6579 = vmul.f32 %v6574, %v6578
        %vm6580 = vweird.f32 %v6548
        %vm6581 = vweird.f32 %v6574
        %vm6582 = vmor %vm6580, %vm6581
        %v6583 = vsel %vm6582, %v6574, %v6579
        %v6584 = vrsqrt.pop %v6549
        %v6585 = vmul.f32 %v6584, %v6549
        %v6586 = vmul.f32 %v6585, %v6584
        %v6587 = vmul.f32 0.5, %v6586
        %v6588 = vsub.f32 1.5, %v6587
        %v6589 = vmul.f32 %v6584, %v6588
        %vm6590 = vweird.f32 %v6549
        %vm6591 = vweird.f32 %v6584
        %vm6592 = vmor %vm6590, %vm6591
        %v6593 = vsel %vm6592, %v6584, %v6589
        %v6594 = vrsqrt.pop %v6550
        %v6595 = vmul.f32 %v6594, %v6550
        %v6596 = vmul.f32 %v6595, %v6594
        %v6597 = vmul.f32 0.5, %v6596
        %v6598 = vsub.f32 1.5, %v6597
        %v6599 = vmul.f32 %v6594, %v6598
        %vm6600 = vweird.f32 %v6550
        %vm6601 = vweird.f32 %v6594
        %vm6602 = vmor %vm6600, %vm6601
        %v6603 = vsel %vm6602, %v6594, %v6599
        %v6604 = vrsqrt.pop %v6551
        %v6605 = vmul.f32 %v6604, %v6551
        %v6606 = vmul.f32 %v6605, %v6604
        %v6607 = vmul.f32 0.5, %v6606
        %v6608 = vsub.f32 1.5, %v6607
        %v6609 = vmul.f32 %v6604, %v6608
        %vm6610 = vweird.f32 %v6551
        %vm6611 = vweird.f32 %v6604
        %vm6612 = vmor %vm6610, %vm6611
        %v6613 = vsel %vm6612, %v6604, %v6609
        %v6614 = vrsqrt.pop %v6552
        %v6615 = vmul.f32 %v6614, %v6552
        %v6616 = vmul.f32 %v6615, %v6614
        %v6617 = vmul.f32 0.5, %v6616
        %v6618 = vsub.f32 1.5, %v6617
        %v6619 = vmul.f32 %v6614, %v6618
        %vm6620 = vweird.f32 %v6552
        %vm6621 = vweird.f32 %v6614
        %vm6622 = vmor %vm6620, %vm6621
        %v6623 = vsel %vm6622, %v6614, %v6619
        %v6624 = vrsqrt.pop %v6553
        %v6625 = vmul.f32 %v6624, %v6553
        %v6626 = vmul.f32 %v6625, %v6624
        %v6627 = vmul.f32 0.5, %v6626
        %v6628 = vsub.f32 1.5, %v6627
        %v6629 = vmul.f32 %v6624, %v6628
        %vm6630 = vweird.f32 %v6553
        %vm6631 = vweird.f32 %v6624
        %vm6632 = vmor %vm6630, %vm6631
        %v6633 = vsel %vm6632, %v6624, %v6629
        %v6634 = vmul.f32 %v6498, %v6563
        %v6635 = vmul.f32 %v6499, %v6573
        %v6636 = vmul.f32 %v6500, %v6583
        %v6637 = vmul.f32 %v6501, %v6593
        %v6638 = vmul.f32 %v6502, %v6603
        %v6639 = vmul.f32 %v6503, %v6613
        %v6640 = vmul.f32 %v6504, %v6623
        %v6641 = vmul.f32 %v6505, %v6633
        %v6642 = vperm.slane %v3527, 2
        %v6643 = vmul.f32 %v6634, %v6642
        %v6644 = vmul.f32 %v6635, %v6642
        %v6645 = vmul.f32 %v6636, %v6642
        %v6646 = vmul.f32 %v6637, %v6642
        %v6647 = vmul.f32 %v6638, %v6642
        %v6648 = vmul.f32 %v6639, %v6642
        %v6649 = vmul.f32 %v6640, %v6642
        %v6650 = vmul.f32 %v6641, %v6642
        %v6651 = vperm.slane %v3527, 3
        %v6652 = vadd.f32 %v6643, %v6651
        %v6653 = vadd.f32 %v6644, %v6651
        %v6654 = vadd.f32 %v6645, %v6651
        %v6655 = vadd.f32 %v6646, %v6651
        %v6656 = vadd.f32 %v6647, %v6651
        %v6657 = vadd.f32 %v6648, %v6651
        %v6658 = vadd.f32 %v6649, %v6651
        %v6659 = vadd.f32 %v6650, %v6651
        %v6660 = vlaneseq
        %v6661 = vshrl.u32 %v6660, 7
        %vm6662 = vcmp.lt.s32.totalorder %v6661, 5
        %v6663 = vsel %vm6662, 1, 0
        %v6664 = vcvt.s32.f32 %v6663
        %v6665 = vmul.f32 %v6652, %v6664
        %v6666 = vmul.f32 %v6653, %v6664
        %v6667 = vmul.f32 %v6654, %v6664
        %v6668 = vmul.f32 %v6655, %v6664
        %v6669 = vmul.f32 %v6656, %v6664
        %v6670 = vmul.f32 %v6657, %v6664
        %v6671 = vmul.f32 %v6658, %v6664
        %v6672 = vmul.f32 %v6659, %v6664
        %v6673 = vsel %vm390, %v6665, 0.0
        %v6674 = vrot.slane %v6673, 4
        %v6675 = vadd.f32 %v6673, %v6674
        %v6676 = vrot.slane %v6675, 2
        %v6677 = vadd.f32 %v6675, %v6676
        %v6678 = vrot.slane %v6677, 1
        %v6679 = vadd.f32 %v6677, %v6678
        %v6680 = vsel %vm390, %v6666, 0.0
        %v6681 = vrot.slane %v6680, 4
        %v6682 = vadd.f32 %v6680, %v6681
        %v6683 = vrot.slane %v6682, 2
        %v6684 = vadd.f32 %v6682, %v6683
        %v6685 = vrot.slane %v6684, 1
        %v6686 = vadd.f32 %v6684, %v6685
        %v6687 = vsel %vm390, %v6667, 0.0
        %v6688 = vrot.slane %v6687, 4
        %v6689 = vadd.f32 %v6687, %v6688
        %v6690 = vrot.slane %v6689, 2
        %v6691 = vadd.f32 %v6689, %v6690
        %v6692 = vrot.slane %v6691, 1
        %v6693 = vadd.f32 %v6691, %v6692
        %v6694 = vsel %vm390, %v6668, 0.0
        %v6695 = vrot.slane %v6694, 4
        %v6696 = vadd.f32 %v6694, %v6695
        %v6697 = vrot.slane %v6696, 2
        %v6698 = vadd.f32 %v6696, %v6697
        %v6699 = vrot.slane %v6698, 1
        %v6700 = vadd.f32 %v6698, %v6699
        %v6701 = vsel %vm390, %v6669, 0.0
        %v6702 = vrot.slane %v6701, 4
        %v6703 = vadd.f32 %v6701, %v6702
        %v6704 = vrot.slane %v6703, 2
        %v6705 = vadd.f32 %v6703, %v6704
        %v6706 = vrot.slane %v6705, 1
        %v6707 = vadd.f32 %v6705, %v6706
        %v6708 = vsel %vm390, %v6670, 0.0
        %v6709 = vrot.slane %v6708, 4
        %v6710 = vadd.f32 %v6708, %v6709
        %v6711 = vrot.slane %v6710, 2
        %v6712 = vadd.f32 %v6710, %v6711
        %v6713 = vrot.slane %v6712, 1
        %v6714 = vadd.f32 %v6712, %v6713
        %v6715 = vsel %vm390, %v6671, 0.0
        %v6716 = vrot.slane %v6715, 4
        %v6717 = vadd.f32 %v6715, %v6716
        %v6718 = vrot.slane %v6717, 2
        %v6719 = vadd.f32 %v6717, %v6718
        %v6720 = vrot.slane %v6719, 1
        %v6721 = vadd.f32 %v6719, %v6720
        %v6722 = vsel %vm390, %v6672, 0.0
        %v6723 = vrot.slane %v6722, 4
        %v6724 = vadd.f32 %v6722, %v6723
        %v6725 = vrot.slane %v6724, 2
        %v6726 = vadd.f32 %v6724, %v6725
        %v6727 = vrot.slane %v6726, 1
        %v6728 = vadd.f32 %v6726, %v6727
        %v6729 = vld [vmem:[%s370] sm:$0x7]
        %v6730 = vld [vmem:[%s370 + $0x4] sm:$0x7]
        %v6731 = vld [vmem:[%s370 + $0x8] sm:$0x7]
        %v6732 = vld [vmem:[%s370 + $0xc] sm:$0x7]
        %v6733 = vld [vmem:[%s370 + $0x10] sm:$0x7]
        %v6734 = vld [vmem:[%s370 + $0x14] sm:$0x7]
        %v6735 = vld [vmem:[%s370 + $0x18] sm:$0x7]
        %v6736 = vld [vmem:[%s370 + $0x1c] sm:$0x7]
        %vm6737 = vcmask 256000
        %v6738 = vsel %vm6737, %v6729, 0.0
        %v6739 = vrot.slane %v6738, 4
        %v6740 = vadd.f32 %v6738, %v6739
        %v6741 = vrot.slane %v6740, 2
        %v6742 = vadd.f32 %v6740, %v6741
        %v6743 = vrot.slane %v6742, 1
        %v6744 = vadd.f32 %v6742, %v6743
        %v6745 = vsel %vm6737, %v6730, 0.0
        %v6746 = vrot.slane %v6745, 4
        %v6747 = vadd.f32 %v6745, %v6746
        %v6748 = vrot.slane %v6747, 2
        %v6749 = vadd.f32 %v6747, %v6748
        %v6750 = vrot.slane %v6749, 1
        %v6751 = vadd.f32 %v6749, %v6750
        %v6752 = vsel %vm6737, %v6731, 0.0
        %v6753 = vrot.slane %v6752, 4
        %v6754 = vadd.f32 %v6752, %v6753
        %v6755 = vrot.slane %v6754, 2
        %v6756 = vadd.f32 %v6754, %v6755
        %v6757 = vrot.slane %v6756, 1
        %v6758 = vadd.f32 %v6756, %v6757
        %v6759 = vsel %vm6737, %v6732, 0.0
        %v6760 = vrot.slane %v6759, 4
        %v6761 = vadd.f32 %v6759, %v6760
        %v6762 = vrot.slane %v6761, 2
        %v6763 = vadd.f32 %v6761, %v6762
        %v6764 = vrot.slane %v6763, 1
        %v6765 = vadd.f32 %v6763, %v6764
        %v6766 = vsel %vm6737, %v6733, 0.0
        %v6767 = vrot.slane %v6766, 4
        %v6768 = vadd.f32 %v6766, %v6767
        %v6769 = vrot.slane %v6768, 2
        %v6770 = vadd.f32 %v6768, %v6769
        %v6771 = vrot.slane %v6770, 1
        %v6772 = vadd.f32 %v6770, %v6771
        %v6773 = vsel %vm6737, %v6734, 0.0
        %v6774 = vrot.slane %v6773, 4
        %v6775 = vadd.f32 %v6773, %v6774
        %v6776 = vrot.slane %v6775, 2
        %v6777 = vadd.f32 %v6775, %v6776
        %v6778 = vrot.slane %v6777, 1
        %v6779 = vadd.f32 %v6777, %v6778
        %v6780 = vsel %vm6737, %v6735, 0.0
        %v6781 = vrot.slane %v6780, 4
        %v6782 = vadd.f32 %v6780, %v6781
        %v6783 = vrot.slane %v6782, 2
        %v6784 = vadd.f32 %v6782, %v6783
        %v6785 = vrot.slane %v6784, 1
        %v6786 = vadd.f32 %v6784, %v6785
        %v6787 = vsel %vm6737, %v6736, 0.0
        %v6788 = vrot.slane %v6787, 4
        %v6789 = vadd.f32 %v6787, %v6788
        %v6790 = vrot.slane %v6789, 2
        %v6791 = vadd.f32 %v6789, %v6790
        %v6792 = vrot.slane %v6791, 1
        %v6793 = vadd.f32 %v6791, %v6792
        %v6794 = vadd.f32 %v6679, %v6744
        %v6795 = vadd.f32 %v6686, %v6751
        %v6796 = vadd.f32 %v6693, %v6758
        %v6797 = vadd.f32 %v6700, %v6765
        %v6798 = vadd.f32 %v6707, %v6772
        %v6799 = vadd.f32 %v6714, %v6779
        %v6800 = vadd.f32 %v6721, %v6786
        %v6801 = vadd.f32 %v6728, %v6793
        %v6802 = vmul.f32 %v6794, 0.125
        %v6803 = vmul.f32 %v6795, 0.125
        %v6804 = vmul.f32 %v6796, 0.125
        %v6805 = vmul.f32 %v6797, 0.125
        %v6806 = vmul.f32 %v6798, 0.125
        %v6807 = vmul.f32 %v6799, 0.125
        %v6808 = vmul.f32 %v6800, 0.125
        %v6809 = vmul.f32 %v6801, 0.125
        %vm6818 = vcmask 1041409
        %v6819 = vsel %vm6818, %v6803, %v6802
        %vm6820 = vcmask 1042434
        %v6821 = vsel %vm6820, %v6804, %v6819
        %vm6822 = vcmask 1043459
        %v6823 = vsel %vm6822, %v6805, %v6821
        %vm6824 = vcmask 1044484
        %v6825 = vsel %vm6824, %v6806, %v6823
        %vm6826 = vcmask 1045509
        %v6827 = vsel %vm6826, %v6807, %v6825
        %vm6828 = vcmask 1046534
        %v6829 = vsel %vm6828, %v6808, %v6827
        %vm6830 = vcmask 1047559
        %v6831 = vsel %vm6830, %v6809, %v6829
        %6833 = vst.msk [vmem:[%s364] sm:$0xff] %vm390, %v6831
        %s6834 = sand.u32 %s191, 1
        %s6835 = scalar_lea.sflag [#allocation4], %s6834
        %s6836 = sand.u32 %s191, 1
        %s6837 = smul.addr %s6836, 8
        %s6838 = scalar_lea.vmem [#allocation10], %s6837
        // Predicated region
        $region65: #{tpu_custom_call.1} parent=47 // pred_check
          %p6839 = pneg %p201
        $region66: #{tpu_custom_call.1} parent=47 // pred_check_branch
          %6841 = sbr.rel (%p6839) target = $region68
        $region67: #{tpu_custom_call.1} parent=47 // pred_region
          %6843 = vsyncadd %s6835, 0
          %s6844 = smul.addr %s26, 8
          %s6845 = scalar_lea.hbm %s7, %s6844
          %s6847 = sshll.u32 %s6838, 4
          %s6848 = int_to_ptr.vmem [resolvable:$true] %s6847
          %s6849 = sshll.u32 %s6845, 4
          %s6850 = int_to_ptr.hbm [resolvable:$true] %s6849
          %6852 = dma.vmem_to_hbm [thread:$0]  %s6848, 128, %s6850, %s6835
        $region68: #{tpu_custom_call.1} parent=47 // pred_fallthru
          _
      $region48: #{tpu_custom_call.1} parent=5 // pred_fallthru
        _
      %p6853 = scmp.le.s32.totalorder 2, %s21
      // Predicated region
      $region69: #{tpu_custom_call.1} parent=5 // pred_check
        %p6854 = pneg %p6853
      $region70: #{tpu_custom_call.1} parent=5 // pred_check_branch
        %6856 = sbr.rel (%p6854) target = $region72
      $region71: #{tpu_custom_call.1} parent=5 // pred_region
        %s6857 = ssub.s32 %s21, 2
        // Predicated region
        $region73: #{tpu_custom_call.1} parent=71 // pred_check
          %p6858 = pneg %p207
        $region74: #{tpu_custom_call.1} parent=71 // pred_check_branch
          %6860 = sbr.rel (%p6858) target = $region76
        $region75: #{tpu_custom_call.1} parent=71 // pred_region
          %s6861 = sand.u32 %s192, 1
          %s6862 = scalar_lea.sflag [#allocation4], %s6861
          %s6863 = sand.u32 %s192, 1
          %s6864 = smul.addr %s6863, 8
          %s6865 = scalar_lea.vmem [#allocation10], %s6864
          %6867 = dma.done %s6862, 128
        $region76: #{tpu_custom_call.1} parent=71 // pred_fallthru
          _
      $region72: #{tpu_custom_call.1} parent=5 // pred_fallthru
        _
    $region6: #{tpu_custom_call.1} parent=1 // loop_footer
      %s25 = sadd.s32 1, %s21
    $region7: #{tpu_custom_call.1} parent=1 // loop_footer_branch
      %20 = sbr.rel target = $region3
    $region8: #{tpu_custom_call.1} parent=1 // loop_exit
      _
    %6868 = vsyncpa [#allocation3], 1
    %s6869 = scalar_lea.sflag [#allocation3], 1
    %6870 = vsyncpa %s6869, 1
    %6871 = vsyncpa [#allocation6], 1
    %6872 = vsyncpa [#allocation9], 1
    %6873 = vsyncpa [#allocation4], 1
    %s6874 = scalar_lea.sflag [#allocation4], 1
    %6875 = vsyncpa %s6874, 1

</llo_original>
